<compile_context>
chip_gen: v7x
topology: tpu7x:2x2x1
jax: 0.10.0
libtpu: 0.0.40
codegen_flags: <defaults>
</compile_context>

<pallas_src>
import functools

import jax
import jax.numpy as jnp
from jax import lax
from jax.experimental import pallas as pl
from jax.experimental.pallas import tpu as pltpu

KSIZE = 3
BN_EPS = 1e-5
LEAKY_SLOPE = 0.01            # torch.nn.LeakyReLU default negative_slope
SOFTPLUS_EPS = 1e-6
VMEM_LIMIT_BYTES = 32 * 1024 * 1024   # fits v5e/v6e/v7x scoped-VMEM budgets


# ---------------------------------------------------------------------------
# Fused ConvBlock kernel: 3x3 'same' conv + BatchNorm(batch stats) + LeakyReLU
# (or conv + bias for the decoder's final plain Conv2d), whole batch per call,
# channel-planar (C, N*H*W) layout.
# ---------------------------------------------------------------------------
def _shifted_flat(x, off, nhw):
    """tap[:, l] = x[:, l + off], zero-filled past the array ends.

    Explicit slice + lane-concat (instead of a circular roll) so the shift
    direction is unambiguous; per-row / per-image boundary lanes are masked by
    the caller."""
    if off == 0:
        return x
    cin = x.shape[0]
    if off > 0:
        pad = jnp.zeros((cin, off), x.dtype)
        return jnp.concatenate([x[:, off:], pad], axis=1)
    pad = jnp.zeros((cin, -off), x.dtype)
    return jnp.concatenate([pad, x[:, :nhw + off]], axis=1)


def _make_fused_conv_kernel(n_im, h, w, cin, cout, mode):
    """mode='bn_act': conv + BatchNorm2d(training stats) + LeakyReLU.
       mode='bias'  : plain conv + bias (decoder's final layer)."""
    nhw = n_im * h * w

    def _conv(x_ref, w_ref):
        x = x_ref[...]                                       # (Cin, NHW) f32
        # Per-lane (i*W + j) and j indices (H, W are powers of two).
        lane = lax.broadcasted_iota(jnp.int32, (cin, nhw), 1)
        pos = jnp.bitwise_and(lane, h * w - 1)               # i*W + j
        col = jnp.bitwise_and(lane, w - 1)                   # j

        acc = jnp.zeros((cout, nhw), jnp.float32)
        for kh in range(KSIZE):
            dh = kh - 1
            for kw in range(KSIZE):
                dw = kw - 1
                off = dh * w + dw
                tap = _shifted_flat(x, off, nhw)
                # Output-pixel validity: 0 <= i+dh < H and 0 <= j+dw < W.
                conds = []
                if dh < 0:
                    conds.append(pos >= w)
                elif dh > 0:
                    conds.append(pos < (h - 1) * w)
                if dw < 0:
                    conds.append(col >= 1)
                elif dw > 0:
                    conds.append(col < w - 1)
                if conds:
                    m = conds[0]
                    for c in conds[1:]:
                        m = jnp.logical_and(m, c)
                    tap = jnp.where(m, tap, 0.0)
                # 9 tiny accumulated MXU matmuls: (Cout,Cin) @ (Cin,NHW).
                acc = acc + jnp.dot(w_ref[kh * KSIZE + kw], tap,
                                    preferred_element_type=jnp.float32)
        return acc

    if mode == "bn_act":
        def kernel(x_ref, w_ref, gamma_ref, beta_ref, o_ref):
            acc = _conv(x_ref, w_ref)
            # BN batch statistics: per-channel reduction along the lane dim,
            # kept entirely on-chip (never stored to HBM).
            inv_cnt = 1.0 / float(nhw)
            mean = jnp.sum(acc, axis=1, keepdims=True) * inv_cnt      # (Cout,1)
            ex2 = jnp.sum(acc * acc, axis=1, keepdims=True) * inv_cnt
            var = jnp.maximum(ex2 - mean * mean, 0.0)   # biased, training-mode
            scale = gamma_ref[...] * lax.rsqrt(var + BN_EPS)
            shift = beta_ref[...] - mean * scale
            z = acc * scale + shift
            o_ref[...] = jnp.where(z >= 0, z, LEAKY_SLOPE * z)
    else:
        def kernel(x_ref, w_ref, b_ref, o_ref):
            acc = _conv(x_ref, w_ref)
            o_ref[...] = acc + b_ref[...]

    return kernel


def _fused_conv_call(x2d, wk, params, *, n_im, h, w, mode):
    cin, nhw = x2d.shape
    cout = wk.shape[1]
    assert h & (h - 1) == 0 and w & (w - 1) == 0, "H/W must be powers of two"
    assert nhw == n_im * h * w

    vmem = pl.BlockSpec(memory_space=pltpu.MemorySpace.VMEM)
    args = (x2d, wk) + tuple(params)

    flops = 2 * KSIZE * KSIZE * cin * cout * nhw + 12 * cout * nhw
    bytes_accessed = (cin + cout) * nhw * 4 + wk.size * 4 + 8 * cout

    return pl.pallas_call(
        _make_fused_conv_kernel(n_im, h, w, cin, cout, mode),
        out_shape=jax.ShapeDtypeStruct((cout, nhw), jnp.float32),
        in_specs=[vmem] * len(args),
        out_specs=vmem,
        compiler_params=pltpu.CompilerParams(
            vmem_limit_bytes=VMEM_LIMIT_BYTES),
        cost_estimate=pl.CostEstimate(flops=flops, transcendentals=2 * cout,
                                      bytes_accessed=bytes_accessed),
    )(*args)


# ---------------------------------------------------------------------------
# Blocks (all channel-planar: (C, N, H, W)).
# ---------------------------------------------------------------------------
def conv_block(x_cp, p):
    """Conv2d(3x3,'same') + BatchNorm2d(training stats) + LeakyReLU.
    The conv bias is omitted: training-mode BN subtracts the batch mean right
    after the conv, so a per-channel bias cancels exactly (dead work)."""
    cin, n_im, h, w = x_cp.shape
    cout = p["wk"].shape[1]
    y = _fused_conv_call(x_cp.reshape(cin, n_im * h * w), p["wk"],
                         (p["gamma"], p["beta"]),
                         n_im=n_im, h=h, w=w, mode="bn_act")
    return y.reshape(cout, n_im, h, w)            # free metadata reshape


def conv2d_same(x_cp, p):
    """Plain Conv2d(3x3,'same') with bias (decoder's final layer)."""
    cin, n_im, h, w = x_cp.shape
    cout = p["wk"].shape[1]
    y = _fused_conv_call(x_cp.reshape(cin, n_im * h * w), p["wk"], (p["b"],),
                         n_im=n_im, h=h, w=w, mode="bias")
    return y.reshape(cout, n_im, h, w)


# TODO(synk): MaxPool2d / nearest Upsample / reparameterize are trivial,
# memory-bound glue and are left to XLA instead of dedicated Pallas kernels.
def maxpool2(x_cp):
    c, n, h, w = x_cp.shape
    return x_cp.reshape(c, n, h // 2, 2, w // 2, 2).max(axis=(3, 5))


def upsample2_nearest(x_cp):
    return jnp.repeat(jnp.repeat(x_cp, 2, axis=2), 2, axis=3)


# ---------------------------------------------------------------------------
# Parameter init (mirrors the PyTorch module structure, torch-style OIHW) and
# one-time repack into the kernel layout.
# ---------------------------------------------------------------------------
def _init_conv(key, cin, cout, with_bias):
    fan_in = cin * KSIZE * KSIZE
    bound = float(1.0 / (fan_in ** 0.5))
    kw_, kb = jax.random.split(key)
    p = {"w": jax.random.uniform(kw_, (cout, cin, KSIZE, KSIZE), jnp.float32,
                                 -bound, bound)}
    if with_bias:
        p["b"] = jax.random.uniform(kb, (cout,), jnp.float32, -bound, bound)
    return p


def _init_conv_block(key, cin, cout):
    p = _init_conv(key, cin, cout, with_bias=False)   # bias cancelled by BN
    p["gamma"] = jnp.ones((cout,), jnp.float32)       # BatchNorm2d defaults
    p["beta"] = jnp.zeros((cout,), jnp.float32)
    return p


def init_vae_params(key, encoder_base_features, latent_dim_channels):
    keys = iter(jax.random.split(key, 64))
    params = {"encoder": [], "decoder": []}

    enc_feats = list(encoder_base_features) + [2 * latent_dim_channels]
    for i in range(len(enc_feats) - 1):
        fi, fo = enc_feats[i], enc_feats[i + 1]
        params["encoder"].append({
            "cb0": _init_conv_block(next(keys), fi, fo),
            "cb1": _init_conv_block(next(keys), fo, fo),
        })

    dec_feats = ([latent_dim_channels]
                 + list(encoder_base_features[:0:-1])
                 + [encoder_base_features[0]])
    nt = len(dec_feats) - 1
    for i in range(nt):
        fi, fo = dec_feats[i], dec_feats[i + 1]
        layer = {}
        if i > 0:
            layer["up_cb"] = _init_conv_block(next(keys), fi, fi)
        layer["cb_a"] = _init_conv_block(next(keys), fi, fi)
        if i < nt - 1:
            layer["cb_b"] = _init_conv_block(next(keys), fi, fo)
        else:
            layer["final_conv"] = _init_conv(next(keys), fi, fo, with_bias=True)
        params["decoder"].append(layer)
    return params


def _prep_conv(p):
    cout, cin = p["w"].shape[:2]
    # OIHW -> (kh, kw, Cout, Cin) -> (9, Cout, Cin): tap-major weight layout.
    out = {"wk": jnp.transpose(p["w"], (2, 3, 0, 1)).reshape(
        KSIZE * KSIZE, cout, cin)}
    if "b" in p:
        out["b"] = p["b"].reshape(cout, 1)
    if "gamma" in p:
        out["gamma"] = p["gamma"].reshape(cout, 1)
        out["beta"] = p["beta"].reshape(cout, 1)
    return out


def prepare_vae_params(params):
    """One-time (outside jit) repack of torch-style params into kernel layout
    so the jitted forward contains no per-layer weight reshapes/transposes."""
    return {
        "encoder": [{k: _prep_conv(v) for k, v in layer.items()}
                    for layer in params["encoder"]],
        "decoder": [{k: _prep_conv(v) for k, v in layer.items()}
                    for layer in params["decoder"]],
    }


# ---------------------------------------------------------------------------
# Forward pass (channel-planar internally; NCHW only at the model boundary).
# ---------------------------------------------------------------------------
def encoder_forward(enc_params, x_cp):
    y = x_cp
    for i, layer in enumerate(enc_params):
        if i > 0:
            y = maxpool2(y)
        y = conv_block(y, layer["cb0"])
        y = conv_block(y, layer["cb1"])
    return y


def decoder_forward(dec_params, z_cp):
    y = z_cp
    nt = len(dec_params)
    for i, layer in enumerate(dec_params):
        if i > 0:
            y = upsample2_nearest(y)
            y = conv_block(y, layer["up_cb"])
        y = conv_block(y, layer["cb_a"])
        if i < nt - 1:
            y = conv_block(y, layer["cb_b"])
        else:
            y = conv2d_same(y, layer["final_conv"])
    return y


def vae_forward(prepared_params, x_nchw, key, *, latent_dim_channels):
    # Single boundary transpose NCHW -> channel-planar (C, N, H, W); every
    # ConvBlock kernel then sees a lane-dense (C, N*H*W) layout.
    x = jnp.transpose(x_nchw, (1, 0, 2, 3))

    mu_sigma = encoder_forward(prepared_params["encoder"], x)   # (2L, N, h, w)
    mu = mu_sigma[:latent_dim_channels]
    sigma_params = mu_sigma[latent_dim_channels:]

    # reparameterize: std = softplus(sigma) + 1e-6, z = mu + eps * std.
    std = jax.nn.softplus(sigma_params) + SOFTPLUS_EPS
    eps = jax.random.normal(key, std.shape, dtype=std.dtype)
    z = mu + eps * std

    recon = decoder_forward(prepared_params["decoder"], z)
    sigma_for_kl = std        # identical expression in the reference module

    to_nchw = lambda t: jnp.transpose(t, (1, 0, 2, 3))
    # TODO(synk): BatchNorm2d running_mean/running_var buffer updates are not
    # modeled; this reproduces the training-mode forward activations only.
    return to_nchw(recon), to_nchw(mu), to_nchw(sigma_for_kl)


# ---------------------------------------------------------------------------
if __name__ == "__main__":
    ENCODER_BASE_FEATURES = [4, 8]
    LATENT_DIM_CHANNELS = 4
    N, H, W = 2, 16, 16

    x = jax.random.normal(jax.random.PRNGKey(0),
                          (N, ENCODER_BASE_FEATURES[0], H, W), jnp.float32)
    params = init_vae_params(jax.random.PRNGKey(42),
                             ENCODER_BASE_FEATURES, LATENT_DIM_CHANNELS)
    prepared = prepare_vae_params(params)       # one-time repack, outside jit

    fwd = jax.jit(functools.partial(vae_forward,
                                    latent_dim_channels=LATENT_DIM_CHANNELS))
    recon, mu, sigma_for_kl = fwd(prepared, x, jax.random.PRNGKey(7))
    jax.block_until_ready((recon, mu, sigma_for_kl))

    assert recon.shape == (N, ENCODER_BASE_FEATURES[0], H, W), recon.shape
    assert mu.shape == (N, LATENT_DIM_CHANNELS, H // 2, W // 2), mu.shape
    assert sigma_for_kl.shape == (N, LATENT_DIM_CHANNELS, H // 2, W // 2)
    assert bool(jnp.all(jnp.isfinite(recon)))
    assert bool(jnp.all(jnp.isfinite(mu)))
    print("KERNEL_OK")
</pallas_src>

<mosaic_0001>
module attributes {stable_mosaic.version = 11 : i64} {
  func.func @kernel(%arg0: memref<8x128xf32, #tpu.memory_space<vmem>>, %arg1: memref<9x8x8xf32, #tpu.memory_space<vmem>>, %arg2: memref<8x1xf32, #tpu.memory_space<vmem>>, %arg3: memref<8x1xf32, #tpu.memory_space<vmem>>, %arg4: memref<8x128xf32, #tpu.memory_space<vmem>>) attributes {dimension_semantics = [], scalar_prefetch = 0 : i64, scratch_operands = 0 : i64, tpu.core_type = #tpu.core_type<tc>} {
    %c0 = arith.constant 0 : index
    %c0_0 = arith.constant 0 : index
    %0 = vector.load %arg0[%c0, %c0_0] : memref<8x128xf32, #tpu.memory_space<vmem>>, vector<8x128xf32>
    %1 = tpu.iota {dimensions = array<i32: 1>} : vector<8x128xi32>
    %c63_i32 = arith.constant 63 : i32
    %2 = vector.broadcast %c63_i32 : i32 to vector<8x128xi32>
    %3 = arith.andi %1, %2 : vector<8x128xi32>
    %c7_i32 = arith.constant 7 : i32
    %4 = vector.broadcast %c7_i32 : i32 to vector<8x128xi32>
    %5 = arith.andi %1, %4 : vector<8x128xi32>
    %cst = arith.constant 0.000000e+00 : f32
    %6 = vector.broadcast %cst : f32 to vector<8x128xf32>
    %cst_1 = arith.constant 0.000000e+00 : f32
    %7 = vector.broadcast %cst_1 : f32 to vector<8x9xf32>
    %8 = vector.extract_strided_slice %0 {offsets = [0, 0], sizes = [8, 119], strides = [1, 1]} : vector<8x128xf32> to vector<8x119xf32>
    %9 = tpu.concatenate %7, %8 in 1 : vector<8x9xf32>, vector<8x119xf32> -> vector<8x128xf32>
    %c8_i32 = arith.constant 8 : i32
    %10 = vector.broadcast %c8_i32 : i32 to vector<8x128xi32>
    %11 = arith.cmpi sge, %3, %10 : vector<8x128xi32>
    %c1_i32 = arith.constant 1 : i32
    %12 = vector.broadcast %c1_i32 : i32 to vector<8x128xi32>
    %13 = arith.cmpi sge, %5, %12 : vector<8x128xi32>
    %14 = arith.andi %11, %13 : vector<8x128xi1>
    %cst_2 = arith.constant 0.000000e+00 : f32
    %15 = vector.broadcast %cst_2 : f32 to vector<8x128xf32>
    %16 = arith.select %14, %9, %15 : vector<8x128xi1>, vector<8x128xf32>
    %c0_3 = arith.constant 0 : index
    %c0_4 = arith.constant 0 : index
    %c0_5 = arith.constant 0 : index
    %17 = vector.load %arg1[%c0_3, %c0_4, %c0_5] : memref<9x8x8xf32, #tpu.memory_space<vmem>>, vector<1x8x8xf32>
    %18 = vector.shape_cast %17 : vector<1x8x8xf32> to vector<8x8xf32>
    %cst_6 = arith.constant dense<0.000000e+00> : vector<8x128xf32>
    %19 = tpu.matmul %18, %16, %cst_6 {dimension_numbers = #tpu.dot_dimension_numbers<[1], [0], [0], [1], [0, 0, 1, 1], [], []>} : vector<8x8xf32>, vector<8x128xf32>, vector<8x128xf32> -> vector<8x128xf32>
    %20 = arith.addf %6, %19 : vector<8x128xf32>
    %cst_7 = arith.constant 0.000000e+00 : f32
    %21 = vector.broadcast %cst_7 : f32 to vector<8x8xf32>
    %22 = vector.extract_strided_slice %0 {offsets = [0, 0], sizes = [8, 120], strides = [1, 1]} : vector<8x128xf32> to vector<8x120xf32>
    %23 = tpu.concatenate %21, %22 in 1 : vector<8x8xf32>, vector<8x120xf32> -> vector<8x128xf32>
    %c8_i32_8 = arith.constant 8 : i32
    %24 = vector.broadcast %c8_i32_8 : i32 to vector<8x128xi32>
    %25 = arith.cmpi sge, %3, %24 : vector<8x128xi32>
    %cst_9 = arith.constant 0.000000e+00 : f32
    %26 = vector.broadcast %cst_9 : f32 to vector<8x128xf32>
    %27 = arith.select %25, %23, %26 : vector<8x128xi1>, vector<8x128xf32>
    %c1 = arith.constant 1 : index
    %c0_10 = arith.constant 0 : index
    %c0_11 = arith.constant 0 : index
    %28 = vector.load %arg1[%c1, %c0_10, %c0_11] : memref<9x8x8xf32, #tpu.memory_space<vmem>>, vector<1x8x8xf32>
    %29 = vector.shape_cast %28 : vector<1x8x8xf32> to vector<8x8xf32>
    %cst_12 = arith.constant dense<0.000000e+00> : vector<8x128xf32>
    %30 = tpu.matmul %29, %27, %cst_12 {dimension_numbers = #tpu.dot_dimension_numbers<[1], [0], [0], [1], [0, 0, 1, 1], [], []>} : vector<8x8xf32>, vector<8x128xf32>, vector<8x128xf32> -> vector<8x128xf32>
    %31 = arith.addf %20, %30 : vector<8x128xf32>
    %cst_13 = arith.constant 0.000000e+00 : f32
    %32 = vector.broadcast %cst_13 : f32 to vector<8x7xf32>
    %33 = vector.extract_strided_slice %0 {offsets = [0, 0], sizes = [8, 121], strides = [1, 1]} : vector<8x128xf32> to vector<8x121xf32>
    %34 = tpu.concatenate %32, %33 in 1 : vector<8x7xf32>, vector<8x121xf32> -> vector<8x128xf32>
    %c8_i32_14 = arith.constant 8 : i32
    %35 = vector.broadcast %c8_i32_14 : i32 to vector<8x128xi32>
    %36 = arith.cmpi sge, %3, %35 : vector<8x128xi32>
    %c7_i32_15 = arith.constant 7 : i32
    %37 = vector.broadcast %c7_i32_15 : i32 to vector<8x128xi32>
    %38 = arith.cmpi slt, %5, %37 : vector<8x128xi32>
    %39 = arith.andi %36, %38 : vector<8x128xi1>
    %cst_16 = arith.constant 0.000000e+00 : f32
    %40 = vector.broadcast %cst_16 : f32 to vector<8x128xf32>
    %41 = arith.select %39, %34, %40 : vector<8x128xi1>, vector<8x128xf32>
    %c2 = arith.constant 2 : index
    %c0_17 = arith.constant 0 : index
    %c0_18 = arith.constant 0 : index
    %42 = vector.load %arg1[%c2, %c0_17, %c0_18] : memref<9x8x8xf32, #tpu.memory_space<vmem>>, vector<1x8x8xf32>
    %43 = vector.shape_cast %42 : vector<1x8x8xf32> to vector<8x8xf32>
    %cst_19 = arith.constant dense<0.000000e+00> : vector<8x128xf32>
    %44 = tpu.matmul %43, %41, %cst_19 {dimension_numbers = #tpu.dot_dimension_numbers<[1], [0], [0], [1], [0, 0, 1, 1], [], []>} : vector<8x8xf32>, vector<8x128xf32>, vector<8x128xf32> -> vector<8x128xf32>
    %45 = arith.addf %31, %44 : vector<8x128xf32>
    %cst_20 = arith.constant 0.000000e+00 : f32
    %46 = vector.broadcast %cst_20 : f32 to vector<8x1xf32>
    %47 = vector.extract_strided_slice %0 {offsets = [0, 0], sizes = [8, 127], strides = [1, 1]} : vector<8x128xf32> to vector<8x127xf32>
    %48 = tpu.concatenate %46, %47 in 1 : vector<8x1xf32>, vector<8x127xf32> -> vector<8x128xf32>
    %c1_i32_21 = arith.constant 1 : i32
    %49 = vector.broadcast %c1_i32_21 : i32 to vector<8x128xi32>
    %50 = arith.cmpi sge, %5, %49 : vector<8x128xi32>
    %cst_22 = arith.constant 0.000000e+00 : f32
    %51 = vector.broadcast %cst_22 : f32 to vector<8x128xf32>
    %52 = arith.select %50, %48, %51 : vector<8x128xi1>, vector<8x128xf32>
    %c3 = arith.constant 3 : index
    %c0_23 = arith.constant 0 : index
    %c0_24 = arith.constant 0 : index
    %53 = vector.load %arg1[%c3, %c0_23, %c0_24] : memref<9x8x8xf32, #tpu.memory_space<vmem>>, vector<1x8x8xf32>
    %54 = vector.shape_cast %53 : vector<1x8x8xf32> to vector<8x8xf32>
    %cst_25 = arith.constant dense<0.000000e+00> : vector<8x128xf32>
    %55 = tpu.matmul %54, %52, %cst_25 {dimension_numbers = #tpu.dot_dimension_numbers<[1], [0], [0], [1], [0, 0, 1, 1], [], []>} : vector<8x8xf32>, vector<8x128xf32>, vector<8x128xf32> -> vector<8x128xf32>
    %56 = arith.addf %45, %55 : vector<8x128xf32>
    %c4 = arith.constant 4 : index
    %c0_26 = arith.constant 0 : index
    %c0_27 = arith.constant 0 : index
    %57 = vector.load %arg1[%c4, %c0_26, %c0_27] : memref<9x8x8xf32, #tpu.memory_space<vmem>>, vector<1x8x8xf32>
    %58 = vector.shape_cast %57 : vector<1x8x8xf32> to vector<8x8xf32>
    %cst_28 = arith.constant dense<0.000000e+00> : vector<8x128xf32>
    %59 = tpu.matmul %58, %0, %cst_28 {dimension_numbers = #tpu.dot_dimension_numbers<[1], [0], [0], [1], [0, 0, 1, 1], [], []>} : vector<8x8xf32>, vector<8x128xf32>, vector<8x128xf32> -> vector<8x128xf32>
    %60 = arith.addf %56, %59 : vector<8x128xf32>
    %cst_29 = arith.constant 0.000000e+00 : f32
    %61 = vector.broadcast %cst_29 : f32 to vector<8x1xf32>
    %62 = vector.extract_strided_slice %0 {offsets = [0, 1], sizes = [8, 127], strides = [1, 1]} : vector<8x128xf32> to vector<8x127xf32>
    %63 = tpu.concatenate %62, %61 in 1 : vector<8x127xf32>, vector<8x1xf32> -> vector<8x128xf32>
    %c7_i32_30 = arith.constant 7 : i32
    %64 = vector.broadcast %c7_i32_30 : i32 to vector<8x128xi32>
    %65 = arith.cmpi slt, %5, %64 : vector<8x128xi32>
    %cst_31 = arith.constant 0.000000e+00 : f32
    %66 = vector.broadcast %cst_31 : f32 to vector<8x128xf32>
    %67 = arith.select %65, %63, %66 : vector<8x128xi1>, vector<8x128xf32>
    %c5 = arith.constant 5 : index
    %c0_32 = arith.constant 0 : index
    %c0_33 = arith.constant 0 : index
    %68 = vector.load %arg1[%c5, %c0_32, %c0_33] : memref<9x8x8xf32, #tpu.memory_space<vmem>>, vector<1x8x8xf32>
    %69 = vector.shape_cast %68 : vector<1x8x8xf32> to vector<8x8xf32>
    %cst_34 = arith.constant dense<0.000000e+00> : vector<8x128xf32>
    %70 = tpu.matmul %69, %67, %cst_34 {dimension_numbers = #tpu.dot_dimension_numbers<[1], [0], [0], [1], [0, 0, 1, 1], [], []>} : vector<8x8xf32>, vector<8x128xf32>, vector<8x128xf32> -> vector<8x128xf32>
    %71 = arith.addf %60, %70 : vector<8x128xf32>
    %cst_35 = arith.constant 0.000000e+00 : f32
    %72 = vector.broadcast %cst_35 : f32 to vector<8x7xf32>
    %73 = vector.extract_strided_slice %0 {offsets = [0, 7], sizes = [8, 121], strides = [1, 1]} : vector<8x128xf32> to vector<8x121xf32>
    %74 = tpu.concatenate %73, %72 in 1 : vector<8x121xf32>, vector<8x7xf32> -> vector<8x128xf32>
    %c56_i32 = arith.constant 56 : i32
    %75 = vector.broadcast %c56_i32 : i32 to vector<8x128xi32>
    %76 = arith.cmpi slt, %3, %75 : vector<8x128xi32>
    %c1_i32_36 = arith.constant 1 : i32
    %77 = vector.broadcast %c1_i32_36 : i32 to vector<8x128xi32>
    %78 = arith.cmpi sge, %5, %77 : vector<8x128xi32>
    %79 = arith.andi %76, %78 : vector<8x128xi1>
    %cst_37 = arith.constant 0.000000e+00 : f32
    %80 = vector.broadcast %cst_37 : f32 to vector<8x128xf32>
    %81 = arith.select %79, %74, %80 : vector<8x128xi1>, vector<8x128xf32>
    %c6 = arith.constant 6 : index
    %c0_38 = arith.constant 0 : index
    %c0_39 = arith.constant 0 : index
    %82 = vector.load %arg1[%c6, %c0_38, %c0_39] : memref<9x8x8xf32, #tpu.memory_space<vmem>>, vector<1x8x8xf32>
    %83 = vector.shape_cast %82 : vector<1x8x8xf32> to vector<8x8xf32>
    %cst_40 = arith.constant dense<0.000000e+00> : vector<8x128xf32>
    %84 = tpu.matmul %83, %81, %cst_40 {dimension_numbers = #tpu.dot_dimension_numbers<[1], [0], [0], [1], [0, 0, 1, 1], [], []>} : vector<8x8xf32>, vector<8x128xf32>, vector<8x128xf32> -> vector<8x128xf32>
    %85 = arith.addf %71, %84 : vector<8x128xf32>
    %cst_41 = arith.constant 0.000000e+00 : f32
    %86 = vector.broadcast %cst_41 : f32 to vector<8x8xf32>
    %87 = vector.extract_strided_slice %0 {offsets = [0, 8], sizes = [8, 120], strides = [1, 1]} : vector<8x128xf32> to vector<8x120xf32>
    %88 = tpu.concatenate %87, %86 in 1 : vector<8x120xf32>, vector<8x8xf32> -> vector<8x128xf32>
    %c56_i32_42 = arith.constant 56 : i32
    %89 = vector.broadcast %c56_i32_42 : i32 to vector<8x128xi32>
    %90 = arith.cmpi slt, %3, %89 : vector<8x128xi32>
    %cst_43 = arith.constant 0.000000e+00 : f32
    %91 = vector.broadcast %cst_43 : f32 to vector<8x128xf32>
    %92 = arith.select %90, %88, %91 : vector<8x128xi1>, vector<8x128xf32>
    %c7 = arith.constant 7 : index
    %c0_44 = arith.constant 0 : index
    %c0_45 = arith.constant 0 : index
    %93 = vector.load %arg1[%c7, %c0_44, %c0_45] : memref<9x8x8xf32, #tpu.memory_space<vmem>>, vector<1x8x8xf32>
    %94 = vector.shape_cast %93 : vector<1x8x8xf32> to vector<8x8xf32>
    %cst_46 = arith.constant dense<0.000000e+00> : vector<8x128xf32>
    %95 = tpu.matmul %94, %92, %cst_46 {dimension_numbers = #tpu.dot_dimension_numbers<[1], [0], [0], [1], [0, 0, 1, 1], [], []>} : vector<8x8xf32>, vector<8x128xf32>, vector<8x128xf32> -> vector<8x128xf32>
    %96 = arith.addf %85, %95 : vector<8x128xf32>
    %cst_47 = arith.constant 0.000000e+00 : f32
    %97 = vector.broadcast %cst_47 : f32 to vector<8x9xf32>
    %98 = vector.extract_strided_slice %0 {offsets = [0, 9], sizes = [8, 119], strides = [1, 1]} : vector<8x128xf32> to vector<8x119xf32>
    %99 = tpu.concatenate %98, %97 in 1 : vector<8x119xf32>, vector<8x9xf32> -> vector<8x128xf32>
    %c56_i32_48 = arith.constant 56 : i32
    %100 = vector.broadcast %c56_i32_48 : i32 to vector<8x128xi32>
    %101 = arith.cmpi slt, %3, %100 : vector<8x128xi32>
    %c7_i32_49 = arith.constant 7 : i32
    %102 = vector.broadcast %c7_i32_49 : i32 to vector<8x128xi32>
    %103 = arith.cmpi slt, %5, %102 : vector<8x128xi32>
    %104 = arith.andi %101, %103 : vector<8x128xi1>
    %cst_50 = arith.constant 0.000000e+00 : f32
    %105 = vector.broadcast %cst_50 : f32 to vector<8x128xf32>
    %106 = arith.select %104, %99, %105 : vector<8x128xi1>, vector<8x128xf32>
    %c8 = arith.constant 8 : index
    %c0_51 = arith.constant 0 : index
    %c0_52 = arith.constant 0 : index
    %107 = vector.load %arg1[%c8, %c0_51, %c0_52] : memref<9x8x8xf32, #tpu.memory_space<vmem>>, vector<1x8x8xf32>
    %108 = vector.shape_cast %107 : vector<1x8x8xf32> to vector<8x8xf32>
    %cst_53 = arith.constant dense<0.000000e+00> : vector<8x128xf32>
    %109 = tpu.matmul %108, %106, %cst_53 {dimension_numbers = #tpu.dot_dimension_numbers<[1], [0], [0], [1], [0, 0, 1, 1], [], []>} : vector<8x8xf32>, vector<8x128xf32>, vector<8x128xf32> -> vector<8x128xf32>
    %110 = arith.addf %96, %109 : vector<8x128xf32>
    %cst_54 = arith.constant dense<0.000000e+00> : vector<8xf32>
    %111 = vector.multi_reduction <add>, %110, %cst_54 [1] : vector<8x128xf32> to vector<8xf32>
    %112 = vector.shape_cast %111 : vector<8xf32> to vector<8x1xf32>
    %cst_55 = arith.constant 7.812500e-03 : f32
    %113 = vector.broadcast %cst_55 : f32 to vector<8x1xf32>
    %114 = arith.mulf %112, %113 : vector<8x1xf32>
    %115 = arith.mulf %110, %110 : vector<8x128xf32>
    %cst_56 = arith.constant dense<0.000000e+00> : vector<8xf32>
    %116 = vector.multi_reduction <add>, %115, %cst_56 [1] : vector<8x128xf32> to vector<8xf32>
    %117 = vector.shape_cast %116 : vector<8xf32> to vector<8x1xf32>
    %cst_57 = arith.constant 7.812500e-03 : f32
    %118 = vector.broadcast %cst_57 : f32 to vector<8x1xf32>
    %119 = arith.mulf %117, %118 : vector<8x1xf32>
    %120 = arith.mulf %114, %114 : vector<8x1xf32>
    %121 = arith.subf %119, %120 : vector<8x1xf32>
    %cst_58 = arith.constant 0.000000e+00 : f32
    %122 = vector.broadcast %cst_58 : f32 to vector<8x1xf32>
    %123 = arith.maximumf %121, %122 : vector<8x1xf32>
    %c0_59 = arith.constant 0 : index
    %c0_60 = arith.constant 0 : index
    %124 = vector.load %arg2[%c0_59, %c0_60] : memref<8x1xf32, #tpu.memory_space<vmem>>, vector<8x1xf32>
    %cst_61 = arith.constant 9.99999974E-6 : f32
    %125 = vector.broadcast %cst_61 : f32 to vector<8x1xf32>
    %126 = arith.addf %123, %125 : vector<8x1xf32>
    %127 = math.rsqrt %126 : vector<8x1xf32>
    %128 = arith.mulf %124, %127 : vector<8x1xf32>
    %c0_62 = arith.constant 0 : index
    %c0_63 = arith.constant 0 : index
    %129 = vector.load %arg3[%c0_62, %c0_63] : memref<8x1xf32, #tpu.memory_space<vmem>>, vector<8x1xf32>
    %130 = arith.mulf %114, %128 : vector<8x1xf32>
    %131 = arith.subf %129, %130 : vector<8x1xf32>
    %132 = vector.broadcast %128 : vector<8x1xf32> to vector<8x128xf32>
    %133 = arith.mulf %110, %132 : vector<8x128xf32>
    %134 = vector.broadcast %131 : vector<8x1xf32> to vector<8x128xf32>
    %135 = arith.addf %133, %134 : vector<8x128xf32>
    %cst_64 = arith.constant 0.000000e+00 : f32
    %136 = vector.broadcast %cst_64 : f32 to vector<8x128xf32>
    %137 = arith.cmpf oge, %135, %136 : vector<8x128xf32>
    %cst_65 = arith.constant 0.00999999977 : f32
    %138 = vector.broadcast %cst_65 : f32 to vector<8x128xf32>
    %139 = arith.mulf %138, %135 : vector<8x128xf32>
    %140 = arith.select %137, %135, %139 : vector<8x128xi1>, vector<8x128xf32>
    %c0_66 = arith.constant 0 : index
    %c0_67 = arith.constant 0 : index
    %141 = vector.load %arg4[%c0_66, %c0_67] : memref<8x128xf32, #tpu.memory_space<vmem>>, vector<8x128xf32>
    tpu.vector_store %arg4[%c0_66, %c0_67], %140 {strides = array<i32>} : memref<8x128xf32, #tpu.memory_space<vmem>>, vector<8x128xf32>,
    return
  }
}

module attributes {stable_mosaic.version = 11 : i64} {
  func.func @kernel(%arg0: memref<8x512xf32, #tpu.memory_space<vmem>>, %arg1: memref<9x8x8xf32, #tpu.memory_space<vmem>>, %arg2: memref<8x1xf32, #tpu.memory_space<vmem>>, %arg3: memref<8x1xf32, #tpu.memory_space<vmem>>, %arg4: memref<8x512xf32, #tpu.memory_space<vmem>>) attributes {dimension_semantics = [], scalar_prefetch = 0 : i64, scratch_operands = 0 : i64, tpu.core_type = #tpu.core_type<tc>} {
    %c0 = arith.constant 0 : index
    %c0_0 = arith.constant 0 : index
    %0 = vector.load %arg0[%c0, %c0_0] : memref<8x512xf32, #tpu.memory_space<vmem>>, vector<8x512xf32>
    %1 = tpu.iota {dimensions = array<i32: 1>} : vector<8x512xi32>
    %c255_i32 = arith.constant 255 : i32
    %2 = vector.broadcast %c255_i32 : i32 to vector<8x512xi32>
    %3 = arith.andi %1, %2 : vector<8x512xi32>
    %c15_i32 = arith.constant 15 : i32
    %4 = vector.broadcast %c15_i32 : i32 to vector<8x512xi32>
    %5 = arith.andi %1, %4 : vector<8x512xi32>
    %cst = arith.constant 0.000000e+00 : f32
    %6 = vector.broadcast %cst : f32 to vector<8x512xf32>
    %cst_1 = arith.constant 0.000000e+00 : f32
    %7 = vector.broadcast %cst_1 : f32 to vector<8x17xf32>
    %8 = vector.extract_strided_slice %0 {offsets = [0, 0], sizes = [8, 495], strides = [1, 1]} : vector<8x512xf32> to vector<8x495xf32>
    %9 = tpu.concatenate %7, %8 in 1 : vector<8x17xf32>, vector<8x495xf32> -> vector<8x512xf32>
    %c16_i32 = arith.constant 16 : i32
    %10 = vector.broadcast %c16_i32 : i32 to vector<8x512xi32>
    %11 = arith.cmpi sge, %3, %10 : vector<8x512xi32>
    %c1_i32 = arith.constant 1 : i32
    %12 = vector.broadcast %c1_i32 : i32 to vector<8x512xi32>
    %13 = arith.cmpi sge, %5, %12 : vector<8x512xi32>
    %14 = arith.andi %11, %13 : vector<8x512xi1>
    %cst_2 = arith.constant 0.000000e+00 : f32
    %15 = vector.broadcast %cst_2 : f32 to vector<8x512xf32>
    %16 = arith.select %14, %9, %15 : vector<8x512xi1>, vector<8x512xf32>
    %c0_3 = arith.constant 0 : index
    %c0_4 = arith.constant 0 : index
    %c0_5 = arith.constant 0 : index
    %17 = vector.load %arg1[%c0_3, %c0_4, %c0_5] : memref<9x8x8xf32, #tpu.memory_space<vmem>>, vector<1x8x8xf32>
    %18 = vector.shape_cast %17 : vector<1x8x8xf32> to vector<8x8xf32>
    %cst_6 = arith.constant dense<0.000000e+00> : vector<8x512xf32>
    %19 = tpu.matmul %18, %16, %cst_6 {dimension_numbers = #tpu.dot_dimension_numbers<[1], [0], [0], [1], [0, 0, 1, 1], [], []>} : vector<8x8xf32>, vector<8x512xf32>, vector<8x512xf32> -> vector<8x512xf32>
    %20 = arith.addf %6, %19 : vector<8x512xf32>
    %cst_7 = arith.constant 0.000000e+00 : f32
    %21 = vector.broadcast %cst_7 : f32 to vector<8x16xf32>
    %22 = vector.extract_strided_slice %0 {offsets = [0, 0], sizes = [8, 496], strides = [1, 1]} : vector<8x512xf32> to vector<8x496xf32>
    %23 = tpu.concatenate %21, %22 in 1 : vector<8x16xf32>, vector<8x496xf32> -> vector<8x512xf32>
    %c16_i32_8 = arith.constant 16 : i32
    %24 = vector.broadcast %c16_i32_8 : i32 to vector<8x512xi32>
    %25 = arith.cmpi sge, %3, %24 : vector<8x512xi32>
    %cst_9 = arith.constant 0.000000e+00 : f32
    %26 = vector.broadcast %cst_9 : f32 to vector<8x512xf32>
    %27 = arith.select %25, %23, %26 : vector<8x512xi1>, vector<8x512xf32>
    %c1 = arith.constant 1 : index
    %c0_10 = arith.constant 0 : index
    %c0_11 = arith.constant 0 : index
    %28 = vector.load %arg1[%c1, %c0_10, %c0_11] : memref<9x8x8xf32, #tpu.memory_space<vmem>>, vector<1x8x8xf32>
    %29 = vector.shape_cast %28 : vector<1x8x8xf32> to vector<8x8xf32>
    %cst_12 = arith.constant dense<0.000000e+00> : vector<8x512xf32>
    %30 = tpu.matmul %29, %27, %cst_12 {dimension_numbers = #tpu.dot_dimension_numbers<[1], [0], [0], [1], [0, 0, 1, 1], [], []>} : vector<8x8xf32>, vector<8x512xf32>, vector<8x512xf32> -> vector<8x512xf32>
    %31 = arith.addf %20, %30 : vector<8x512xf32>
    %cst_13 = arith.constant 0.000000e+00 : f32
    %32 = vector.broadcast %cst_13 : f32 to vector<8x15xf32>
    %33 = vector.extract_strided_slice %0 {offsets = [0, 0], sizes = [8, 497], strides = [1, 1]} : vector<8x512xf32> to vector<8x497xf32>
    %34 = tpu.concatenate %32, %33 in 1 : vector<8x15xf32>, vector<8x497xf32> -> vector<8x512xf32>
    %c16_i32_14 = arith.constant 16 : i32
    %35 = vector.broadcast %c16_i32_14 : i32 to vector<8x512xi32>
    %36 = arith.cmpi sge, %3, %35 : vector<8x512xi32>
    %c15_i32_15 = arith.constant 15 : i32
    %37 = vector.broadcast %c15_i32_15 : i32 to vector<8x512xi32>
    %38 = arith.cmpi slt, %5, %37 : vector<8x512xi32>
    %39 = arith.andi %36, %38 : vector<8x512xi1>
    %cst_16 = arith.constant 0.000000e+00 : f32
    %40 = vector.broadcast %cst_16 : f32 to vector<8x512xf32>
    %41 = arith.select %39, %34, %40 : vector<8x512xi1>, vector<8x512xf32>
    %c2 = arith.constant 2 : index
    %c0_17 = arith.constant 0 : index
    %c0_18 = arith.constant 0 : index
    %42 = vector.load %arg1[%c2, %c0_17, %c0_18] : memref<9x8x8xf32, #tpu.memory_space<vmem>>, vector<1x8x8xf32>
    %43 = vector.shape_cast %42 : vector<1x8x8xf32> to vector<8x8xf32>
    %cst_19 = arith.constant dense<0.000000e+00> : vector<8x512xf32>
    %44 = tpu.matmul %43, %41, %cst_19 {dimension_numbers = #tpu.dot_dimension_numbers<[1], [0], [0], [1], [0, 0, 1, 1], [], []>} : vector<8x8xf32>, vector<8x512xf32>, vector<8x512xf32> -> vector<8x512xf32>
    %45 = arith.addf %31, %44 : vector<8x512xf32>
    %cst_20 = arith.constant 0.000000e+00 : f32
    %46 = vector.broadcast %cst_20 : f32 to vector<8x1xf32>
    %47 = vector.extract_strided_slice %0 {offsets = [0, 0], sizes = [8, 511], strides = [1, 1]} : vector<8x512xf32> to vector<8x511xf32>
    %48 = tpu.concatenate %46, %47 in 1 : vector<8x1xf32>, vector<8x511xf32> -> vector<8x512xf32>
    %c1_i32_21 = arith.constant 1 : i32
    %49 = vector.broadcast %c1_i32_21 : i32 to vector<8x512xi32>
    %50 = arith.cmpi sge, %5, %49 : vector<8x512xi32>
    %cst_22 = arith.constant 0.000000e+00 : f32
    %51 = vector.broadcast %cst_22 : f32 to vector<8x512xf32>
    %52 = arith.select %50, %48, %51 : vector<8x512xi1>, vector<8x512xf32>
    %c3 = arith.constant 3 : index
    %c0_23 = arith.constant 0 : index
    %c0_24 = arith.constant 0 : index
    %53 = vector.load %arg1[%c3, %c0_23, %c0_24] : memref<9x8x8xf32, #tpu.memory_space<vmem>>, vector<1x8x8xf32>
    %54 = vector.shape_cast %53 : vector<1x8x8xf32> to vector<8x8xf32>
    %cst_25 = arith.constant dense<0.000000e+00> : vector<8x512xf32>
    %55 = tpu.matmul %54, %52, %cst_25 {dimension_numbers = #tpu.dot_dimension_numbers<[1], [0], [0], [1], [0, 0, 1, 1], [], []>} : vector<8x8xf32>, vector<8x512xf32>, vector<8x512xf32> -> vector<8x512xf32>
    %56 = arith.addf %45, %55 : vector<8x512xf32>
    %c4 = arith.constant 4 : index
    %c0_26 = arith.constant 0 : index
    %c0_27 = arith.constant 0 : index
    %57 = vector.load %arg1[%c4, %c0_26, %c0_27] : memref<9x8x8xf32, #tpu.memory_space<vmem>>, vector<1x8x8xf32>
    %58 = vector.shape_cast %57 : vector<1x8x8xf32> to vector<8x8xf32>
    %cst_28 = arith.constant dense<0.000000e+00> : vector<8x512xf32>
    %59 = tpu.matmul %58, %0, %cst_28 {dimension_numbers = #tpu.dot_dimension_numbers<[1], [0], [0], [1], [0, 0, 1, 1], [], []>} : vector<8x8xf32>, vector<8x512xf32>, vector<8x512xf32> -> vector<8x512xf32>
    %60 = arith.addf %56, %59 : vector<8x512xf32>
    %cst_29 = arith.constant 0.000000e+00 : f32
    %61 = vector.broadcast %cst_29 : f32 to vector<8x1xf32>
    %62 = vector.extract_strided_slice %0 {offsets = [0, 1], sizes = [8, 511], strides = [1, 1]} : vector<8x512xf32> to vector<8x511xf32>
    %63 = tpu.concatenate %62, %61 in 1 : vector<8x511xf32>, vector<8x1xf32> -> vector<8x512xf32>
    %c15_i32_30 = arith.constant 15 : i32
    %64 = vector.broadcast %c15_i32_30 : i32 to vector<8x512xi32>
    %65 = arith.cmpi slt, %5, %64 : vector<8x512xi32>
    %cst_31 = arith.constant 0.000000e+00 : f32
    %66 = vector.broadcast %cst_31 : f32 to vector<8x512xf32>
    %67 = arith.select %65, %63, %66 : vector<8x512xi1>, vector<8x512xf32>
    %c5 = arith.constant 5 : index
    %c0_32 = arith.constant 0 : index
    %c0_33 = arith.constant 0 : index
    %68 = vector.load %arg1[%c5, %c0_32, %c0_33] : memref<9x8x8xf32, #tpu.memory_space<vmem>>, vector<1x8x8xf32>
    %69 = vector.shape_cast %68 : vector<1x8x8xf32> to vector<8x8xf32>
    %cst_34 = arith.constant dense<0.000000e+00> : vector<8x512xf32>
    %70 = tpu.matmul %69, %67, %cst_34 {dimension_numbers = #tpu.dot_dimension_numbers<[1], [0], [0], [1], [0, 0, 1, 1], [], []>} : vector<8x8xf32>, vector<8x512xf32>, vector<8x512xf32> -> vector<8x512xf32>
    %71 = arith.addf %60, %70 : vector<8x512xf32>
    %cst_35 = arith.constant 0.000000e+00 : f32
    %72 = vector.broadcast %cst_35 : f32 to vector<8x15xf32>
    %73 = vector.extract_strided_slice %0 {offsets = [0, 15], sizes = [8, 497], strides = [1, 1]} : vector<8x512xf32> to vector<8x497xf32>
    %74 = tpu.concatenate %73, %72 in 1 : vector<8x497xf32>, vector<8x15xf32> -> vector<8x512xf32>
    %c240_i32 = arith.constant 240 : i32
    %75 = vector.broadcast %c240_i32 : i32 to vector<8x512xi32>
    %76 = arith.cmpi slt, %3, %75 : vector<8x512xi32>
    %c1_i32_36 = arith.constant 1 : i32
    %77 = vector.broadcast %c1_i32_36 : i32 to vector<8x512xi32>
    %78 = arith.cmpi sge, %5, %77 : vector<8x512xi32>
    %79 = arith.andi %76, %78 : vector<8x512xi1>
    %cst_37 = arith.constant 0.000000e+00 : f32
    %80 = vector.broadcast %cst_37 : f32 to vector<8x512xf32>
    %81 = arith.select %79, %74, %80 : vector<8x512xi1>, vector<8x512xf32>
    %c6 = arith.constant 6 : index
    %c0_38 = arith.constant 0 : index
    %c0_39 = arith.constant 0 : index
    %82 = vector.load %arg1[%c6, %c0_38, %c0_39] : memref<9x8x8xf32, #tpu.memory_space<vmem>>, vector<1x8x8xf32>
    %83 = vector.shape_cast %82 : vector<1x8x8xf32> to vector<8x8xf32>
    %cst_40 = arith.constant dense<0.000000e+00> : vector<8x512xf32>
    %84 = tpu.matmul %83, %81, %cst_40 {dimension_numbers = #tpu.dot_dimension_numbers<[1], [0], [0], [1], [0, 0, 1, 1], [], []>} : vector<8x8xf32>, vector<8x512xf32>, vector<8x512xf32> -> vector<8x512xf32>
    %85 = arith.addf %71, %84 : vector<8x512xf32>
    %cst_41 = arith.constant 0.000000e+00 : f32
    %86 = vector.broadcast %cst_41 : f32 to vector<8x16xf32>
    %87 = vector.extract_strided_slice %0 {offsets = [0, 16], sizes = [8, 496], strides = [1, 1]} : vector<8x512xf32> to vector<8x496xf32>
    %88 = tpu.concatenate %87, %86 in 1 : vector<8x496xf32>, vector<8x16xf32> -> vector<8x512xf32>
    %c240_i32_42 = arith.constant 240 : i32
    %89 = vector.broadcast %c240_i32_42 : i32 to vector<8x512xi32>
    %90 = arith.cmpi slt, %3, %89 : vector<8x512xi32>
    %cst_43 = arith.constant 0.000000e+00 : f32
    %91 = vector.broadcast %cst_43 : f32 to vector<8x512xf32>
    %92 = arith.select %90, %88, %91 : vector<8x512xi1>, vector<8x512xf32>
    %c7 = arith.constant 7 : index
    %c0_44 = arith.constant 0 : index
    %c0_45 = arith.constant 0 : index
    %93 = vector.load %arg1[%c7, %c0_44, %c0_45] : memref<9x8x8xf32, #tpu.memory_space<vmem>>, vector<1x8x8xf32>
    %94 = vector.shape_cast %93 : vector<1x8x8xf32> to vector<8x8xf32>
    %cst_46 = arith.constant dense<0.000000e+00> : vector<8x512xf32>
    %95 = tpu.matmul %94, %92, %cst_46 {dimension_numbers = #tpu.dot_dimension_numbers<[1], [0], [0], [1], [0, 0, 1, 1], [], []>} : vector<8x8xf32>, vector<8x512xf32>, vector<8x512xf32> -> vector<8x512xf32>
    %96 = arith.addf %85, %95 : vector<8x512xf32>
    %cst_47 = arith.constant 0.000000e+00 : f32
    %97 = vector.broadcast %cst_47 : f32 to vector<8x17xf32>
    %98 = vector.extract_strided_slice %0 {offsets = [0, 17], sizes = [8, 495], strides = [1, 1]} : vector<8x512xf32> to vector<8x495xf32>
    %99 = tpu.concatenate %98, %97 in 1 : vector<8x495xf32>, vector<8x17xf32> -> vector<8x512xf32>
    %c240_i32_48 = arith.constant 240 : i32
    %100 = vector.broadcast %c240_i32_48 : i32 to vector<8x512xi32>
    %101 = arith.cmpi slt, %3, %100 : vector<8x512xi32>
    %c15_i32_49 = arith.constant 15 : i32
    %102 = vector.broadcast %c15_i32_49 : i32 to vector<8x512xi32>
    %103 = arith.cmpi slt, %5, %102 : vector<8x512xi32>
    %104 = arith.andi %101, %103 : vector<8x512xi1>
    %cst_50 = arith.constant 0.000000e+00 : f32
    %105 = vector.broadcast %cst_50 : f32 to vector<8x512xf32>
    %106 = arith.select %104, %99, %105 : vector<8x512xi1>, vector<8x512xf32>
    %c8 = arith.constant 8 : index
    %c0_51 = arith.constant 0 : index
    %c0_52 = arith.constant 0 : index
    %107 = vector.load %arg1[%c8, %c0_51, %c0_52] : memref<9x8x8xf32, #tpu.memory_space<vmem>>, vector<1x8x8xf32>
    %108 = vector.shape_cast %107 : vector<1x8x8xf32> to vector<8x8xf32>
    %cst_53 = arith.constant dense<0.000000e+00> : vector<8x512xf32>
    %109 = tpu.matmul %108, %106, %cst_53 {dimension_numbers = #tpu.dot_dimension_numbers<[1], [0], [0], [1], [0, 0, 1, 1], [], []>} : vector<8x8xf32>, vector<8x512xf32>, vector<8x512xf32> -> vector<8x512xf32>
    %110 = arith.addf %96, %109 : vector<8x512xf32>
    %cst_54 = arith.constant dense<0.000000e+00> : vector<8xf32>
    %111 = vector.multi_reduction <add>, %110, %cst_54 [1] : vector<8x512xf32> to vector<8xf32>
    %112 = vector.shape_cast %111 : vector<8xf32> to vector<8x1xf32>
    %cst_55 = arith.constant 0.001953125 : f32
    %113 = vector.broadcast %cst_55 : f32 to vector<8x1xf32>
    %114 = arith.mulf %112, %113 : vector<8x1xf32>
    %115 = arith.mulf %110, %110 : vector<8x512xf32>
    %cst_56 = arith.constant dense<0.000000e+00> : vector<8xf32>
    %116 = vector.multi_reduction <add>, %115, %cst_56 [1] : vector<8x512xf32> to vector<8xf32>
    %117 = vector.shape_cast %116 : vector<8xf32> to vector<8x1xf32>
    %cst_57 = arith.constant 0.001953125 : f32
    %118 = vector.broadcast %cst_57 : f32 to vector<8x1xf32>
    %119 = arith.mulf %117, %118 : vector<8x1xf32>
    %120 = arith.mulf %114, %114 : vector<8x1xf32>
    %121 = arith.subf %119, %120 : vector<8x1xf32>
    %cst_58 = arith.constant 0.000000e+00 : f32
    %122 = vector.broadcast %cst_58 : f32 to vector<8x1xf32>
    %123 = arith.maximumf %121, %122 : vector<8x1xf32>
    %c0_59 = arith.constant 0 : index
    %c0_60 = arith.constant 0 : index
    %124 = vector.load %arg2[%c0_59, %c0_60] : memref<8x1xf32, #tpu.memory_space<vmem>>, vector<8x1xf32>
    %cst_61 = arith.constant 9.99999974E-6 : f32
    %125 = vector.broadcast %cst_61 : f32 to vector<8x1xf32>
    %126 = arith.addf %123, %125 : vector<8x1xf32>
    %127 = math.rsqrt %126 : vector<8x1xf32>
    %128 = arith.mulf %124, %127 : vector<8x1xf32>
    %c0_62 = arith.constant 0 : index
    %c0_63 = arith.constant 0 : index
    %129 = vector.load %arg3[%c0_62, %c0_63] : memref<8x1xf32, #tpu.memory_space<vmem>>, vector<8x1xf32>
    %130 = arith.mulf %114, %128 : vector<8x1xf32>
    %131 = arith.subf %129, %130 : vector<8x1xf32>
    %132 = vector.broadcast %128 : vector<8x1xf32> to vector<8x512xf32>
    %133 = arith.mulf %110, %132 : vector<8x512xf32>
    %134 = vector.broadcast %131 : vector<8x1xf32> to vector<8x512xf32>
    %135 = arith.addf %133, %134 : vector<8x512xf32>
    %cst_64 = arith.constant 0.000000e+00 : f32
    %136 = vector.broadcast %cst_64 : f32 to vector<8x512xf32>
    %137 = arith.cmpf oge, %135, %136 : vector<8x512xf32>
    %cst_65 = arith.constant 0.00999999977 : f32
    %138 = vector.broadcast %cst_65 : f32 to vector<8x512xf32>
    %139 = arith.mulf %138, %135 : vector<8x512xf32>
    %140 = arith.select %137, %135, %139 : vector<8x512xi1>, vector<8x512xf32>
    %c0_66 = arith.constant 0 : index
    %c0_67 = arith.constant 0 : index
    %141 = vector.load %arg4[%c0_66, %c0_67] : memref<8x512xf32, #tpu.memory_space<vmem>>, vector<8x512xf32>
    tpu.vector_store %arg4[%c0_66, %c0_67], %140 {strides = array<i32>} : memref<8x512xf32, #tpu.memory_space<vmem>>, vector<8x512xf32>,
    return
  }
}

module attributes {stable_mosaic.version = 11 : i64} {
  func.func @kernel(%arg0: memref<4x512xf32, #tpu.memory_space<vmem>>, %arg1: memref<9x8x4xf32, #tpu.memory_space<vmem>>, %arg2: memref<8x1xf32, #tpu.memory_space<vmem>>, %arg3: memref<8x1xf32, #tpu.memory_space<vmem>>, %arg4: memref<8x512xf32, #tpu.memory_space<vmem>>) attributes {dimension_semantics = [], scalar_prefetch = 0 : i64, scratch_operands = 0 : i64, tpu.core_type = #tpu.core_type<tc>} {
    %c0 = arith.constant 0 : index
    %c0_0 = arith.constant 0 : index
    %0 = vector.load %arg0[%c0, %c0_0] : memref<4x512xf32, #tpu.memory_space<vmem>>, vector<4x512xf32>
    %1 = tpu.iota {dimensions = array<i32: 1>} : vector<4x512xi32>
    %c255_i32 = arith.constant 255 : i32
    %2 = vector.broadcast %c255_i32 : i32 to vector<4x512xi32>
    %3 = arith.andi %1, %2 : vector<4x512xi32>
    %c15_i32 = arith.constant 15 : i32
    %4 = vector.broadcast %c15_i32 : i32 to vector<4x512xi32>
    %5 = arith.andi %1, %4 : vector<4x512xi32>
    %cst = arith.constant 0.000000e+00 : f32
    %6 = vector.broadcast %cst : f32 to vector<8x512xf32>
    %cst_1 = arith.constant 0.000000e+00 : f32
    %7 = vector.broadcast %cst_1 : f32 to vector<4x17xf32>
    %8 = vector.extract_strided_slice %0 {offsets = [0, 0], sizes = [4, 495], strides = [1, 1]} : vector<4x512xf32> to vector<4x495xf32>
    %9 = tpu.concatenate %7, %8 in 1 : vector<4x17xf32>, vector<4x495xf32> -> vector<4x512xf32>
    %c16_i32 = arith.constant 16 : i32
    %10 = vector.broadcast %c16_i32 : i32 to vector<4x512xi32>
    %11 = arith.cmpi sge, %3, %10 : vector<4x512xi32>
    %c1_i32 = arith.constant 1 : i32
    %12 = vector.broadcast %c1_i32 : i32 to vector<4x512xi32>
    %13 = arith.cmpi sge, %5, %12 : vector<4x512xi32>
    %14 = arith.andi %11, %13 : vector<4x512xi1>
    %cst_2 = arith.constant 0.000000e+00 : f32
    %15 = vector.broadcast %cst_2 : f32 to vector<4x512xf32>
    %16 = arith.select %14, %9, %15 : vector<4x512xi1>, vector<4x512xf32>
    %c0_3 = arith.constant 0 : index
    %c0_4 = arith.constant 0 : index
    %c0_5 = arith.constant 0 : index
    %17 = vector.load %arg1[%c0_3, %c0_4, %c0_5] : memref<9x8x4xf32, #tpu.memory_space<vmem>>, vector<1x8x4xf32>
    %18 = vector.shape_cast %17 : vector<1x8x4xf32> to vector<8x4xf32>
    %cst_6 = arith.constant dense<0.000000e+00> : vector<8x512xf32>
    %19 = tpu.matmul %18, %16, %cst_6 {dimension_numbers = #tpu.dot_dimension_numbers<[1], [0], [0], [1], [0, 0, 1, 1], [], []>} : vector<8x4xf32>, vector<4x512xf32>, vector<8x512xf32> -> vector<8x512xf32>
    %20 = arith.addf %6, %19 : vector<8x512xf32>
    %cst_7 = arith.constant 0.000000e+00 : f32
    %21 = vector.broadcast %cst_7 : f32 to vector<4x16xf32>
    %22 = vector.extract_strided_slice %0 {offsets = [0, 0], sizes = [4, 496], strides = [1, 1]} : vector<4x512xf32> to vector<4x496xf32>
    %23 = tpu.concatenate %21, %22 in 1 : vector<4x16xf32>, vector<4x496xf32> -> vector<4x512xf32>
    %c16_i32_8 = arith.constant 16 : i32
    %24 = vector.broadcast %c16_i32_8 : i32 to vector<4x512xi32>
    %25 = arith.cmpi sge, %3, %24 : vector<4x512xi32>
    %cst_9 = arith.constant 0.000000e+00 : f32
    %26 = vector.broadcast %cst_9 : f32 to vector<4x512xf32>
    %27 = arith.select %25, %23, %26 : vector<4x512xi1>, vector<4x512xf32>
    %c1 = arith.constant 1 : index
    %c0_10 = arith.constant 0 : index
    %c0_11 = arith.constant 0 : index
    %28 = vector.load %arg1[%c1, %c0_10, %c0_11] : memref<9x8x4xf32, #tpu.memory_space<vmem>>, vector<1x8x4xf32>
    %29 = vector.shape_cast %28 : vector<1x8x4xf32> to vector<8x4xf32>
    %cst_12 = arith.constant dense<0.000000e+00> : vector<8x512xf32>
    %30 = tpu.matmul %29, %27, %cst_12 {dimension_numbers = #tpu.dot_dimension_numbers<[1], [0], [0], [1], [0, 0, 1, 1], [], []>} : vector<8x4xf32>, vector<4x512xf32>, vector<8x512xf32> -> vector<8x512xf32>
    %31 = arith.addf %20, %30 : vector<8x512xf32>
    %cst_13 = arith.constant 0.000000e+00 : f32
    %32 = vector.broadcast %cst_13 : f32 to vector<4x15xf32>
    %33 = vector.extract_strided_slice %0 {offsets = [0, 0], sizes = [4, 497], strides = [1, 1]} : vector<4x512xf32> to vector<4x497xf32>
    %34 = tpu.concatenate %32, %33 in 1 : vector<4x15xf32>, vector<4x497xf32> -> vector<4x512xf32>
    %c16_i32_14 = arith.constant 16 : i32
    %35 = vector.broadcast %c16_i32_14 : i32 to vector<4x512xi32>
    %36 = arith.cmpi sge, %3, %35 : vector<4x512xi32>
    %c15_i32_15 = arith.constant 15 : i32
    %37 = vector.broadcast %c15_i32_15 : i32 to vector<4x512xi32>
    %38 = arith.cmpi slt, %5, %37 : vector<4x512xi32>
    %39 = arith.andi %36, %38 : vector<4x512xi1>
    %cst_16 = arith.constant 0.000000e+00 : f32
    %40 = vector.broadcast %cst_16 : f32 to vector<4x512xf32>
    %41 = arith.select %39, %34, %40 : vector<4x512xi1>, vector<4x512xf32>
    %c2 = arith.constant 2 : index
    %c0_17 = arith.constant 0 : index
    %c0_18 = arith.constant 0 : index
    %42 = vector.load %arg1[%c2, %c0_17, %c0_18] : memref<9x8x4xf32, #tpu.memory_space<vmem>>, vector<1x8x4xf32>
    %43 = vector.shape_cast %42 : vector<1x8x4xf32> to vector<8x4xf32>
    %cst_19 = arith.constant dense<0.000000e+00> : vector<8x512xf32>
    %44 = tpu.matmul %43, %41, %cst_19 {dimension_numbers = #tpu.dot_dimension_numbers<[1], [0], [0], [1], [0, 0, 1, 1], [], []>} : vector<8x4xf32>, vector<4x512xf32>, vector<8x512xf32> -> vector<8x512xf32>
    %45 = arith.addf %31, %44 : vector<8x512xf32>
    %cst_20 = arith.constant 0.000000e+00 : f32
    %46 = vector.broadcast %cst_20 : f32 to vector<4x1xf32>
    %47 = vector.extract_strided_slice %0 {offsets = [0, 0], sizes = [4, 511], strides = [1, 1]} : vector<4x512xf32> to vector<4x511xf32>
    %48 = tpu.concatenate %46, %47 in 1 : vector<4x1xf32>, vector<4x511xf32> -> vector<4x512xf32>
    %c1_i32_21 = arith.constant 1 : i32
    %49 = vector.broadcast %c1_i32_21 : i32 to vector<4x512xi32>
    %50 = arith.cmpi sge, %5, %49 : vector<4x512xi32>
    %cst_22 = arith.constant 0.000000e+00 : f32
    %51 = vector.broadcast %cst_22 : f32 to vector<4x512xf32>
    %52 = arith.select %50, %48, %51 : vector<4x512xi1>, vector<4x512xf32>
    %c3 = arith.constant 3 : index
    %c0_23 = arith.constant 0 : index
    %c0_24 = arith.constant 0 : index
    %53 = vector.load %arg1[%c3, %c0_23, %c0_24] : memref<9x8x4xf32, #tpu.memory_space<vmem>>, vector<1x8x4xf32>
    %54 = vector.shape_cast %53 : vector<1x8x4xf32> to vector<8x4xf32>
    %cst_25 = arith.constant dense<0.000000e+00> : vector<8x512xf32>
    %55 = tpu.matmul %54, %52, %cst_25 {dimension_numbers = #tpu.dot_dimension_numbers<[1], [0], [0], [1], [0, 0, 1, 1], [], []>} : vector<8x4xf32>, vector<4x512xf32>, vector<8x512xf32> -> vector<8x512xf32>
    %56 = arith.addf %45, %55 : vector<8x512xf32>
    %c4 = arith.constant 4 : index
    %c0_26 = arith.constant 0 : index
    %c0_27 = arith.constant 0 : index
    %57 = vector.load %arg1[%c4, %c0_26, %c0_27] : memref<9x8x4xf32, #tpu.memory_space<vmem>>, vector<1x8x4xf32>
    %58 = vector.shape_cast %57 : vector<1x8x4xf32> to vector<8x4xf32>
    %cst_28 = arith.constant dense<0.000000e+00> : vector<8x512xf32>
    %59 = tpu.matmul %58, %0, %cst_28 {dimension_numbers = #tpu.dot_dimension_numbers<[1], [0], [0], [1], [0, 0, 1, 1], [], []>} : vector<8x4xf32>, vector<4x512xf32>, vector<8x512xf32> -> vector<8x512xf32>
    %60 = arith.addf %56, %59 : vector<8x512xf32>
    %cst_29 = arith.constant 0.000000e+00 : f32
    %61 = vector.broadcast %cst_29 : f32 to vector<4x1xf32>
    %62 = vector.extract_strided_slice %0 {offsets = [0, 1], sizes = [4, 511], strides = [1, 1]} : vector<4x512xf32> to vector<4x511xf32>
    %63 = tpu.concatenate %62, %61 in 1 : vector<4x511xf32>, vector<4x1xf32> -> vector<4x512xf32>
    %c15_i32_30 = arith.constant 15 : i32
    %64 = vector.broadcast %c15_i32_30 : i32 to vector<4x512xi32>
    %65 = arith.cmpi slt, %5, %64 : vector<4x512xi32>
    %cst_31 = arith.constant 0.000000e+00 : f32
    %66 = vector.broadcast %cst_31 : f32 to vector<4x512xf32>
    %67 = arith.select %65, %63, %66 : vector<4x512xi1>, vector<4x512xf32>
    %c5 = arith.constant 5 : index
    %c0_32 = arith.constant 0 : index
    %c0_33 = arith.constant 0 : index
    %68 = vector.load %arg1[%c5, %c0_32, %c0_33] : memref<9x8x4xf32, #tpu.memory_space<vmem>>, vector<1x8x4xf32>
    %69 = vector.shape_cast %68 : vector<1x8x4xf32> to vector<8x4xf32>
    %cst_34 = arith.constant dense<0.000000e+00> : vector<8x512xf32>
    %70 = tpu.matmul %69, %67, %cst_34 {dimension_numbers = #tpu.dot_dimension_numbers<[1], [0], [0], [1], [0, 0, 1, 1], [], []>} : vector<8x4xf32>, vector<4x512xf32>, vector<8x512xf32> -> vector<8x512xf32>
    %71 = arith.addf %60, %70 : vector<8x512xf32>
    %cst_35 = arith.constant 0.000000e+00 : f32
    %72 = vector.broadcast %cst_35 : f32 to vector<4x15xf32>
    %73 = vector.extract_strided_slice %0 {offsets = [0, 15], sizes = [4, 497], strides = [1, 1]} : vector<4x512xf32> to vector<4x497xf32>
    %74 = tpu.concatenate %73, %72 in 1 : vector<4x497xf32>, vector<4x15xf32> -> vector<4x512xf32>
    %c240_i32 = arith.constant 240 : i32
    %75 = vector.broadcast %c240_i32 : i32 to vector<4x512xi32>
    %76 = arith.cmpi slt, %3, %75 : vector<4x512xi32>
    %c1_i32_36 = arith.constant 1 : i32
    %77 = vector.broadcast %c1_i32_36 : i32 to vector<4x512xi32>
    %78 = arith.cmpi sge, %5, %77 : vector<4x512xi32>
    %79 = arith.andi %76, %78 : vector<4x512xi1>
    %cst_37 = arith.constant 0.000000e+00 : f32
    %80 = vector.broadcast %cst_37 : f32 to vector<4x512xf32>
    %81 = arith.select %79, %74, %80 : vector<4x512xi1>, vector<4x512xf32>
    %c6 = arith.constant 6 : index
    %c0_38 = arith.constant 0 : index
    %c0_39 = arith.constant 0 : index
    %82 = vector.load %arg1[%c6, %c0_38, %c0_39] : memref<9x8x4xf32, #tpu.memory_space<vmem>>, vector<1x8x4xf32>
    %83 = vector.shape_cast %82 : vector<1x8x4xf32> to vector<8x4xf32>
    %cst_40 = arith.constant dense<0.000000e+00> : vector<8x512xf32>
    %84 = tpu.matmul %83, %81, %cst_40 {dimension_numbers = #tpu.dot_dimension_numbers<[1], [0], [0], [1], [0, 0, 1, 1], [], []>} : vector<8x4xf32>, vector<4x512xf32>, vector<8x512xf32> -> vector<8x512xf32>
    %85 = arith.addf %71, %84 : vector<8x512xf32>
    %cst_41 = arith.constant 0.000000e+00 : f32
    %86 = vector.broadcast %cst_41 : f32 to vector<4x16xf32>
    %87 = vector.extract_strided_slice %0 {offsets = [0, 16], sizes = [4, 496], strides = [1, 1]} : vector<4x512xf32> to vector<4x496xf32>
    %88 = tpu.concatenate %87, %86 in 1 : vector<4x496xf32>, vector<4x16xf32> -> vector<4x512xf32>
    %c240_i32_42 = arith.constant 240 : i32
    %89 = vector.broadcast %c240_i32_42 : i32 to vector<4x512xi32>
    %90 = arith.cmpi slt, %3, %89 : vector<4x512xi32>
    %cst_43 = arith.constant 0.000000e+00 : f32
    %91 = vector.broadcast %cst_43 : f32 to vector<4x512xf32>
    %92 = arith.select %90, %88, %91 : vector<4x512xi1>, vector<4x512xf32>
    %c7 = arith.constant 7 : index
    %c0_44 = arith.constant 0 : index
    %c0_45 = arith.constant 0 : index
    %93 = vector.load %arg1[%c7, %c0_44, %c0_45] : memref<9x8x4xf32, #tpu.memory_space<vmem>>, vector<1x8x4xf32>
    %94 = vector.shape_cast %93 : vector<1x8x4xf32> to vector<8x4xf32>
    %cst_46 = arith.constant dense<0.000000e+00> : vector<8x512xf32>
    %95 = tpu.matmul %94, %92, %cst_46 {dimension_numbers = #tpu.dot_dimension_numbers<[1], [0], [0], [1], [0, 0, 1, 1], [], []>} : vector<8x4xf32>, vector<4x512xf32>, vector<8x512xf32> -> vector<8x512xf32>
    %96 = arith.addf %85, %95 : vector<8x512xf32>
    %cst_47 = arith.constant 0.000000e+00 : f32
    %97 = vector.broadcast %cst_47 : f32 to vector<4x17xf32>
    %98 = vector.extract_strided_slice %0 {offsets = [0, 17], sizes = [4, 495], strides = [1, 1]} : vector<4x512xf32> to vector<4x495xf32>
    %99 = tpu.concatenate %98, %97 in 1 : vector<4x495xf32>, vector<4x17xf32> -> vector<4x512xf32>
    %c240_i32_48 = arith.constant 240 : i32
    %100 = vector.broadcast %c240_i32_48 : i32 to vector<4x512xi32>
    %101 = arith.cmpi slt, %3, %100 : vector<4x512xi32>
    %c15_i32_49 = arith.constant 15 : i32
    %102 = vector.broadcast %c15_i32_49 : i32 to vector<4x512xi32>
    %103 = arith.cmpi slt, %5, %102 : vector<4x512xi32>
    %104 = arith.andi %101, %103 : vector<4x512xi1>
    %cst_50 = arith.constant 0.000000e+00 : f32
    %105 = vector.broadcast %cst_50 : f32 to vector<4x512xf32>
    %106 = arith.select %104, %99, %105 : vector<4x512xi1>, vector<4x512xf32>
    %c8 = arith.constant 8 : index
    %c0_51 = arith.constant 0 : index
    %c0_52 = arith.constant 0 : index
    %107 = vector.load %arg1[%c8, %c0_51, %c0_52] : memref<9x8x4xf32, #tpu.memory_space<vmem>>, vector<1x8x4xf32>
    %108 = vector.shape_cast %107 : vector<1x8x4xf32> to vector<8x4xf32>
    %cst_53 = arith.constant dense<0.000000e+00> : vector<8x512xf32>
    %109 = tpu.matmul %108, %106, %cst_53 {dimension_numbers = #tpu.dot_dimension_numbers<[1], [0], [0], [1], [0, 0, 1, 1], [], []>} : vector<8x4xf32>, vector<4x512xf32>, vector<8x512xf32> -> vector<8x512xf32>
    %110 = arith.addf %96, %109 : vector<8x512xf32>
    %cst_54 = arith.constant dense<0.000000e+00> : vector<8xf32>
    %111 = vector.multi_reduction <add>, %110, %cst_54 [1] : vector<8x512xf32> to vector<8xf32>
    %112 = vector.shape_cast %111 : vector<8xf32> to vector<8x1xf32>
    %cst_55 = arith.constant 0.001953125 : f32
    %113 = vector.broadcast %cst_55 : f32 to vector<8x1xf32>
    %114 = arith.mulf %112, %113 : vector<8x1xf32>
    %115 = arith.mulf %110, %110 : vector<8x512xf32>
    %cst_56 = arith.constant dense<0.000000e+00> : vector<8xf32>
    %116 = vector.multi_reduction <add>, %115, %cst_56 [1] : vector<8x512xf32> to vector<8xf32>
    %117 = vector.shape_cast %116 : vector<8xf32> to vector<8x1xf32>
    %cst_57 = arith.constant 0.001953125 : f32
    %118 = vector.broadcast %cst_57 : f32 to vector<8x1xf32>
    %119 = arith.mulf %117, %118 : vector<8x1xf32>
    %120 = arith.mulf %114, %114 : vector<8x1xf32>
    %121 = arith.subf %119, %120 : vector<8x1xf32>
    %cst_58 = arith.constant 0.000000e+00 : f32
    %122 = vector.broadcast %cst_58 : f32 to vector<8x1xf32>
    %123 = arith.maximumf %121, %122 : vector<8x1xf32>
    %c0_59 = arith.constant 0 : index
    %c0_60 = arith.constant 0 : index
    %124 = vector.load %arg2[%c0_59, %c0_60] : memref<8x1xf32, #tpu.memory_space<vmem>>, vector<8x1xf32>
    %cst_61 = arith.constant 9.99999974E-6 : f32
    %125 = vector.broadcast %cst_61 : f32 to vector<8x1xf32>
    %126 = arith.addf %123, %125 : vector<8x1xf32>
    %127 = math.rsqrt %126 : vector<8x1xf32>
    %128 = arith.mulf %124, %127 : vector<8x1xf32>
    %c0_62 = arith.constant 0 : index
    %c0_63 = arith.constant 0 : index
    %129 = vector.load %arg3[%c0_62, %c0_63] : memref<8x1xf32, #tpu.memory_space<vmem>>, vector<8x1xf32>
    %130 = arith.mulf %114, %128 : vector<8x1xf32>
    %131 = arith.subf %129, %130 : vector<8x1xf32>
    %132 = vector.broadcast %128 : vector<8x1xf32> to vector<8x512xf32>
    %133 = arith.mulf %110, %132 : vector<8x512xf32>
    %134 = vector.broadcast %131 : vector<8x1xf32> to vector<8x512xf32>
    %135 = arith.addf %133, %134 : vector<8x512xf32>
    %cst_64 = arith.constant 0.000000e+00 : f32
    %136 = vector.broadcast %cst_64 : f32 to vector<8x512xf32>
    %137 = arith.cmpf oge, %135, %136 : vector<8x512xf32>
    %cst_65 = arith.constant 0.00999999977 : f32
    %138 = vector.broadcast %cst_65 : f32 to vector<8x512xf32>
    %139 = arith.mulf %138, %135 : vector<8x512xf32>
    %140 = arith.select %137, %135, %139 : vector<8x512xi1>, vector<8x512xf32>
    %c0_66 = arith.constant 0 : index
    %c0_67 = arith.constant 0 : index
    %141 = vector.load %arg4[%c0_66, %c0_67] : memref<8x512xf32, #tpu.memory_space<vmem>>, vector<8x512xf32>
    tpu.vector_store %arg4[%c0_66, %c0_67], %140 {strides = array<i32>} : memref<8x512xf32, #tpu.memory_space<vmem>>, vector<8x512xf32>,
    return
  }
}

module attributes {stable_mosaic.version = 11 : i64} {
  func.func @kernel(%arg0: memref<4x128xf32, #tpu.memory_space<vmem>>, %arg1: memref<9x8x4xf32, #tpu.memory_space<vmem>>, %arg2: memref<8x1xf32, #tpu.memory_space<vmem>>, %arg3: memref<8x1xf32, #tpu.memory_space<vmem>>, %arg4: memref<8x128xf32, #tpu.memory_space<vmem>>) attributes {dimension_semantics = [], scalar_prefetch = 0 : i64, scratch_operands = 0 : i64, tpu.core_type = #tpu.core_type<tc>} {
    %c0 = arith.constant 0 : index
    %c0_0 = arith.constant 0 : index
    %0 = vector.load %arg0[%c0, %c0_0] : memref<4x128xf32, #tpu.memory_space<vmem>>, vector<4x128xf32>
    %1 = tpu.iota {dimensions = array<i32: 1>} : vector<4x128xi32>
    %c63_i32 = arith.constant 63 : i32
    %2 = vector.broadcast %c63_i32 : i32 to vector<4x128xi32>
    %3 = arith.andi %1, %2 : vector<4x128xi32>
    %c7_i32 = arith.constant 7 : i32
    %4 = vector.broadcast %c7_i32 : i32 to vector<4x128xi32>
    %5 = arith.andi %1, %4 : vector<4x128xi32>
    %cst = arith.constant 0.000000e+00 : f32
    %6 = vector.broadcast %cst : f32 to vector<8x128xf32>
    %cst_1 = arith.constant 0.000000e+00 : f32
    %7 = vector.broadcast %cst_1 : f32 to vector<4x9xf32>
    %8 = vector.extract_strided_slice %0 {offsets = [0, 0], sizes = [4, 119], strides = [1, 1]} : vector<4x128xf32> to vector<4x119xf32>
    %9 = tpu.concatenate %7, %8 in 1 : vector<4x9xf32>, vector<4x119xf32> -> vector<4x128xf32>
    %c8_i32 = arith.constant 8 : i32
    %10 = vector.broadcast %c8_i32 : i32 to vector<4x128xi32>
    %11 = arith.cmpi sge, %3, %10 : vector<4x128xi32>
    %c1_i32 = arith.constant 1 : i32
    %12 = vector.broadcast %c1_i32 : i32 to vector<4x128xi32>
    %13 = arith.cmpi sge, %5, %12 : vector<4x128xi32>
    %14 = arith.andi %11, %13 : vector<4x128xi1>
    %cst_2 = arith.constant 0.000000e+00 : f32
    %15 = vector.broadcast %cst_2 : f32 to vector<4x128xf32>
    %16 = arith.select %14, %9, %15 : vector<4x128xi1>, vector<4x128xf32>
    %c0_3 = arith.constant 0 : index
    %c0_4 = arith.constant 0 : index
    %c0_5 = arith.constant 0 : index
    %17 = vector.load %arg1[%c0_3, %c0_4, %c0_5] : memref<9x8x4xf32, #tpu.memory_space<vmem>>, vector<1x8x4xf32>
    %18 = vector.shape_cast %17 : vector<1x8x4xf32> to vector<8x4xf32>
    %cst_6 = arith.constant dense<0.000000e+00> : vector<8x128xf32>
    %19 = tpu.matmul %18, %16, %cst_6 {dimension_numbers = #tpu.dot_dimension_numbers<[1], [0], [0], [1], [0, 0, 1, 1], [], []>} : vector<8x4xf32>, vector<4x128xf32>, vector<8x128xf32> -> vector<8x128xf32>
    %20 = arith.addf %6, %19 : vector<8x128xf32>
    %cst_7 = arith.constant 0.000000e+00 : f32
    %21 = vector.broadcast %cst_7 : f32 to vector<4x8xf32>
    %22 = vector.extract_strided_slice %0 {offsets = [0, 0], sizes = [4, 120], strides = [1, 1]} : vector<4x128xf32> to vector<4x120xf32>
    %23 = tpu.concatenate %21, %22 in 1 : vector<4x8xf32>, vector<4x120xf32> -> vector<4x128xf32>
    %c8_i32_8 = arith.constant 8 : i32
    %24 = vector.broadcast %c8_i32_8 : i32 to vector<4x128xi32>
    %25 = arith.cmpi sge, %3, %24 : vector<4x128xi32>
    %cst_9 = arith.constant 0.000000e+00 : f32
    %26 = vector.broadcast %cst_9 : f32 to vector<4x128xf32>
    %27 = arith.select %25, %23, %26 : vector<4x128xi1>, vector<4x128xf32>
    %c1 = arith.constant 1 : index
    %c0_10 = arith.constant 0 : index
    %c0_11 = arith.constant 0 : index
    %28 = vector.load %arg1[%c1, %c0_10, %c0_11] : memref<9x8x4xf32, #tpu.memory_space<vmem>>, vector<1x8x4xf32>
    %29 = vector.shape_cast %28 : vector<1x8x4xf32> to vector<8x4xf32>
    %cst_12 = arith.constant dense<0.000000e+00> : vector<8x128xf32>
    %30 = tpu.matmul %29, %27, %cst_12 {dimension_numbers = #tpu.dot_dimension_numbers<[1], [0], [0], [1], [0, 0, 1, 1], [], []>} : vector<8x4xf32>, vector<4x128xf32>, vector<8x128xf32> -> vector<8x128xf32>
    %31 = arith.addf %20, %30 : vector<8x128xf32>
    %cst_13 = arith.constant 0.000000e+00 : f32
    %32 = vector.broadcast %cst_13 : f32 to vector<4x7xf32>
    %33 = vector.extract_strided_slice %0 {offsets = [0, 0], sizes = [4, 121], strides = [1, 1]} : vector<4x128xf32> to vector<4x121xf32>
    %34 = tpu.concatenate %32, %33 in 1 : vector<4x7xf32>, vector<4x121xf32> -> vector<4x128xf32>
    %c8_i32_14 = arith.constant 8 : i32
    %35 = vector.broadcast %c8_i32_14 : i32 to vector<4x128xi32>
    %36 = arith.cmpi sge, %3, %35 : vector<4x128xi32>
    %c7_i32_15 = arith.constant 7 : i32
    %37 = vector.broadcast %c7_i32_15 : i32 to vector<4x128xi32>
    %38 = arith.cmpi slt, %5, %37 : vector<4x128xi32>
    %39 = arith.andi %36, %38 : vector<4x128xi1>
    %cst_16 = arith.constant 0.000000e+00 : f32
    %40 = vector.broadcast %cst_16 : f32 to vector<4x128xf32>
    %41 = arith.select %39, %34, %40 : vector<4x128xi1>, vector<4x128xf32>
    %c2 = arith.constant 2 : index
    %c0_17 = arith.constant 0 : index
    %c0_18 = arith.constant 0 : index
    %42 = vector.load %arg1[%c2, %c0_17, %c0_18] : memref<9x8x4xf32, #tpu.memory_space<vmem>>, vector<1x8x4xf32>
    %43 = vector.shape_cast %42 : vector<1x8x4xf32> to vector<8x4xf32>
    %cst_19 = arith.constant dense<0.000000e+00> : vector<8x128xf32>
    %44 = tpu.matmul %43, %41, %cst_19 {dimension_numbers = #tpu.dot_dimension_numbers<[1], [0], [0], [1], [0, 0, 1, 1], [], []>} : vector<8x4xf32>, vector<4x128xf32>, vector<8x128xf32> -> vector<8x128xf32>
    %45 = arith.addf %31, %44 : vector<8x128xf32>
    %cst_20 = arith.constant 0.000000e+00 : f32
    %46 = vector.broadcast %cst_20 : f32 to vector<4x1xf32>
    %47 = vector.extract_strided_slice %0 {offsets = [0, 0], sizes = [4, 127], strides = [1, 1]} : vector<4x128xf32> to vector<4x127xf32>
    %48 = tpu.concatenate %46, %47 in 1 : vector<4x1xf32>, vector<4x127xf32> -> vector<4x128xf32>
    %c1_i32_21 = arith.constant 1 : i32
    %49 = vector.broadcast %c1_i32_21 : i32 to vector<4x128xi32>
    %50 = arith.cmpi sge, %5, %49 : vector<4x128xi32>
    %cst_22 = arith.constant 0.000000e+00 : f32
    %51 = vector.broadcast %cst_22 : f32 to vector<4x128xf32>
    %52 = arith.select %50, %48, %51 : vector<4x128xi1>, vector<4x128xf32>
    %c3 = arith.constant 3 : index
    %c0_23 = arith.constant 0 : index
    %c0_24 = arith.constant 0 : index
    %53 = vector.load %arg1[%c3, %c0_23, %c0_24] : memref<9x8x4xf32, #tpu.memory_space<vmem>>, vector<1x8x4xf32>
    %54 = vector.shape_cast %53 : vector<1x8x4xf32> to vector<8x4xf32>
    %cst_25 = arith.constant dense<0.000000e+00> : vector<8x128xf32>
    %55 = tpu.matmul %54, %52, %cst_25 {dimension_numbers = #tpu.dot_dimension_numbers<[1], [0], [0], [1], [0, 0, 1, 1], [], []>} : vector<8x4xf32>, vector<4x128xf32>, vector<8x128xf32> -> vector<8x128xf32>
    %56 = arith.addf %45, %55 : vector<8x128xf32>
    %c4 = arith.constant 4 : index
    %c0_26 = arith.constant 0 : index
    %c0_27 = arith.constant 0 : index
    %57 = vector.load %arg1[%c4, %c0_26, %c0_27] : memref<9x8x4xf32, #tpu.memory_space<vmem>>, vector<1x8x4xf32>
    %58 = vector.shape_cast %57 : vector<1x8x4xf32> to vector<8x4xf32>
    %cst_28 = arith.constant dense<0.000000e+00> : vector<8x128xf32>
    %59 = tpu.matmul %58, %0, %cst_28 {dimension_numbers = #tpu.dot_dimension_numbers<[1], [0], [0], [1], [0, 0, 1, 1], [], []>} : vector<8x4xf32>, vector<4x128xf32>, vector<8x128xf32> -> vector<8x128xf32>
    %60 = arith.addf %56, %59 : vector<8x128xf32>
    %cst_29 = arith.constant 0.000000e+00 : f32
    %61 = vector.broadcast %cst_29 : f32 to vector<4x1xf32>
    %62 = vector.extract_strided_slice %0 {offsets = [0, 1], sizes = [4, 127], strides = [1, 1]} : vector<4x128xf32> to vector<4x127xf32>
    %63 = tpu.concatenate %62, %61 in 1 : vector<4x127xf32>, vector<4x1xf32> -> vector<4x128xf32>
    %c7_i32_30 = arith.constant 7 : i32
    %64 = vector.broadcast %c7_i32_30 : i32 to vector<4x128xi32>
    %65 = arith.cmpi slt, %5, %64 : vector<4x128xi32>
    %cst_31 = arith.constant 0.000000e+00 : f32
    %66 = vector.broadcast %cst_31 : f32 to vector<4x128xf32>
    %67 = arith.select %65, %63, %66 : vector<4x128xi1>, vector<4x128xf32>
    %c5 = arith.constant 5 : index
    %c0_32 = arith.constant 0 : index
    %c0_33 = arith.constant 0 : index
    %68 = vector.load %arg1[%c5, %c0_32, %c0_33] : memref<9x8x4xf32, #tpu.memory_space<vmem>>, vector<1x8x4xf32>
    %69 = vector.shape_cast %68 : vector<1x8x4xf32> to vector<8x4xf32>
    %cst_34 = arith.constant dense<0.000000e+00> : vector<8x128xf32>
    %70 = tpu.matmul %69, %67, %cst_34 {dimension_numbers = #tpu.dot_dimension_numbers<[1], [0], [0], [1], [0, 0, 1, 1], [], []>} : vector<8x4xf32>, vector<4x128xf32>, vector<8x128xf32> -> vector<8x128xf32>
    %71 = arith.addf %60, %70 : vector<8x128xf32>
    %cst_35 = arith.constant 0.000000e+00 : f32
    %72 = vector.broadcast %cst_35 : f32 to vector<4x7xf32>
    %73 = vector.extract_strided_slice %0 {offsets = [0, 7], sizes = [4, 121], strides = [1, 1]} : vector<4x128xf32> to vector<4x121xf32>
    %74 = tpu.concatenate %73, %72 in 1 : vector<4x121xf32>, vector<4x7xf32> -> vector<4x128xf32>
    %c56_i32 = arith.constant 56 : i32
    %75 = vector.broadcast %c56_i32 : i32 to vector<4x128xi32>
    %76 = arith.cmpi slt, %3, %75 : vector<4x128xi32>
    %c1_i32_36 = arith.constant 1 : i32
    %77 = vector.broadcast %c1_i32_36 : i32 to vector<4x128xi32>
    %78 = arith.cmpi sge, %5, %77 : vector<4x128xi32>
    %79 = arith.andi %76, %78 : vector<4x128xi1>
    %cst_37 = arith.constant 0.000000e+00 : f32
    %80 = vector.broadcast %cst_37 : f32 to vector<4x128xf32>
    %81 = arith.select %79, %74, %80 : vector<4x128xi1>, vector<4x128xf32>
    %c6 = arith.constant 6 : index
    %c0_38 = arith.constant 0 : index
    %c0_39 = arith.constant 0 : index
    %82 = vector.load %arg1[%c6, %c0_38, %c0_39] : memref<9x8x4xf32, #tpu.memory_space<vmem>>, vector<1x8x4xf32>
    %83 = vector.shape_cast %82 : vector<1x8x4xf32> to vector<8x4xf32>
    %cst_40 = arith.constant dense<0.000000e+00> : vector<8x128xf32>
    %84 = tpu.matmul %83, %81, %cst_40 {dimension_numbers = #tpu.dot_dimension_numbers<[1], [0], [0], [1], [0, 0, 1, 1], [], []>} : vector<8x4xf32>, vector<4x128xf32>, vector<8x128xf32> -> vector<8x128xf32>
    %85 = arith.addf %71, %84 : vector<8x128xf32>
    %cst_41 = arith.constant 0.000000e+00 : f32
    %86 = vector.broadcast %cst_41 : f32 to vector<4x8xf32>
    %87 = vector.extract_strided_slice %0 {offsets = [0, 8], sizes = [4, 120], strides = [1, 1]} : vector<4x128xf32> to vector<4x120xf32>
    %88 = tpu.concatenate %87, %86 in 1 : vector<4x120xf32>, vector<4x8xf32> -> vector<4x128xf32>
    %c56_i32_42 = arith.constant 56 : i32
    %89 = vector.broadcast %c56_i32_42 : i32 to vector<4x128xi32>
    %90 = arith.cmpi slt, %3, %89 : vector<4x128xi32>
    %cst_43 = arith.constant 0.000000e+00 : f32
    %91 = vector.broadcast %cst_43 : f32 to vector<4x128xf32>
    %92 = arith.select %90, %88, %91 : vector<4x128xi1>, vector<4x128xf32>
    %c7 = arith.constant 7 : index
    %c0_44 = arith.constant 0 : index
    %c0_45 = arith.constant 0 : index
    %93 = vector.load %arg1[%c7, %c0_44, %c0_45] : memref<9x8x4xf32, #tpu.memory_space<vmem>>, vector<1x8x4xf32>
    %94 = vector.shape_cast %93 : vector<1x8x4xf32> to vector<8x4xf32>
    %cst_46 = arith.constant dense<0.000000e+00> : vector<8x128xf32>
    %95 = tpu.matmul %94, %92, %cst_46 {dimension_numbers = #tpu.dot_dimension_numbers<[1], [0], [0], [1], [0, 0, 1, 1], [], []>} : vector<8x4xf32>, vector<4x128xf32>, vector<8x128xf32> -> vector<8x128xf32>
    %96 = arith.addf %85, %95 : vector<8x128xf32>
    %cst_47 = arith.constant 0.000000e+00 : f32
    %97 = vector.broadcast %cst_47 : f32 to vector<4x9xf32>
    %98 = vector.extract_strided_slice %0 {offsets = [0, 9], sizes = [4, 119], strides = [1, 1]} : vector<4x128xf32> to vector<4x119xf32>
    %99 = tpu.concatenate %98, %97 in 1 : vector<4x119xf32>, vector<4x9xf32> -> vector<4x128xf32>
    %c56_i32_48 = arith.constant 56 : i32
    %100 = vector.broadcast %c56_i32_48 : i32 to vector<4x128xi32>
    %101 = arith.cmpi slt, %3, %100 : vector<4x128xi32>
    %c7_i32_49 = arith.constant 7 : i32
    %102 = vector.broadcast %c7_i32_49 : i32 to vector<4x128xi32>
    %103 = arith.cmpi slt, %5, %102 : vector<4x128xi32>
    %104 = arith.andi %101, %103 : vector<4x128xi1>
    %cst_50 = arith.constant 0.000000e+00 : f32
    %105 = vector.broadcast %cst_50 : f32 to vector<4x128xf32>
    %106 = arith.select %104, %99, %105 : vector<4x128xi1>, vector<4x128xf32>
    %c8 = arith.constant 8 : index
    %c0_51 = arith.constant 0 : index
    %c0_52 = arith.constant 0 : index
    %107 = vector.load %arg1[%c8, %c0_51, %c0_52] : memref<9x8x4xf32, #tpu.memory_space<vmem>>, vector<1x8x4xf32>
    %108 = vector.shape_cast %107 : vector<1x8x4xf32> to vector<8x4xf32>
    %cst_53 = arith.constant dense<0.000000e+00> : vector<8x128xf32>
    %109 = tpu.matmul %108, %106, %cst_53 {dimension_numbers = #tpu.dot_dimension_numbers<[1], [0], [0], [1], [0, 0, 1, 1], [], []>} : vector<8x4xf32>, vector<4x128xf32>, vector<8x128xf32> -> vector<8x128xf32>
    %110 = arith.addf %96, %109 : vector<8x128xf32>
    %cst_54 = arith.constant dense<0.000000e+00> : vector<8xf32>
    %111 = vector.multi_reduction <add>, %110, %cst_54 [1] : vector<8x128xf32> to vector<8xf32>
    %112 = vector.shape_cast %111 : vector<8xf32> to vector<8x1xf32>
    %cst_55 = arith.constant 7.812500e-03 : f32
    %113 = vector.broadcast %cst_55 : f32 to vector<8x1xf32>
    %114 = arith.mulf %112, %113 : vector<8x1xf32>
    %115 = arith.mulf %110, %110 : vector<8x128xf32>
    %cst_56 = arith.constant dense<0.000000e+00> : vector<8xf32>
    %116 = vector.multi_reduction <add>, %115, %cst_56 [1] : vector<8x128xf32> to vector<8xf32>
    %117 = vector.shape_cast %116 : vector<8xf32> to vector<8x1xf32>
    %cst_57 = arith.constant 7.812500e-03 : f32
    %118 = vector.broadcast %cst_57 : f32 to vector<8x1xf32>
    %119 = arith.mulf %117, %118 : vector<8x1xf32>
    %120 = arith.mulf %114, %114 : vector<8x1xf32>
    %121 = arith.subf %119, %120 : vector<8x1xf32>
    %cst_58 = arith.constant 0.000000e+00 : f32
    %122 = vector.broadcast %cst_58 : f32 to vector<8x1xf32>
    %123 = arith.maximumf %121, %122 : vector<8x1xf32>
    %c0_59 = arith.constant 0 : index
    %c0_60 = arith.constant 0 : index
    %124 = vector.load %arg2[%c0_59, %c0_60] : memref<8x1xf32, #tpu.memory_space<vmem>>, vector<8x1xf32>
    %cst_61 = arith.constant 9.99999974E-6 : f32
    %125 = vector.broadcast %cst_61 : f32 to vector<8x1xf32>
    %126 = arith.addf %123, %125 : vector<8x1xf32>
    %127 = math.rsqrt %126 : vector<8x1xf32>
    %128 = arith.mulf %124, %127 : vector<8x1xf32>
    %c0_62 = arith.constant 0 : index
    %c0_63 = arith.constant 0 : index
    %129 = vector.load %arg3[%c0_62, %c0_63] : memref<8x1xf32, #tpu.memory_space<vmem>>, vector<8x1xf32>
    %130 = arith.mulf %114, %128 : vector<8x1xf32>
    %131 = arith.subf %129, %130 : vector<8x1xf32>
    %132 = vector.broadcast %128 : vector<8x1xf32> to vector<8x128xf32>
    %133 = arith.mulf %110, %132 : vector<8x128xf32>
    %134 = vector.broadcast %131 : vector<8x1xf32> to vector<8x128xf32>
    %135 = arith.addf %133, %134 : vector<8x128xf32>
    %cst_64 = arith.constant 0.000000e+00 : f32
    %136 = vector.broadcast %cst_64 : f32 to vector<8x128xf32>
    %137 = arith.cmpf oge, %135, %136 : vector<8x128xf32>
    %cst_65 = arith.constant 0.00999999977 : f32
    %138 = vector.broadcast %cst_65 : f32 to vector<8x128xf32>
    %139 = arith.mulf %138, %135 : vector<8x128xf32>
    %140 = arith.select %137, %135, %139 : vector<8x128xi1>, vector<8x128xf32>
    %c0_66 = arith.constant 0 : index
    %c0_67 = arith.constant 0 : index
    %141 = vector.load %arg4[%c0_66, %c0_67] : memref<8x128xf32, #tpu.memory_space<vmem>>, vector<8x128xf32>
    tpu.vector_store %arg4[%c0_66, %c0_67], %140 {strides = array<i32>} : memref<8x128xf32, #tpu.memory_space<vmem>>, vector<8x128xf32>,
    return
  }
}

module attributes {stable_mosaic.version = 11 : i64} {
  func.func @kernel(%arg0: memref<4x128xf32, #tpu.memory_space<vmem>>, %arg1: memref<9x4x4xf32, #tpu.memory_space<vmem>>, %arg2: memref<4x1xf32, #tpu.memory_space<vmem>>, %arg3: memref<4x1xf32, #tpu.memory_space<vmem>>, %arg4: memref<4x128xf32, #tpu.memory_space<vmem>>) attributes {dimension_semantics = [], scalar_prefetch = 0 : i64, scratch_operands = 0 : i64, tpu.core_type = #tpu.core_type<tc>} {
    %c0 = arith.constant 0 : index
    %c0_0 = arith.constant 0 : index
    %0 = vector.load %arg0[%c0, %c0_0] : memref<4x128xf32, #tpu.memory_space<vmem>>, vector<4x128xf32>
    %1 = tpu.iota {dimensions = array<i32: 1>} : vector<4x128xi32>
    %c63_i32 = arith.constant 63 : i32
    %2 = vector.broadcast %c63_i32 : i32 to vector<4x128xi32>
    %3 = arith.andi %1, %2 : vector<4x128xi32>
    %c7_i32 = arith.constant 7 : i32
    %4 = vector.broadcast %c7_i32 : i32 to vector<4x128xi32>
    %5 = arith.andi %1, %4 : vector<4x128xi32>
    %cst = arith.constant 0.000000e+00 : f32
    %6 = vector.broadcast %cst : f32 to vector<4x128xf32>
    %cst_1 = arith.constant 0.000000e+00 : f32
    %7 = vector.broadcast %cst_1 : f32 to vector<4x9xf32>
    %8 = vector.extract_strided_slice %0 {offsets = [0, 0], sizes = [4, 119], strides = [1, 1]} : vector<4x128xf32> to vector<4x119xf32>
    %9 = tpu.concatenate %7, %8 in 1 : vector<4x9xf32>, vector<4x119xf32> -> vector<4x128xf32>
    %c8_i32 = arith.constant 8 : i32
    %10 = vector.broadcast %c8_i32 : i32 to vector<4x128xi32>
    %11 = arith.cmpi sge, %3, %10 : vector<4x128xi32>
    %c1_i32 = arith.constant 1 : i32
    %12 = vector.broadcast %c1_i32 : i32 to vector<4x128xi32>
    %13 = arith.cmpi sge, %5, %12 : vector<4x128xi32>
    %14 = arith.andi %11, %13 : vector<4x128xi1>
    %cst_2 = arith.constant 0.000000e+00 : f32
    %15 = vector.broadcast %cst_2 : f32 to vector<4x128xf32>
    %16 = arith.select %14, %9, %15 : vector<4x128xi1>, vector<4x128xf32>
    %c0_3 = arith.constant 0 : index
    %c0_4 = arith.constant 0 : index
    %c0_5 = arith.constant 0 : index
    %17 = vector.load %arg1[%c0_3, %c0_4, %c0_5] : memref<9x4x4xf32, #tpu.memory_space<vmem>>, vector<1x4x4xf32>
    %18 = vector.shape_cast %17 : vector<1x4x4xf32> to vector<4x4xf32>
    %cst_6 = arith.constant dense<0.000000e+00> : vector<4x128xf32>
    %19 = tpu.matmul %18, %16, %cst_6 {dimension_numbers = #tpu.dot_dimension_numbers<[1], [0], [0], [1], [0, 0, 1, 1], [], []>} : vector<4x4xf32>, vector<4x128xf32>, vector<4x128xf32> -> vector<4x128xf32>
    %20 = arith.addf %6, %19 : vector<4x128xf32>
    %cst_7 = arith.constant 0.000000e+00 : f32
    %21 = vector.broadcast %cst_7 : f32 to vector<4x8xf32>
    %22 = vector.extract_strided_slice %0 {offsets = [0, 0], sizes = [4, 120], strides = [1, 1]} : vector<4x128xf32> to vector<4x120xf32>
    %23 = tpu.concatenate %21, %22 in 1 : vector<4x8xf32>, vector<4x120xf32> -> vector<4x128xf32>
    %c8_i32_8 = arith.constant 8 : i32
    %24 = vector.broadcast %c8_i32_8 : i32 to vector<4x128xi32>
    %25 = arith.cmpi sge, %3, %24 : vector<4x128xi32>
    %cst_9 = arith.constant 0.000000e+00 : f32
    %26 = vector.broadcast %cst_9 : f32 to vector<4x128xf32>
    %27 = arith.select %25, %23, %26 : vector<4x128xi1>, vector<4x128xf32>
    %c1 = arith.constant 1 : index
    %c0_10 = arith.constant 0 : index
    %c0_11 = arith.constant 0 : index
    %28 = vector.load %arg1[%c1, %c0_10, %c0_11] : memref<9x4x4xf32, #tpu.memory_space<vmem>>, vector<1x4x4xf32>
    %29 = vector.shape_cast %28 : vector<1x4x4xf32> to vector<4x4xf32>
    %cst_12 = arith.constant dense<0.000000e+00> : vector<4x128xf32>
    %30 = tpu.matmul %29, %27, %cst_12 {dimension_numbers = #tpu.dot_dimension_numbers<[1], [0], [0], [1], [0, 0, 1, 1], [], []>} : vector<4x4xf32>, vector<4x128xf32>, vector<4x128xf32> -> vector<4x128xf32>
    %31 = arith.addf %20, %30 : vector<4x128xf32>
    %cst_13 = arith.constant 0.000000e+00 : f32
    %32 = vector.broadcast %cst_13 : f32 to vector<4x7xf32>
    %33 = vector.extract_strided_slice %0 {offsets = [0, 0], sizes = [4, 121], strides = [1, 1]} : vector<4x128xf32> to vector<4x121xf32>
    %34 = tpu.concatenate %32, %33 in 1 : vector<4x7xf32>, vector<4x121xf32> -> vector<4x128xf32>
    %c8_i32_14 = arith.constant 8 : i32
    %35 = vector.broadcast %c8_i32_14 : i32 to vector<4x128xi32>
    %36 = arith.cmpi sge, %3, %35 : vector<4x128xi32>
    %c7_i32_15 = arith.constant 7 : i32
    %37 = vector.broadcast %c7_i32_15 : i32 to vector<4x128xi32>
    %38 = arith.cmpi slt, %5, %37 : vector<4x128xi32>
    %39 = arith.andi %36, %38 : vector<4x128xi1>
    %cst_16 = arith.constant 0.000000e+00 : f32
    %40 = vector.broadcast %cst_16 : f32 to vector<4x128xf32>
    %41 = arith.select %39, %34, %40 : vector<4x128xi1>, vector<4x128xf32>
    %c2 = arith.constant 2 : index
    %c0_17 = arith.constant 0 : index
    %c0_18 = arith.constant 0 : index
    %42 = vector.load %arg1[%c2, %c0_17, %c0_18] : memref<9x4x4xf32, #tpu.memory_space<vmem>>, vector<1x4x4xf32>
    %43 = vector.shape_cast %42 : vector<1x4x4xf32> to vector<4x4xf32>
    %cst_19 = arith.constant dense<0.000000e+00> : vector<4x128xf32>
    %44 = tpu.matmul %43, %41, %cst_19 {dimension_numbers = #tpu.dot_dimension_numbers<[1], [0], [0], [1], [0, 0, 1, 1], [], []>} : vector<4x4xf32>, vector<4x128xf32>, vector<4x128xf32> -> vector<4x128xf32>
    %45 = arith.addf %31, %44 : vector<4x128xf32>
    %cst_20 = arith.constant 0.000000e+00 : f32
    %46 = vector.broadcast %cst_20 : f32 to vector<4x1xf32>
    %47 = vector.extract_strided_slice %0 {offsets = [0, 0], sizes = [4, 127], strides = [1, 1]} : vector<4x128xf32> to vector<4x127xf32>
    %48 = tpu.concatenate %46, %47 in 1 : vector<4x1xf32>, vector<4x127xf32> -> vector<4x128xf32>
    %c1_i32_21 = arith.constant 1 : i32
    %49 = vector.broadcast %c1_i32_21 : i32 to vector<4x128xi32>
    %50 = arith.cmpi sge, %5, %49 : vector<4x128xi32>
    %cst_22 = arith.constant 0.000000e+00 : f32
    %51 = vector.broadcast %cst_22 : f32 to vector<4x128xf32>
    %52 = arith.select %50, %48, %51 : vector<4x128xi1>, vector<4x128xf32>
    %c3 = arith.constant 3 : index
    %c0_23 = arith.constant 0 : index
    %c0_24 = arith.constant 0 : index
    %53 = vector.load %arg1[%c3, %c0_23, %c0_24] : memref<9x4x4xf32, #tpu.memory_space<vmem>>, vector<1x4x4xf32>
    %54 = vector.shape_cast %53 : vector<1x4x4xf32> to vector<4x4xf32>
    %cst_25 = arith.constant dense<0.000000e+00> : vector<4x128xf32>
    %55 = tpu.matmul %54, %52, %cst_25 {dimension_numbers = #tpu.dot_dimension_numbers<[1], [0], [0], [1], [0, 0, 1, 1], [], []>} : vector<4x4xf32>, vector<4x128xf32>, vector<4x128xf32> -> vector<4x128xf32>
    %56 = arith.addf %45, %55 : vector<4x128xf32>
    %c4 = arith.constant 4 : index
    %c0_26 = arith.constant 0 : index
    %c0_27 = arith.constant 0 : index
    %57 = vector.load %arg1[%c4, %c0_26, %c0_27] : memref<9x4x4xf32, #tpu.memory_space<vmem>>, vector<1x4x4xf32>
    %58 = vector.shape_cast %57 : vector<1x4x4xf32> to vector<4x4xf32>
    %cst_28 = arith.constant dense<0.000000e+00> : vector<4x128xf32>
    %59 = tpu.matmul %58, %0, %cst_28 {dimension_numbers = #tpu.dot_dimension_numbers<[1], [0], [0], [1], [0, 0, 1, 1], [], []>} : vector<4x4xf32>, vector<4x128xf32>, vector<4x128xf32> -> vector<4x128xf32>
    %60 = arith.addf %56, %59 : vector<4x128xf32>
    %cst_29 = arith.constant 0.000000e+00 : f32
    %61 = vector.broadcast %cst_29 : f32 to vector<4x1xf32>
    %62 = vector.extract_strided_slice %0 {offsets = [0, 1], sizes = [4, 127], strides = [1, 1]} : vector<4x128xf32> to vector<4x127xf32>
    %63 = tpu.concatenate %62, %61 in 1 : vector<4x127xf32>, vector<4x1xf32> -> vector<4x128xf32>
    %c7_i32_30 = arith.constant 7 : i32
    %64 = vector.broadcast %c7_i32_30 : i32 to vector<4x128xi32>
    %65 = arith.cmpi slt, %5, %64 : vector<4x128xi32>
    %cst_31 = arith.constant 0.000000e+00 : f32
    %66 = vector.broadcast %cst_31 : f32 to vector<4x128xf32>
    %67 = arith.select %65, %63, %66 : vector<4x128xi1>, vector<4x128xf32>
    %c5 = arith.constant 5 : index
    %c0_32 = arith.constant 0 : index
    %c0_33 = arith.constant 0 : index
    %68 = vector.load %arg1[%c5, %c0_32, %c0_33] : memref<9x4x4xf32, #tpu.memory_space<vmem>>, vector<1x4x4xf32>
    %69 = vector.shape_cast %68 : vector<1x4x4xf32> to vector<4x4xf32>
    %cst_34 = arith.constant dense<0.000000e+00> : vector<4x128xf32>
    %70 = tpu.matmul %69, %67, %cst_34 {dimension_numbers = #tpu.dot_dimension_numbers<[1], [0], [0], [1], [0, 0, 1, 1], [], []>} : vector<4x4xf32>, vector<4x128xf32>, vector<4x128xf32> -> vector<4x128xf32>
    %71 = arith.addf %60, %70 : vector<4x128xf32>
    %cst_35 = arith.constant 0.000000e+00 : f32
    %72 = vector.broadcast %cst_35 : f32 to vector<4x7xf32>
    %73 = vector.extract_strided_slice %0 {offsets = [0, 7], sizes = [4, 121], strides = [1, 1]} : vector<4x128xf32> to vector<4x121xf32>
    %74 = tpu.concatenate %73, %72 in 1 : vector<4x121xf32>, vector<4x7xf32> -> vector<4x128xf32>
    %c56_i32 = arith.constant 56 : i32
    %75 = vector.broadcast %c56_i32 : i32 to vector<4x128xi32>
    %76 = arith.cmpi slt, %3, %75 : vector<4x128xi32>
    %c1_i32_36 = arith.constant 1 : i32
    %77 = vector.broadcast %c1_i32_36 : i32 to vector<4x128xi32>
    %78 = arith.cmpi sge, %5, %77 : vector<4x128xi32>
    %79 = arith.andi %76, %78 : vector<4x128xi1>
    %cst_37 = arith.constant 0.000000e+00 : f32
    %80 = vector.broadcast %cst_37 : f32 to vector<4x128xf32>
    %81 = arith.select %79, %74, %80 : vector<4x128xi1>, vector<4x128xf32>
    %c6 = arith.constant 6 : index
    %c0_38 = arith.constant 0 : index
    %c0_39 = arith.constant 0 : index
    %82 = vector.load %arg1[%c6, %c0_38, %c0_39] : memref<9x4x4xf32, #tpu.memory_space<vmem>>, vector<1x4x4xf32>
    %83 = vector.shape_cast %82 : vector<1x4x4xf32> to vector<4x4xf32>
    %cst_40 = arith.constant dense<0.000000e+00> : vector<4x128xf32>
    %84 = tpu.matmul %83, %81, %cst_40 {dimension_numbers = #tpu.dot_dimension_numbers<[1], [0], [0], [1], [0, 0, 1, 1], [], []>} : vector<4x4xf32>, vector<4x128xf32>, vector<4x128xf32> -> vector<4x128xf32>
    %85 = arith.addf %71, %84 : vector<4x128xf32>
    %cst_41 = arith.constant 0.000000e+00 : f32
    %86 = vector.broadcast %cst_41 : f32 to vector<4x8xf32>
    %87 = vector.extract_strided_slice %0 {offsets = [0, 8], sizes = [4, 120], strides = [1, 1]} : vector<4x128xf32> to vector<4x120xf32>
    %88 = tpu.concatenate %87, %86 in 1 : vector<4x120xf32>, vector<4x8xf32> -> vector<4x128xf32>
    %c56_i32_42 = arith.constant 56 : i32
    %89 = vector.broadcast %c56_i32_42 : i32 to vector<4x128xi32>
    %90 = arith.cmpi slt, %3, %89 : vector<4x128xi32>
    %cst_43 = arith.constant 0.000000e+00 : f32
    %91 = vector.broadcast %cst_43 : f32 to vector<4x128xf32>
    %92 = arith.select %90, %88, %91 : vector<4x128xi1>, vector<4x128xf32>
    %c7 = arith.constant 7 : index
    %c0_44 = arith.constant 0 : index
    %c0_45 = arith.constant 0 : index
    %93 = vector.load %arg1[%c7, %c0_44, %c0_45] : memref<9x4x4xf32, #tpu.memory_space<vmem>>, vector<1x4x4xf32>
    %94 = vector.shape_cast %93 : vector<1x4x4xf32> to vector<4x4xf32>
    %cst_46 = arith.constant dense<0.000000e+00> : vector<4x128xf32>
    %95 = tpu.matmul %94, %92, %cst_46 {dimension_numbers = #tpu.dot_dimension_numbers<[1], [0], [0], [1], [0, 0, 1, 1], [], []>} : vector<4x4xf32>, vector<4x128xf32>, vector<4x128xf32> -> vector<4x128xf32>
    %96 = arith.addf %85, %95 : vector<4x128xf32>
    %cst_47 = arith.constant 0.000000e+00 : f32
    %97 = vector.broadcast %cst_47 : f32 to vector<4x9xf32>
    %98 = vector.extract_strided_slice %0 {offsets = [0, 9], sizes = [4, 119], strides = [1, 1]} : vector<4x128xf32> to vector<4x119xf32>
    %99 = tpu.concatenate %98, %97 in 1 : vector<4x119xf32>, vector<4x9xf32> -> vector<4x128xf32>
    %c56_i32_48 = arith.constant 56 : i32
    %100 = vector.broadcast %c56_i32_48 : i32 to vector<4x128xi32>
    %101 = arith.cmpi slt, %3, %100 : vector<4x128xi32>
    %c7_i32_49 = arith.constant 7 : i32
    %102 = vector.broadcast %c7_i32_49 : i32 to vector<4x128xi32>
    %103 = arith.cmpi slt, %5, %102 : vector<4x128xi32>
    %104 = arith.andi %101, %103 : vector<4x128xi1>
    %cst_50 = arith.constant 0.000000e+00 : f32
    %105 = vector.broadcast %cst_50 : f32 to vector<4x128xf32>
    %106 = arith.select %104, %99, %105 : vector<4x128xi1>, vector<4x128xf32>
    %c8 = arith.constant 8 : index
    %c0_51 = arith.constant 0 : index
    %c0_52 = arith.constant 0 : index
    %107 = vector.load %arg1[%c8, %c0_51, %c0_52] : memref<9x4x4xf32, #tpu.memory_space<vmem>>, vector<1x4x4xf32>
    %108 = vector.shape_cast %107 : vector<1x4x4xf32> to vector<4x4xf32>
    %cst_53 = arith.constant dense<0.000000e+00> : vector<4x128xf32>
    %109 = tpu.matmul %108, %106, %cst_53 {dimension_numbers = #tpu.dot_dimension_numbers<[1], [0], [0], [1], [0, 0, 1, 1], [], []>} : vector<4x4xf32>, vector<4x128xf32>, vector<4x128xf32> -> vector<4x128xf32>
    %110 = arith.addf %96, %109 : vector<4x128xf32>
    %cst_54 = arith.constant dense<0.000000e+00> : vector<4xf32>
    %111 = vector.multi_reduction <add>, %110, %cst_54 [1] : vector<4x128xf32> to vector<4xf32>
    %112 = vector.shape_cast %111 : vector<4xf32> to vector<4x1xf32>
    %cst_55 = arith.constant 7.812500e-03 : f32
    %113 = vector.broadcast %cst_55 : f32 to vector<4x1xf32>
    %114 = arith.mulf %112, %113 : vector<4x1xf32>
    %115 = arith.mulf %110, %110 : vector<4x128xf32>
    %cst_56 = arith.constant dense<0.000000e+00> : vector<4xf32>
    %116 = vector.multi_reduction <add>, %115, %cst_56 [1] : vector<4x128xf32> to vector<4xf32>
    %117 = vector.shape_cast %116 : vector<4xf32> to vector<4x1xf32>
    %cst_57 = arith.constant 7.812500e-03 : f32
    %118 = vector.broadcast %cst_57 : f32 to vector<4x1xf32>
    %119 = arith.mulf %117, %118 : vector<4x1xf32>
    %120 = arith.mulf %114, %114 : vector<4x1xf32>
    %121 = arith.subf %119, %120 : vector<4x1xf32>
    %cst_58 = arith.constant 0.000000e+00 : f32
    %122 = vector.broadcast %cst_58 : f32 to vector<4x1xf32>
    %123 = arith.maximumf %121, %122 : vector<4x1xf32>
    %c0_59 = arith.constant 0 : index
    %c0_60 = arith.constant 0 : index
    %124 = vector.load %arg2[%c0_59, %c0_60] : memref<4x1xf32, #tpu.memory_space<vmem>>, vector<4x1xf32>
    %cst_61 = arith.constant 9.99999974E-6 : f32
    %125 = vector.broadcast %cst_61 : f32 to vector<4x1xf32>
    %126 = arith.addf %123, %125 : vector<4x1xf32>
    %127 = math.rsqrt %126 : vector<4x1xf32>
    %128 = arith.mulf %124, %127 : vector<4x1xf32>
    %c0_62 = arith.constant 0 : index
    %c0_63 = arith.constant 0 : index
    %129 = vector.load %arg3[%c0_62, %c0_63] : memref<4x1xf32, #tpu.memory_space<vmem>>, vector<4x1xf32>
    %130 = arith.mulf %114, %128 : vector<4x1xf32>
    %131 = arith.subf %129, %130 : vector<4x1xf32>
    %132 = vector.broadcast %128 : vector<4x1xf32> to vector<4x128xf32>
    %133 = arith.mulf %110, %132 : vector<4x128xf32>
    %134 = vector.broadcast %131 : vector<4x1xf32> to vector<4x128xf32>
    %135 = arith.addf %133, %134 : vector<4x128xf32>
    %cst_64 = arith.constant 0.000000e+00 : f32
    %136 = vector.broadcast %cst_64 : f32 to vector<4x128xf32>
    %137 = arith.cmpf oge, %135, %136 : vector<4x128xf32>
    %cst_65 = arith.constant 0.00999999977 : f32
    %138 = vector.broadcast %cst_65 : f32 to vector<4x128xf32>
    %139 = arith.mulf %138, %135 : vector<4x128xf32>
    %140 = arith.select %137, %135, %139 : vector<4x128xi1>, vector<4x128xf32>
    %c0_66 = arith.constant 0 : index
    %c0_67 = arith.constant 0 : index
    %141 = vector.load %arg4[%c0_66, %c0_67] : memref<4x128xf32, #tpu.memory_space<vmem>>, vector<4x128xf32>
    tpu.vector_store %arg4[%c0_66, %c0_67], %140 {strides = array<i32>} : memref<4x128xf32, #tpu.memory_space<vmem>>, vector<4x128xf32>,
    return
  }
}

module attributes {stable_mosaic.version = 11 : i64} {
  func.func @kernel(%arg0: memref<8x512xf32, #tpu.memory_space<vmem>>, %arg1: memref<9x4x8xf32, #tpu.memory_space<vmem>>, %arg2: memref<4x1xf32, #tpu.memory_space<vmem>>, %arg3: memref<4x512xf32, #tpu.memory_space<vmem>>) attributes {dimension_semantics = [], scalar_prefetch = 0 : i64, scratch_operands = 0 : i64, tpu.core_type = #tpu.core_type<tc>} {
    %c0 = arith.constant 0 : index
    %c0_0 = arith.constant 0 : index
    %0 = vector.load %arg0[%c0, %c0_0] : memref<8x512xf32, #tpu.memory_space<vmem>>, vector<8x512xf32>
    %1 = tpu.iota {dimensions = array<i32: 1>} : vector<8x512xi32>
    %c255_i32 = arith.constant 255 : i32
    %2 = vector.broadcast %c255_i32 : i32 to vector<8x512xi32>
    %3 = arith.andi %1, %2 : vector<8x512xi32>
    %c15_i32 = arith.constant 15 : i32
    %4 = vector.broadcast %c15_i32 : i32 to vector<8x512xi32>
    %5 = arith.andi %1, %4 : vector<8x512xi32>
    %cst = arith.constant 0.000000e+00 : f32
    %6 = vector.broadcast %cst : f32 to vector<4x512xf32>
    %cst_1 = arith.constant 0.000000e+00 : f32
    %7 = vector.broadcast %cst_1 : f32 to vector<8x17xf32>
    %8 = vector.extract_strided_slice %0 {offsets = [0, 0], sizes = [8, 495], strides = [1, 1]} : vector<8x512xf32> to vector<8x495xf32>
    %9 = tpu.concatenate %7, %8 in 1 : vector<8x17xf32>, vector<8x495xf32> -> vector<8x512xf32>
    %c16_i32 = arith.constant 16 : i32
    %10 = vector.broadcast %c16_i32 : i32 to vector<8x512xi32>
    %11 = arith.cmpi sge, %3, %10 : vector<8x512xi32>
    %c1_i32 = arith.constant 1 : i32
    %12 = vector.broadcast %c1_i32 : i32 to vector<8x512xi32>
    %13 = arith.cmpi sge, %5, %12 : vector<8x512xi32>
    %14 = arith.andi %11, %13 : vector<8x512xi1>
    %cst_2 = arith.constant 0.000000e+00 : f32
    %15 = vector.broadcast %cst_2 : f32 to vector<8x512xf32>
    %16 = arith.select %14, %9, %15 : vector<8x512xi1>, vector<8x512xf32>
    %c0_3 = arith.constant 0 : index
    %c0_4 = arith.constant 0 : index
    %c0_5 = arith.constant 0 : index
    %17 = vector.load %arg1[%c0_3, %c0_4, %c0_5] : memref<9x4x8xf32, #tpu.memory_space<vmem>>, vector<1x4x8xf32>
    %18 = vector.shape_cast %17 : vector<1x4x8xf32> to vector<4x8xf32>
    %cst_6 = arith.constant dense<0.000000e+00> : vector<4x512xf32>
    %19 = tpu.matmul %18, %16, %cst_6 {dimension_numbers = #tpu.dot_dimension_numbers<[1], [0], [0], [1], [0, 0, 1, 1], [], []>} : vector<4x8xf32>, vector<8x512xf32>, vector<4x512xf32> -> vector<4x512xf32>
    %20 = arith.addf %6, %19 : vector<4x512xf32>
    %cst_7 = arith.constant 0.000000e+00 : f32
    %21 = vector.broadcast %cst_7 : f32 to vector<8x16xf32>
    %22 = vector.extract_strided_slice %0 {offsets = [0, 0], sizes = [8, 496], strides = [1, 1]} : vector<8x512xf32> to vector<8x496xf32>
    %23 = tpu.concatenate %21, %22 in 1 : vector<8x16xf32>, vector<8x496xf32> -> vector<8x512xf32>
    %c16_i32_8 = arith.constant 16 : i32
    %24 = vector.broadcast %c16_i32_8 : i32 to vector<8x512xi32>
    %25 = arith.cmpi sge, %3, %24 : vector<8x512xi32>
    %cst_9 = arith.constant 0.000000e+00 : f32
    %26 = vector.broadcast %cst_9 : f32 to vector<8x512xf32>
    %27 = arith.select %25, %23, %26 : vector<8x512xi1>, vector<8x512xf32>
    %c1 = arith.constant 1 : index
    %c0_10 = arith.constant 0 : index
    %c0_11 = arith.constant 0 : index
    %28 = vector.load %arg1[%c1, %c0_10, %c0_11] : memref<9x4x8xf32, #tpu.memory_space<vmem>>, vector<1x4x8xf32>
    %29 = vector.shape_cast %28 : vector<1x4x8xf32> to vector<4x8xf32>
    %cst_12 = arith.constant dense<0.000000e+00> : vector<4x512xf32>
    %30 = tpu.matmul %29, %27, %cst_12 {dimension_numbers = #tpu.dot_dimension_numbers<[1], [0], [0], [1], [0, 0, 1, 1], [], []>} : vector<4x8xf32>, vector<8x512xf32>, vector<4x512xf32> -> vector<4x512xf32>
    %31 = arith.addf %20, %30 : vector<4x512xf32>
    %cst_13 = arith.constant 0.000000e+00 : f32
    %32 = vector.broadcast %cst_13 : f32 to vector<8x15xf32>
    %33 = vector.extract_strided_slice %0 {offsets = [0, 0], sizes = [8, 497], strides = [1, 1]} : vector<8x512xf32> to vector<8x497xf32>
    %34 = tpu.concatenate %32, %33 in 1 : vector<8x15xf32>, vector<8x497xf32> -> vector<8x512xf32>
    %c16_i32_14 = arith.constant 16 : i32
    %35 = vector.broadcast %c16_i32_14 : i32 to vector<8x512xi32>
    %36 = arith.cmpi sge, %3, %35 : vector<8x512xi32>
    %c15_i32_15 = arith.constant 15 : i32
    %37 = vector.broadcast %c15_i32_15 : i32 to vector<8x512xi32>
    %38 = arith.cmpi slt, %5, %37 : vector<8x512xi32>
    %39 = arith.andi %36, %38 : vector<8x512xi1>
    %cst_16 = arith.constant 0.000000e+00 : f32
    %40 = vector.broadcast %cst_16 : f32 to vector<8x512xf32>
    %41 = arith.select %39, %34, %40 : vector<8x512xi1>, vector<8x512xf32>
    %c2 = arith.constant 2 : index
    %c0_17 = arith.constant 0 : index
    %c0_18 = arith.constant 0 : index
    %42 = vector.load %arg1[%c2, %c0_17, %c0_18] : memref<9x4x8xf32, #tpu.memory_space<vmem>>, vector<1x4x8xf32>
    %43 = vector.shape_cast %42 : vector<1x4x8xf32> to vector<4x8xf32>
    %cst_19 = arith.constant dense<0.000000e+00> : vector<4x512xf32>
    %44 = tpu.matmul %43, %41, %cst_19 {dimension_numbers = #tpu.dot_dimension_numbers<[1], [0], [0], [1], [0, 0, 1, 1], [], []>} : vector<4x8xf32>, vector<8x512xf32>, vector<4x512xf32> -> vector<4x512xf32>
    %45 = arith.addf %31, %44 : vector<4x512xf32>
    %cst_20 = arith.constant 0.000000e+00 : f32
    %46 = vector.broadcast %cst_20 : f32 to vector<8x1xf32>
    %47 = vector.extract_strided_slice %0 {offsets = [0, 0], sizes = [8, 511], strides = [1, 1]} : vector<8x512xf32> to vector<8x511xf32>
    %48 = tpu.concatenate %46, %47 in 1 : vector<8x1xf32>, vector<8x511xf32> -> vector<8x512xf32>
    %c1_i32_21 = arith.constant 1 : i32
    %49 = vector.broadcast %c1_i32_21 : i32 to vector<8x512xi32>
    %50 = arith.cmpi sge, %5, %49 : vector<8x512xi32>
    %cst_22 = arith.constant 0.000000e+00 : f32
    %51 = vector.broadcast %cst_22 : f32 to vector<8x512xf32>
    %52 = arith.select %50, %48, %51 : vector<8x512xi1>, vector<8x512xf32>
    %c3 = arith.constant 3 : index
    %c0_23 = arith.constant 0 : index
    %c0_24 = arith.constant 0 : index
    %53 = vector.load %arg1[%c3, %c0_23, %c0_24] : memref<9x4x8xf32, #tpu.memory_space<vmem>>, vector<1x4x8xf32>
    %54 = vector.shape_cast %53 : vector<1x4x8xf32> to vector<4x8xf32>
    %cst_25 = arith.constant dense<0.000000e+00> : vector<4x512xf32>
    %55 = tpu.matmul %54, %52, %cst_25 {dimension_numbers = #tpu.dot_dimension_numbers<[1], [0], [0], [1], [0, 0, 1, 1], [], []>} : vector<4x8xf32>, vector<8x512xf32>, vector<4x512xf32> -> vector<4x512xf32>
    %56 = arith.addf %45, %55 : vector<4x512xf32>
    %c4 = arith.constant 4 : index
    %c0_26 = arith.constant 0 : index
    %c0_27 = arith.constant 0 : index
    %57 = vector.load %arg1[%c4, %c0_26, %c0_27] : memref<9x4x8xf32, #tpu.memory_space<vmem>>, vector<1x4x8xf32>
    %58 = vector.shape_cast %57 : vector<1x4x8xf32> to vector<4x8xf32>
    %cst_28 = arith.constant dense<0.000000e+00> : vector<4x512xf32>
    %59 = tpu.matmul %58, %0, %cst_28 {dimension_numbers = #tpu.dot_dimension_numbers<[1], [0], [0], [1], [0, 0, 1, 1], [], []>} : vector<4x8xf32>, vector<8x512xf32>, vector<4x512xf32> -> vector<4x512xf32>
    %60 = arith.addf %56, %59 : vector<4x512xf32>
    %cst_29 = arith.constant 0.000000e+00 : f32
    %61 = vector.broadcast %cst_29 : f32 to vector<8x1xf32>
    %62 = vector.extract_strided_slice %0 {offsets = [0, 1], sizes = [8, 511], strides = [1, 1]} : vector<8x512xf32> to vector<8x511xf32>
    %63 = tpu.concatenate %62, %61 in 1 : vector<8x511xf32>, vector<8x1xf32> -> vector<8x512xf32>
    %c15_i32_30 = arith.constant 15 : i32
    %64 = vector.broadcast %c15_i32_30 : i32 to vector<8x512xi32>
    %65 = arith.cmpi slt, %5, %64 : vector<8x512xi32>
    %cst_31 = arith.constant 0.000000e+00 : f32
    %66 = vector.broadcast %cst_31 : f32 to vector<8x512xf32>
    %67 = arith.select %65, %63, %66 : vector<8x512xi1>, vector<8x512xf32>
    %c5 = arith.constant 5 : index
    %c0_32 = arith.constant 0 : index
    %c0_33 = arith.constant 0 : index
    %68 = vector.load %arg1[%c5, %c0_32, %c0_33] : memref<9x4x8xf32, #tpu.memory_space<vmem>>, vector<1x4x8xf32>
    %69 = vector.shape_cast %68 : vector<1x4x8xf32> to vector<4x8xf32>
    %cst_34 = arith.constant dense<0.000000e+00> : vector<4x512xf32>
    %70 = tpu.matmul %69, %67, %cst_34 {dimension_numbers = #tpu.dot_dimension_numbers<[1], [0], [0], [1], [0, 0, 1, 1], [], []>} : vector<4x8xf32>, vector<8x512xf32>, vector<4x512xf32> -> vector<4x512xf32>
    %71 = arith.addf %60, %70 : vector<4x512xf32>
    %cst_35 = arith.constant 0.000000e+00 : f32
    %72 = vector.broadcast %cst_35 : f32 to vector<8x15xf32>
    %73 = vector.extract_strided_slice %0 {offsets = [0, 15], sizes = [8, 497], strides = [1, 1]} : vector<8x512xf32> to vector<8x497xf32>
    %74 = tpu.concatenate %73, %72 in 1 : vector<8x497xf32>, vector<8x15xf32> -> vector<8x512xf32>
    %c240_i32 = arith.constant 240 : i32
    %75 = vector.broadcast %c240_i32 : i32 to vector<8x512xi32>
    %76 = arith.cmpi slt, %3, %75 : vector<8x512xi32>
    %c1_i32_36 = arith.constant 1 : i32
    %77 = vector.broadcast %c1_i32_36 : i32 to vector<8x512xi32>
    %78 = arith.cmpi sge, %5, %77 : vector<8x512xi32>
    %79 = arith.andi %76, %78 : vector<8x512xi1>
    %cst_37 = arith.constant 0.000000e+00 : f32
    %80 = vector.broadcast %cst_37 : f32 to vector<8x512xf32>
    %81 = arith.select %79, %74, %80 : vector<8x512xi1>, vector<8x512xf32>
    %c6 = arith.constant 6 : index
    %c0_38 = arith.constant 0 : index
    %c0_39 = arith.constant 0 : index
    %82 = vector.load %arg1[%c6, %c0_38, %c0_39] : memref<9x4x8xf32, #tpu.memory_space<vmem>>, vector<1x4x8xf32>
    %83 = vector.shape_cast %82 : vector<1x4x8xf32> to vector<4x8xf32>
    %cst_40 = arith.constant dense<0.000000e+00> : vector<4x512xf32>
    %84 = tpu.matmul %83, %81, %cst_40 {dimension_numbers = #tpu.dot_dimension_numbers<[1], [0], [0], [1], [0, 0, 1, 1], [], []>} : vector<4x8xf32>, vector<8x512xf32>, vector<4x512xf32> -> vector<4x512xf32>
    %85 = arith.addf %71, %84 : vector<4x512xf32>
    %cst_41 = arith.constant 0.000000e+00 : f32
    %86 = vector.broadcast %cst_41 : f32 to vector<8x16xf32>
    %87 = vector.extract_strided_slice %0 {offsets = [0, 16], sizes = [8, 496], strides = [1, 1]} : vector<8x512xf32> to vector<8x496xf32>
    %88 = tpu.concatenate %87, %86 in 1 : vector<8x496xf32>, vector<8x16xf32> -> vector<8x512xf32>
    %c240_i32_42 = arith.constant 240 : i32
    %89 = vector.broadcast %c240_i32_42 : i32 to vector<8x512xi32>
    %90 = arith.cmpi slt, %3, %89 : vector<8x512xi32>
    %cst_43 = arith.constant 0.000000e+00 : f32
    %91 = vector.broadcast %cst_43 : f32 to vector<8x512xf32>
    %92 = arith.select %90, %88, %91 : vector<8x512xi1>, vector<8x512xf32>
    %c7 = arith.constant 7 : index
    %c0_44 = arith.constant 0 : index
    %c0_45 = arith.constant 0 : index
    %93 = vector.load %arg1[%c7, %c0_44, %c0_45] : memref<9x4x8xf32, #tpu.memory_space<vmem>>, vector<1x4x8xf32>
    %94 = vector.shape_cast %93 : vector<1x4x8xf32> to vector<4x8xf32>
    %cst_46 = arith.constant dense<0.000000e+00> : vector<4x512xf32>
    %95 = tpu.matmul %94, %92, %cst_46 {dimension_numbers = #tpu.dot_dimension_numbers<[1], [0], [0], [1], [0, 0, 1, 1], [], []>} : vector<4x8xf32>, vector<8x512xf32>, vector<4x512xf32> -> vector<4x512xf32>
    %96 = arith.addf %85, %95 : vector<4x512xf32>
    %cst_47 = arith.constant 0.000000e+00 : f32
    %97 = vector.broadcast %cst_47 : f32 to vector<8x17xf32>
    %98 = vector.extract_strided_slice %0 {offsets = [0, 17], sizes = [8, 495], strides = [1, 1]} : vector<8x512xf32> to vector<8x495xf32>
    %99 = tpu.concatenate %98, %97 in 1 : vector<8x495xf32>, vector<8x17xf32> -> vector<8x512xf32>
    %c240_i32_48 = arith.constant 240 : i32
    %100 = vector.broadcast %c240_i32_48 : i32 to vector<8x512xi32>
    %101 = arith.cmpi slt, %3, %100 : vector<8x512xi32>
    %c15_i32_49 = arith.constant 15 : i32
    %102 = vector.broadcast %c15_i32_49 : i32 to vector<8x512xi32>
    %103 = arith.cmpi slt, %5, %102 : vector<8x512xi32>
    %104 = arith.andi %101, %103 : vector<8x512xi1>
    %cst_50 = arith.constant 0.000000e+00 : f32
    %105 = vector.broadcast %cst_50 : f32 to vector<8x512xf32>
    %106 = arith.select %104, %99, %105 : vector<8x512xi1>, vector<8x512xf32>
    %c8 = arith.constant 8 : index
    %c0_51 = arith.constant 0 : index
    %c0_52 = arith.constant 0 : index
    %107 = vector.load %arg1[%c8, %c0_51, %c0_52] : memref<9x4x8xf32, #tpu.memory_space<vmem>>, vector<1x4x8xf32>
    %108 = vector.shape_cast %107 : vector<1x4x8xf32> to vector<4x8xf32>
    %cst_53 = arith.constant dense<0.000000e+00> : vector<4x512xf32>
    %109 = tpu.matmul %108, %106, %cst_53 {dimension_numbers = #tpu.dot_dimension_numbers<[1], [0], [0], [1], [0, 0, 1, 1], [], []>} : vector<4x8xf32>, vector<8x512xf32>, vector<4x512xf32> -> vector<4x512xf32>
    %110 = arith.addf %96, %109 : vector<4x512xf32>
    %c0_54 = arith.constant 0 : index
    %c0_55 = arith.constant 0 : index
    %111 = vector.load %arg2[%c0_54, %c0_55] : memref<4x1xf32, #tpu.memory_space<vmem>>, vector<4x1xf32>
    %112 = vector.broadcast %111 : vector<4x1xf32> to vector<4x512xf32>
    %113 = arith.addf %110, %112 : vector<4x512xf32>
    %c0_56 = arith.constant 0 : index
    %c0_57 = arith.constant 0 : index
    %114 = vector.load %arg3[%c0_56, %c0_57] : memref<4x512xf32, #tpu.memory_space<vmem>>, vector<4x512xf32>
    tpu.vector_store %arg3[%c0_56, %c0_57], %113 {strides = array<i32>} : memref<4x512xf32, #tpu.memory_space<vmem>>, vector<4x512xf32>,
    return
  }
}

</mosaic_0001>

<llo_original>
// kernel: vae_forward.11
$region0: #{vae_forward.11}
  #allocation0 [shape = 'u32[]', space=smem, size = 0x4, offset = 0x4, fixed_abs, tag = 'smem constant byte address 0x4 - core index']
  #allocation1 [shape = 'u32[144,128]{1,0:T(1,128)}', space=vmem, size = 0x12000, scoped, tag = 'internal scratch']
  %s0 = inlined_call_operand.vmem [shape: f32[8,128], index: 0, kind: input, shape index: {}]
  %s1 = inlined_call_operand.vmem [shape: f32[9,8,8], index: 1, kind: input, shape index: {}]
  %s2 = inlined_call_operand.vmem [shape: f32[8,1], index: 2, kind: input, shape index: {}]
  %s3 = inlined_call_operand.vmem [shape: f32[8,1], index: 3, kind: input, shape index: {}]
  %s4 = inlined_call_operand.vmem [shape: f32[8,128], index: 4, kind: output, shape index: {}]
  %s5 = sld [smem:[#allocation0]]
  $region26: #{vae_forward.11} parent=0
    _
  %s7 = ssub.s32 1, %s5
  %s8 = scalar_select 0, %s7, %s5
  // Predicated region
  $region2: #{vae_forward.11} parent=0 // pred_check
    _
  $region3: #{vae_forward.11} parent=0 // pred_check_branch
    %10 = sbr.rel (0) target = $region5
  $region4: #{vae_forward.11} parent=0 // pred_region
    _
  $region5: #{vae_forward.11} parent=0 // pred_fallthru
    _
  // Predicated region
  $region6: #{vae_forward.11} parent=0 // pred_check
    _
  $region7: #{vae_forward.11} parent=0 // pred_check_branch
    %12 = sbr.rel (0) target = $region9
  $region8: #{vae_forward.11} parent=0 // pred_region
    _
  $region9: #{vae_forward.11} parent=0 // pred_fallthru
    _
  // Predicated region
  $region10: #{vae_forward.11} parent=0 // pred_check
    _
  $region11: #{vae_forward.11} parent=0 // pred_check_branch
    %14 = sbr.rel (0) target = $region13
  $region12: #{vae_forward.11} parent=0 // pred_region
    _
  $region13: #{vae_forward.11} parent=0 // pred_fallthru
    _
  // Predicated region
  $region14: #{vae_forward.11} parent=0 // pred_check
    _
  $region15: #{vae_forward.11} parent=0 // pred_check_branch
    %16 = sbr.rel (0) target = $region17
  $region16: #{vae_forward.11} parent=0 // pred_region
    _
  $region17: #{vae_forward.11} parent=0 // pred_fallthru
    _
  %v17 = vld [vmem:[%s0] sm:$0xff]
  %v18 = vlaneseq
  %v19 = vand.u32 %v18, 127
  %v20 = vand.u32 %v19, 63
  %v21 = vand.u32 %v19, 7
  %23 = vrot.lane.b32.xlu0 %v17, 9
  %v24 = vpop.permute.xlu0 %23
  %vm26 = vcmask 72704
  %v27 = vsel %vm26, 0.0, %v24
  %vm28 = vcmp.ge.s32.totalorder %v20, 8
  %vm29 = vcmp.ge.s32.totalorder %v21, 1
  %vm30 = vmand %vm28, %vm29
  %v31 = vsel %vm30, %v27, 0.0
  %v32 = vld [vmem:[%s1] sm:$0xff]
  %33 = vrot.lane.b32.xlu0 %v17, 8
  %v34 = vpop.permute.xlu0 %33
  %vm36 = vcmask 64512
  %v37 = vsel %vm36, 0.0, %v34
  %v38 = vsel %vm28, %v37, 0.0
  %s39 = scalar_lea.vmem %s1, 8
  %v40 = vld [vmem:[%s39] sm:$0xff]
  %v42 = vsel %vm36, %v40, 0
  %44 = vmatprep.subr.mxu0 0.0
  %45 = vmatpush1.msra.mxu0 %v38
  %46 = vmatprep.subr.mxu0 0.0
  %47 = vmatpush1.msra.mxu0 0.0
  %48 = vmatprep.subr.mxu0 0.0
  %49 = vmatpush1.msra.mxu0 0.0
  %50 = vmatprep.subr.mxu0 0.0
  %51 = vmatpush1.msra.mxu0 0.0
  %52 = vmatprep.subr.mxu0 0.0
  %53 = vmatpush1.msra.mxu0 0.0
  %54 = vmatprep.subr.mxu0 0.0
  %55 = vmatpush1.msra.mxu0 0.0
  %56 = vmatprep.subr.mxu0 0.0
  %57 = vmatpush1.msra.mxu0 0.0
  %58 = vmatprep.subr.mxu0 0.0
  %59 = vmatpush1.msra.mxu0 0.0
  %60 = vmatprep.subr.mxu0 0.0
  %61 = vmatpush1.msra.mxu0 0.0
  %62 = vmatprep.subr.mxu0 0.0
  %63 = vmatpush1.msra.mxu0 0.0
  %64 = vmatprep.subr.mxu0 0.0
  %65 = vmatpush1.msra.mxu0 0.0
  %66 = vmatprep.subr.mxu0 0.0
  %67 = vmatpush1.msra.mxu0 0.0
  %68 = vmatprep.subr.mxu0 0.0
  %69 = vmatpush1.msra.mxu0 0.0
  %70 = vmatprep.subr.mxu0 0.0
  %71 = vmatpush1.msra.mxu0 0.0
  %72 = vmatprep.subr.mxu0 0.0
  %73 = vmatpush1.msra.mxu0 0.0
  %74 = vmatprep.subr.mxu0 0.0
  %75 = vmatpush1.msra.mxu0 0.0
  %76 = vmatprep.subr.mxu0 0.0
  %77 = vmatpush1.msra.mxu0 0.0
  %78 = vmatprep.subr.mxu0 0.0
  %79 = vmatpush1.msra.mxu0 0.0
  %80 = vmatprep.subr.mxu0 0.0
  %81 = vmatpush1.msra.mxu0 0.0
  %82 = vmatprep.subr.mxu0 0.0
  %83 = vmatpush1.msra.mxu0 0.0
  %84 = vmatprep.subr.mxu0 0.0
  %85 = vmatpush1.msra.mxu0 0.0
  %86 = vmatprep.subr.mxu0 0.0
  %87 = vmatpush1.msra.mxu0 0.0
  %88 = vmatprep.subr.mxu0 0.0
  %89 = vmatpush1.msra.mxu0 0.0
  %90 = vmatprep.subr.mxu0 0.0
  %91 = vmatpush1.msra.mxu0 0.0
  %92 = vmatprep.subr.mxu0 0.0
  %93 = vmatpush1.msra.mxu0 0.0
  %94 = vmatprep.subr.mxu0 0.0
  %95 = vmatpush1.msra.mxu0 0.0
  %96 = vmatprep.subr.mxu0 0.0
  %97 = vmatpush1.msra.mxu0 0.0
  %98 = vmatprep.subr.mxu0 0.0
  %99 = vmatpush1.msra.mxu0 0.0
  %100 = vmatprep.subr.mxu0 0.0
  %101 = vmatpush1.msra.mxu0 0.0
  %102 = vmatprep.subr.mxu0 0.0
  %103 = vmatpush1.msra.mxu0 0.0
  %104 = vmatprep.subr.mxu0 0.0
  %105 = vmatpush1.msra.mxu0 0.0
  %106 = vmatprep.subr.mxu0 0.0
  %107 = vmatpush1.msra.mxu0 0.0
  %108 = vmatprep.mubr.f32.mxu0 0.0
  %109 = vmatmul.mubr.f32.gmra.mrb[0].mxu0 %v42
  %v110 = vpop.f32.mrb[0].mxu0
  %v111 = vadd.f32 0.0, %v110
  %v112 = vpop.f32.mrb[0].mxu0
  %113 = vdwg.mxu0
  %v115 = vsel %vm36, %v32, 0
  %117 = vmatprep.subr.mxu0 0.0
  %118 = vmatpush1.msra.mxu0 %v31
  %119 = vmatprep.subr.mxu0 0.0
  %120 = vmatpush1.msra.mxu0 0.0
  %121 = vmatprep.subr.mxu0 0.0
  %122 = vmatpush1.msra.mxu0 0.0
  %123 = vmatprep.subr.mxu0 0.0
  %124 = vmatpush1.msra.mxu0 0.0
  %125 = vmatprep.subr.mxu0 0.0
  %126 = vmatpush1.msra.mxu0 0.0
  %127 = vmatprep.subr.mxu0 0.0
  %128 = vmatpush1.msra.mxu0 0.0
  %129 = vmatprep.subr.mxu0 0.0
  %130 = vmatpush1.msra.mxu0 0.0
  %131 = vmatprep.subr.mxu0 0.0
  %132 = vmatpush1.msra.mxu0 0.0
  %133 = vmatprep.subr.mxu0 0.0
  %134 = vmatpush1.msra.mxu0 0.0
  %135 = vmatprep.subr.mxu0 0.0
  %136 = vmatpush1.msra.mxu0 0.0
  %137 = vmatprep.subr.mxu0 0.0
  %138 = vmatpush1.msra.mxu0 0.0
  %139 = vmatprep.subr.mxu0 0.0
  %140 = vmatpush1.msra.mxu0 0.0
  %141 = vmatprep.subr.mxu0 0.0
  %142 = vmatpush1.msra.mxu0 0.0
  %143 = vmatprep.subr.mxu0 0.0
  %144 = vmatpush1.msra.mxu0 0.0
  %145 = vmatprep.subr.mxu0 0.0
  %146 = vmatpush1.msra.mxu0 0.0
  %147 = vmatprep.subr.mxu0 0.0
  %148 = vmatpush1.msra.mxu0 0.0
  %149 = vmatprep.subr.mxu0 0.0
  %150 = vmatpush1.msra.mxu0 0.0
  %151 = vmatprep.subr.mxu0 0.0
  %152 = vmatpush1.msra.mxu0 0.0
  %153 = vmatprep.subr.mxu0 0.0
  %154 = vmatpush1.msra.mxu0 0.0
  %155 = vmatprep.subr.mxu0 0.0
  %156 = vmatpush1.msra.mxu0 0.0
  %157 = vmatprep.subr.mxu0 0.0
  %158 = vmatpush1.msra.mxu0 0.0
  %159 = vmatprep.subr.mxu0 0.0
  %160 = vmatpush1.msra.mxu0 0.0
  %161 = vmatprep.subr.mxu0 0.0
  %162 = vmatpush1.msra.mxu0 0.0
  %163 = vmatprep.subr.mxu0 0.0
  %164 = vmatpush1.msra.mxu0 0.0
  %165 = vmatprep.subr.mxu0 0.0
  %166 = vmatpush1.msra.mxu0 0.0
  %167 = vmatprep.subr.mxu0 0.0
  %168 = vmatpush1.msra.mxu0 0.0
  %169 = vmatprep.subr.mxu0 0.0
  %170 = vmatpush1.msra.mxu0 0.0
  %171 = vmatprep.subr.mxu0 0.0
  %172 = vmatpush1.msra.mxu0 0.0
  %173 = vmatprep.subr.mxu0 0.0
  %174 = vmatpush1.msra.mxu0 0.0
  %175 = vmatprep.subr.mxu0 0.0
  %176 = vmatpush1.msra.mxu0 0.0
  %177 = vmatprep.subr.mxu0 0.0
  %178 = vmatpush1.msra.mxu0 0.0
  %179 = vmatprep.subr.mxu0 0.0
  %180 = vmatpush1.msra.mxu0 0.0
  %181 = vmatprep.mubr.f32.mxu0 0.0
  %182 = vmatmul.mubr.f32.gmra.mrb[0].mxu0 %v115
  %v183 = vpop.f32.mrb[0].mxu0
  %v184 = vadd.f32 %v111, %v183
  %v185 = vpop.f32.mrb[0].mxu0
  %186 = vdwg.mxu0
  %187 = vrot.lane.b32.xlu0 %v17, 7
  %v188 = vpop.permute.xlu0 %187
  %vm190 = vcmask 56320
  %v191 = vsel %vm190, 0.0, %v188
  %vm192 = vcmp.lt.s32.totalorder %v21, 7
  %vm193 = vmand %vm28, %vm192
  %v194 = vsel %vm193, %v191, 0.0
  %s195 = scalar_lea.vmem %s1, 16
  %v196 = vld [vmem:[%s195] sm:$0xff]
  %v198 = vsel %vm36, %v196, 0
  %200 = vmatprep.subr.mxu0 0.0
  %201 = vmatpush1.msra.mxu0 %v194
  %202 = vmatprep.subr.mxu0 0.0
  %203 = vmatpush1.msra.mxu0 0.0
  %204 = vmatprep.subr.mxu0 0.0
  %205 = vmatpush1.msra.mxu0 0.0
  %206 = vmatprep.subr.mxu0 0.0
  %207 = vmatpush1.msra.mxu0 0.0
  %208 = vmatprep.subr.mxu0 0.0
  %209 = vmatpush1.msra.mxu0 0.0
  %210 = vmatprep.subr.mxu0 0.0
  %211 = vmatpush1.msra.mxu0 0.0
  %212 = vmatprep.subr.mxu0 0.0
  %213 = vmatpush1.msra.mxu0 0.0
  %214 = vmatprep.subr.mxu0 0.0
  %215 = vmatpush1.msra.mxu0 0.0
  %216 = vmatprep.subr.mxu0 0.0
  %217 = vmatpush1.msra.mxu0 0.0
  %218 = vmatprep.subr.mxu0 0.0
  %219 = vmatpush1.msra.mxu0 0.0
  %220 = vmatprep.subr.mxu0 0.0
  %221 = vmatpush1.msra.mxu0 0.0
  %222 = vmatprep.subr.mxu0 0.0
  %223 = vmatpush1.msra.mxu0 0.0
  %224 = vmatprep.subr.mxu0 0.0
  %225 = vmatpush1.msra.mxu0 0.0
  %226 = vmatprep.subr.mxu0 0.0
  %227 = vmatpush1.msra.mxu0 0.0
  %228 = vmatprep.subr.mxu0 0.0
  %229 = vmatpush1.msra.mxu0 0.0
  %230 = vmatprep.subr.mxu0 0.0
  %231 = vmatpush1.msra.mxu0 0.0
  %232 = vmatprep.subr.mxu0 0.0
  %233 = vmatpush1.msra.mxu0 0.0
  %234 = vmatprep.subr.mxu0 0.0
  %235 = vmatpush1.msra.mxu0 0.0
  %236 = vmatprep.subr.mxu0 0.0
  %237 = vmatpush1.msra.mxu0 0.0
  %238 = vmatprep.subr.mxu0 0.0
  %239 = vmatpush1.msra.mxu0 0.0
  %240 = vmatprep.subr.mxu0 0.0
  %241 = vmatpush1.msra.mxu0 0.0
  %242 = vmatprep.subr.mxu0 0.0
  %243 = vmatpush1.msra.mxu0 0.0
  %244 = vmatprep.subr.mxu0 0.0
  %245 = vmatpush1.msra.mxu0 0.0
  %246 = vmatprep.subr.mxu0 0.0
  %247 = vmatpush1.msra.mxu0 0.0
  %248 = vmatprep.subr.mxu0 0.0
  %249 = vmatpush1.msra.mxu0 0.0
  %250 = vmatprep.subr.mxu0 0.0
  %251 = vmatpush1.msra.mxu0 0.0
  %252 = vmatprep.subr.mxu0 0.0
  %253 = vmatpush1.msra.mxu0 0.0
  %254 = vmatprep.subr.mxu0 0.0
  %255 = vmatpush1.msra.mxu0 0.0
  %256 = vmatprep.subr.mxu0 0.0
  %257 = vmatpush1.msra.mxu0 0.0
  %258 = vmatprep.subr.mxu0 0.0
  %259 = vmatpush1.msra.mxu0 0.0
  %260 = vmatprep.subr.mxu0 0.0
  %261 = vmatpush1.msra.mxu0 0.0
  %262 = vmatprep.subr.mxu0 0.0
  %263 = vmatpush1.msra.mxu0 0.0
  %264 = vmatprep.mubr.f32.mxu0 0.0
  %265 = vmatmul.mubr.f32.gmra.mrb[0].mxu0 %v198
  %v266 = vpop.f32.mrb[0].mxu0
  %v267 = vadd.f32 0.0, %v266
  %v268 = vpop.f32.mrb[0].mxu0
  %269 = vdwg.mxu0
  %v270 = vadd.f32 %v184, %v267
  %271 = vrot.lane.b32.xlu0 %v17, 1
  %v272 = vpop.permute.xlu0 %271
  %vm274 = vcmask 7168
  %v275 = vsel %vm274, 0.0, %v272
  %v276 = vsel %vm29, %v275, 0.0
  %s277 = scalar_lea.vmem %s1, 24
  %v278 = vld [vmem:[%s277] sm:$0xff]
  %v280 = vsel %vm36, %v278, 0
  %282 = vmatprep.subr.mxu0 0.0
  %283 = vmatpush1.msra.mxu0 %v276
  %284 = vmatprep.subr.mxu0 0.0
  %285 = vmatpush1.msra.mxu0 0.0
  %286 = vmatprep.subr.mxu0 0.0
  %287 = vmatpush1.msra.mxu0 0.0
  %288 = vmatprep.subr.mxu0 0.0
  %289 = vmatpush1.msra.mxu0 0.0
  %290 = vmatprep.subr.mxu0 0.0
  %291 = vmatpush1.msra.mxu0 0.0
  %292 = vmatprep.subr.mxu0 0.0
  %293 = vmatpush1.msra.mxu0 0.0
  %294 = vmatprep.subr.mxu0 0.0
  %295 = vmatpush1.msra.mxu0 0.0
  %296 = vmatprep.subr.mxu0 0.0
  %297 = vmatpush1.msra.mxu0 0.0
  %298 = vmatprep.subr.mxu0 0.0
  %299 = vmatpush1.msra.mxu0 0.0
  %300 = vmatprep.subr.mxu0 0.0
  %301 = vmatpush1.msra.mxu0 0.0
  %302 = vmatprep.subr.mxu0 0.0
  %303 = vmatpush1.msra.mxu0 0.0
  %304 = vmatprep.subr.mxu0 0.0
  %305 = vmatpush1.msra.mxu0 0.0
  %306 = vmatprep.subr.mxu0 0.0
  %307 = vmatpush1.msra.mxu0 0.0
  %308 = vmatprep.subr.mxu0 0.0
  %309 = vmatpush1.msra.mxu0 0.0
  %310 = vmatprep.subr.mxu0 0.0
  %311 = vmatpush1.msra.mxu0 0.0
  %312 = vmatprep.subr.mxu0 0.0
  %313 = vmatpush1.msra.mxu0 0.0
  %314 = vmatprep.subr.mxu0 0.0
  %315 = vmatpush1.msra.mxu0 0.0
  %316 = vmatprep.subr.mxu0 0.0
  %317 = vmatpush1.msra.mxu0 0.0
  %318 = vmatprep.subr.mxu0 0.0
  %319 = vmatpush1.msra.mxu0 0.0
  %320 = vmatprep.subr.mxu0 0.0
  %321 = vmatpush1.msra.mxu0 0.0
  %322 = vmatprep.subr.mxu0 0.0
  %323 = vmatpush1.msra.mxu0 0.0
  %324 = vmatprep.subr.mxu0 0.0
  %325 = vmatpush1.msra.mxu0 0.0
  %326 = vmatprep.subr.mxu0 0.0
  %327 = vmatpush1.msra.mxu0 0.0
  %328 = vmatprep.subr.mxu0 0.0
  %329 = vmatpush1.msra.mxu0 0.0
  %330 = vmatprep.subr.mxu0 0.0
  %331 = vmatpush1.msra.mxu0 0.0
  %332 = vmatprep.subr.mxu0 0.0
  %333 = vmatpush1.msra.mxu0 0.0
  %334 = vmatprep.subr.mxu0 0.0
  %335 = vmatpush1.msra.mxu0 0.0
  %336 = vmatprep.subr.mxu0 0.0
  %337 = vmatpush1.msra.mxu0 0.0
  %338 = vmatprep.subr.mxu0 0.0
  %339 = vmatpush1.msra.mxu0 0.0
  %340 = vmatprep.subr.mxu0 0.0
  %341 = vmatpush1.msra.mxu0 0.0
  %342 = vmatprep.subr.mxu0 0.0
  %343 = vmatpush1.msra.mxu0 0.0
  %344 = vmatprep.subr.mxu0 0.0
  %345 = vmatpush1.msra.mxu0 0.0
  %346 = vmatprep.mubr.f32.mxu0 0.0
  %347 = vmatmul.mubr.f32.gmra.mrb[0].mxu0 %v280
  %v348 = vpop.f32.mrb[0].mxu0
  %v349 = vadd.f32 0.0, %v348
  %v350 = vpop.f32.mrb[0].mxu0
  %351 = vdwg.mxu0
  %v352 = vadd.f32 %v270, %v349
  %s353 = scalar_lea.vmem %s1, 32
  %v354 = vld [vmem:[%s353] sm:$0xff]
  %v356 = vsel %vm36, %v354, 0
  %358 = vmatprep.subr.mxu0 0.0
  %359 = vmatpush1.msra.mxu0 %v17
  %360 = vmatprep.subr.mxu0 0.0
  %361 = vmatpush1.msra.mxu0 0.0
  %362 = vmatprep.subr.mxu0 0.0
  %363 = vmatpush1.msra.mxu0 0.0
  %364 = vmatprep.subr.mxu0 0.0
  %365 = vmatpush1.msra.mxu0 0.0
  %366 = vmatprep.subr.mxu0 0.0
  %367 = vmatpush1.msra.mxu0 0.0
  %368 = vmatprep.subr.mxu0 0.0
  %369 = vmatpush1.msra.mxu0 0.0
  %370 = vmatprep.subr.mxu0 0.0
  %371 = vmatpush1.msra.mxu0 0.0
  %372 = vmatprep.subr.mxu0 0.0
  %373 = vmatpush1.msra.mxu0 0.0
  %374 = vmatprep.subr.mxu0 0.0
  %375 = vmatpush1.msra.mxu0 0.0
  %376 = vmatprep.subr.mxu0 0.0
  %377 = vmatpush1.msra.mxu0 0.0
  %378 = vmatprep.subr.mxu0 0.0
  %379 = vmatpush1.msra.mxu0 0.0
  %380 = vmatprep.subr.mxu0 0.0
  %381 = vmatpush1.msra.mxu0 0.0
  %382 = vmatprep.subr.mxu0 0.0
  %383 = vmatpush1.msra.mxu0 0.0
  %384 = vmatprep.subr.mxu0 0.0
  %385 = vmatpush1.msra.mxu0 0.0
  %386 = vmatprep.subr.mxu0 0.0
  %387 = vmatpush1.msra.mxu0 0.0
  %388 = vmatprep.subr.mxu0 0.0
  %389 = vmatpush1.msra.mxu0 0.0
  %390 = vmatprep.subr.mxu0 0.0
  %391 = vmatpush1.msra.mxu0 0.0
  %392 = vmatprep.subr.mxu0 0.0
  %393 = vmatpush1.msra.mxu0 0.0
  %394 = vmatprep.subr.mxu0 0.0
  %395 = vmatpush1.msra.mxu0 0.0
  %396 = vmatprep.subr.mxu0 0.0
  %397 = vmatpush1.msra.mxu0 0.0
  %398 = vmatprep.subr.mxu0 0.0
  %399 = vmatpush1.msra.mxu0 0.0
  %400 = vmatprep.subr.mxu0 0.0
  %401 = vmatpush1.msra.mxu0 0.0
  %402 = vmatprep.subr.mxu0 0.0
  %403 = vmatpush1.msra.mxu0 0.0
  %404 = vmatprep.subr.mxu0 0.0
  %405 = vmatpush1.msra.mxu0 0.0
  %406 = vmatprep.subr.mxu0 0.0
  %407 = vmatpush1.msra.mxu0 0.0
  %408 = vmatprep.subr.mxu0 0.0
  %409 = vmatpush1.msra.mxu0 0.0
  %410 = vmatprep.subr.mxu0 0.0
  %411 = vmatpush1.msra.mxu0 0.0
  %412 = vmatprep.subr.mxu0 0.0
  %413 = vmatpush1.msra.mxu0 0.0
  %414 = vmatprep.subr.mxu0 0.0
  %415 = vmatpush1.msra.mxu0 0.0
  %416 = vmatprep.subr.mxu0 0.0
  %417 = vmatpush1.msra.mxu0 0.0
  %418 = vmatprep.subr.mxu0 0.0
  %419 = vmatpush1.msra.mxu0 0.0
  %420 = vmatprep.subr.mxu0 0.0
  %421 = vmatpush1.msra.mxu0 0.0
  %422 = vmatprep.mubr.f32.mxu0 0.0
  %423 = vmatmul.mubr.f32.gmra.mrb[0].mxu0 %v356
  %v424 = vpop.f32.mrb[0].mxu0
  %v425 = vadd.f32 0.0, %v424
  %v426 = vpop.f32.mrb[0].mxu0
  %427 = vdwg.mxu0
  %v428 = vadd.f32 %v352, %v425
  %429 = vrot.lane.b32.xlu0 %v17, 127
  %v430 = vpop.permute.xlu0 %429
  %vm432 = vcmask 1039360
  %v433 = vsel %vm432, %v430, 0.0
  %v434 = vsel %vm192, %v433, 0.0
  %s435 = scalar_lea.vmem %s1, 40
  %v436 = vld [vmem:[%s435] sm:$0xff]
  %v438 = vsel %vm36, %v436, 0
  %440 = vmatprep.subr.mxu0 0.0
  %441 = vmatpush1.msra.mxu0 %v434
  %442 = vmatprep.subr.mxu0 0.0
  %443 = vmatpush1.msra.mxu0 0.0
  %444 = vmatprep.subr.mxu0 0.0
  %445 = vmatpush1.msra.mxu0 0.0
  %446 = vmatprep.subr.mxu0 0.0
  %447 = vmatpush1.msra.mxu0 0.0
  %448 = vmatprep.subr.mxu0 0.0
  %449 = vmatpush1.msra.mxu0 0.0
  %450 = vmatprep.subr.mxu0 0.0
  %451 = vmatpush1.msra.mxu0 0.0
  %452 = vmatprep.subr.mxu0 0.0
  %453 = vmatpush1.msra.mxu0 0.0
  %454 = vmatprep.subr.mxu0 0.0
  %455 = vmatpush1.msra.mxu0 0.0
  %456 = vmatprep.subr.mxu0 0.0
  %457 = vmatpush1.msra.mxu0 0.0
  %458 = vmatprep.subr.mxu0 0.0
  %459 = vmatpush1.msra.mxu0 0.0
  %460 = vmatprep.subr.mxu0 0.0
  %461 = vmatpush1.msra.mxu0 0.0
  %462 = vmatprep.subr.mxu0 0.0
  %463 = vmatpush1.msra.mxu0 0.0
  %464 = vmatprep.subr.mxu0 0.0
  %465 = vmatpush1.msra.mxu0 0.0
  %466 = vmatprep.subr.mxu0 0.0
  %467 = vmatpush1.msra.mxu0 0.0
  %468 = vmatprep.subr.mxu0 0.0
  %469 = vmatpush1.msra.mxu0 0.0
  %470 = vmatprep.subr.mxu0 0.0
  %471 = vmatpush1.msra.mxu0 0.0
  %472 = vmatprep.subr.mxu0 0.0
  %473 = vmatpush1.msra.mxu0 0.0
  %474 = vmatprep.subr.mxu0 0.0
  %475 = vmatpush1.msra.mxu0 0.0
  %476 = vmatprep.subr.mxu0 0.0
  %477 = vmatpush1.msra.mxu0 0.0
  %478 = vmatprep.subr.mxu0 0.0
  %479 = vmatpush1.msra.mxu0 0.0
  %480 = vmatprep.subr.mxu0 0.0
  %481 = vmatpush1.msra.mxu0 0.0
  %482 = vmatprep.subr.mxu0 0.0
  %483 = vmatpush1.msra.mxu0 0.0
  %484 = vmatprep.subr.mxu0 0.0
  %485 = vmatpush1.msra.mxu0 0.0
  %486 = vmatprep.subr.mxu0 0.0
  %487 = vmatpush1.msra.mxu0 0.0
  %488 = vmatprep.subr.mxu0 0.0
  %489 = vmatpush1.msra.mxu0 0.0
  %490 = vmatprep.subr.mxu0 0.0
  %491 = vmatpush1.msra.mxu0 0.0
  %492 = vmatprep.subr.mxu0 0.0
  %493 = vmatpush1.msra.mxu0 0.0
  %494 = vmatprep.subr.mxu0 0.0
  %495 = vmatpush1.msra.mxu0 0.0
  %496 = vmatprep.subr.mxu0 0.0
  %497 = vmatpush1.msra.mxu0 0.0
  %498 = vmatprep.subr.mxu0 0.0
  %499 = vmatpush1.msra.mxu0 0.0
  %500 = vmatprep.subr.mxu0 0.0
  %501 = vmatpush1.msra.mxu0 0.0
  %502 = vmatprep.subr.mxu0 0.0
  %503 = vmatpush1.msra.mxu0 0.0
  %504 = vmatprep.mubr.f32.mxu0 0.0
  %505 = vmatmul.mubr.f32.gmra.mrb[0].mxu0 %v438
  %v506 = vpop.f32.mrb[0].mxu0
  %v507 = vadd.f32 0.0, %v506
  %v508 = vpop.f32.mrb[0].mxu0
  %509 = vdwg.mxu0
  %v510 = vadd.f32 %v428, %v507
  %511 = vrot.lane.b32.xlu0 %v17, 121
  %v512 = vpop.permute.xlu0 %511
  %vm514 = vcmask 990208
  %v515 = vsel %vm514, %v512, 0.0
  %vm516 = vcmp.lt.s32.totalorder %v20, 56
  %vm517 = vmand %vm516, %vm29
  %v518 = vsel %vm517, %v515, 0.0
  %s519 = scalar_lea.vmem %s1, 48
  %v520 = vld [vmem:[%s519] sm:$0xff]
  %v522 = vsel %vm36, %v520, 0
  %524 = vmatprep.subr.mxu0 0.0
  %525 = vmatpush1.msra.mxu0 %v518
  %526 = vmatprep.subr.mxu0 0.0
  %527 = vmatpush1.msra.mxu0 0.0
  %528 = vmatprep.subr.mxu0 0.0
  %529 = vmatpush1.msra.mxu0 0.0
  %530 = vmatprep.subr.mxu0 0.0
  %531 = vmatpush1.msra.mxu0 0.0
  %532 = vmatprep.subr.mxu0 0.0
  %533 = vmatpush1.msra.mxu0 0.0
  %534 = vmatprep.subr.mxu0 0.0
  %535 = vmatpush1.msra.mxu0 0.0
  %536 = vmatprep.subr.mxu0 0.0
  %537 = vmatpush1.msra.mxu0 0.0
  %538 = vmatprep.subr.mxu0 0.0
  %539 = vmatpush1.msra.mxu0 0.0
  %540 = vmatprep.subr.mxu0 0.0
  %541 = vmatpush1.msra.mxu0 0.0
  %542 = vmatprep.subr.mxu0 0.0
  %543 = vmatpush1.msra.mxu0 0.0
  %544 = vmatprep.subr.mxu0 0.0
  %545 = vmatpush1.msra.mxu0 0.0
  %546 = vmatprep.subr.mxu0 0.0
  %547 = vmatpush1.msra.mxu0 0.0
  %548 = vmatprep.subr.mxu0 0.0
  %549 = vmatpush1.msra.mxu0 0.0
  %550 = vmatprep.subr.mxu0 0.0
  %551 = vmatpush1.msra.mxu0 0.0
  %552 = vmatprep.subr.mxu0 0.0
  %553 = vmatpush1.msra.mxu0 0.0
  %554 = vmatprep.subr.mxu0 0.0
  %555 = vmatpush1.msra.mxu0 0.0
  %556 = vmatprep.subr.mxu0 0.0
  %557 = vmatpush1.msra.mxu0 0.0
  %558 = vmatprep.subr.mxu0 0.0
  %559 = vmatpush1.msra.mxu0 0.0
  %560 = vmatprep.subr.mxu0 0.0
  %561 = vmatpush1.msra.mxu0 0.0
  %562 = vmatprep.subr.mxu0 0.0
  %563 = vmatpush1.msra.mxu0 0.0
  %564 = vmatprep.subr.mxu0 0.0
  %565 = vmatpush1.msra.mxu0 0.0
  %566 = vmatprep.subr.mxu0 0.0
  %567 = vmatpush1.msra.mxu0 0.0
  %568 = vmatprep.subr.mxu0 0.0
  %569 = vmatpush1.msra.mxu0 0.0
  %570 = vmatprep.subr.mxu0 0.0
  %571 = vmatpush1.msra.mxu0 0.0
  %572 = vmatprep.subr.mxu0 0.0
  %573 = vmatpush1.msra.mxu0 0.0
  %574 = vmatprep.subr.mxu0 0.0
  %575 = vmatpush1.msra.mxu0 0.0
  %576 = vmatprep.subr.mxu0 0.0
  %577 = vmatpush1.msra.mxu0 0.0
  %578 = vmatprep.subr.mxu0 0.0
  %579 = vmatpush1.msra.mxu0 0.0
  %580 = vmatprep.subr.mxu0 0.0
  %581 = vmatpush1.msra.mxu0 0.0
  %582 = vmatprep.subr.mxu0 0.0
  %583 = vmatpush1.msra.mxu0 0.0
  %584 = vmatprep.subr.mxu0 0.0
  %585 = vmatpush1.msra.mxu0 0.0
  %586 = vmatprep.subr.mxu0 0.0
  %587 = vmatpush1.msra.mxu0 0.0
  %588 = vmatprep.mubr.f32.mxu0 0.0
  %589 = vmatmul.mubr.f32.gmra.mrb[0].mxu0 %v522
  %v590 = vpop.f32.mrb[0].mxu0
  %v591 = vadd.f32 0.0, %v590
  %v592 = vpop.f32.mrb[0].mxu0
  %593 = vdwg.mxu0
  %v594 = vadd.f32 %v510, %v591
  %595 = vrot.lane.b32.xlu0 %v17, 120
  %v596 = vpop.permute.xlu0 %595
  %vm598 = vcmask 982016
  %v599 = vsel %vm598, %v596, 0.0
  %v600 = vsel %vm516, %v599, 0.0
  %s601 = scalar_lea.vmem %s1, 56
  %v602 = vld [vmem:[%s601] sm:$0xff]
  %v604 = vsel %vm36, %v602, 0
  %606 = vmatprep.subr.mxu0 0.0
  %607 = vmatpush1.msra.mxu0 %v600
  %608 = vmatprep.subr.mxu0 0.0
  %609 = vmatpush1.msra.mxu0 0.0
  %610 = vmatprep.subr.mxu0 0.0
  %611 = vmatpush1.msra.mxu0 0.0
  %612 = vmatprep.subr.mxu0 0.0
  %613 = vmatpush1.msra.mxu0 0.0
  %614 = vmatprep.subr.mxu0 0.0
  %615 = vmatpush1.msra.mxu0 0.0
  %616 = vmatprep.subr.mxu0 0.0
  %617 = vmatpush1.msra.mxu0 0.0
  %618 = vmatprep.subr.mxu0 0.0
  %619 = vmatpush1.msra.mxu0 0.0
  %620 = vmatprep.subr.mxu0 0.0
  %621 = vmatpush1.msra.mxu0 0.0
  %622 = vmatprep.subr.mxu0 0.0
  %623 = vmatpush1.msra.mxu0 0.0
  %624 = vmatprep.subr.mxu0 0.0
  %625 = vmatpush1.msra.mxu0 0.0
  %626 = vmatprep.subr.mxu0 0.0
  %627 = vmatpush1.msra.mxu0 0.0
  %628 = vmatprep.subr.mxu0 0.0
  %629 = vmatpush1.msra.mxu0 0.0
  %630 = vmatprep.subr.mxu0 0.0
  %631 = vmatpush1.msra.mxu0 0.0
  %632 = vmatprep.subr.mxu0 0.0
  %633 = vmatpush1.msra.mxu0 0.0
  %634 = vmatprep.subr.mxu0 0.0
  %635 = vmatpush1.msra.mxu0 0.0
  %636 = vmatprep.subr.mxu0 0.0
  %637 = vmatpush1.msra.mxu0 0.0
  %638 = vmatprep.subr.mxu0 0.0
  %639 = vmatpush1.msra.mxu0 0.0
  %640 = vmatprep.subr.mxu0 0.0
  %641 = vmatpush1.msra.mxu0 0.0
  %642 = vmatprep.subr.mxu0 0.0
  %643 = vmatpush1.msra.mxu0 0.0
  %644 = vmatprep.subr.mxu0 0.0
  %645 = vmatpush1.msra.mxu0 0.0
  %646 = vmatprep.subr.mxu0 0.0
  %647 = vmatpush1.msra.mxu0 0.0
  %648 = vmatprep.subr.mxu0 0.0
  %649 = vmatpush1.msra.mxu0 0.0
  %650 = vmatprep.subr.mxu0 0.0
  %651 = vmatpush1.msra.mxu0 0.0
  %652 = vmatprep.subr.mxu0 0.0
  %653 = vmatpush1.msra.mxu0 0.0
  %654 = vmatprep.subr.mxu0 0.0
  %655 = vmatpush1.msra.mxu0 0.0
  %656 = vmatprep.subr.mxu0 0.0
  %657 = vmatpush1.msra.mxu0 0.0
  %658 = vmatprep.subr.mxu0 0.0
  %659 = vmatpush1.msra.mxu0 0.0
  %660 = vmatprep.subr.mxu0 0.0
  %661 = vmatpush1.msra.mxu0 0.0
  %662 = vmatprep.subr.mxu0 0.0
  %663 = vmatpush1.msra.mxu0 0.0
  %664 = vmatprep.subr.mxu0 0.0
  %665 = vmatpush1.msra.mxu0 0.0
  %666 = vmatprep.subr.mxu0 0.0
  %667 = vmatpush1.msra.mxu0 0.0
  %668 = vmatprep.subr.mxu0 0.0
  %669 = vmatpush1.msra.mxu0 0.0
  %670 = vmatprep.mubr.f32.mxu0 0.0
  %671 = vmatmul.mubr.f32.gmra.mrb[0].mxu0 %v604
  %v672 = vpop.f32.mrb[0].mxu0
  %v673 = vadd.f32 0.0, %v672
  %v674 = vpop.f32.mrb[0].mxu0
  %675 = vdwg.mxu0
  %v676 = vadd.f32 %v594, %v673
  %677 = vrot.lane.b32.xlu0 %v17, 119
  %v678 = vpop.permute.xlu0 %677
  %vm680 = vcmask 973824
  %v681 = vsel %vm680, %v678, 0.0
  %vm682 = vmand %vm516, %vm192
  %v683 = vsel %vm682, %v681, 0.0
  %s684 = scalar_lea.vmem %s1, 64
  %v685 = vld [vmem:[%s684] sm:$0xff]
  %v687 = vsel %vm36, %v685, 0
  %689 = vmatprep.subr.mxu0 0.0
  %690 = vmatpush1.msra.mxu0 %v683
  %691 = vmatprep.subr.mxu0 0.0
  %692 = vmatpush1.msra.mxu0 0.0
  %693 = vmatprep.subr.mxu0 0.0
  %694 = vmatpush1.msra.mxu0 0.0
  %695 = vmatprep.subr.mxu0 0.0
  %696 = vmatpush1.msra.mxu0 0.0
  %697 = vmatprep.subr.mxu0 0.0
  %698 = vmatpush1.msra.mxu0 0.0
  %699 = vmatprep.subr.mxu0 0.0
  %700 = vmatpush1.msra.mxu0 0.0
  %701 = vmatprep.subr.mxu0 0.0
  %702 = vmatpush1.msra.mxu0 0.0
  %703 = vmatprep.subr.mxu0 0.0
  %704 = vmatpush1.msra.mxu0 0.0
  %705 = vmatprep.subr.mxu0 0.0
  %706 = vmatpush1.msra.mxu0 0.0
  %707 = vmatprep.subr.mxu0 0.0
  %708 = vmatpush1.msra.mxu0 0.0
  %709 = vmatprep.subr.mxu0 0.0
  %710 = vmatpush1.msra.mxu0 0.0
  %711 = vmatprep.subr.mxu0 0.0
  %712 = vmatpush1.msra.mxu0 0.0
  %713 = vmatprep.subr.mxu0 0.0
  %714 = vmatpush1.msra.mxu0 0.0
  %715 = vmatprep.subr.mxu0 0.0
  %716 = vmatpush1.msra.mxu0 0.0
  %717 = vmatprep.subr.mxu0 0.0
  %718 = vmatpush1.msra.mxu0 0.0
  %719 = vmatprep.subr.mxu0 0.0
  %720 = vmatpush1.msra.mxu0 0.0
  %721 = vmatprep.subr.mxu0 0.0
  %722 = vmatpush1.msra.mxu0 0.0
  %723 = vmatprep.subr.mxu0 0.0
  %724 = vmatpush1.msra.mxu0 0.0
  %725 = vmatprep.subr.mxu0 0.0
  %726 = vmatpush1.msra.mxu0 0.0
  %727 = vmatprep.subr.mxu0 0.0
  %728 = vmatpush1.msra.mxu0 0.0
  %729 = vmatprep.subr.mxu0 0.0
  %730 = vmatpush1.msra.mxu0 0.0
  %731 = vmatprep.subr.mxu0 0.0
  %732 = vmatpush1.msra.mxu0 0.0
  %733 = vmatprep.subr.mxu0 0.0
  %734 = vmatpush1.msra.mxu0 0.0
  %735 = vmatprep.subr.mxu0 0.0
  %736 = vmatpush1.msra.mxu0 0.0
  %737 = vmatprep.subr.mxu0 0.0
  %738 = vmatpush1.msra.mxu0 0.0
  %739 = vmatprep.subr.mxu0 0.0
  %740 = vmatpush1.msra.mxu0 0.0
  %741 = vmatprep.subr.mxu0 0.0
  %742 = vmatpush1.msra.mxu0 0.0
  %743 = vmatprep.subr.mxu0 0.0
  %744 = vmatpush1.msra.mxu0 0.0
  %745 = vmatprep.subr.mxu0 0.0
  %746 = vmatpush1.msra.mxu0 0.0
  %747 = vmatprep.subr.mxu0 0.0
  %748 = vmatpush1.msra.mxu0 0.0
  %749 = vmatprep.subr.mxu0 0.0
  %750 = vmatpush1.msra.mxu0 0.0
  %751 = vmatprep.subr.mxu0 0.0
  %752 = vmatpush1.msra.mxu0 0.0
  %753 = vmatprep.mubr.f32.mxu0 0.0
  %754 = vmatmul.mubr.f32.gmra.mrb[0].mxu0 %v687
  %v755 = vpop.f32.mrb[0].mxu0
  %v756 = vadd.f32 0.0, %v755
  %v757 = vpop.f32.mrb[0].mxu0
  %758 = vdwg.mxu0
  %v759 = vadd.f32 %v676, %v756
  %760 = vadd.xlane.f32.xlu0 %v759
  %v761 = vpop.xlane.xlu0 %760
  %v762 = vmul.f32 %v761, 0.0078125
  %v763 = vmul.f32 %v759, %v759
  %764 = vadd.xlane.f32.xlu0 %v763
  %v765 = vpop.xlane.xlu0 %764
  %v766 = vmul.f32 %v765, 0.0078125
  %v767 = vmul.f32 %v762, %v762
  %v768 = vsub.f32 %v766, %v767
  %v769 = vmax.f32 %v768, 0.0
  %v770 = vld [vmem:[%s2] sm:$0xff]
  %v771 = vadd.f32 %v769, 1e-05
  %v772 = vrsqrt.pop %v771
  %v773 = vmul.f32 %v770, %v772
  %v774 = vld [vmem:[%s3] sm:$0xff]
  %v775 = vmul.f32 %v762, %v773
  %v776 = vsub.f32 %v774, %v775
  %778 = vset.pattern.permute.xlu0 0
  %779 = vperm.xlu0 %778, %v773
  %v780 = vpop.permute.xlu0 %779
  %v782 = vmul.f32 %v759, %v780
  %784 = vset.pattern.permute.xlu0 0
  %785 = vperm.xlu0 %784, %v776
  %v786 = vpop.permute.xlu0 %785
  %v788 = vadd.f32 %v782, %v786
  %vm789 = vcmp.ge.f32.partialorder %v788, 0.0
  %v790 = vmul.f32 %v788, 0.01
  %v791 = vsel %vm789, %v788, %v790
  %792 = vst [vmem:[%s4] sm:$0xff] %v791
  // Predicated region
  $region18: #{vae_forward.11} parent=0 // pred_check
    _
  $region19: #{vae_forward.11} parent=0 // pred_check_branch
    %794 = sbr.rel (0) target = $region21
  $region20: #{vae_forward.11} parent=0 // pred_region
    _
  $region21: #{vae_forward.11} parent=0 // pred_fallthru
    _
  // Predicated region
  $region22: #{vae_forward.11} parent=0 // pred_check
    _
  $region23: #{vae_forward.11} parent=0 // pred_check_branch
    %796 = sbr.rel (0) target = $region25
  $region24: #{vae_forward.11} parent=0 // pred_region
    _
  $region25: #{vae_forward.11} parent=0 // pred_fallthru
    _

// kernel: vae_forward.10
$region0: #{vae_forward.10}
  #allocation0 [shape = 'u32[]', space=smem, size = 0x4, offset = 0x4, fixed_abs, tag = 'smem constant byte address 0x4 - core index']
  #allocation1 [shape = 'u32[144,128]{1,0:T(1,128)}', space=vmem, size = 0x12000, scoped, tag = 'internal scratch']
  %s0 = inlined_call_operand.vmem [shape: f32[8,512], index: 0, kind: input, shape index: {}]
  %s1 = inlined_call_operand.vmem [shape: f32[9,8,8], index: 1, kind: input, shape index: {}]
  %s2 = inlined_call_operand.vmem [shape: f32[8,1], index: 2, kind: input, shape index: {}]
  %s3 = inlined_call_operand.vmem [shape: f32[8,1], index: 3, kind: input, shape index: {}]
  %s4 = inlined_call_operand.vmem [shape: f32[8,512], index: 4, kind: output, shape index: {}]
  %s5 = sld [smem:[#allocation0]]
  $region26: #{vae_forward.10} parent=0
    _
  %s7 = ssub.s32 1, %s5
  %s8 = scalar_select 0, %s7, %s5
  // Predicated region
  $region2: #{vae_forward.10} parent=0 // pred_check
    _
  $region3: #{vae_forward.10} parent=0 // pred_check_branch
    %10 = sbr.rel (0) target = $region5
  $region4: #{vae_forward.10} parent=0 // pred_region
    _
  $region5: #{vae_forward.10} parent=0 // pred_fallthru
    _
  // Predicated region
  $region6: #{vae_forward.10} parent=0 // pred_check
    _
  $region7: #{vae_forward.10} parent=0 // pred_check_branch
    %12 = sbr.rel (0) target = $region9
  $region8: #{vae_forward.10} parent=0 // pred_region
    _
  $region9: #{vae_forward.10} parent=0 // pred_fallthru
    _
  // Predicated region
  $region10: #{vae_forward.10} parent=0 // pred_check
    _
  $region11: #{vae_forward.10} parent=0 // pred_check_branch
    %14 = sbr.rel (0) target = $region13
  $region12: #{vae_forward.10} parent=0 // pred_region
    _
  $region13: #{vae_forward.10} parent=0 // pred_fallthru
    _
  // Predicated region
  $region14: #{vae_forward.10} parent=0 // pred_check
    _
  $region15: #{vae_forward.10} parent=0 // pred_check_branch
    %16 = sbr.rel (0) target = $region17
  $region16: #{vae_forward.10} parent=0 // pred_region
    _
  $region17: #{vae_forward.10} parent=0 // pred_fallthru
    _
  %v17 = vld [vmem:[%s0] sm:$0xff]
  %v18 = vld [vmem:[%s0 + $0x8] sm:$0xff]
  %v19 = vld [vmem:[%s0 + $0x10] sm:$0xff]
  %v20 = vld [vmem:[%s0 + $0x18] sm:$0xff]
  %v21 = vlaneseq
  %v22 = vand.u32 %v21, 127
  %v23 = vadd.s32 %v22, 128
  %v24 = vadd.s32 %v22, 256
  %v25 = vadd.s32 %v22, 384
  %v26 = vand.u32 %v22, 255
  %v27 = vand.u32 %v23, 255
  %v28 = vand.u32 %v24, 255
  %v29 = vand.u32 %v25, 255
  %v30 = vand.u32 %v22, 15
  %v31 = vand.u32 %v23, 15
  %v32 = vand.u32 %v24, 15
  %v33 = vand.u32 %v25, 15
  %38 = vrot.lane.b32.xlu0 %v17, 17
  %v39 = vpop.permute.xlu0 %38
  %40 = vrot.lane.b32.xlu0 %v18, 17
  %v41 = vpop.permute.xlu0 %40
  %42 = vrot.lane.b32.xlu0 %v19, 17
  %v43 = vpop.permute.xlu0 %42
  %44 = vrot.lane.b32.xlu0 %v20, 17
  %v45 = vpop.permute.xlu0 %44
  %vm46 = vcmask 138240
  %v47 = vsel %vm46, %v39, %v41
  %v48 = vsel %vm46, %v41, %v43
  %v49 = vsel %vm46, %v43, %v45
  %v54 = vsel %vm46, 0.0, %v39
  %vm55 = vcmp.ge.s32.totalorder %v26, 16
  %vm56 = vcmp.ge.s32.totalorder %v27, 16
  %vm57 = vcmp.ge.s32.totalorder %v28, 16
  %vm58 = vcmp.ge.s32.totalorder %v29, 16
  %vm59 = vcmp.ge.s32.totalorder %v30, 1
  %vm60 = vcmp.ge.s32.totalorder %v31, 1
  %vm61 = vcmp.ge.s32.totalorder %v32, 1
  %vm62 = vcmp.ge.s32.totalorder %v33, 1
  %vm63 = vmand %vm55, %vm59
  %vm64 = vmand %vm56, %vm60
  %vm65 = vmand %vm57, %vm61
  %vm66 = vmand %vm58, %vm62
  %v67 = vsel %vm63, %v54, 0.0
  %v68 = vsel %vm64, %v47, 0.0
  %v69 = vsel %vm65, %v48, 0.0
  %v70 = vsel %vm66, %v49, 0.0
  %v71 = vld [vmem:[%s1] sm:$0xff]
  %72 = vrot.lane.b32.xlu0 %v17, 16
  %v73 = vpop.permute.xlu0 %72
  %74 = vrot.lane.b32.xlu0 %v18, 16
  %v75 = vpop.permute.xlu0 %74
  %76 = vrot.lane.b32.xlu0 %v19, 16
  %v77 = vpop.permute.xlu0 %76
  %78 = vrot.lane.b32.xlu0 %v20, 16
  %v79 = vpop.permute.xlu0 %78
  %vm80 = vcmask 130048
  %v81 = vsel %vm80, %v73, %v75
  %v82 = vsel %vm80, %v75, %v77
  %v83 = vsel %vm80, %v77, %v79
  %v88 = vsel %vm80, 0.0, %v73
  %v89 = vsel %vm55, %v88, 0.0
  %v90 = vsel %vm56, %v81, 0.0
  %v91 = vsel %vm57, %v82, 0.0
  %v92 = vsel %vm58, %v83, 0.0
  %s93 = scalar_lea.vmem %s1, 8
  %v94 = vld [vmem:[%s93] sm:$0xff]
  %vm95 = vcmask 64512
  %v97 = vsel %vm95, %v94, 0
  %99 = vmatprep.subr.mxu0 %v90
  %100 = vmatpush1.msra.mxu0 %v89
  %101 = vmatprep.subr.mxu0 0.0
  %102 = vmatpush1.msra.mxu0 0.0
  %103 = vmatprep.subr.mxu0 0.0
  %104 = vmatpush1.msra.mxu0 0.0
  %105 = vmatprep.subr.mxu0 0.0
  %106 = vmatpush1.msra.mxu0 0.0
  %107 = vmatprep.subr.mxu0 0.0
  %108 = vmatpush1.msra.mxu0 0.0
  %109 = vmatprep.subr.mxu0 0.0
  %110 = vmatpush1.msra.mxu0 0.0
  %111 = vmatprep.subr.mxu0 0.0
  %112 = vmatpush1.msra.mxu0 0.0
  %113 = vmatprep.subr.mxu0 0.0
  %114 = vmatpush1.msra.mxu0 0.0
  %115 = vmatprep.subr.mxu0 0.0
  %116 = vmatpush1.msra.mxu0 0.0
  %117 = vmatprep.subr.mxu0 0.0
  %118 = vmatpush1.msra.mxu0 0.0
  %119 = vmatprep.subr.mxu0 0.0
  %120 = vmatpush1.msra.mxu0 0.0
  %121 = vmatprep.subr.mxu0 0.0
  %122 = vmatpush1.msra.mxu0 0.0
  %123 = vmatprep.subr.mxu0 0.0
  %124 = vmatpush1.msra.mxu0 0.0
  %125 = vmatprep.subr.mxu0 0.0
  %126 = vmatpush1.msra.mxu0 0.0
  %127 = vmatprep.subr.mxu0 0.0
  %128 = vmatpush1.msra.mxu0 0.0
  %129 = vmatprep.subr.mxu0 0.0
  %130 = vmatpush1.msra.mxu0 0.0
  %131 = vmatprep.subr.mxu0 0.0
  %132 = vmatpush1.msra.mxu0 0.0
  %133 = vmatprep.subr.mxu0 0.0
  %134 = vmatpush1.msra.mxu0 0.0
  %135 = vmatprep.subr.mxu0 0.0
  %136 = vmatpush1.msra.mxu0 0.0
  %137 = vmatprep.subr.mxu0 0.0
  %138 = vmatpush1.msra.mxu0 0.0
  %139 = vmatprep.subr.mxu0 0.0
  %140 = vmatpush1.msra.mxu0 0.0
  %141 = vmatprep.subr.mxu0 0.0
  %142 = vmatpush1.msra.mxu0 0.0
  %143 = vmatprep.subr.mxu0 0.0
  %144 = vmatpush1.msra.mxu0 0.0
  %145 = vmatprep.subr.mxu0 0.0
  %146 = vmatpush1.msra.mxu0 0.0
  %147 = vmatprep.subr.mxu0 0.0
  %148 = vmatpush1.msra.mxu0 0.0
  %149 = vmatprep.subr.mxu0 0.0
  %150 = vmatpush1.msra.mxu0 0.0
  %151 = vmatprep.subr.mxu0 0.0
  %152 = vmatpush1.msra.mxu0 0.0
  %153 = vmatprep.subr.mxu0 0.0
  %154 = vmatpush1.msra.mxu0 0.0
  %155 = vmatprep.subr.mxu0 0.0
  %156 = vmatpush1.msra.mxu0 0.0
  %157 = vmatprep.subr.mxu0 0.0
  %158 = vmatpush1.msra.mxu0 0.0
  %159 = vmatprep.subr.mxu0 0.0
  %160 = vmatpush1.msra.mxu0 0.0
  %161 = vmatprep.subr.mxu0 0.0
  %162 = vmatpush1.msra.mxu0 0.0
  %163 = vmatprep.mubr.f32.mxu0 0.0
  %164 = vmatmul.mubr.f32.gmra.mrb[0].mxu0 %v97
  %v165 = vpop.f32.mrb[0].mxu0
  %v166 = vadd.f32 0.0, %v165
  %v167 = vpop.f32.mrb[0].mxu0
  %v168 = vadd.f32 0.0, %v167
  %169 = vdwg.mxu0
  %170 = vmatprep.subr.mxu0 %v92
  %171 = vmatpush1.msra.mxu0 %v91
  %172 = vmatprep.subr.mxu0 0.0
  %173 = vmatpush1.msra.mxu0 0.0
  %174 = vmatprep.subr.mxu0 0.0
  %175 = vmatpush1.msra.mxu0 0.0
  %176 = vmatprep.subr.mxu0 0.0
  %177 = vmatpush1.msra.mxu0 0.0
  %178 = vmatprep.subr.mxu0 0.0
  %179 = vmatpush1.msra.mxu0 0.0
  %180 = vmatprep.subr.mxu0 0.0
  %181 = vmatpush1.msra.mxu0 0.0
  %182 = vmatprep.subr.mxu0 0.0
  %183 = vmatpush1.msra.mxu0 0.0
  %184 = vmatprep.subr.mxu0 0.0
  %185 = vmatpush1.msra.mxu0 0.0
  %186 = vmatprep.subr.mxu0 0.0
  %187 = vmatpush1.msra.mxu0 0.0
  %188 = vmatprep.subr.mxu0 0.0
  %189 = vmatpush1.msra.mxu0 0.0
  %190 = vmatprep.subr.mxu0 0.0
  %191 = vmatpush1.msra.mxu0 0.0
  %192 = vmatprep.subr.mxu0 0.0
  %193 = vmatpush1.msra.mxu0 0.0
  %194 = vmatprep.subr.mxu0 0.0
  %195 = vmatpush1.msra.mxu0 0.0
  %196 = vmatprep.subr.mxu0 0.0
  %197 = vmatpush1.msra.mxu0 0.0
  %198 = vmatprep.subr.mxu0 0.0
  %199 = vmatpush1.msra.mxu0 0.0
  %200 = vmatprep.subr.mxu0 0.0
  %201 = vmatpush1.msra.mxu0 0.0
  %202 = vmatprep.subr.mxu0 0.0
  %203 = vmatpush1.msra.mxu0 0.0
  %204 = vmatprep.subr.mxu0 0.0
  %205 = vmatpush1.msra.mxu0 0.0
  %206 = vmatprep.subr.mxu0 0.0
  %207 = vmatpush1.msra.mxu0 0.0
  %208 = vmatprep.subr.mxu0 0.0
  %209 = vmatpush1.msra.mxu0 0.0
  %210 = vmatprep.subr.mxu0 0.0
  %211 = vmatpush1.msra.mxu0 0.0
  %212 = vmatprep.subr.mxu0 0.0
  %213 = vmatpush1.msra.mxu0 0.0
  %214 = vmatprep.subr.mxu0 0.0
  %215 = vmatpush1.msra.mxu0 0.0
  %216 = vmatprep.subr.mxu0 0.0
  %217 = vmatpush1.msra.mxu0 0.0
  %218 = vmatprep.subr.mxu0 0.0
  %219 = vmatpush1.msra.mxu0 0.0
  %220 = vmatprep.subr.mxu0 0.0
  %221 = vmatpush1.msra.mxu0 0.0
  %222 = vmatprep.subr.mxu0 0.0
  %223 = vmatpush1.msra.mxu0 0.0
  %224 = vmatprep.subr.mxu0 0.0
  %225 = vmatpush1.msra.mxu0 0.0
  %226 = vmatprep.subr.mxu0 0.0
  %227 = vmatpush1.msra.mxu0 0.0
  %228 = vmatprep.subr.mxu0 0.0
  %229 = vmatpush1.msra.mxu0 0.0
  %230 = vmatprep.subr.mxu0 0.0
  %231 = vmatpush1.msra.mxu0 0.0
  %232 = vmatprep.subr.mxu0 0.0
  %233 = vmatpush1.msra.mxu0 0.0
  %234 = vmatprep.mubr.f32.mxu0 0.0
  %235 = vmatmul.mubr.f32.gmra.mrb[0].mxu0 %v97
  %v236 = vpop.f32.mrb[0].mxu0
  %v237 = vadd.f32 0.0, %v236
  %v238 = vpop.f32.mrb[0].mxu0
  %v239 = vadd.f32 0.0, %v238
  %240 = vdwg.mxu0
  %v242 = vsel %vm95, %v71, 0
  %244 = vmatprep.subr.mxu0 %v68
  %245 = vmatpush1.msra.mxu0 %v67
  %246 = vmatprep.subr.mxu0 0.0
  %247 = vmatpush1.msra.mxu0 0.0
  %248 = vmatprep.subr.mxu0 0.0
  %249 = vmatpush1.msra.mxu0 0.0
  %250 = vmatprep.subr.mxu0 0.0
  %251 = vmatpush1.msra.mxu0 0.0
  %252 = vmatprep.subr.mxu0 0.0
  %253 = vmatpush1.msra.mxu0 0.0
  %254 = vmatprep.subr.mxu0 0.0
  %255 = vmatpush1.msra.mxu0 0.0
  %256 = vmatprep.subr.mxu0 0.0
  %257 = vmatpush1.msra.mxu0 0.0
  %258 = vmatprep.subr.mxu0 0.0
  %259 = vmatpush1.msra.mxu0 0.0
  %260 = vmatprep.subr.mxu0 0.0
  %261 = vmatpush1.msra.mxu0 0.0
  %262 = vmatprep.subr.mxu0 0.0
  %263 = vmatpush1.msra.mxu0 0.0
  %264 = vmatprep.subr.mxu0 0.0
  %265 = vmatpush1.msra.mxu0 0.0
  %266 = vmatprep.subr.mxu0 0.0
  %267 = vmatpush1.msra.mxu0 0.0
  %268 = vmatprep.subr.mxu0 0.0
  %269 = vmatpush1.msra.mxu0 0.0
  %270 = vmatprep.subr.mxu0 0.0
  %271 = vmatpush1.msra.mxu0 0.0
  %272 = vmatprep.subr.mxu0 0.0
  %273 = vmatpush1.msra.mxu0 0.0
  %274 = vmatprep.subr.mxu0 0.0
  %275 = vmatpush1.msra.mxu0 0.0
  %276 = vmatprep.subr.mxu0 0.0
  %277 = vmatpush1.msra.mxu0 0.0
  %278 = vmatprep.subr.mxu0 0.0
  %279 = vmatpush1.msra.mxu0 0.0
  %280 = vmatprep.subr.mxu0 0.0
  %281 = vmatpush1.msra.mxu0 0.0
  %282 = vmatprep.subr.mxu0 0.0
  %283 = vmatpush1.msra.mxu0 0.0
  %284 = vmatprep.subr.mxu0 0.0
  %285 = vmatpush1.msra.mxu0 0.0
  %286 = vmatprep.subr.mxu0 0.0
  %287 = vmatpush1.msra.mxu0 0.0
  %288 = vmatprep.subr.mxu0 0.0
  %289 = vmatpush1.msra.mxu0 0.0
  %290 = vmatprep.subr.mxu0 0.0
  %291 = vmatpush1.msra.mxu0 0.0
  %292 = vmatprep.subr.mxu0 0.0
  %293 = vmatpush1.msra.mxu0 0.0
  %294 = vmatprep.subr.mxu0 0.0
  %295 = vmatpush1.msra.mxu0 0.0
  %296 = vmatprep.subr.mxu0 0.0
  %297 = vmatpush1.msra.mxu0 0.0
  %298 = vmatprep.subr.mxu0 0.0
  %299 = vmatpush1.msra.mxu0 0.0
  %300 = vmatprep.subr.mxu0 0.0
  %301 = vmatpush1.msra.mxu0 0.0
  %302 = vmatprep.subr.mxu0 0.0
  %303 = vmatpush1.msra.mxu0 0.0
  %304 = vmatprep.subr.mxu0 0.0
  %305 = vmatpush1.msra.mxu0 0.0
  %306 = vmatprep.subr.mxu0 0.0
  %307 = vmatpush1.msra.mxu0 0.0
  %308 = vmatprep.mubr.f32.mxu0 0.0
  %309 = vmatmul.mubr.f32.gmra.mrb[0].mxu0 %v242
  %v310 = vpop.f32.mrb[0].mxu0
  %v311 = vadd.f32 %v166, %v310
  %v312 = vpop.f32.mrb[0].mxu0
  %v313 = vadd.f32 %v168, %v312
  %314 = vdwg.mxu0
  %315 = vmatprep.subr.mxu0 %v70
  %316 = vmatpush1.msra.mxu0 %v69
  %317 = vmatprep.subr.mxu0 0.0
  %318 = vmatpush1.msra.mxu0 0.0
  %319 = vmatprep.subr.mxu0 0.0
  %320 = vmatpush1.msra.mxu0 0.0
  %321 = vmatprep.subr.mxu0 0.0
  %322 = vmatpush1.msra.mxu0 0.0
  %323 = vmatprep.subr.mxu0 0.0
  %324 = vmatpush1.msra.mxu0 0.0
  %325 = vmatprep.subr.mxu0 0.0
  %326 = vmatpush1.msra.mxu0 0.0
  %327 = vmatprep.subr.mxu0 0.0
  %328 = vmatpush1.msra.mxu0 0.0
  %329 = vmatprep.subr.mxu0 0.0
  %330 = vmatpush1.msra.mxu0 0.0
  %331 = vmatprep.subr.mxu0 0.0
  %332 = vmatpush1.msra.mxu0 0.0
  %333 = vmatprep.subr.mxu0 0.0
  %334 = vmatpush1.msra.mxu0 0.0
  %335 = vmatprep.subr.mxu0 0.0
  %336 = vmatpush1.msra.mxu0 0.0
  %337 = vmatprep.subr.mxu0 0.0
  %338 = vmatpush1.msra.mxu0 0.0
  %339 = vmatprep.subr.mxu0 0.0
  %340 = vmatpush1.msra.mxu0 0.0
  %341 = vmatprep.subr.mxu0 0.0
  %342 = vmatpush1.msra.mxu0 0.0
  %343 = vmatprep.subr.mxu0 0.0
  %344 = vmatpush1.msra.mxu0 0.0
  %345 = vmatprep.subr.mxu0 0.0
  %346 = vmatpush1.msra.mxu0 0.0
  %347 = vmatprep.subr.mxu0 0.0
  %348 = vmatpush1.msra.mxu0 0.0
  %349 = vmatprep.subr.mxu0 0.0
  %350 = vmatpush1.msra.mxu0 0.0
  %351 = vmatprep.subr.mxu0 0.0
  %352 = vmatpush1.msra.mxu0 0.0
  %353 = vmatprep.subr.mxu0 0.0
  %354 = vmatpush1.msra.mxu0 0.0
  %355 = vmatprep.subr.mxu0 0.0
  %356 = vmatpush1.msra.mxu0 0.0
  %357 = vmatprep.subr.mxu0 0.0
  %358 = vmatpush1.msra.mxu0 0.0
  %359 = vmatprep.subr.mxu0 0.0
  %360 = vmatpush1.msra.mxu0 0.0
  %361 = vmatprep.subr.mxu0 0.0
  %362 = vmatpush1.msra.mxu0 0.0
  %363 = vmatprep.subr.mxu0 0.0
  %364 = vmatpush1.msra.mxu0 0.0
  %365 = vmatprep.subr.mxu0 0.0
  %366 = vmatpush1.msra.mxu0 0.0
  %367 = vmatprep.subr.mxu0 0.0
  %368 = vmatpush1.msra.mxu0 0.0
  %369 = vmatprep.subr.mxu0 0.0
  %370 = vmatpush1.msra.mxu0 0.0
  %371 = vmatprep.subr.mxu0 0.0
  %372 = vmatpush1.msra.mxu0 0.0
  %373 = vmatprep.subr.mxu0 0.0
  %374 = vmatpush1.msra.mxu0 0.0
  %375 = vmatprep.subr.mxu0 0.0
  %376 = vmatpush1.msra.mxu0 0.0
  %377 = vmatprep.subr.mxu0 0.0
  %378 = vmatpush1.msra.mxu0 0.0
  %379 = vmatprep.mubr.f32.mxu0 0.0
  %380 = vmatmul.mubr.f32.gmra.mrb[0].mxu0 %v242
  %v381 = vpop.f32.mrb[0].mxu0
  %v382 = vadd.f32 %v237, %v381
  %v383 = vpop.f32.mrb[0].mxu0
  %v384 = vadd.f32 %v239, %v383
  %385 = vdwg.mxu0
  %386 = vrot.lane.b32.xlu0 %v17, 15
  %v387 = vpop.permute.xlu0 %386
  %388 = vrot.lane.b32.xlu0 %v18, 15
  %v389 = vpop.permute.xlu0 %388
  %390 = vrot.lane.b32.xlu0 %v19, 15
  %v391 = vpop.permute.xlu0 %390
  %392 = vrot.lane.b32.xlu0 %v20, 15
  %v393 = vpop.permute.xlu0 %392
  %vm394 = vcmask 121856
  %v395 = vsel %vm394, %v387, %v389
  %v396 = vsel %vm394, %v389, %v391
  %v397 = vsel %vm394, %v391, %v393
  %v402 = vsel %vm394, 0.0, %v387
  %vm403 = vcmp.lt.s32.totalorder %v30, 15
  %vm404 = vcmp.lt.s32.totalorder %v31, 15
  %vm405 = vcmp.lt.s32.totalorder %v32, 15
  %vm406 = vcmp.lt.s32.totalorder %v33, 15
  %vm407 = vmand %vm55, %vm403
  %vm408 = vmand %vm56, %vm404
  %vm409 = vmand %vm57, %vm405
  %vm410 = vmand %vm58, %vm406
  %v411 = vsel %vm407, %v402, 0.0
  %v412 = vsel %vm408, %v395, 0.0
  %v413 = vsel %vm409, %v396, 0.0
  %v414 = vsel %vm410, %v397, 0.0
  %s415 = scalar_lea.vmem %s1, 16
  %v416 = vld [vmem:[%s415] sm:$0xff]
  %v418 = vsel %vm95, %v416, 0
  %420 = vmatprep.subr.mxu0 %v412
  %421 = vmatpush1.msra.mxu0 %v411
  %422 = vmatprep.subr.mxu0 0.0
  %423 = vmatpush1.msra.mxu0 0.0
  %424 = vmatprep.subr.mxu0 0.0
  %425 = vmatpush1.msra.mxu0 0.0
  %426 = vmatprep.subr.mxu0 0.0
  %427 = vmatpush1.msra.mxu0 0.0
  %428 = vmatprep.subr.mxu0 0.0
  %429 = vmatpush1.msra.mxu0 0.0
  %430 = vmatprep.subr.mxu0 0.0
  %431 = vmatpush1.msra.mxu0 0.0
  %432 = vmatprep.subr.mxu0 0.0
  %433 = vmatpush1.msra.mxu0 0.0
  %434 = vmatprep.subr.mxu0 0.0
  %435 = vmatpush1.msra.mxu0 0.0
  %436 = vmatprep.subr.mxu0 0.0
  %437 = vmatpush1.msra.mxu0 0.0
  %438 = vmatprep.subr.mxu0 0.0
  %439 = vmatpush1.msra.mxu0 0.0
  %440 = vmatprep.subr.mxu0 0.0
  %441 = vmatpush1.msra.mxu0 0.0
  %442 = vmatprep.subr.mxu0 0.0
  %443 = vmatpush1.msra.mxu0 0.0
  %444 = vmatprep.subr.mxu0 0.0
  %445 = vmatpush1.msra.mxu0 0.0
  %446 = vmatprep.subr.mxu0 0.0
  %447 = vmatpush1.msra.mxu0 0.0
  %448 = vmatprep.subr.mxu0 0.0
  %449 = vmatpush1.msra.mxu0 0.0
  %450 = vmatprep.subr.mxu0 0.0
  %451 = vmatpush1.msra.mxu0 0.0
  %452 = vmatprep.subr.mxu0 0.0
  %453 = vmatpush1.msra.mxu0 0.0
  %454 = vmatprep.subr.mxu0 0.0
  %455 = vmatpush1.msra.mxu0 0.0
  %456 = vmatprep.subr.mxu0 0.0
  %457 = vmatpush1.msra.mxu0 0.0
  %458 = vmatprep.subr.mxu0 0.0
  %459 = vmatpush1.msra.mxu0 0.0
  %460 = vmatprep.subr.mxu0 0.0
  %461 = vmatpush1.msra.mxu0 0.0
  %462 = vmatprep.subr.mxu0 0.0
  %463 = vmatpush1.msra.mxu0 0.0
  %464 = vmatprep.subr.mxu0 0.0
  %465 = vmatpush1.msra.mxu0 0.0
  %466 = vmatprep.subr.mxu0 0.0
  %467 = vmatpush1.msra.mxu0 0.0
  %468 = vmatprep.subr.mxu0 0.0
  %469 = vmatpush1.msra.mxu0 0.0
  %470 = vmatprep.subr.mxu0 0.0
  %471 = vmatpush1.msra.mxu0 0.0
  %472 = vmatprep.subr.mxu0 0.0
  %473 = vmatpush1.msra.mxu0 0.0
  %474 = vmatprep.subr.mxu0 0.0
  %475 = vmatpush1.msra.mxu0 0.0
  %476 = vmatprep.subr.mxu0 0.0
  %477 = vmatpush1.msra.mxu0 0.0
  %478 = vmatprep.subr.mxu0 0.0
  %479 = vmatpush1.msra.mxu0 0.0
  %480 = vmatprep.subr.mxu0 0.0
  %481 = vmatpush1.msra.mxu0 0.0
  %482 = vmatprep.subr.mxu0 0.0
  %483 = vmatpush1.msra.mxu0 0.0
  %484 = vmatprep.mubr.f32.mxu0 0.0
  %485 = vmatmul.mubr.f32.gmra.mrb[0].mxu0 %v418
  %v486 = vpop.f32.mrb[0].mxu0
  %v487 = vadd.f32 0.0, %v486
  %v488 = vpop.f32.mrb[0].mxu0
  %v489 = vadd.f32 0.0, %v488
  %490 = vdwg.mxu0
  %491 = vmatprep.subr.mxu0 %v414
  %492 = vmatpush1.msra.mxu0 %v413
  %493 = vmatprep.subr.mxu0 0.0
  %494 = vmatpush1.msra.mxu0 0.0
  %495 = vmatprep.subr.mxu0 0.0
  %496 = vmatpush1.msra.mxu0 0.0
  %497 = vmatprep.subr.mxu0 0.0
  %498 = vmatpush1.msra.mxu0 0.0
  %499 = vmatprep.subr.mxu0 0.0
  %500 = vmatpush1.msra.mxu0 0.0
  %501 = vmatprep.subr.mxu0 0.0
  %502 = vmatpush1.msra.mxu0 0.0
  %503 = vmatprep.subr.mxu0 0.0
  %504 = vmatpush1.msra.mxu0 0.0
  %505 = vmatprep.subr.mxu0 0.0
  %506 = vmatpush1.msra.mxu0 0.0
  %507 = vmatprep.subr.mxu0 0.0
  %508 = vmatpush1.msra.mxu0 0.0
  %509 = vmatprep.subr.mxu0 0.0
  %510 = vmatpush1.msra.mxu0 0.0
  %511 = vmatprep.subr.mxu0 0.0
  %512 = vmatpush1.msra.mxu0 0.0
  %513 = vmatprep.subr.mxu0 0.0
  %514 = vmatpush1.msra.mxu0 0.0
  %515 = vmatprep.subr.mxu0 0.0
  %516 = vmatpush1.msra.mxu0 0.0
  %517 = vmatprep.subr.mxu0 0.0
  %518 = vmatpush1.msra.mxu0 0.0
  %519 = vmatprep.subr.mxu0 0.0
  %520 = vmatpush1.msra.mxu0 0.0
  %521 = vmatprep.subr.mxu0 0.0
  %522 = vmatpush1.msra.mxu0 0.0
  %523 = vmatprep.subr.mxu0 0.0
  %524 = vmatpush1.msra.mxu0 0.0
  %525 = vmatprep.subr.mxu0 0.0
  %526 = vmatpush1.msra.mxu0 0.0
  %527 = vmatprep.subr.mxu0 0.0
  %528 = vmatpush1.msra.mxu0 0.0
  %529 = vmatprep.subr.mxu0 0.0
  %530 = vmatpush1.msra.mxu0 0.0
  %531 = vmatprep.subr.mxu0 0.0
  %532 = vmatpush1.msra.mxu0 0.0
  %533 = vmatprep.subr.mxu0 0.0
  %534 = vmatpush1.msra.mxu0 0.0
  %535 = vmatprep.subr.mxu0 0.0
  %536 = vmatpush1.msra.mxu0 0.0
  %537 = vmatprep.subr.mxu0 0.0
  %538 = vmatpush1.msra.mxu0 0.0
  %539 = vmatprep.subr.mxu0 0.0
  %540 = vmatpush1.msra.mxu0 0.0
  %541 = vmatprep.subr.mxu0 0.0
  %542 = vmatpush1.msra.mxu0 0.0
  %543 = vmatprep.subr.mxu0 0.0
  %544 = vmatpush1.msra.mxu0 0.0
  %545 = vmatprep.subr.mxu0 0.0
  %546 = vmatpush1.msra.mxu0 0.0
  %547 = vmatprep.subr.mxu0 0.0
  %548 = vmatpush1.msra.mxu0 0.0
  %549 = vmatprep.subr.mxu0 0.0
  %550 = vmatpush1.msra.mxu0 0.0
  %551 = vmatprep.subr.mxu0 0.0
  %552 = vmatpush1.msra.mxu0 0.0
  %553 = vmatprep.subr.mxu0 0.0
  %554 = vmatpush1.msra.mxu0 0.0
  %555 = vmatprep.mubr.f32.mxu0 0.0
  %556 = vmatmul.mubr.f32.gmra.mrb[0].mxu0 %v418
  %v557 = vpop.f32.mrb[0].mxu0
  %v558 = vadd.f32 0.0, %v557
  %v559 = vpop.f32.mrb[0].mxu0
  %v560 = vadd.f32 0.0, %v559
  %561 = vdwg.mxu0
  %v562 = vadd.f32 %v311, %v487
  %v563 = vadd.f32 %v313, %v489
  %v564 = vadd.f32 %v382, %v558
  %v565 = vadd.f32 %v384, %v560
  %566 = vrot.lane.b32.xlu0 %v17, 1
  %v567 = vpop.permute.xlu0 %566
  %568 = vrot.lane.b32.xlu0 %v18, 1
  %v569 = vpop.permute.xlu0 %568
  %570 = vrot.lane.b32.xlu0 %v19, 1
  %v571 = vpop.permute.xlu0 %570
  %572 = vrot.lane.b32.xlu0 %v20, 1
  %v573 = vpop.permute.xlu0 %572
  %vm574 = vcmask 7168
  %v575 = vsel %vm574, %v567, %v569
  %v576 = vsel %vm574, %v569, %v571
  %v577 = vsel %vm574, %v571, %v573
  %v582 = vsel %vm574, 0.0, %v567
  %v583 = vsel %vm59, %v582, 0.0
  %v584 = vsel %vm60, %v575, 0.0
  %v585 = vsel %vm61, %v576, 0.0
  %v586 = vsel %vm62, %v577, 0.0
  %s587 = scalar_lea.vmem %s1, 24
  %v588 = vld [vmem:[%s587] sm:$0xff]
  %v590 = vsel %vm95, %v588, 0
  %592 = vmatprep.subr.mxu0 %v584
  %593 = vmatpush1.msra.mxu0 %v583
  %594 = vmatprep.subr.mxu0 0.0
  %595 = vmatpush1.msra.mxu0 0.0
  %596 = vmatprep.subr.mxu0 0.0
  %597 = vmatpush1.msra.mxu0 0.0
  %598 = vmatprep.subr.mxu0 0.0
  %599 = vmatpush1.msra.mxu0 0.0
  %600 = vmatprep.subr.mxu0 0.0
  %601 = vmatpush1.msra.mxu0 0.0
  %602 = vmatprep.subr.mxu0 0.0
  %603 = vmatpush1.msra.mxu0 0.0
  %604 = vmatprep.subr.mxu0 0.0
  %605 = vmatpush1.msra.mxu0 0.0
  %606 = vmatprep.subr.mxu0 0.0
  %607 = vmatpush1.msra.mxu0 0.0
  %608 = vmatprep.subr.mxu0 0.0
  %609 = vmatpush1.msra.mxu0 0.0
  %610 = vmatprep.subr.mxu0 0.0
  %611 = vmatpush1.msra.mxu0 0.0
  %612 = vmatprep.subr.mxu0 0.0
  %613 = vmatpush1.msra.mxu0 0.0
  %614 = vmatprep.subr.mxu0 0.0
  %615 = vmatpush1.msra.mxu0 0.0
  %616 = vmatprep.subr.mxu0 0.0
  %617 = vmatpush1.msra.mxu0 0.0
  %618 = vmatprep.subr.mxu0 0.0
  %619 = vmatpush1.msra.mxu0 0.0
  %620 = vmatprep.subr.mxu0 0.0
  %621 = vmatpush1.msra.mxu0 0.0
  %622 = vmatprep.subr.mxu0 0.0
  %623 = vmatpush1.msra.mxu0 0.0
  %624 = vmatprep.subr.mxu0 0.0
  %625 = vmatpush1.msra.mxu0 0.0
  %626 = vmatprep.subr.mxu0 0.0
  %627 = vmatpush1.msra.mxu0 0.0
  %628 = vmatprep.subr.mxu0 0.0
  %629 = vmatpush1.msra.mxu0 0.0
  %630 = vmatprep.subr.mxu0 0.0
  %631 = vmatpush1.msra.mxu0 0.0
  %632 = vmatprep.subr.mxu0 0.0
  %633 = vmatpush1.msra.mxu0 0.0
  %634 = vmatprep.subr.mxu0 0.0
  %635 = vmatpush1.msra.mxu0 0.0
  %636 = vmatprep.subr.mxu0 0.0
  %637 = vmatpush1.msra.mxu0 0.0
  %638 = vmatprep.subr.mxu0 0.0
  %639 = vmatpush1.msra.mxu0 0.0
  %640 = vmatprep.subr.mxu0 0.0
  %641 = vmatpush1.msra.mxu0 0.0
  %642 = vmatprep.subr.mxu0 0.0
  %643 = vmatpush1.msra.mxu0 0.0
  %644 = vmatprep.subr.mxu0 0.0
  %645 = vmatpush1.msra.mxu0 0.0
  %646 = vmatprep.subr.mxu0 0.0
  %647 = vmatpush1.msra.mxu0 0.0
  %648 = vmatprep.subr.mxu0 0.0
  %649 = vmatpush1.msra.mxu0 0.0
  %650 = vmatprep.subr.mxu0 0.0
  %651 = vmatpush1.msra.mxu0 0.0
  %652 = vmatprep.subr.mxu0 0.0
  %653 = vmatpush1.msra.mxu0 0.0
  %654 = vmatprep.subr.mxu0 0.0
  %655 = vmatpush1.msra.mxu0 0.0
  %656 = vmatprep.mubr.f32.mxu0 0.0
  %657 = vmatmul.mubr.f32.gmra.mrb[0].mxu0 %v590
  %v658 = vpop.f32.mrb[0].mxu0
  %v659 = vadd.f32 0.0, %v658
  %v660 = vpop.f32.mrb[0].mxu0
  %v661 = vadd.f32 0.0, %v660
  %662 = vdwg.mxu0
  %663 = vmatprep.subr.mxu0 %v586
  %664 = vmatpush1.msra.mxu0 %v585
  %665 = vmatprep.subr.mxu0 0.0
  %666 = vmatpush1.msra.mxu0 0.0
  %667 = vmatprep.subr.mxu0 0.0
  %668 = vmatpush1.msra.mxu0 0.0
  %669 = vmatprep.subr.mxu0 0.0
  %670 = vmatpush1.msra.mxu0 0.0
  %671 = vmatprep.subr.mxu0 0.0
  %672 = vmatpush1.msra.mxu0 0.0
  %673 = vmatprep.subr.mxu0 0.0
  %674 = vmatpush1.msra.mxu0 0.0
  %675 = vmatprep.subr.mxu0 0.0
  %676 = vmatpush1.msra.mxu0 0.0
  %677 = vmatprep.subr.mxu0 0.0
  %678 = vmatpush1.msra.mxu0 0.0
  %679 = vmatprep.subr.mxu0 0.0
  %680 = vmatpush1.msra.mxu0 0.0
  %681 = vmatprep.subr.mxu0 0.0
  %682 = vmatpush1.msra.mxu0 0.0
  %683 = vmatprep.subr.mxu0 0.0
  %684 = vmatpush1.msra.mxu0 0.0
  %685 = vmatprep.subr.mxu0 0.0
  %686 = vmatpush1.msra.mxu0 0.0
  %687 = vmatprep.subr.mxu0 0.0
  %688 = vmatpush1.msra.mxu0 0.0
  %689 = vmatprep.subr.mxu0 0.0
  %690 = vmatpush1.msra.mxu0 0.0
  %691 = vmatprep.subr.mxu0 0.0
  %692 = vmatpush1.msra.mxu0 0.0
  %693 = vmatprep.subr.mxu0 0.0
  %694 = vmatpush1.msra.mxu0 0.0
  %695 = vmatprep.subr.mxu0 0.0
  %696 = vmatpush1.msra.mxu0 0.0
  %697 = vmatprep.subr.mxu0 0.0
  %698 = vmatpush1.msra.mxu0 0.0
  %699 = vmatprep.subr.mxu0 0.0
  %700 = vmatpush1.msra.mxu0 0.0
  %701 = vmatprep.subr.mxu0 0.0
  %702 = vmatpush1.msra.mxu0 0.0
  %703 = vmatprep.subr.mxu0 0.0
  %704 = vmatpush1.msra.mxu0 0.0
  %705 = vmatprep.subr.mxu0 0.0
  %706 = vmatpush1.msra.mxu0 0.0
  %707 = vmatprep.subr.mxu0 0.0
  %708 = vmatpush1.msra.mxu0 0.0
  %709 = vmatprep.subr.mxu0 0.0
  %710 = vmatpush1.msra.mxu0 0.0
  %711 = vmatprep.subr.mxu0 0.0
  %712 = vmatpush1.msra.mxu0 0.0
  %713 = vmatprep.subr.mxu0 0.0
  %714 = vmatpush1.msra.mxu0 0.0
  %715 = vmatprep.subr.mxu0 0.0
  %716 = vmatpush1.msra.mxu0 0.0
  %717 = vmatprep.subr.mxu0 0.0
  %718 = vmatpush1.msra.mxu0 0.0
  %719 = vmatprep.subr.mxu0 0.0
  %720 = vmatpush1.msra.mxu0 0.0
  %721 = vmatprep.subr.mxu0 0.0
  %722 = vmatpush1.msra.mxu0 0.0
  %723 = vmatprep.subr.mxu0 0.0
  %724 = vmatpush1.msra.mxu0 0.0
  %725 = vmatprep.subr.mxu0 0.0
  %726 = vmatpush1.msra.mxu0 0.0
  %727 = vmatprep.mubr.f32.mxu0 0.0
  %728 = vmatmul.mubr.f32.gmra.mrb[0].mxu0 %v590
  %v729 = vpop.f32.mrb[0].mxu0
  %v730 = vadd.f32 0.0, %v729
  %v731 = vpop.f32.mrb[0].mxu0
  %v732 = vadd.f32 0.0, %v731
  %733 = vdwg.mxu0
  %v734 = vadd.f32 %v562, %v659
  %v735 = vadd.f32 %v563, %v661
  %v736 = vadd.f32 %v564, %v730
  %v737 = vadd.f32 %v565, %v732
  %s738 = scalar_lea.vmem %s1, 32
  %v739 = vld [vmem:[%s738] sm:$0xff]
  %v741 = vsel %vm95, %v739, 0
  %743 = vmatprep.subr.mxu0 %v18
  %744 = vmatpush1.msra.mxu0 %v17
  %745 = vmatprep.subr.mxu0 0.0
  %746 = vmatpush1.msra.mxu0 0.0
  %747 = vmatprep.subr.mxu0 0.0
  %748 = vmatpush1.msra.mxu0 0.0
  %749 = vmatprep.subr.mxu0 0.0
  %750 = vmatpush1.msra.mxu0 0.0
  %751 = vmatprep.subr.mxu0 0.0
  %752 = vmatpush1.msra.mxu0 0.0
  %753 = vmatprep.subr.mxu0 0.0
  %754 = vmatpush1.msra.mxu0 0.0
  %755 = vmatprep.subr.mxu0 0.0
  %756 = vmatpush1.msra.mxu0 0.0
  %757 = vmatprep.subr.mxu0 0.0
  %758 = vmatpush1.msra.mxu0 0.0
  %759 = vmatprep.subr.mxu0 0.0
  %760 = vmatpush1.msra.mxu0 0.0
  %761 = vmatprep.subr.mxu0 0.0
  %762 = vmatpush1.msra.mxu0 0.0
  %763 = vmatprep.subr.mxu0 0.0
  %764 = vmatpush1.msra.mxu0 0.0
  %765 = vmatprep.subr.mxu0 0.0
  %766 = vmatpush1.msra.mxu0 0.0
  %767 = vmatprep.subr.mxu0 0.0
  %768 = vmatpush1.msra.mxu0 0.0
  %769 = vmatprep.subr.mxu0 0.0
  %770 = vmatpush1.msra.mxu0 0.0
  %771 = vmatprep.subr.mxu0 0.0
  %772 = vmatpush1.msra.mxu0 0.0
  %773 = vmatprep.subr.mxu0 0.0
  %774 = vmatpush1.msra.mxu0 0.0
  %775 = vmatprep.subr.mxu0 0.0
  %776 = vmatpush1.msra.mxu0 0.0
  %777 = vmatprep.subr.mxu0 0.0
  %778 = vmatpush1.msra.mxu0 0.0
  %779 = vmatprep.subr.mxu0 0.0
  %780 = vmatpush1.msra.mxu0 0.0
  %781 = vmatprep.subr.mxu0 0.0
  %782 = vmatpush1.msra.mxu0 0.0
  %783 = vmatprep.subr.mxu0 0.0
  %784 = vmatpush1.msra.mxu0 0.0
  %785 = vmatprep.subr.mxu0 0.0
  %786 = vmatpush1.msra.mxu0 0.0
  %787 = vmatprep.subr.mxu0 0.0
  %788 = vmatpush1.msra.mxu0 0.0
  %789 = vmatprep.subr.mxu0 0.0
  %790 = vmatpush1.msra.mxu0 0.0
  %791 = vmatprep.subr.mxu0 0.0
  %792 = vmatpush1.msra.mxu0 0.0
  %793 = vmatprep.subr.mxu0 0.0
  %794 = vmatpush1.msra.mxu0 0.0
  %795 = vmatprep.subr.mxu0 0.0
  %796 = vmatpush1.msra.mxu0 0.0
  %797 = vmatprep.subr.mxu0 0.0
  %798 = vmatpush1.msra.mxu0 0.0
  %799 = vmatprep.subr.mxu0 0.0
  %800 = vmatpush1.msra.mxu0 0.0
  %801 = vmatprep.subr.mxu0 0.0
  %802 = vmatpush1.msra.mxu0 0.0
  %803 = vmatprep.subr.mxu0 0.0
  %804 = vmatpush1.msra.mxu0 0.0
  %805 = vmatprep.subr.mxu0 0.0
  %806 = vmatpush1.msra.mxu0 0.0
  %807 = vmatprep.mubr.f32.mxu0 0.0
  %808 = vmatmul.mubr.f32.gmra.mrb[0].mxu0 %v741
  %v809 = vpop.f32.mrb[0].mxu0
  %v810 = vadd.f32 0.0, %v809
  %v811 = vpop.f32.mrb[0].mxu0
  %v812 = vadd.f32 0.0, %v811
  %813 = vdwg.mxu0
  %814 = vmatprep.subr.mxu0 %v20
  %815 = vmatpush1.msra.mxu0 %v19
  %816 = vmatprep.subr.mxu0 0.0
  %817 = vmatpush1.msra.mxu0 0.0
  %818 = vmatprep.subr.mxu0 0.0
  %819 = vmatpush1.msra.mxu0 0.0
  %820 = vmatprep.subr.mxu0 0.0
  %821 = vmatpush1.msra.mxu0 0.0
  %822 = vmatprep.subr.mxu0 0.0
  %823 = vmatpush1.msra.mxu0 0.0
  %824 = vmatprep.subr.mxu0 0.0
  %825 = vmatpush1.msra.mxu0 0.0
  %826 = vmatprep.subr.mxu0 0.0
  %827 = vmatpush1.msra.mxu0 0.0
  %828 = vmatprep.subr.mxu0 0.0
  %829 = vmatpush1.msra.mxu0 0.0
  %830 = vmatprep.subr.mxu0 0.0
  %831 = vmatpush1.msra.mxu0 0.0
  %832 = vmatprep.subr.mxu0 0.0
  %833 = vmatpush1.msra.mxu0 0.0
  %834 = vmatprep.subr.mxu0 0.0
  %835 = vmatpush1.msra.mxu0 0.0
  %836 = vmatprep.subr.mxu0 0.0
  %837 = vmatpush1.msra.mxu0 0.0
  %838 = vmatprep.subr.mxu0 0.0
  %839 = vmatpush1.msra.mxu0 0.0
  %840 = vmatprep.subr.mxu0 0.0
  %841 = vmatpush1.msra.mxu0 0.0
  %842 = vmatprep.subr.mxu0 0.0
  %843 = vmatpush1.msra.mxu0 0.0
  %844 = vmatprep.subr.mxu0 0.0
  %845 = vmatpush1.msra.mxu0 0.0
  %846 = vmatprep.subr.mxu0 0.0
  %847 = vmatpush1.msra.mxu0 0.0
  %848 = vmatprep.subr.mxu0 0.0
  %849 = vmatpush1.msra.mxu0 0.0
  %850 = vmatprep.subr.mxu0 0.0
  %851 = vmatpush1.msra.mxu0 0.0
  %852 = vmatprep.subr.mxu0 0.0
  %853 = vmatpush1.msra.mxu0 0.0
  %854 = vmatprep.subr.mxu0 0.0
  %855 = vmatpush1.msra.mxu0 0.0
  %856 = vmatprep.subr.mxu0 0.0
  %857 = vmatpush1.msra.mxu0 0.0
  %858 = vmatprep.subr.mxu0 0.0
  %859 = vmatpush1.msra.mxu0 0.0
  %860 = vmatprep.subr.mxu0 0.0
  %861 = vmatpush1.msra.mxu0 0.0
  %862 = vmatprep.subr.mxu0 0.0
  %863 = vmatpush1.msra.mxu0 0.0
  %864 = vmatprep.subr.mxu0 0.0
  %865 = vmatpush1.msra.mxu0 0.0
  %866 = vmatprep.subr.mxu0 0.0
  %867 = vmatpush1.msra.mxu0 0.0
  %868 = vmatprep.subr.mxu0 0.0
  %869 = vmatpush1.msra.mxu0 0.0
  %870 = vmatprep.subr.mxu0 0.0
  %871 = vmatpush1.msra.mxu0 0.0
  %872 = vmatprep.subr.mxu0 0.0
  %873 = vmatpush1.msra.mxu0 0.0
  %874 = vmatprep.subr.mxu0 0.0
  %875 = vmatpush1.msra.mxu0 0.0
  %876 = vmatprep.subr.mxu0 0.0
  %877 = vmatpush1.msra.mxu0 0.0
  %878 = vmatprep.mubr.f32.mxu0 0.0
  %879 = vmatmul.mubr.f32.gmra.mrb[0].mxu0 %v741
  %v880 = vpop.f32.mrb[0].mxu0
  %v881 = vadd.f32 0.0, %v880
  %v882 = vpop.f32.mrb[0].mxu0
  %v883 = vadd.f32 0.0, %v882
  %884 = vdwg.mxu0
  %v885 = vadd.f32 %v734, %v810
  %v886 = vadd.f32 %v735, %v812
  %v887 = vadd.f32 %v736, %v881
  %v888 = vadd.f32 %v737, %v883
  %889 = vrot.lane.b32.xlu0 %v17, 127
  %v890 = vpop.permute.xlu0 %889
  %891 = vrot.lane.b32.xlu0 %v18, 127
  %v892 = vpop.permute.xlu0 %891
  %893 = vrot.lane.b32.xlu0 %v19, 127
  %v894 = vpop.permute.xlu0 %893
  %895 = vrot.lane.b32.xlu0 %v20, 127
  %v896 = vpop.permute.xlu0 %895
  %vm897 = vcmask 1039360
  %v898 = vsel %vm897, %v890, %v892
  %v899 = vsel %vm897, %v892, %v894
  %v900 = vsel %vm897, %v894, %v896
  %v905 = vsel %vm897, %v896, 0.0
  %v906 = vsel %vm403, %v898, 0.0
  %v907 = vsel %vm404, %v899, 0.0
  %v908 = vsel %vm405, %v900, 0.0
  %v909 = vsel %vm406, %v905, 0.0
  %s910 = scalar_lea.vmem %s1, 40
  %v911 = vld [vmem:[%s910] sm:$0xff]
  %v913 = vsel %vm95, %v911, 0
  %915 = vmatprep.subr.mxu0 %v907
  %916 = vmatpush1.msra.mxu0 %v906
  %917 = vmatprep.subr.mxu0 0.0
  %918 = vmatpush1.msra.mxu0 0.0
  %919 = vmatprep.subr.mxu0 0.0
  %920 = vmatpush1.msra.mxu0 0.0
  %921 = vmatprep.subr.mxu0 0.0
  %922 = vmatpush1.msra.mxu0 0.0
  %923 = vmatprep.subr.mxu0 0.0
  %924 = vmatpush1.msra.mxu0 0.0
  %925 = vmatprep.subr.mxu0 0.0
  %926 = vmatpush1.msra.mxu0 0.0
  %927 = vmatprep.subr.mxu0 0.0
  %928 = vmatpush1.msra.mxu0 0.0
  %929 = vmatprep.subr.mxu0 0.0
  %930 = vmatpush1.msra.mxu0 0.0
  %931 = vmatprep.subr.mxu0 0.0
  %932 = vmatpush1.msra.mxu0 0.0
  %933 = vmatprep.subr.mxu0 0.0
  %934 = vmatpush1.msra.mxu0 0.0
  %935 = vmatprep.subr.mxu0 0.0
  %936 = vmatpush1.msra.mxu0 0.0
  %937 = vmatprep.subr.mxu0 0.0
  %938 = vmatpush1.msra.mxu0 0.0
  %939 = vmatprep.subr.mxu0 0.0
  %940 = vmatpush1.msra.mxu0 0.0
  %941 = vmatprep.subr.mxu0 0.0
  %942 = vmatpush1.msra.mxu0 0.0
  %943 = vmatprep.subr.mxu0 0.0
  %944 = vmatpush1.msra.mxu0 0.0
  %945 = vmatprep.subr.mxu0 0.0
  %946 = vmatpush1.msra.mxu0 0.0
  %947 = vmatprep.subr.mxu0 0.0
  %948 = vmatpush1.msra.mxu0 0.0
  %949 = vmatprep.subr.mxu0 0.0
  %950 = vmatpush1.msra.mxu0 0.0
  %951 = vmatprep.subr.mxu0 0.0
  %952 = vmatpush1.msra.mxu0 0.0
  %953 = vmatprep.subr.mxu0 0.0
  %954 = vmatpush1.msra.mxu0 0.0
  %955 = vmatprep.subr.mxu0 0.0
  %956 = vmatpush1.msra.mxu0 0.0
  %957 = vmatprep.subr.mxu0 0.0
  %958 = vmatpush1.msra.mxu0 0.0
  %959 = vmatprep.subr.mxu0 0.0
  %960 = vmatpush1.msra.mxu0 0.0
  %961 = vmatprep.subr.mxu0 0.0
  %962 = vmatpush1.msra.mxu0 0.0
  %963 = vmatprep.subr.mxu0 0.0
  %964 = vmatpush1.msra.mxu0 0.0
  %965 = vmatprep.subr.mxu0 0.0
  %966 = vmatpush1.msra.mxu0 0.0
  %967 = vmatprep.subr.mxu0 0.0
  %968 = vmatpush1.msra.mxu0 0.0
  %969 = vmatprep.subr.mxu0 0.0
  %970 = vmatpush1.msra.mxu0 0.0
  %971 = vmatprep.subr.mxu0 0.0
  %972 = vmatpush1.msra.mxu0 0.0
  %973 = vmatprep.subr.mxu0 0.0
  %974 = vmatpush1.msra.mxu0 0.0
  %975 = vmatprep.subr.mxu0 0.0
  %976 = vmatpush1.msra.mxu0 0.0
  %977 = vmatprep.subr.mxu0 0.0
  %978 = vmatpush1.msra.mxu0 0.0
  %979 = vmatprep.mubr.f32.mxu0 0.0
  %980 = vmatmul.mubr.f32.gmra.mrb[0].mxu0 %v913
  %v981 = vpop.f32.mrb[0].mxu0
  %v982 = vadd.f32 0.0, %v981
  %v983 = vpop.f32.mrb[0].mxu0
  %v984 = vadd.f32 0.0, %v983
  %985 = vdwg.mxu0
  %986 = vmatprep.subr.mxu0 %v909
  %987 = vmatpush1.msra.mxu0 %v908
  %988 = vmatprep.subr.mxu0 0.0
  %989 = vmatpush1.msra.mxu0 0.0
  %990 = vmatprep.subr.mxu0 0.0
  %991 = vmatpush1.msra.mxu0 0.0
  %992 = vmatprep.subr.mxu0 0.0
  %993 = vmatpush1.msra.mxu0 0.0
  %994 = vmatprep.subr.mxu0 0.0
  %995 = vmatpush1.msra.mxu0 0.0
  %996 = vmatprep.subr.mxu0 0.0
  %997 = vmatpush1.msra.mxu0 0.0
  %998 = vmatprep.subr.mxu0 0.0
  %999 = vmatpush1.msra.mxu0 0.0
  %1000 = vmatprep.subr.mxu0 0.0
  %1001 = vmatpush1.msra.mxu0 0.0
  %1002 = vmatprep.subr.mxu0 0.0
  %1003 = vmatpush1.msra.mxu0 0.0
  %1004 = vmatprep.subr.mxu0 0.0
  %1005 = vmatpush1.msra.mxu0 0.0
  %1006 = vmatprep.subr.mxu0 0.0
  %1007 = vmatpush1.msra.mxu0 0.0
  %1008 = vmatprep.subr.mxu0 0.0
  %1009 = vmatpush1.msra.mxu0 0.0
  %1010 = vmatprep.subr.mxu0 0.0
  %1011 = vmatpush1.msra.mxu0 0.0
  %1012 = vmatprep.subr.mxu0 0.0
  %1013 = vmatpush1.msra.mxu0 0.0
  %1014 = vmatprep.subr.mxu0 0.0
  %1015 = vmatpush1.msra.mxu0 0.0
  %1016 = vmatprep.subr.mxu0 0.0
  %1017 = vmatpush1.msra.mxu0 0.0
  %1018 = vmatprep.subr.mxu0 0.0
  %1019 = vmatpush1.msra.mxu0 0.0
  %1020 = vmatprep.subr.mxu0 0.0
  %1021 = vmatpush1.msra.mxu0 0.0
  %1022 = vmatprep.subr.mxu0 0.0
  %1023 = vmatpush1.msra.mxu0 0.0
  %1024 = vmatprep.subr.mxu0 0.0
  %1025 = vmatpush1.msra.mxu0 0.0
  %1026 = vmatprep.subr.mxu0 0.0
  %1027 = vmatpush1.msra.mxu0 0.0
  %1028 = vmatprep.subr.mxu0 0.0
  %1029 = vmatpush1.msra.mxu0 0.0
  %1030 = vmatprep.subr.mxu0 0.0
  %1031 = vmatpush1.msra.mxu0 0.0
  %1032 = vmatprep.subr.mxu0 0.0
  %1033 = vmatpush1.msra.mxu0 0.0
  %1034 = vmatprep.subr.mxu0 0.0
  %1035 = vmatpush1.msra.mxu0 0.0
  %1036 = vmatprep.subr.mxu0 0.0
  %1037 = vmatpush1.msra.mxu0 0.0
  %1038 = vmatprep.subr.mxu0 0.0
  %1039 = vmatpush1.msra.mxu0 0.0
  %1040 = vmatprep.subr.mxu0 0.0
  %1041 = vmatpush1.msra.mxu0 0.0
  %1042 = vmatprep.subr.mxu0 0.0
  %1043 = vmatpush1.msra.mxu0 0.0
  %1044 = vmatprep.subr.mxu0 0.0
  %1045 = vmatpush1.msra.mxu0 0.0
  %1046 = vmatprep.subr.mxu0 0.0
  %1047 = vmatpush1.msra.mxu0 0.0
  %1048 = vmatprep.subr.mxu0 0.0
  %1049 = vmatpush1.msra.mxu0 0.0
  %1050 = vmatprep.mubr.f32.mxu0 0.0
  %1051 = vmatmul.mubr.f32.gmra.mrb[0].mxu0 %v913
  %v1052 = vpop.f32.mrb[0].mxu0
  %v1053 = vadd.f32 0.0, %v1052
  %v1054 = vpop.f32.mrb[0].mxu0
  %v1055 = vadd.f32 0.0, %v1054
  %1056 = vdwg.mxu0
  %v1057 = vadd.f32 %v885, %v982
  %v1058 = vadd.f32 %v886, %v984
  %v1059 = vadd.f32 %v887, %v1053
  %v1060 = vadd.f32 %v888, %v1055
  %1061 = vrot.lane.b32.xlu0 %v17, 113
  %v1062 = vpop.permute.xlu0 %1061
  %1063 = vrot.lane.b32.xlu0 %v18, 113
  %v1064 = vpop.permute.xlu0 %1063
  %1065 = vrot.lane.b32.xlu0 %v19, 113
  %v1066 = vpop.permute.xlu0 %1065
  %1067 = vrot.lane.b32.xlu0 %v20, 113
  %v1068 = vpop.permute.xlu0 %1067
  %vm1069 = vcmask 924672
  %v1070 = vsel %vm1069, %v1062, %v1064
  %v1071 = vsel %vm1069, %v1064, %v1066
  %v1072 = vsel %vm1069, %v1066, %v1068
  %v1077 = vsel %vm1069, %v1068, 0.0
  %vm1078 = vcmp.lt.s32.totalorder %v26, 240
  %vm1079 = vcmp.lt.s32.totalorder %v27, 240
  %vm1080 = vcmp.lt.s32.totalorder %v28, 240
  %vm1081 = vcmp.lt.s32.totalorder %v29, 240
  %vm1082 = vmand %vm1078, %vm59
  %vm1083 = vmand %vm1079, %vm60
  %vm1084 = vmand %vm1080, %vm61
  %vm1085 = vmand %vm1081, %vm62
  %v1086 = vsel %vm1082, %v1070, 0.0
  %v1087 = vsel %vm1083, %v1071, 0.0
  %v1088 = vsel %vm1084, %v1072, 0.0
  %v1089 = vsel %vm1085, %v1077, 0.0
  %s1090 = scalar_lea.vmem %s1, 48
  %v1091 = vld [vmem:[%s1090] sm:$0xff]
  %v1093 = vsel %vm95, %v1091, 0
  %1095 = vmatprep.subr.mxu0 %v1087
  %1096 = vmatpush1.msra.mxu0 %v1086
  %1097 = vmatprep.subr.mxu0 0.0
  %1098 = vmatpush1.msra.mxu0 0.0
  %1099 = vmatprep.subr.mxu0 0.0
  %1100 = vmatpush1.msra.mxu0 0.0
  %1101 = vmatprep.subr.mxu0 0.0
  %1102 = vmatpush1.msra.mxu0 0.0
  %1103 = vmatprep.subr.mxu0 0.0
  %1104 = vmatpush1.msra.mxu0 0.0
  %1105 = vmatprep.subr.mxu0 0.0
  %1106 = vmatpush1.msra.mxu0 0.0
  %1107 = vmatprep.subr.mxu0 0.0
  %1108 = vmatpush1.msra.mxu0 0.0
  %1109 = vmatprep.subr.mxu0 0.0
  %1110 = vmatpush1.msra.mxu0 0.0
  %1111 = vmatprep.subr.mxu0 0.0
  %1112 = vmatpush1.msra.mxu0 0.0
  %1113 = vmatprep.subr.mxu0 0.0
  %1114 = vmatpush1.msra.mxu0 0.0
  %1115 = vmatprep.subr.mxu0 0.0
  %1116 = vmatpush1.msra.mxu0 0.0
  %1117 = vmatprep.subr.mxu0 0.0
  %1118 = vmatpush1.msra.mxu0 0.0
  %1119 = vmatprep.subr.mxu0 0.0
  %1120 = vmatpush1.msra.mxu0 0.0
  %1121 = vmatprep.subr.mxu0 0.0
  %1122 = vmatpush1.msra.mxu0 0.0
  %1123 = vmatprep.subr.mxu0 0.0
  %1124 = vmatpush1.msra.mxu0 0.0
  %1125 = vmatprep.subr.mxu0 0.0
  %1126 = vmatpush1.msra.mxu0 0.0
  %1127 = vmatprep.subr.mxu0 0.0
  %1128 = vmatpush1.msra.mxu0 0.0
  %1129 = vmatprep.subr.mxu0 0.0
  %1130 = vmatpush1.msra.mxu0 0.0
  %1131 = vmatprep.subr.mxu0 0.0
  %1132 = vmatpush1.msra.mxu0 0.0
  %1133 = vmatprep.subr.mxu0 0.0
  %1134 = vmatpush1.msra.mxu0 0.0
  %1135 = vmatprep.subr.mxu0 0.0
  %1136 = vmatpush1.msra.mxu0 0.0
  %1137 = vmatprep.subr.mxu0 0.0
  %1138 = vmatpush1.msra.mxu0 0.0
  %1139 = vmatprep.subr.mxu0 0.0
  %1140 = vmatpush1.msra.mxu0 0.0
  %1141 = vmatprep.subr.mxu0 0.0
  %1142 = vmatpush1.msra.mxu0 0.0
  %1143 = vmatprep.subr.mxu0 0.0
  %1144 = vmatpush1.msra.mxu0 0.0
  %1145 = vmatprep.subr.mxu0 0.0
  %1146 = vmatpush1.msra.mxu0 0.0
  %1147 = vmatprep.subr.mxu0 0.0
  %1148 = vmatpush1.msra.mxu0 0.0
  %1149 = vmatprep.subr.mxu0 0.0
  %1150 = vmatpush1.msra.mxu0 0.0
  %1151 = vmatprep.subr.mxu0 0.0
  %1152 = vmatpush1.msra.mxu0 0.0
  %1153 = vmatprep.subr.mxu0 0.0
  %1154 = vmatpush1.msra.mxu0 0.0
  %1155 = vmatprep.subr.mxu0 0.0
  %1156 = vmatpush1.msra.mxu0 0.0
  %1157 = vmatprep.subr.mxu0 0.0
  %1158 = vmatpush1.msra.mxu0 0.0
  %1159 = vmatprep.mubr.f32.mxu0 0.0
  %1160 = vmatmul.mubr.f32.gmra.mrb[0].mxu0 %v1093
  %v1161 = vpop.f32.mrb[0].mxu0
  %v1162 = vadd.f32 0.0, %v1161
  %v1163 = vpop.f32.mrb[0].mxu0
  %v1164 = vadd.f32 0.0, %v1163
  %1165 = vdwg.mxu0
  %1166 = vmatprep.subr.mxu0 %v1089
  %1167 = vmatpush1.msra.mxu0 %v1088
  %1168 = vmatprep.subr.mxu0 0.0
  %1169 = vmatpush1.msra.mxu0 0.0
  %1170 = vmatprep.subr.mxu0 0.0
  %1171 = vmatpush1.msra.mxu0 0.0
  %1172 = vmatprep.subr.mxu0 0.0
  %1173 = vmatpush1.msra.mxu0 0.0
  %1174 = vmatprep.subr.mxu0 0.0
  %1175 = vmatpush1.msra.mxu0 0.0
  %1176 = vmatprep.subr.mxu0 0.0
  %1177 = vmatpush1.msra.mxu0 0.0
  %1178 = vmatprep.subr.mxu0 0.0
  %1179 = vmatpush1.msra.mxu0 0.0
  %1180 = vmatprep.subr.mxu0 0.0
  %1181 = vmatpush1.msra.mxu0 0.0
  %1182 = vmatprep.subr.mxu0 0.0
  %1183 = vmatpush1.msra.mxu0 0.0
  %1184 = vmatprep.subr.mxu0 0.0
  %1185 = vmatpush1.msra.mxu0 0.0
  %1186 = vmatprep.subr.mxu0 0.0
  %1187 = vmatpush1.msra.mxu0 0.0
  %1188 = vmatprep.subr.mxu0 0.0
  %1189 = vmatpush1.msra.mxu0 0.0
  %1190 = vmatprep.subr.mxu0 0.0
  %1191 = vmatpush1.msra.mxu0 0.0
  %1192 = vmatprep.subr.mxu0 0.0
  %1193 = vmatpush1.msra.mxu0 0.0
  %1194 = vmatprep.subr.mxu0 0.0
  %1195 = vmatpush1.msra.mxu0 0.0
  %1196 = vmatprep.subr.mxu0 0.0
  %1197 = vmatpush1.msra.mxu0 0.0
  %1198 = vmatprep.subr.mxu0 0.0
  %1199 = vmatpush1.msra.mxu0 0.0
  %1200 = vmatprep.subr.mxu0 0.0
  %1201 = vmatpush1.msra.mxu0 0.0
  %1202 = vmatprep.subr.mxu0 0.0
  %1203 = vmatpush1.msra.mxu0 0.0
  %1204 = vmatprep.subr.mxu0 0.0
  %1205 = vmatpush1.msra.mxu0 0.0
  %1206 = vmatprep.subr.mxu0 0.0
  %1207 = vmatpush1.msra.mxu0 0.0
  %1208 = vmatprep.subr.mxu0 0.0
  %1209 = vmatpush1.msra.mxu0 0.0
  %1210 = vmatprep.subr.mxu0 0.0
  %1211 = vmatpush1.msra.mxu0 0.0
  %1212 = vmatprep.subr.mxu0 0.0
  %1213 = vmatpush1.msra.mxu0 0.0
  %1214 = vmatprep.subr.mxu0 0.0
  %1215 = vmatpush1.msra.mxu0 0.0
  %1216 = vmatprep.subr.mxu0 0.0
  %1217 = vmatpush1.msra.mxu0 0.0
  %1218 = vmatprep.subr.mxu0 0.0
  %1219 = vmatpush1.msra.mxu0 0.0
  %1220 = vmatprep.subr.mxu0 0.0
  %1221 = vmatpush1.msra.mxu0 0.0
  %1222 = vmatprep.subr.mxu0 0.0
  %1223 = vmatpush1.msra.mxu0 0.0
  %1224 = vmatprep.subr.mxu0 0.0
  %1225 = vmatpush1.msra.mxu0 0.0
  %1226 = vmatprep.subr.mxu0 0.0
  %1227 = vmatpush1.msra.mxu0 0.0
  %1228 = vmatprep.subr.mxu0 0.0
  %1229 = vmatpush1.msra.mxu0 0.0
  %1230 = vmatprep.mubr.f32.mxu0 0.0
  %1231 = vmatmul.mubr.f32.gmra.mrb[0].mxu0 %v1093
  %v1232 = vpop.f32.mrb[0].mxu0
  %v1233 = vadd.f32 0.0, %v1232
  %v1234 = vpop.f32.mrb[0].mxu0
  %v1235 = vadd.f32 0.0, %v1234
  %1236 = vdwg.mxu0
  %v1237 = vadd.f32 %v1057, %v1162
  %v1238 = vadd.f32 %v1058, %v1164
  %v1239 = vadd.f32 %v1059, %v1233
  %v1240 = vadd.f32 %v1060, %v1235
  %1241 = vrot.lane.b32.xlu0 %v17, 112
  %v1242 = vpop.permute.xlu0 %1241
  %1243 = vrot.lane.b32.xlu0 %v18, 112
  %v1244 = vpop.permute.xlu0 %1243
  %1245 = vrot.lane.b32.xlu0 %v19, 112
  %v1246 = vpop.permute.xlu0 %1245
  %1247 = vrot.lane.b32.xlu0 %v20, 112
  %v1248 = vpop.permute.xlu0 %1247
  %vm1249 = vcmask 916480
  %v1250 = vsel %vm1249, %v1242, %v1244
  %v1251 = vsel %vm1249, %v1244, %v1246
  %v1252 = vsel %vm1249, %v1246, %v1248
  %v1257 = vsel %vm1249, %v1248, 0.0
  %v1258 = vsel %vm1078, %v1250, 0.0
  %v1259 = vsel %vm1079, %v1251, 0.0
  %v1260 = vsel %vm1080, %v1252, 0.0
  %v1261 = vsel %vm1081, %v1257, 0.0
  %s1262 = scalar_lea.vmem %s1, 56
  %v1263 = vld [vmem:[%s1262] sm:$0xff]
  %v1265 = vsel %vm95, %v1263, 0
  %1267 = vmatprep.subr.mxu0 %v1259
  %1268 = vmatpush1.msra.mxu0 %v1258
  %1269 = vmatprep.subr.mxu0 0.0
  %1270 = vmatpush1.msra.mxu0 0.0
  %1271 = vmatprep.subr.mxu0 0.0
  %1272 = vmatpush1.msra.mxu0 0.0
  %1273 = vmatprep.subr.mxu0 0.0
  %1274 = vmatpush1.msra.mxu0 0.0
  %1275 = vmatprep.subr.mxu0 0.0
  %1276 = vmatpush1.msra.mxu0 0.0
  %1277 = vmatprep.subr.mxu0 0.0
  %1278 = vmatpush1.msra.mxu0 0.0
  %1279 = vmatprep.subr.mxu0 0.0
  %1280 = vmatpush1.msra.mxu0 0.0
  %1281 = vmatprep.subr.mxu0 0.0
  %1282 = vmatpush1.msra.mxu0 0.0
  %1283 = vmatprep.subr.mxu0 0.0
  %1284 = vmatpush1.msra.mxu0 0.0
  %1285 = vmatprep.subr.mxu0 0.0
  %1286 = vmatpush1.msra.mxu0 0.0
  %1287 = vmatprep.subr.mxu0 0.0
  %1288 = vmatpush1.msra.mxu0 0.0
  %1289 = vmatprep.subr.mxu0 0.0
  %1290 = vmatpush1.msra.mxu0 0.0
  %1291 = vmatprep.subr.mxu0 0.0
  %1292 = vmatpush1.msra.mxu0 0.0
  %1293 = vmatprep.subr.mxu0 0.0
  %1294 = vmatpush1.msra.mxu0 0.0
  %1295 = vmatprep.subr.mxu0 0.0
  %1296 = vmatpush1.msra.mxu0 0.0
  %1297 = vmatprep.subr.mxu0 0.0
  %1298 = vmatpush1.msra.mxu0 0.0
  %1299 = vmatprep.subr.mxu0 0.0
  %1300 = vmatpush1.msra.mxu0 0.0
  %1301 = vmatprep.subr.mxu0 0.0
  %1302 = vmatpush1.msra.mxu0 0.0
  %1303 = vmatprep.subr.mxu0 0.0
  %1304 = vmatpush1.msra.mxu0 0.0
  %1305 = vmatprep.subr.mxu0 0.0
  %1306 = vmatpush1.msra.mxu0 0.0
  %1307 = vmatprep.subr.mxu0 0.0
  %1308 = vmatpush1.msra.mxu0 0.0
  %1309 = vmatprep.subr.mxu0 0.0
  %1310 = vmatpush1.msra.mxu0 0.0
  %1311 = vmatprep.subr.mxu0 0.0
  %1312 = vmatpush1.msra.mxu0 0.0
  %1313 = vmatprep.subr.mxu0 0.0
  %1314 = vmatpush1.msra.mxu0 0.0
  %1315 = vmatprep.subr.mxu0 0.0
  %1316 = vmatpush1.msra.mxu0 0.0
  %1317 = vmatprep.subr.mxu0 0.0
  %1318 = vmatpush1.msra.mxu0 0.0
  %1319 = vmatprep.subr.mxu0 0.0
  %1320 = vmatpush1.msra.mxu0 0.0
  %1321 = vmatprep.subr.mxu0 0.0
  %1322 = vmatpush1.msra.mxu0 0.0
  %1323 = vmatprep.subr.mxu0 0.0
  %1324 = vmatpush1.msra.mxu0 0.0
  %1325 = vmatprep.subr.mxu0 0.0
  %1326 = vmatpush1.msra.mxu0 0.0
  %1327 = vmatprep.subr.mxu0 0.0
  %1328 = vmatpush1.msra.mxu0 0.0
  %1329 = vmatprep.subr.mxu0 0.0
  %1330 = vmatpush1.msra.mxu0 0.0
  %1331 = vmatprep.mubr.f32.mxu0 0.0
  %1332 = vmatmul.mubr.f32.gmra.mrb[0].mxu0 %v1265
  %v1333 = vpop.f32.mrb[0].mxu0
  %v1334 = vadd.f32 0.0, %v1333
  %v1335 = vpop.f32.mrb[0].mxu0
  %v1336 = vadd.f32 0.0, %v1335
  %1337 = vdwg.mxu0
  %1338 = vmatprep.subr.mxu0 %v1261
  %1339 = vmatpush1.msra.mxu0 %v1260
  %1340 = vmatprep.subr.mxu0 0.0
  %1341 = vmatpush1.msra.mxu0 0.0
  %1342 = vmatprep.subr.mxu0 0.0
  %1343 = vmatpush1.msra.mxu0 0.0
  %1344 = vmatprep.subr.mxu0 0.0
  %1345 = vmatpush1.msra.mxu0 0.0
  %1346 = vmatprep.subr.mxu0 0.0
  %1347 = vmatpush1.msra.mxu0 0.0
  %1348 = vmatprep.subr.mxu0 0.0
  %1349 = vmatpush1.msra.mxu0 0.0
  %1350 = vmatprep.subr.mxu0 0.0
  %1351 = vmatpush1.msra.mxu0 0.0
  %1352 = vmatprep.subr.mxu0 0.0
  %1353 = vmatpush1.msra.mxu0 0.0
  %1354 = vmatprep.subr.mxu0 0.0
  %1355 = vmatpush1.msra.mxu0 0.0
  %1356 = vmatprep.subr.mxu0 0.0
  %1357 = vmatpush1.msra.mxu0 0.0
  %1358 = vmatprep.subr.mxu0 0.0
  %1359 = vmatpush1.msra.mxu0 0.0
  %1360 = vmatprep.subr.mxu0 0.0
  %1361 = vmatpush1.msra.mxu0 0.0
  %1362 = vmatprep.subr.mxu0 0.0
  %1363 = vmatpush1.msra.mxu0 0.0
  %1364 = vmatprep.subr.mxu0 0.0
  %1365 = vmatpush1.msra.mxu0 0.0
  %1366 = vmatprep.subr.mxu0 0.0
  %1367 = vmatpush1.msra.mxu0 0.0
  %1368 = vmatprep.subr.mxu0 0.0
  %1369 = vmatpush1.msra.mxu0 0.0
  %1370 = vmatprep.subr.mxu0 0.0
  %1371 = vmatpush1.msra.mxu0 0.0
  %1372 = vmatprep.subr.mxu0 0.0
  %1373 = vmatpush1.msra.mxu0 0.0
  %1374 = vmatprep.subr.mxu0 0.0
  %1375 = vmatpush1.msra.mxu0 0.0
  %1376 = vmatprep.subr.mxu0 0.0
  %1377 = vmatpush1.msra.mxu0 0.0
  %1378 = vmatprep.subr.mxu0 0.0
  %1379 = vmatpush1.msra.mxu0 0.0
  %1380 = vmatprep.subr.mxu0 0.0
  %1381 = vmatpush1.msra.mxu0 0.0
  %1382 = vmatprep.subr.mxu0 0.0
  %1383 = vmatpush1.msra.mxu0 0.0
  %1384 = vmatprep.subr.mxu0 0.0
  %1385 = vmatpush1.msra.mxu0 0.0
  %1386 = vmatprep.subr.mxu0 0.0
  %1387 = vmatpush1.msra.mxu0 0.0
  %1388 = vmatprep.subr.mxu0 0.0
  %1389 = vmatpush1.msra.mxu0 0.0
  %1390 = vmatprep.subr.mxu0 0.0
  %1391 = vmatpush1.msra.mxu0 0.0
  %1392 = vmatprep.subr.mxu0 0.0
  %1393 = vmatpush1.msra.mxu0 0.0
  %1394 = vmatprep.subr.mxu0 0.0
  %1395 = vmatpush1.msra.mxu0 0.0
  %1396 = vmatprep.subr.mxu0 0.0
  %1397 = vmatpush1.msra.mxu0 0.0
  %1398 = vmatprep.subr.mxu0 0.0
  %1399 = vmatpush1.msra.mxu0 0.0
  %1400 = vmatprep.subr.mxu0 0.0
  %1401 = vmatpush1.msra.mxu0 0.0
  %1402 = vmatprep.mubr.f32.mxu0 0.0
  %1403 = vmatmul.mubr.f32.gmra.mrb[0].mxu0 %v1265
  %v1404 = vpop.f32.mrb[0].mxu0
  %v1405 = vadd.f32 0.0, %v1404
  %v1406 = vpop.f32.mrb[0].mxu0
  %v1407 = vadd.f32 0.0, %v1406
  %1408 = vdwg.mxu0
  %v1409 = vadd.f32 %v1237, %v1334
  %v1410 = vadd.f32 %v1238, %v1336
  %v1411 = vadd.f32 %v1239, %v1405
  %v1412 = vadd.f32 %v1240, %v1407
  %1413 = vrot.lane.b32.xlu0 %v17, 111
  %v1414 = vpop.permute.xlu0 %1413
  %1415 = vrot.lane.b32.xlu0 %v18, 111
  %v1416 = vpop.permute.xlu0 %1415
  %1417 = vrot.lane.b32.xlu0 %v19, 111
  %v1418 = vpop.permute.xlu0 %1417
  %1419 = vrot.lane.b32.xlu0 %v20, 111
  %v1420 = vpop.permute.xlu0 %1419
  %vm1421 = vcmask 908288
  %v1422 = vsel %vm1421, %v1414, %v1416
  %v1423 = vsel %vm1421, %v1416, %v1418
  %v1424 = vsel %vm1421, %v1418, %v1420
  %v1429 = vsel %vm1421, %v1420, 0.0
  %vm1430 = vmand %vm1078, %vm403
  %vm1431 = vmand %vm1079, %vm404
  %vm1432 = vmand %vm1080, %vm405
  %vm1433 = vmand %vm1081, %vm406
  %v1434 = vsel %vm1430, %v1422, 0.0
  %v1435 = vsel %vm1431, %v1423, 0.0
  %v1436 = vsel %vm1432, %v1424, 0.0
  %v1437 = vsel %vm1433, %v1429, 0.0
  %s1438 = scalar_lea.vmem %s1, 64
  %v1439 = vld [vmem:[%s1438] sm:$0xff]
  %v1441 = vsel %vm95, %v1439, 0
  %1443 = vmatprep.subr.mxu0 %v1435
  %1444 = vmatpush1.msra.mxu0 %v1434
  %1445 = vmatprep.subr.mxu0 0.0
  %1446 = vmatpush1.msra.mxu0 0.0
  %1447 = vmatprep.subr.mxu0 0.0
  %1448 = vmatpush1.msra.mxu0 0.0
  %1449 = vmatprep.subr.mxu0 0.0
  %1450 = vmatpush1.msra.mxu0 0.0
  %1451 = vmatprep.subr.mxu0 0.0
  %1452 = vmatpush1.msra.mxu0 0.0
  %1453 = vmatprep.subr.mxu0 0.0
  %1454 = vmatpush1.msra.mxu0 0.0
  %1455 = vmatprep.subr.mxu0 0.0
  %1456 = vmatpush1.msra.mxu0 0.0
  %1457 = vmatprep.subr.mxu0 0.0
  %1458 = vmatpush1.msra.mxu0 0.0
  %1459 = vmatprep.subr.mxu0 0.0
  %1460 = vmatpush1.msra.mxu0 0.0
  %1461 = vmatprep.subr.mxu0 0.0
  %1462 = vmatpush1.msra.mxu0 0.0
  %1463 = vmatprep.subr.mxu0 0.0
  %1464 = vmatpush1.msra.mxu0 0.0
  %1465 = vmatprep.subr.mxu0 0.0
  %1466 = vmatpush1.msra.mxu0 0.0
  %1467 = vmatprep.subr.mxu0 0.0
  %1468 = vmatpush1.msra.mxu0 0.0
  %1469 = vmatprep.subr.mxu0 0.0
  %1470 = vmatpush1.msra.mxu0 0.0
  %1471 = vmatprep.subr.mxu0 0.0
  %1472 = vmatpush1.msra.mxu0 0.0
  %1473 = vmatprep.subr.mxu0 0.0
  %1474 = vmatpush1.msra.mxu0 0.0
  %1475 = vmatprep.subr.mxu0 0.0
  %1476 = vmatpush1.msra.mxu0 0.0
  %1477 = vmatprep.subr.mxu0 0.0
  %1478 = vmatpush1.msra.mxu0 0.0
  %1479 = vmatprep.subr.mxu0 0.0
  %1480 = vmatpush1.msra.mxu0 0.0
  %1481 = vmatprep.subr.mxu0 0.0
  %1482 = vmatpush1.msra.mxu0 0.0
  %1483 = vmatprep.subr.mxu0 0.0
  %1484 = vmatpush1.msra.mxu0 0.0
  %1485 = vmatprep.subr.mxu0 0.0
  %1486 = vmatpush1.msra.mxu0 0.0
  %1487 = vmatprep.subr.mxu0 0.0
  %1488 = vmatpush1.msra.mxu0 0.0
  %1489 = vmatprep.subr.mxu0 0.0
  %1490 = vmatpush1.msra.mxu0 0.0
  %1491 = vmatprep.subr.mxu0 0.0
  %1492 = vmatpush1.msra.mxu0 0.0
  %1493 = vmatprep.subr.mxu0 0.0
  %1494 = vmatpush1.msra.mxu0 0.0
  %1495 = vmatprep.subr.mxu0 0.0
  %1496 = vmatpush1.msra.mxu0 0.0
  %1497 = vmatprep.subr.mxu0 0.0
  %1498 = vmatpush1.msra.mxu0 0.0
  %1499 = vmatprep.subr.mxu0 0.0
  %1500 = vmatpush1.msra.mxu0 0.0
  %1501 = vmatprep.subr.mxu0 0.0
  %1502 = vmatpush1.msra.mxu0 0.0
  %1503 = vmatprep.subr.mxu0 0.0
  %1504 = vmatpush1.msra.mxu0 0.0
  %1505 = vmatprep.subr.mxu0 0.0
  %1506 = vmatpush1.msra.mxu0 0.0
  %1507 = vmatprep.mubr.f32.mxu0 0.0
  %1508 = vmatmul.mubr.f32.gmra.mrb[0].mxu0 %v1441
  %v1509 = vpop.f32.mrb[0].mxu0
  %v1510 = vadd.f32 0.0, %v1509
  %v1511 = vpop.f32.mrb[0].mxu0
  %v1512 = vadd.f32 0.0, %v1511
  %1513 = vdwg.mxu0
  %1514 = vmatprep.subr.mxu0 %v1437
  %1515 = vmatpush1.msra.mxu0 %v1436
  %1516 = vmatprep.subr.mxu0 0.0
  %1517 = vmatpush1.msra.mxu0 0.0
  %1518 = vmatprep.subr.mxu0 0.0
  %1519 = vmatpush1.msra.mxu0 0.0
  %1520 = vmatprep.subr.mxu0 0.0
  %1521 = vmatpush1.msra.mxu0 0.0
  %1522 = vmatprep.subr.mxu0 0.0
  %1523 = vmatpush1.msra.mxu0 0.0
  %1524 = vmatprep.subr.mxu0 0.0
  %1525 = vmatpush1.msra.mxu0 0.0
  %1526 = vmatprep.subr.mxu0 0.0
  %1527 = vmatpush1.msra.mxu0 0.0
  %1528 = vmatprep.subr.mxu0 0.0
  %1529 = vmatpush1.msra.mxu0 0.0
  %1530 = vmatprep.subr.mxu0 0.0
  %1531 = vmatpush1.msra.mxu0 0.0
  %1532 = vmatprep.subr.mxu0 0.0
  %1533 = vmatpush1.msra.mxu0 0.0
  %1534 = vmatprep.subr.mxu0 0.0
  %1535 = vmatpush1.msra.mxu0 0.0
  %1536 = vmatprep.subr.mxu0 0.0
  %1537 = vmatpush1.msra.mxu0 0.0
  %1538 = vmatprep.subr.mxu0 0.0
  %1539 = vmatpush1.msra.mxu0 0.0
  %1540 = vmatprep.subr.mxu0 0.0
  %1541 = vmatpush1.msra.mxu0 0.0
  %1542 = vmatprep.subr.mxu0 0.0
  %1543 = vmatpush1.msra.mxu0 0.0
  %1544 = vmatprep.subr.mxu0 0.0
  %1545 = vmatpush1.msra.mxu0 0.0
  %1546 = vmatprep.subr.mxu0 0.0
  %1547 = vmatpush1.msra.mxu0 0.0
  %1548 = vmatprep.subr.mxu0 0.0
  %1549 = vmatpush1.msra.mxu0 0.0
  %1550 = vmatprep.subr.mxu0 0.0
  %1551 = vmatpush1.msra.mxu0 0.0
  %1552 = vmatprep.subr.mxu0 0.0
  %1553 = vmatpush1.msra.mxu0 0.0
  %1554 = vmatprep.subr.mxu0 0.0
  %1555 = vmatpush1.msra.mxu0 0.0
  %1556 = vmatprep.subr.mxu0 0.0
  %1557 = vmatpush1.msra.mxu0 0.0
  %1558 = vmatprep.subr.mxu0 0.0
  %1559 = vmatpush1.msra.mxu0 0.0
  %1560 = vmatprep.subr.mxu0 0.0
  %1561 = vmatpush1.msra.mxu0 0.0
  %1562 = vmatprep.subr.mxu0 0.0
  %1563 = vmatpush1.msra.mxu0 0.0
  %1564 = vmatprep.subr.mxu0 0.0
  %1565 = vmatpush1.msra.mxu0 0.0
  %1566 = vmatprep.subr.mxu0 0.0
  %1567 = vmatpush1.msra.mxu0 0.0
  %1568 = vmatprep.subr.mxu0 0.0
  %1569 = vmatpush1.msra.mxu0 0.0
  %1570 = vmatprep.subr.mxu0 0.0
  %1571 = vmatpush1.msra.mxu0 0.0
  %1572 = vmatprep.subr.mxu0 0.0
  %1573 = vmatpush1.msra.mxu0 0.0
  %1574 = vmatprep.subr.mxu0 0.0
  %1575 = vmatpush1.msra.mxu0 0.0
  %1576 = vmatprep.subr.mxu0 0.0
  %1577 = vmatpush1.msra.mxu0 0.0
  %1578 = vmatprep.mubr.f32.mxu0 0.0
  %1579 = vmatmul.mubr.f32.gmra.mrb[0].mxu0 %v1441
  %v1580 = vpop.f32.mrb[0].mxu0
  %v1581 = vadd.f32 0.0, %v1580
  %v1582 = vpop.f32.mrb[0].mxu0
  %v1583 = vadd.f32 0.0, %v1582
  %1584 = vdwg.mxu0
  %v1585 = vadd.f32 %v1409, %v1510
  %v1586 = vadd.f32 %v1410, %v1512
  %v1587 = vadd.f32 %v1411, %v1581
  %v1588 = vadd.f32 %v1412, %v1583
  %v1589 = vadd.f32 %v1585, %v1586
  %v1590 = vadd.f32 %v1589, %v1587
  %v1591 = vadd.f32 %v1590, %v1588
  %1592 = vadd.xlane.f32.xlu0 %v1591
  %v1593 = vpop.xlane.xlu0 %1592
  %v1594 = vmul.f32 %v1593, 0.001953125
  %v1595 = vmul.f32 %v1585, %v1585
  %v1596 = vmul.f32 %v1586, %v1586
  %v1597 = vmul.f32 %v1587, %v1587
  %v1598 = vmul.f32 %v1588, %v1588
  %v1599 = vadd.f32 %v1595, %v1596
  %v1600 = vadd.f32 %v1599, %v1597
  %v1601 = vadd.f32 %v1600, %v1598
  %1602 = vadd.xlane.f32.xlu0 %v1601
  %v1603 = vpop.xlane.xlu0 %1602
  %v1604 = vmul.f32 %v1603, 0.001953125
  %v1605 = vmul.f32 %v1594, %v1594
  %v1606 = vsub.f32 %v1604, %v1605
  %v1607 = vmax.f32 %v1606, 0.0
  %v1608 = vld [vmem:[%s2] sm:$0xff]
  %v1609 = vadd.f32 %v1607, 1e-05
  %v1610 = vrsqrt.pop %v1609
  %v1611 = vmul.f32 %v1608, %v1610
  %v1612 = vld [vmem:[%s3] sm:$0xff]
  %v1613 = vmul.f32 %v1594, %v1611
  %v1614 = vsub.f32 %v1612, %v1613
  %1616 = vset.pattern.permute.xlu0 0
  %1617 = vperm.xlu0 %1616, %v1611
  %v1618 = vpop.permute.xlu0 %1617
  %v1620 = vmul.f32 %v1585, %v1618
  %v1621 = vmul.f32 %v1586, %v1618
  %v1622 = vmul.f32 %v1587, %v1618
  %v1623 = vmul.f32 %v1588, %v1618
  %1625 = vset.pattern.permute.xlu0 0
  %1626 = vperm.xlu0 %1625, %v1614
  %v1627 = vpop.permute.xlu0 %1626
  %v1629 = vadd.f32 %v1620, %v1627
  %v1630 = vadd.f32 %v1621, %v1627
  %v1631 = vadd.f32 %v1622, %v1627
  %v1632 = vadd.f32 %v1623, %v1627
  %vm1633 = vcmp.ge.f32.partialorder %v1629, 0.0
  %vm1634 = vcmp.ge.f32.partialorder %v1630, 0.0
  %vm1635 = vcmp.ge.f32.partialorder %v1631, 0.0
  %vm1636 = vcmp.ge.f32.partialorder %v1632, 0.0
  %v1637 = vmul.f32 %v1629, 0.01
  %v1638 = vmul.f32 %v1630, 0.01
  %v1639 = vmul.f32 %v1631, 0.01
  %v1640 = vmul.f32 %v1632, 0.01
  %v1641 = vsel %vm1633, %v1629, %v1637
  %v1642 = vsel %vm1634, %v1630, %v1638
  %v1643 = vsel %vm1635, %v1631, %v1639
  %v1644 = vsel %vm1636, %v1632, %v1640
  %1645 = vst [vmem:[%s4] sm:$0xff] %v1641
  %1646 = vst [vmem:[%s4 + $0x8] sm:$0xff] %v1642
  %1647 = vst [vmem:[%s4 + $0x10] sm:$0xff] %v1643
  %1648 = vst [vmem:[%s4 + $0x18] sm:$0xff] %v1644
  // Predicated region
  $region18: #{vae_forward.10} parent=0 // pred_check
    _
  $region19: #{vae_forward.10} parent=0 // pred_check_branch
    %1650 = sbr.rel (0) target = $region21
  $region20: #{vae_forward.10} parent=0 // pred_region
    _
  $region21: #{vae_forward.10} parent=0 // pred_fallthru
    _
  // Predicated region
  $region22: #{vae_forward.10} parent=0 // pred_check
    _
  $region23: #{vae_forward.10} parent=0 // pred_check_branch
    %1652 = sbr.rel (0) target = $region25
  $region24: #{vae_forward.10} parent=0 // pred_region
    _
  $region25: #{vae_forward.10} parent=0 // pred_fallthru
    _

// kernel: vae_forward.9
$region0: #{vae_forward.9}
  #allocation0 [shape = 'u32[]', space=smem, size = 0x4, offset = 0x4, fixed_abs, tag = 'smem constant byte address 0x4 - core index']
  #allocation1 [shape = 'u32[144,128]{1,0:T(1,128)}', space=vmem, size = 0x12000, scoped, tag = 'internal scratch']
  %s0 = inlined_call_operand.vmem [shape: f32[4,512], index: 0, kind: input, shape index: {}]
  %s1 = inlined_call_operand.vmem [shape: f32[9,8,4], index: 1, kind: input, shape index: {}]
  %s2 = inlined_call_operand.vmem [shape: f32[8,1], index: 2, kind: input, shape index: {}]
  %s3 = inlined_call_operand.vmem [shape: f32[8,1], index: 3, kind: input, shape index: {}]
  %s4 = inlined_call_operand.vmem [shape: f32[8,512], index: 4, kind: output, shape index: {}]
  %s5 = sld [smem:[#allocation0]]
  $region26: #{vae_forward.9} parent=0
    _
  %s7 = ssub.s32 1, %s5
  %s8 = scalar_select 0, %s7, %s5
  // Predicated region
  $region2: #{vae_forward.9} parent=0 // pred_check
    _
  $region3: #{vae_forward.9} parent=0 // pred_check_branch
    %10 = sbr.rel (0) target = $region5
  $region4: #{vae_forward.9} parent=0 // pred_region
    _
  $region5: #{vae_forward.9} parent=0 // pred_fallthru
    _
  // Predicated region
  $region6: #{vae_forward.9} parent=0 // pred_check
    _
  $region7: #{vae_forward.9} parent=0 // pred_check_branch
    %12 = sbr.rel (0) target = $region9
  $region8: #{vae_forward.9} parent=0 // pred_region
    _
  $region9: #{vae_forward.9} parent=0 // pred_fallthru
    _
  // Predicated region
  $region10: #{vae_forward.9} parent=0 // pred_check
    _
  $region11: #{vae_forward.9} parent=0 // pred_check_branch
    %14 = sbr.rel (0) target = $region13
  $region12: #{vae_forward.9} parent=0 // pred_region
    _
  $region13: #{vae_forward.9} parent=0 // pred_fallthru
    _
  // Predicated region
  $region14: #{vae_forward.9} parent=0 // pred_check
    _
  $region15: #{vae_forward.9} parent=0 // pred_check_branch
    %16 = sbr.rel (0) target = $region17
  $region16: #{vae_forward.9} parent=0 // pred_region
    _
  $region17: #{vae_forward.9} parent=0 // pred_fallthru
    _
  %v17 = vld [vmem:[%s0] sm:$0xff]
  %v18 = vld [vmem:[%s0 + $0x8] sm:$0xff]
  %v19 = vlaneseq
  %v20 = vand.u32 %v19, 127
  %v21 = vadd.s32 %v20, 128
  %v22 = vadd.s32 %v20, 256
  %v23 = vadd.s32 %v20, 384
  %v24 = vand.u32 %v20, 255
  %v25 = vand.u32 %v21, 255
  %v26 = vand.u32 %v22, 255
  %v27 = vand.u32 %v23, 255
  %v28 = vand.u32 %v20, 15
  %v29 = vand.u32 %v21, 15
  %v30 = vand.u32 %v22, 15
  %v31 = vand.u32 %v23, 15
  %v34 = vcombine.high %v17, %v17
  %v35 = vcombine.high %v18, %v18
  %36 = vrot.lane.b32.xlu0 %v17, 17
  %v37 = vpop.permute.xlu0 %36
  %38 = vrot.lane.b32.xlu0 %v34, 17
  %v39 = vpop.permute.xlu0 %38
  %40 = vrot.lane.b32.xlu0 %v18, 17
  %v41 = vpop.permute.xlu0 %40
  %42 = vrot.lane.b32.xlu0 %v35, 17
  %v43 = vpop.permute.xlu0 %42
  %vm44 = vcmask 138240
  %v45 = vsel %vm44, %v37, %v39
  %v46 = vsel %vm44, %v39, %v41
  %v47 = vsel %vm44, %v41, %v43
  %v52 = vsel %vm44, 0.0, %v37
  %vm53 = vcmp.ge.s32.totalorder %v24, 16
  %vm54 = vcmp.ge.s32.totalorder %v25, 16
  %vm55 = vcmp.ge.s32.totalorder %v26, 16
  %vm56 = vcmp.ge.s32.totalorder %v27, 16
  %vm57 = vcmp.ge.s32.totalorder %v28, 1
  %vm58 = vcmp.ge.s32.totalorder %v29, 1
  %vm59 = vcmp.ge.s32.totalorder %v30, 1
  %vm60 = vcmp.ge.s32.totalorder %v31, 1
  %vm61 = vmand %vm53, %vm57
  %vm62 = vmand %vm54, %vm58
  %vm63 = vmand %vm55, %vm59
  %vm64 = vmand %vm56, %vm60
  %v65 = vsel %vm61, %v52, 0.0
  %v66 = vsel %vm62, %v45, 0.0
  %v67 = vsel %vm63, %v46, 0.0
  %v68 = vsel %vm64, %v47, 0.0
  %v69 = vld [vmem:[%s1] sm:$0xff]
  %70 = vrot.lane.b32.xlu0 %v17, 16
  %v71 = vpop.permute.xlu0 %70
  %72 = vrot.lane.b32.xlu0 %v34, 16
  %v73 = vpop.permute.xlu0 %72
  %74 = vrot.lane.b32.xlu0 %v18, 16
  %v75 = vpop.permute.xlu0 %74
  %76 = vrot.lane.b32.xlu0 %v35, 16
  %v77 = vpop.permute.xlu0 %76
  %vm78 = vcmask 130048
  %v79 = vsel %vm78, %v71, %v73
  %v80 = vsel %vm78, %v73, %v75
  %v81 = vsel %vm78, %v75, %v77
  %v86 = vsel %vm78, 0.0, %v71
  %v87 = vsel %vm53, %v86, 0.0
  %v88 = vsel %vm54, %v79, 0.0
  %v89 = vsel %vm55, %v80, 0.0
  %v90 = vsel %vm56, %v81, 0.0
  %s91 = scalar_lea.vmem %s1, 8
  %v92 = vld [vmem:[%s91] sm:$0xff]
  %vm93 = vcmask 31744
  %v95 = vsel %vm93, %v92, 0
  %vm97 = vcmask 1043456
  %v99 = vsel %vm97, %v87, 0
  %v102 = vsel %vm97, %v88, 0
  %v105 = vsel %vm97, %v89, 0
  %v108 = vsel %vm97, %v90, 0
  %110 = vmatprep.subr.mxu0 %v102
  %111 = vmatpush1.msra.mxu0 %v99
  %112 = vmatprep.subr.mxu0 0.0
  %113 = vmatpush1.msra.mxu0 0.0
  %114 = vmatprep.subr.mxu0 0.0
  %115 = vmatpush1.msra.mxu0 0.0
  %116 = vmatprep.subr.mxu0 0.0
  %117 = vmatpush1.msra.mxu0 0.0
  %118 = vmatprep.subr.mxu0 0.0
  %119 = vmatpush1.msra.mxu0 0.0
  %120 = vmatprep.subr.mxu0 0.0
  %121 = vmatpush1.msra.mxu0 0.0
  %122 = vmatprep.subr.mxu0 0.0
  %123 = vmatpush1.msra.mxu0 0.0
  %124 = vmatprep.subr.mxu0 0.0
  %125 = vmatpush1.msra.mxu0 0.0
  %126 = vmatprep.subr.mxu0 0.0
  %127 = vmatpush1.msra.mxu0 0.0
  %128 = vmatprep.subr.mxu0 0.0
  %129 = vmatpush1.msra.mxu0 0.0
  %130 = vmatprep.subr.mxu0 0.0
  %131 = vmatpush1.msra.mxu0 0.0
  %132 = vmatprep.subr.mxu0 0.0
  %133 = vmatpush1.msra.mxu0 0.0
  %134 = vmatprep.subr.mxu0 0.0
  %135 = vmatpush1.msra.mxu0 0.0
  %136 = vmatprep.subr.mxu0 0.0
  %137 = vmatpush1.msra.mxu0 0.0
  %138 = vmatprep.subr.mxu0 0.0
  %139 = vmatpush1.msra.mxu0 0.0
  %140 = vmatprep.subr.mxu0 0.0
  %141 = vmatpush1.msra.mxu0 0.0
  %142 = vmatprep.subr.mxu0 0.0
  %143 = vmatpush1.msra.mxu0 0.0
  %144 = vmatprep.subr.mxu0 0.0
  %145 = vmatpush1.msra.mxu0 0.0
  %146 = vmatprep.subr.mxu0 0.0
  %147 = vmatpush1.msra.mxu0 0.0
  %148 = vmatprep.subr.mxu0 0.0
  %149 = vmatpush1.msra.mxu0 0.0
  %150 = vmatprep.subr.mxu0 0.0
  %151 = vmatpush1.msra.mxu0 0.0
  %152 = vmatprep.subr.mxu0 0.0
  %153 = vmatpush1.msra.mxu0 0.0
  %154 = vmatprep.subr.mxu0 0.0
  %155 = vmatpush1.msra.mxu0 0.0
  %156 = vmatprep.subr.mxu0 0.0
  %157 = vmatpush1.msra.mxu0 0.0
  %158 = vmatprep.subr.mxu0 0.0
  %159 = vmatpush1.msra.mxu0 0.0
  %160 = vmatprep.subr.mxu0 0.0
  %161 = vmatpush1.msra.mxu0 0.0
  %162 = vmatprep.subr.mxu0 0.0
  %163 = vmatpush1.msra.mxu0 0.0
  %164 = vmatprep.subr.mxu0 0.0
  %165 = vmatpush1.msra.mxu0 0.0
  %166 = vmatprep.subr.mxu0 0.0
  %167 = vmatpush1.msra.mxu0 0.0
  %168 = vmatprep.subr.mxu0 0.0
  %169 = vmatpush1.msra.mxu0 0.0
  %170 = vmatprep.subr.mxu0 0.0
  %171 = vmatpush1.msra.mxu0 0.0
  %172 = vmatprep.subr.mxu0 0.0
  %173 = vmatpush1.msra.mxu0 0.0
  %174 = vmatprep.mubr.f32.mxu0 0.0
  %175 = vmatmul.mubr.f32.gmra.mrb[0].mxu0 %v95
  %v176 = vpop.f32.mrb[0].mxu0
  %v177 = vadd.f32 0.0, %v176
  %v178 = vpop.f32.mrb[0].mxu0
  %v179 = vadd.f32 0.0, %v178
  %180 = vdwg.mxu0
  %181 = vmatprep.subr.mxu0 %v108
  %182 = vmatpush1.msra.mxu0 %v105
  %183 = vmatprep.subr.mxu0 0.0
  %184 = vmatpush1.msra.mxu0 0.0
  %185 = vmatprep.subr.mxu0 0.0
  %186 = vmatpush1.msra.mxu0 0.0
  %187 = vmatprep.subr.mxu0 0.0
  %188 = vmatpush1.msra.mxu0 0.0
  %189 = vmatprep.subr.mxu0 0.0
  %190 = vmatpush1.msra.mxu0 0.0
  %191 = vmatprep.subr.mxu0 0.0
  %192 = vmatpush1.msra.mxu0 0.0
  %193 = vmatprep.subr.mxu0 0.0
  %194 = vmatpush1.msra.mxu0 0.0
  %195 = vmatprep.subr.mxu0 0.0
  %196 = vmatpush1.msra.mxu0 0.0
  %197 = vmatprep.subr.mxu0 0.0
  %198 = vmatpush1.msra.mxu0 0.0
  %199 = vmatprep.subr.mxu0 0.0
  %200 = vmatpush1.msra.mxu0 0.0
  %201 = vmatprep.subr.mxu0 0.0
  %202 = vmatpush1.msra.mxu0 0.0
  %203 = vmatprep.subr.mxu0 0.0
  %204 = vmatpush1.msra.mxu0 0.0
  %205 = vmatprep.subr.mxu0 0.0
  %206 = vmatpush1.msra.mxu0 0.0
  %207 = vmatprep.subr.mxu0 0.0
  %208 = vmatpush1.msra.mxu0 0.0
  %209 = vmatprep.subr.mxu0 0.0
  %210 = vmatpush1.msra.mxu0 0.0
  %211 = vmatprep.subr.mxu0 0.0
  %212 = vmatpush1.msra.mxu0 0.0
  %213 = vmatprep.subr.mxu0 0.0
  %214 = vmatpush1.msra.mxu0 0.0
  %215 = vmatprep.subr.mxu0 0.0
  %216 = vmatpush1.msra.mxu0 0.0
  %217 = vmatprep.subr.mxu0 0.0
  %218 = vmatpush1.msra.mxu0 0.0
  %219 = vmatprep.subr.mxu0 0.0
  %220 = vmatpush1.msra.mxu0 0.0
  %221 = vmatprep.subr.mxu0 0.0
  %222 = vmatpush1.msra.mxu0 0.0
  %223 = vmatprep.subr.mxu0 0.0
  %224 = vmatpush1.msra.mxu0 0.0
  %225 = vmatprep.subr.mxu0 0.0
  %226 = vmatpush1.msra.mxu0 0.0
  %227 = vmatprep.subr.mxu0 0.0
  %228 = vmatpush1.msra.mxu0 0.0
  %229 = vmatprep.subr.mxu0 0.0
  %230 = vmatpush1.msra.mxu0 0.0
  %231 = vmatprep.subr.mxu0 0.0
  %232 = vmatpush1.msra.mxu0 0.0
  %233 = vmatprep.subr.mxu0 0.0
  %234 = vmatpush1.msra.mxu0 0.0
  %235 = vmatprep.subr.mxu0 0.0
  %236 = vmatpush1.msra.mxu0 0.0
  %237 = vmatprep.subr.mxu0 0.0
  %238 = vmatpush1.msra.mxu0 0.0
  %239 = vmatprep.subr.mxu0 0.0
  %240 = vmatpush1.msra.mxu0 0.0
  %241 = vmatprep.subr.mxu0 0.0
  %242 = vmatpush1.msra.mxu0 0.0
  %243 = vmatprep.subr.mxu0 0.0
  %244 = vmatpush1.msra.mxu0 0.0
  %245 = vmatprep.mubr.f32.mxu0 0.0
  %246 = vmatmul.mubr.f32.gmra.mrb[0].mxu0 %v95
  %v247 = vpop.f32.mrb[0].mxu0
  %v248 = vadd.f32 0.0, %v247
  %v249 = vpop.f32.mrb[0].mxu0
  %v250 = vadd.f32 0.0, %v249
  %251 = vdwg.mxu0
  %v253 = vsel %vm93, %v69, 0
  %v256 = vsel %vm97, %v65, 0
  %v259 = vsel %vm97, %v66, 0
  %v262 = vsel %vm97, %v67, 0
  %v265 = vsel %vm97, %v68, 0
  %267 = vmatprep.subr.mxu0 %v259
  %268 = vmatpush1.msra.mxu0 %v256
  %269 = vmatprep.subr.mxu0 0.0
  %270 = vmatpush1.msra.mxu0 0.0
  %271 = vmatprep.subr.mxu0 0.0
  %272 = vmatpush1.msra.mxu0 0.0
  %273 = vmatprep.subr.mxu0 0.0
  %274 = vmatpush1.msra.mxu0 0.0
  %275 = vmatprep.subr.mxu0 0.0
  %276 = vmatpush1.msra.mxu0 0.0
  %277 = vmatprep.subr.mxu0 0.0
  %278 = vmatpush1.msra.mxu0 0.0
  %279 = vmatprep.subr.mxu0 0.0
  %280 = vmatpush1.msra.mxu0 0.0
  %281 = vmatprep.subr.mxu0 0.0
  %282 = vmatpush1.msra.mxu0 0.0
  %283 = vmatprep.subr.mxu0 0.0
  %284 = vmatpush1.msra.mxu0 0.0
  %285 = vmatprep.subr.mxu0 0.0
  %286 = vmatpush1.msra.mxu0 0.0
  %287 = vmatprep.subr.mxu0 0.0
  %288 = vmatpush1.msra.mxu0 0.0
  %289 = vmatprep.subr.mxu0 0.0
  %290 = vmatpush1.msra.mxu0 0.0
  %291 = vmatprep.subr.mxu0 0.0
  %292 = vmatpush1.msra.mxu0 0.0
  %293 = vmatprep.subr.mxu0 0.0
  %294 = vmatpush1.msra.mxu0 0.0
  %295 = vmatprep.subr.mxu0 0.0
  %296 = vmatpush1.msra.mxu0 0.0
  %297 = vmatprep.subr.mxu0 0.0
  %298 = vmatpush1.msra.mxu0 0.0
  %299 = vmatprep.subr.mxu0 0.0
  %300 = vmatpush1.msra.mxu0 0.0
  %301 = vmatprep.subr.mxu0 0.0
  %302 = vmatpush1.msra.mxu0 0.0
  %303 = vmatprep.subr.mxu0 0.0
  %304 = vmatpush1.msra.mxu0 0.0
  %305 = vmatprep.subr.mxu0 0.0
  %306 = vmatpush1.msra.mxu0 0.0
  %307 = vmatprep.subr.mxu0 0.0
  %308 = vmatpush1.msra.mxu0 0.0
  %309 = vmatprep.subr.mxu0 0.0
  %310 = vmatpush1.msra.mxu0 0.0
  %311 = vmatprep.subr.mxu0 0.0
  %312 = vmatpush1.msra.mxu0 0.0
  %313 = vmatprep.subr.mxu0 0.0
  %314 = vmatpush1.msra.mxu0 0.0
  %315 = vmatprep.subr.mxu0 0.0
  %316 = vmatpush1.msra.mxu0 0.0
  %317 = vmatprep.subr.mxu0 0.0
  %318 = vmatpush1.msra.mxu0 0.0
  %319 = vmatprep.subr.mxu0 0.0
  %320 = vmatpush1.msra.mxu0 0.0
  %321 = vmatprep.subr.mxu0 0.0
  %322 = vmatpush1.msra.mxu0 0.0
  %323 = vmatprep.subr.mxu0 0.0
  %324 = vmatpush1.msra.mxu0 0.0
  %325 = vmatprep.subr.mxu0 0.0
  %326 = vmatpush1.msra.mxu0 0.0
  %327 = vmatprep.subr.mxu0 0.0
  %328 = vmatpush1.msra.mxu0 0.0
  %329 = vmatprep.subr.mxu0 0.0
  %330 = vmatpush1.msra.mxu0 0.0
  %331 = vmatprep.mubr.f32.mxu0 0.0
  %332 = vmatmul.mubr.f32.gmra.mrb[0].mxu0 %v253
  %v333 = vpop.f32.mrb[0].mxu0
  %v334 = vadd.f32 %v177, %v333
  %v335 = vpop.f32.mrb[0].mxu0
  %v336 = vadd.f32 %v179, %v335
  %337 = vdwg.mxu0
  %338 = vmatprep.subr.mxu0 %v265
  %339 = vmatpush1.msra.mxu0 %v262
  %340 = vmatprep.subr.mxu0 0.0
  %341 = vmatpush1.msra.mxu0 0.0
  %342 = vmatprep.subr.mxu0 0.0
  %343 = vmatpush1.msra.mxu0 0.0
  %344 = vmatprep.subr.mxu0 0.0
  %345 = vmatpush1.msra.mxu0 0.0
  %346 = vmatprep.subr.mxu0 0.0
  %347 = vmatpush1.msra.mxu0 0.0
  %348 = vmatprep.subr.mxu0 0.0
  %349 = vmatpush1.msra.mxu0 0.0
  %350 = vmatprep.subr.mxu0 0.0
  %351 = vmatpush1.msra.mxu0 0.0
  %352 = vmatprep.subr.mxu0 0.0
  %353 = vmatpush1.msra.mxu0 0.0
  %354 = vmatprep.subr.mxu0 0.0
  %355 = vmatpush1.msra.mxu0 0.0
  %356 = vmatprep.subr.mxu0 0.0
  %357 = vmatpush1.msra.mxu0 0.0
  %358 = vmatprep.subr.mxu0 0.0
  %359 = vmatpush1.msra.mxu0 0.0
  %360 = vmatprep.subr.mxu0 0.0
  %361 = vmatpush1.msra.mxu0 0.0
  %362 = vmatprep.subr.mxu0 0.0
  %363 = vmatpush1.msra.mxu0 0.0
  %364 = vmatprep.subr.mxu0 0.0
  %365 = vmatpush1.msra.mxu0 0.0
  %366 = vmatprep.subr.mxu0 0.0
  %367 = vmatpush1.msra.mxu0 0.0
  %368 = vmatprep.subr.mxu0 0.0
  %369 = vmatpush1.msra.mxu0 0.0
  %370 = vmatprep.subr.mxu0 0.0
  %371 = vmatpush1.msra.mxu0 0.0
  %372 = vmatprep.subr.mxu0 0.0
  %373 = vmatpush1.msra.mxu0 0.0
  %374 = vmatprep.subr.mxu0 0.0
  %375 = vmatpush1.msra.mxu0 0.0
  %376 = vmatprep.subr.mxu0 0.0
  %377 = vmatpush1.msra.mxu0 0.0
  %378 = vmatprep.subr.mxu0 0.0
  %379 = vmatpush1.msra.mxu0 0.0
  %380 = vmatprep.subr.mxu0 0.0
  %381 = vmatpush1.msra.mxu0 0.0
  %382 = vmatprep.subr.mxu0 0.0
  %383 = vmatpush1.msra.mxu0 0.0
  %384 = vmatprep.subr.mxu0 0.0
  %385 = vmatpush1.msra.mxu0 0.0
  %386 = vmatprep.subr.mxu0 0.0
  %387 = vmatpush1.msra.mxu0 0.0
  %388 = vmatprep.subr.mxu0 0.0
  %389 = vmatpush1.msra.mxu0 0.0
  %390 = vmatprep.subr.mxu0 0.0
  %391 = vmatpush1.msra.mxu0 0.0
  %392 = vmatprep.subr.mxu0 0.0
  %393 = vmatpush1.msra.mxu0 0.0
  %394 = vmatprep.subr.mxu0 0.0
  %395 = vmatpush1.msra.mxu0 0.0
  %396 = vmatprep.subr.mxu0 0.0
  %397 = vmatpush1.msra.mxu0 0.0
  %398 = vmatprep.subr.mxu0 0.0
  %399 = vmatpush1.msra.mxu0 0.0
  %400 = vmatprep.subr.mxu0 0.0
  %401 = vmatpush1.msra.mxu0 0.0
  %402 = vmatprep.mubr.f32.mxu0 0.0
  %403 = vmatmul.mubr.f32.gmra.mrb[0].mxu0 %v253
  %v404 = vpop.f32.mrb[0].mxu0
  %v405 = vadd.f32 %v248, %v404
  %v406 = vpop.f32.mrb[0].mxu0
  %v407 = vadd.f32 %v250, %v406
  %408 = vdwg.mxu0
  %409 = vrot.lane.b32.xlu0 %v17, 15
  %v410 = vpop.permute.xlu0 %409
  %411 = vrot.lane.b32.xlu0 %v34, 15
  %v412 = vpop.permute.xlu0 %411
  %413 = vrot.lane.b32.xlu0 %v18, 15
  %v414 = vpop.permute.xlu0 %413
  %415 = vrot.lane.b32.xlu0 %v35, 15
  %v416 = vpop.permute.xlu0 %415
  %vm417 = vcmask 121856
  %v418 = vsel %vm417, %v410, %v412
  %v419 = vsel %vm417, %v412, %v414
  %v420 = vsel %vm417, %v414, %v416
  %v425 = vsel %vm417, 0.0, %v410
  %vm426 = vcmp.lt.s32.totalorder %v28, 15
  %vm427 = vcmp.lt.s32.totalorder %v29, 15
  %vm428 = vcmp.lt.s32.totalorder %v30, 15
  %vm429 = vcmp.lt.s32.totalorder %v31, 15
  %vm430 = vmand %vm53, %vm426
  %vm431 = vmand %vm54, %vm427
  %vm432 = vmand %vm55, %vm428
  %vm433 = vmand %vm56, %vm429
  %v434 = vsel %vm430, %v425, 0.0
  %v435 = vsel %vm431, %v418, 0.0
  %v436 = vsel %vm432, %v419, 0.0
  %v437 = vsel %vm433, %v420, 0.0
  %s438 = scalar_lea.vmem %s1, 16
  %v439 = vld [vmem:[%s438] sm:$0xff]
  %v441 = vsel %vm93, %v439, 0
  %v444 = vsel %vm97, %v434, 0
  %v447 = vsel %vm97, %v435, 0
  %v450 = vsel %vm97, %v436, 0
  %v453 = vsel %vm97, %v437, 0
  %455 = vmatprep.subr.mxu0 %v447
  %456 = vmatpush1.msra.mxu0 %v444
  %457 = vmatprep.subr.mxu0 0.0
  %458 = vmatpush1.msra.mxu0 0.0
  %459 = vmatprep.subr.mxu0 0.0
  %460 = vmatpush1.msra.mxu0 0.0
  %461 = vmatprep.subr.mxu0 0.0
  %462 = vmatpush1.msra.mxu0 0.0
  %463 = vmatprep.subr.mxu0 0.0
  %464 = vmatpush1.msra.mxu0 0.0
  %465 = vmatprep.subr.mxu0 0.0
  %466 = vmatpush1.msra.mxu0 0.0
  %467 = vmatprep.subr.mxu0 0.0
  %468 = vmatpush1.msra.mxu0 0.0
  %469 = vmatprep.subr.mxu0 0.0
  %470 = vmatpush1.msra.mxu0 0.0
  %471 = vmatprep.subr.mxu0 0.0
  %472 = vmatpush1.msra.mxu0 0.0
  %473 = vmatprep.subr.mxu0 0.0
  %474 = vmatpush1.msra.mxu0 0.0
  %475 = vmatprep.subr.mxu0 0.0
  %476 = vmatpush1.msra.mxu0 0.0
  %477 = vmatprep.subr.mxu0 0.0
  %478 = vmatpush1.msra.mxu0 0.0
  %479 = vmatprep.subr.mxu0 0.0
  %480 = vmatpush1.msra.mxu0 0.0
  %481 = vmatprep.subr.mxu0 0.0
  %482 = vmatpush1.msra.mxu0 0.0
  %483 = vmatprep.subr.mxu0 0.0
  %484 = vmatpush1.msra.mxu0 0.0
  %485 = vmatprep.subr.mxu0 0.0
  %486 = vmatpush1.msra.mxu0 0.0
  %487 = vmatprep.subr.mxu0 0.0
  %488 = vmatpush1.msra.mxu0 0.0
  %489 = vmatprep.subr.mxu0 0.0
  %490 = vmatpush1.msra.mxu0 0.0
  %491 = vmatprep.subr.mxu0 0.0
  %492 = vmatpush1.msra.mxu0 0.0
  %493 = vmatprep.subr.mxu0 0.0
  %494 = vmatpush1.msra.mxu0 0.0
  %495 = vmatprep.subr.mxu0 0.0
  %496 = vmatpush1.msra.mxu0 0.0
  %497 = vmatprep.subr.mxu0 0.0
  %498 = vmatpush1.msra.mxu0 0.0
  %499 = vmatprep.subr.mxu0 0.0
  %500 = vmatpush1.msra.mxu0 0.0
  %501 = vmatprep.subr.mxu0 0.0
  %502 = vmatpush1.msra.mxu0 0.0
  %503 = vmatprep.subr.mxu0 0.0
  %504 = vmatpush1.msra.mxu0 0.0
  %505 = vmatprep.subr.mxu0 0.0
  %506 = vmatpush1.msra.mxu0 0.0
  %507 = vmatprep.subr.mxu0 0.0
  %508 = vmatpush1.msra.mxu0 0.0
  %509 = vmatprep.subr.mxu0 0.0
  %510 = vmatpush1.msra.mxu0 0.0
  %511 = vmatprep.subr.mxu0 0.0
  %512 = vmatpush1.msra.mxu0 0.0
  %513 = vmatprep.subr.mxu0 0.0
  %514 = vmatpush1.msra.mxu0 0.0
  %515 = vmatprep.subr.mxu0 0.0
  %516 = vmatpush1.msra.mxu0 0.0
  %517 = vmatprep.subr.mxu0 0.0
  %518 = vmatpush1.msra.mxu0 0.0
  %519 = vmatprep.mubr.f32.mxu0 0.0
  %520 = vmatmul.mubr.f32.gmra.mrb[0].mxu0 %v441
  %v521 = vpop.f32.mrb[0].mxu0
  %v522 = vadd.f32 0.0, %v521
  %v523 = vpop.f32.mrb[0].mxu0
  %v524 = vadd.f32 0.0, %v523
  %525 = vdwg.mxu0
  %526 = vmatprep.subr.mxu0 %v453
  %527 = vmatpush1.msra.mxu0 %v450
  %528 = vmatprep.subr.mxu0 0.0
  %529 = vmatpush1.msra.mxu0 0.0
  %530 = vmatprep.subr.mxu0 0.0
  %531 = vmatpush1.msra.mxu0 0.0
  %532 = vmatprep.subr.mxu0 0.0
  %533 = vmatpush1.msra.mxu0 0.0
  %534 = vmatprep.subr.mxu0 0.0
  %535 = vmatpush1.msra.mxu0 0.0
  %536 = vmatprep.subr.mxu0 0.0
  %537 = vmatpush1.msra.mxu0 0.0
  %538 = vmatprep.subr.mxu0 0.0
  %539 = vmatpush1.msra.mxu0 0.0
  %540 = vmatprep.subr.mxu0 0.0
  %541 = vmatpush1.msra.mxu0 0.0
  %542 = vmatprep.subr.mxu0 0.0
  %543 = vmatpush1.msra.mxu0 0.0
  %544 = vmatprep.subr.mxu0 0.0
  %545 = vmatpush1.msra.mxu0 0.0
  %546 = vmatprep.subr.mxu0 0.0
  %547 = vmatpush1.msra.mxu0 0.0
  %548 = vmatprep.subr.mxu0 0.0
  %549 = vmatpush1.msra.mxu0 0.0
  %550 = vmatprep.subr.mxu0 0.0
  %551 = vmatpush1.msra.mxu0 0.0
  %552 = vmatprep.subr.mxu0 0.0
  %553 = vmatpush1.msra.mxu0 0.0
  %554 = vmatprep.subr.mxu0 0.0
  %555 = vmatpush1.msra.mxu0 0.0
  %556 = vmatprep.subr.mxu0 0.0
  %557 = vmatpush1.msra.mxu0 0.0
  %558 = vmatprep.subr.mxu0 0.0
  %559 = vmatpush1.msra.mxu0 0.0
  %560 = vmatprep.subr.mxu0 0.0
  %561 = vmatpush1.msra.mxu0 0.0
  %562 = vmatprep.subr.mxu0 0.0
  %563 = vmatpush1.msra.mxu0 0.0
  %564 = vmatprep.subr.mxu0 0.0
  %565 = vmatpush1.msra.mxu0 0.0
  %566 = vmatprep.subr.mxu0 0.0
  %567 = vmatpush1.msra.mxu0 0.0
  %568 = vmatprep.subr.mxu0 0.0
  %569 = vmatpush1.msra.mxu0 0.0
  %570 = vmatprep.subr.mxu0 0.0
  %571 = vmatpush1.msra.mxu0 0.0
  %572 = vmatprep.subr.mxu0 0.0
  %573 = vmatpush1.msra.mxu0 0.0
  %574 = vmatprep.subr.mxu0 0.0
  %575 = vmatpush1.msra.mxu0 0.0
  %576 = vmatprep.subr.mxu0 0.0
  %577 = vmatpush1.msra.mxu0 0.0
  %578 = vmatprep.subr.mxu0 0.0
  %579 = vmatpush1.msra.mxu0 0.0
  %580 = vmatprep.subr.mxu0 0.0
  %581 = vmatpush1.msra.mxu0 0.0
  %582 = vmatprep.subr.mxu0 0.0
  %583 = vmatpush1.msra.mxu0 0.0
  %584 = vmatprep.subr.mxu0 0.0
  %585 = vmatpush1.msra.mxu0 0.0
  %586 = vmatprep.subr.mxu0 0.0
  %587 = vmatpush1.msra.mxu0 0.0
  %588 = vmatprep.subr.mxu0 0.0
  %589 = vmatpush1.msra.mxu0 0.0
  %590 = vmatprep.mubr.f32.mxu0 0.0
  %591 = vmatmul.mubr.f32.gmra.mrb[0].mxu0 %v441
  %v592 = vpop.f32.mrb[0].mxu0
  %v593 = vadd.f32 0.0, %v592
  %v594 = vpop.f32.mrb[0].mxu0
  %v595 = vadd.f32 0.0, %v594
  %596 = vdwg.mxu0
  %v597 = vadd.f32 %v334, %v522
  %v598 = vadd.f32 %v336, %v524
  %v599 = vadd.f32 %v405, %v593
  %v600 = vadd.f32 %v407, %v595
  %601 = vrot.lane.b32.xlu0 %v17, 1
  %v602 = vpop.permute.xlu0 %601
  %603 = vrot.lane.b32.xlu0 %v34, 1
  %v604 = vpop.permute.xlu0 %603
  %605 = vrot.lane.b32.xlu0 %v18, 1
  %v606 = vpop.permute.xlu0 %605
  %607 = vrot.lane.b32.xlu0 %v35, 1
  %v608 = vpop.permute.xlu0 %607
  %vm609 = vcmask 7168
  %v610 = vsel %vm609, %v602, %v604
  %v611 = vsel %vm609, %v604, %v606
  %v612 = vsel %vm609, %v606, %v608
  %v617 = vsel %vm609, 0.0, %v602
  %v618 = vsel %vm57, %v617, 0.0
  %v619 = vsel %vm58, %v610, 0.0
  %v620 = vsel %vm59, %v611, 0.0
  %v621 = vsel %vm60, %v612, 0.0
  %s622 = scalar_lea.vmem %s1, 24
  %v623 = vld [vmem:[%s622] sm:$0xff]
  %v625 = vsel %vm93, %v623, 0
  %v628 = vsel %vm97, %v618, 0
  %v631 = vsel %vm97, %v619, 0
  %v634 = vsel %vm97, %v620, 0
  %v637 = vsel %vm97, %v621, 0
  %639 = vmatprep.subr.mxu0 %v631
  %640 = vmatpush1.msra.mxu0 %v628
  %641 = vmatprep.subr.mxu0 0.0
  %642 = vmatpush1.msra.mxu0 0.0
  %643 = vmatprep.subr.mxu0 0.0
  %644 = vmatpush1.msra.mxu0 0.0
  %645 = vmatprep.subr.mxu0 0.0
  %646 = vmatpush1.msra.mxu0 0.0
  %647 = vmatprep.subr.mxu0 0.0
  %648 = vmatpush1.msra.mxu0 0.0
  %649 = vmatprep.subr.mxu0 0.0
  %650 = vmatpush1.msra.mxu0 0.0
  %651 = vmatprep.subr.mxu0 0.0
  %652 = vmatpush1.msra.mxu0 0.0
  %653 = vmatprep.subr.mxu0 0.0
  %654 = vmatpush1.msra.mxu0 0.0
  %655 = vmatprep.subr.mxu0 0.0
  %656 = vmatpush1.msra.mxu0 0.0
  %657 = vmatprep.subr.mxu0 0.0
  %658 = vmatpush1.msra.mxu0 0.0
  %659 = vmatprep.subr.mxu0 0.0
  %660 = vmatpush1.msra.mxu0 0.0
  %661 = vmatprep.subr.mxu0 0.0
  %662 = vmatpush1.msra.mxu0 0.0
  %663 = vmatprep.subr.mxu0 0.0
  %664 = vmatpush1.msra.mxu0 0.0
  %665 = vmatprep.subr.mxu0 0.0
  %666 = vmatpush1.msra.mxu0 0.0
  %667 = vmatprep.subr.mxu0 0.0
  %668 = vmatpush1.msra.mxu0 0.0
  %669 = vmatprep.subr.mxu0 0.0
  %670 = vmatpush1.msra.mxu0 0.0
  %671 = vmatprep.subr.mxu0 0.0
  %672 = vmatpush1.msra.mxu0 0.0
  %673 = vmatprep.subr.mxu0 0.0
  %674 = vmatpush1.msra.mxu0 0.0
  %675 = vmatprep.subr.mxu0 0.0
  %676 = vmatpush1.msra.mxu0 0.0
  %677 = vmatprep.subr.mxu0 0.0
  %678 = vmatpush1.msra.mxu0 0.0
  %679 = vmatprep.subr.mxu0 0.0
  %680 = vmatpush1.msra.mxu0 0.0
  %681 = vmatprep.subr.mxu0 0.0
  %682 = vmatpush1.msra.mxu0 0.0
  %683 = vmatprep.subr.mxu0 0.0
  %684 = vmatpush1.msra.mxu0 0.0
  %685 = vmatprep.subr.mxu0 0.0
  %686 = vmatpush1.msra.mxu0 0.0
  %687 = vmatprep.subr.mxu0 0.0
  %688 = vmatpush1.msra.mxu0 0.0
  %689 = vmatprep.subr.mxu0 0.0
  %690 = vmatpush1.msra.mxu0 0.0
  %691 = vmatprep.subr.mxu0 0.0
  %692 = vmatpush1.msra.mxu0 0.0
  %693 = vmatprep.subr.mxu0 0.0
  %694 = vmatpush1.msra.mxu0 0.0
  %695 = vmatprep.subr.mxu0 0.0
  %696 = vmatpush1.msra.mxu0 0.0
  %697 = vmatprep.subr.mxu0 0.0
  %698 = vmatpush1.msra.mxu0 0.0
  %699 = vmatprep.subr.mxu0 0.0
  %700 = vmatpush1.msra.mxu0 0.0
  %701 = vmatprep.subr.mxu0 0.0
  %702 = vmatpush1.msra.mxu0 0.0
  %703 = vmatprep.mubr.f32.mxu0 0.0
  %704 = vmatmul.mubr.f32.gmra.mrb[0].mxu0 %v625
  %v705 = vpop.f32.mrb[0].mxu0
  %v706 = vadd.f32 0.0, %v705
  %v707 = vpop.f32.mrb[0].mxu0
  %v708 = vadd.f32 0.0, %v707
  %709 = vdwg.mxu0
  %710 = vmatprep.subr.mxu0 %v637
  %711 = vmatpush1.msra.mxu0 %v634
  %712 = vmatprep.subr.mxu0 0.0
  %713 = vmatpush1.msra.mxu0 0.0
  %714 = vmatprep.subr.mxu0 0.0
  %715 = vmatpush1.msra.mxu0 0.0
  %716 = vmatprep.subr.mxu0 0.0
  %717 = vmatpush1.msra.mxu0 0.0
  %718 = vmatprep.subr.mxu0 0.0
  %719 = vmatpush1.msra.mxu0 0.0
  %720 = vmatprep.subr.mxu0 0.0
  %721 = vmatpush1.msra.mxu0 0.0
  %722 = vmatprep.subr.mxu0 0.0
  %723 = vmatpush1.msra.mxu0 0.0
  %724 = vmatprep.subr.mxu0 0.0
  %725 = vmatpush1.msra.mxu0 0.0
  %726 = vmatprep.subr.mxu0 0.0
  %727 = vmatpush1.msra.mxu0 0.0
  %728 = vmatprep.subr.mxu0 0.0
  %729 = vmatpush1.msra.mxu0 0.0
  %730 = vmatprep.subr.mxu0 0.0
  %731 = vmatpush1.msra.mxu0 0.0
  %732 = vmatprep.subr.mxu0 0.0
  %733 = vmatpush1.msra.mxu0 0.0
  %734 = vmatprep.subr.mxu0 0.0
  %735 = vmatpush1.msra.mxu0 0.0
  %736 = vmatprep.subr.mxu0 0.0
  %737 = vmatpush1.msra.mxu0 0.0
  %738 = vmatprep.subr.mxu0 0.0
  %739 = vmatpush1.msra.mxu0 0.0
  %740 = vmatprep.subr.mxu0 0.0
  %741 = vmatpush1.msra.mxu0 0.0
  %742 = vmatprep.subr.mxu0 0.0
  %743 = vmatpush1.msra.mxu0 0.0
  %744 = vmatprep.subr.mxu0 0.0
  %745 = vmatpush1.msra.mxu0 0.0
  %746 = vmatprep.subr.mxu0 0.0
  %747 = vmatpush1.msra.mxu0 0.0
  %748 = vmatprep.subr.mxu0 0.0
  %749 = vmatpush1.msra.mxu0 0.0
  %750 = vmatprep.subr.mxu0 0.0
  %751 = vmatpush1.msra.mxu0 0.0
  %752 = vmatprep.subr.mxu0 0.0
  %753 = vmatpush1.msra.mxu0 0.0
  %754 = vmatprep.subr.mxu0 0.0
  %755 = vmatpush1.msra.mxu0 0.0
  %756 = vmatprep.subr.mxu0 0.0
  %757 = vmatpush1.msra.mxu0 0.0
  %758 = vmatprep.subr.mxu0 0.0
  %759 = vmatpush1.msra.mxu0 0.0
  %760 = vmatprep.subr.mxu0 0.0
  %761 = vmatpush1.msra.mxu0 0.0
  %762 = vmatprep.subr.mxu0 0.0
  %763 = vmatpush1.msra.mxu0 0.0
  %764 = vmatprep.subr.mxu0 0.0
  %765 = vmatpush1.msra.mxu0 0.0
  %766 = vmatprep.subr.mxu0 0.0
  %767 = vmatpush1.msra.mxu0 0.0
  %768 = vmatprep.subr.mxu0 0.0
  %769 = vmatpush1.msra.mxu0 0.0
  %770 = vmatprep.subr.mxu0 0.0
  %771 = vmatpush1.msra.mxu0 0.0
  %772 = vmatprep.subr.mxu0 0.0
  %773 = vmatpush1.msra.mxu0 0.0
  %774 = vmatprep.mubr.f32.mxu0 0.0
  %775 = vmatmul.mubr.f32.gmra.mrb[0].mxu0 %v625
  %v776 = vpop.f32.mrb[0].mxu0
  %v777 = vadd.f32 0.0, %v776
  %v778 = vpop.f32.mrb[0].mxu0
  %v779 = vadd.f32 0.0, %v778
  %780 = vdwg.mxu0
  %v781 = vadd.f32 %v597, %v706
  %v782 = vadd.f32 %v598, %v708
  %v783 = vadd.f32 %v599, %v777
  %v784 = vadd.f32 %v600, %v779
  %s785 = scalar_lea.vmem %s1, 32
  %v786 = vld [vmem:[%s785] sm:$0xff]
  %v788 = vsel %vm93, %v786, 0
  %v790 = vsel %vm97, %v17, 0
  %v792 = vsel %vm97, %v34, 0
  %v794 = vsel %vm97, %v18, 0
  %v796 = vsel %vm97, %v35, 0
  %798 = vmatprep.subr.mxu0 %v792
  %799 = vmatpush1.msra.mxu0 %v790
  %800 = vmatprep.subr.mxu0 0.0
  %801 = vmatpush1.msra.mxu0 0.0
  %802 = vmatprep.subr.mxu0 0.0
  %803 = vmatpush1.msra.mxu0 0.0
  %804 = vmatprep.subr.mxu0 0.0
  %805 = vmatpush1.msra.mxu0 0.0
  %806 = vmatprep.subr.mxu0 0.0
  %807 = vmatpush1.msra.mxu0 0.0
  %808 = vmatprep.subr.mxu0 0.0
  %809 = vmatpush1.msra.mxu0 0.0
  %810 = vmatprep.subr.mxu0 0.0
  %811 = vmatpush1.msra.mxu0 0.0
  %812 = vmatprep.subr.mxu0 0.0
  %813 = vmatpush1.msra.mxu0 0.0
  %814 = vmatprep.subr.mxu0 0.0
  %815 = vmatpush1.msra.mxu0 0.0
  %816 = vmatprep.subr.mxu0 0.0
  %817 = vmatpush1.msra.mxu0 0.0
  %818 = vmatprep.subr.mxu0 0.0
  %819 = vmatpush1.msra.mxu0 0.0
  %820 = vmatprep.subr.mxu0 0.0
  %821 = vmatpush1.msra.mxu0 0.0
  %822 = vmatprep.subr.mxu0 0.0
  %823 = vmatpush1.msra.mxu0 0.0
  %824 = vmatprep.subr.mxu0 0.0
  %825 = vmatpush1.msra.mxu0 0.0
  %826 = vmatprep.subr.mxu0 0.0
  %827 = vmatpush1.msra.mxu0 0.0
  %828 = vmatprep.subr.mxu0 0.0
  %829 = vmatpush1.msra.mxu0 0.0
  %830 = vmatprep.subr.mxu0 0.0
  %831 = vmatpush1.msra.mxu0 0.0
  %832 = vmatprep.subr.mxu0 0.0
  %833 = vmatpush1.msra.mxu0 0.0
  %834 = vmatprep.subr.mxu0 0.0
  %835 = vmatpush1.msra.mxu0 0.0
  %836 = vmatprep.subr.mxu0 0.0
  %837 = vmatpush1.msra.mxu0 0.0
  %838 = vmatprep.subr.mxu0 0.0
  %839 = vmatpush1.msra.mxu0 0.0
  %840 = vmatprep.subr.mxu0 0.0
  %841 = vmatpush1.msra.mxu0 0.0
  %842 = vmatprep.subr.mxu0 0.0
  %843 = vmatpush1.msra.mxu0 0.0
  %844 = vmatprep.subr.mxu0 0.0
  %845 = vmatpush1.msra.mxu0 0.0
  %846 = vmatprep.subr.mxu0 0.0
  %847 = vmatpush1.msra.mxu0 0.0
  %848 = vmatprep.subr.mxu0 0.0
  %849 = vmatpush1.msra.mxu0 0.0
  %850 = vmatprep.subr.mxu0 0.0
  %851 = vmatpush1.msra.mxu0 0.0
  %852 = vmatprep.subr.mxu0 0.0
  %853 = vmatpush1.msra.mxu0 0.0
  %854 = vmatprep.subr.mxu0 0.0
  %855 = vmatpush1.msra.mxu0 0.0
  %856 = vmatprep.subr.mxu0 0.0
  %857 = vmatpush1.msra.mxu0 0.0
  %858 = vmatprep.subr.mxu0 0.0
  %859 = vmatpush1.msra.mxu0 0.0
  %860 = vmatprep.subr.mxu0 0.0
  %861 = vmatpush1.msra.mxu0 0.0
  %862 = vmatprep.mubr.f32.mxu0 0.0
  %863 = vmatmul.mubr.f32.gmra.mrb[0].mxu0 %v788
  %v864 = vpop.f32.mrb[0].mxu0
  %v865 = vadd.f32 0.0, %v864
  %v866 = vpop.f32.mrb[0].mxu0
  %v867 = vadd.f32 0.0, %v866
  %868 = vdwg.mxu0
  %869 = vmatprep.subr.mxu0 %v796
  %870 = vmatpush1.msra.mxu0 %v794
  %871 = vmatprep.subr.mxu0 0.0
  %872 = vmatpush1.msra.mxu0 0.0
  %873 = vmatprep.subr.mxu0 0.0
  %874 = vmatpush1.msra.mxu0 0.0
  %875 = vmatprep.subr.mxu0 0.0
  %876 = vmatpush1.msra.mxu0 0.0
  %877 = vmatprep.subr.mxu0 0.0
  %878 = vmatpush1.msra.mxu0 0.0
  %879 = vmatprep.subr.mxu0 0.0
  %880 = vmatpush1.msra.mxu0 0.0
  %881 = vmatprep.subr.mxu0 0.0
  %882 = vmatpush1.msra.mxu0 0.0
  %883 = vmatprep.subr.mxu0 0.0
  %884 = vmatpush1.msra.mxu0 0.0
  %885 = vmatprep.subr.mxu0 0.0
  %886 = vmatpush1.msra.mxu0 0.0
  %887 = vmatprep.subr.mxu0 0.0
  %888 = vmatpush1.msra.mxu0 0.0
  %889 = vmatprep.subr.mxu0 0.0
  %890 = vmatpush1.msra.mxu0 0.0
  %891 = vmatprep.subr.mxu0 0.0
  %892 = vmatpush1.msra.mxu0 0.0
  %893 = vmatprep.subr.mxu0 0.0
  %894 = vmatpush1.msra.mxu0 0.0
  %895 = vmatprep.subr.mxu0 0.0
  %896 = vmatpush1.msra.mxu0 0.0
  %897 = vmatprep.subr.mxu0 0.0
  %898 = vmatpush1.msra.mxu0 0.0
  %899 = vmatprep.subr.mxu0 0.0
  %900 = vmatpush1.msra.mxu0 0.0
  %901 = vmatprep.subr.mxu0 0.0
  %902 = vmatpush1.msra.mxu0 0.0
  %903 = vmatprep.subr.mxu0 0.0
  %904 = vmatpush1.msra.mxu0 0.0
  %905 = vmatprep.subr.mxu0 0.0
  %906 = vmatpush1.msra.mxu0 0.0
  %907 = vmatprep.subr.mxu0 0.0
  %908 = vmatpush1.msra.mxu0 0.0
  %909 = vmatprep.subr.mxu0 0.0
  %910 = vmatpush1.msra.mxu0 0.0
  %911 = vmatprep.subr.mxu0 0.0
  %912 = vmatpush1.msra.mxu0 0.0
  %913 = vmatprep.subr.mxu0 0.0
  %914 = vmatpush1.msra.mxu0 0.0
  %915 = vmatprep.subr.mxu0 0.0
  %916 = vmatpush1.msra.mxu0 0.0
  %917 = vmatprep.subr.mxu0 0.0
  %918 = vmatpush1.msra.mxu0 0.0
  %919 = vmatprep.subr.mxu0 0.0
  %920 = vmatpush1.msra.mxu0 0.0
  %921 = vmatprep.subr.mxu0 0.0
  %922 = vmatpush1.msra.mxu0 0.0
  %923 = vmatprep.subr.mxu0 0.0
  %924 = vmatpush1.msra.mxu0 0.0
  %925 = vmatprep.subr.mxu0 0.0
  %926 = vmatpush1.msra.mxu0 0.0
  %927 = vmatprep.subr.mxu0 0.0
  %928 = vmatpush1.msra.mxu0 0.0
  %929 = vmatprep.subr.mxu0 0.0
  %930 = vmatpush1.msra.mxu0 0.0
  %931 = vmatprep.subr.mxu0 0.0
  %932 = vmatpush1.msra.mxu0 0.0
  %933 = vmatprep.mubr.f32.mxu0 0.0
  %934 = vmatmul.mubr.f32.gmra.mrb[0].mxu0 %v788
  %v935 = vpop.f32.mrb[0].mxu0
  %v936 = vadd.f32 0.0, %v935
  %v937 = vpop.f32.mrb[0].mxu0
  %v938 = vadd.f32 0.0, %v937
  %939 = vdwg.mxu0
  %v940 = vadd.f32 %v781, %v865
  %v941 = vadd.f32 %v782, %v867
  %v942 = vadd.f32 %v783, %v936
  %v943 = vadd.f32 %v784, %v938
  %944 = vrot.lane.b32.xlu0 %v17, 127
  %v945 = vpop.permute.xlu0 %944
  %946 = vrot.lane.b32.xlu0 %v34, 127
  %v947 = vpop.permute.xlu0 %946
  %948 = vrot.lane.b32.xlu0 %v18, 127
  %v949 = vpop.permute.xlu0 %948
  %950 = vrot.lane.b32.xlu0 %v35, 127
  %v951 = vpop.permute.xlu0 %950
  %vm952 = vcmask 1039360
  %v953 = vsel %vm952, %v945, %v947
  %v954 = vsel %vm952, %v947, %v949
  %v955 = vsel %vm952, %v949, %v951
  %v960 = vsel %vm952, %v951, 0.0
  %v961 = vsel %vm426, %v953, 0.0
  %v962 = vsel %vm427, %v954, 0.0
  %v963 = vsel %vm428, %v955, 0.0
  %v964 = vsel %vm429, %v960, 0.0
  %s965 = scalar_lea.vmem %s1, 40
  %v966 = vld [vmem:[%s965] sm:$0xff]
  %v968 = vsel %vm93, %v966, 0
  %v971 = vsel %vm97, %v961, 0
  %v974 = vsel %vm97, %v962, 0
  %v977 = vsel %vm97, %v963, 0
  %v980 = vsel %vm97, %v964, 0
  %982 = vmatprep.subr.mxu0 %v974
  %983 = vmatpush1.msra.mxu0 %v971
  %984 = vmatprep.subr.mxu0 0.0
  %985 = vmatpush1.msra.mxu0 0.0
  %986 = vmatprep.subr.mxu0 0.0
  %987 = vmatpush1.msra.mxu0 0.0
  %988 = vmatprep.subr.mxu0 0.0
  %989 = vmatpush1.msra.mxu0 0.0
  %990 = vmatprep.subr.mxu0 0.0
  %991 = vmatpush1.msra.mxu0 0.0
  %992 = vmatprep.subr.mxu0 0.0
  %993 = vmatpush1.msra.mxu0 0.0
  %994 = vmatprep.subr.mxu0 0.0
  %995 = vmatpush1.msra.mxu0 0.0
  %996 = vmatprep.subr.mxu0 0.0
  %997 = vmatpush1.msra.mxu0 0.0
  %998 = vmatprep.subr.mxu0 0.0
  %999 = vmatpush1.msra.mxu0 0.0
  %1000 = vmatprep.subr.mxu0 0.0
  %1001 = vmatpush1.msra.mxu0 0.0
  %1002 = vmatprep.subr.mxu0 0.0
  %1003 = vmatpush1.msra.mxu0 0.0
  %1004 = vmatprep.subr.mxu0 0.0
  %1005 = vmatpush1.msra.mxu0 0.0
  %1006 = vmatprep.subr.mxu0 0.0
  %1007 = vmatpush1.msra.mxu0 0.0
  %1008 = vmatprep.subr.mxu0 0.0
  %1009 = vmatpush1.msra.mxu0 0.0
  %1010 = vmatprep.subr.mxu0 0.0
  %1011 = vmatpush1.msra.mxu0 0.0
  %1012 = vmatprep.subr.mxu0 0.0
  %1013 = vmatpush1.msra.mxu0 0.0
  %1014 = vmatprep.subr.mxu0 0.0
  %1015 = vmatpush1.msra.mxu0 0.0
  %1016 = vmatprep.subr.mxu0 0.0
  %1017 = vmatpush1.msra.mxu0 0.0
  %1018 = vmatprep.subr.mxu0 0.0
  %1019 = vmatpush1.msra.mxu0 0.0
  %1020 = vmatprep.subr.mxu0 0.0
  %1021 = vmatpush1.msra.mxu0 0.0
  %1022 = vmatprep.subr.mxu0 0.0
  %1023 = vmatpush1.msra.mxu0 0.0
  %1024 = vmatprep.subr.mxu0 0.0
  %1025 = vmatpush1.msra.mxu0 0.0
  %1026 = vmatprep.subr.mxu0 0.0
  %1027 = vmatpush1.msra.mxu0 0.0
  %1028 = vmatprep.subr.mxu0 0.0
  %1029 = vmatpush1.msra.mxu0 0.0
  %1030 = vmatprep.subr.mxu0 0.0
  %1031 = vmatpush1.msra.mxu0 0.0
  %1032 = vmatprep.subr.mxu0 0.0
  %1033 = vmatpush1.msra.mxu0 0.0
  %1034 = vmatprep.subr.mxu0 0.0
  %1035 = vmatpush1.msra.mxu0 0.0
  %1036 = vmatprep.subr.mxu0 0.0
  %1037 = vmatpush1.msra.mxu0 0.0
  %1038 = vmatprep.subr.mxu0 0.0
  %1039 = vmatpush1.msra.mxu0 0.0
  %1040 = vmatprep.subr.mxu0 0.0
  %1041 = vmatpush1.msra.mxu0 0.0
  %1042 = vmatprep.subr.mxu0 0.0
  %1043 = vmatpush1.msra.mxu0 0.0
  %1044 = vmatprep.subr.mxu0 0.0
  %1045 = vmatpush1.msra.mxu0 0.0
  %1046 = vmatprep.mubr.f32.mxu0 0.0
  %1047 = vmatmul.mubr.f32.gmra.mrb[0].mxu0 %v968
  %v1048 = vpop.f32.mrb[0].mxu0
  %v1049 = vadd.f32 0.0, %v1048
  %v1050 = vpop.f32.mrb[0].mxu0
  %v1051 = vadd.f32 0.0, %v1050
  %1052 = vdwg.mxu0
  %1053 = vmatprep.subr.mxu0 %v980
  %1054 = vmatpush1.msra.mxu0 %v977
  %1055 = vmatprep.subr.mxu0 0.0
  %1056 = vmatpush1.msra.mxu0 0.0
  %1057 = vmatprep.subr.mxu0 0.0
  %1058 = vmatpush1.msra.mxu0 0.0
  %1059 = vmatprep.subr.mxu0 0.0
  %1060 = vmatpush1.msra.mxu0 0.0
  %1061 = vmatprep.subr.mxu0 0.0
  %1062 = vmatpush1.msra.mxu0 0.0
  %1063 = vmatprep.subr.mxu0 0.0
  %1064 = vmatpush1.msra.mxu0 0.0
  %1065 = vmatprep.subr.mxu0 0.0
  %1066 = vmatpush1.msra.mxu0 0.0
  %1067 = vmatprep.subr.mxu0 0.0
  %1068 = vmatpush1.msra.mxu0 0.0
  %1069 = vmatprep.subr.mxu0 0.0
  %1070 = vmatpush1.msra.mxu0 0.0
  %1071 = vmatprep.subr.mxu0 0.0
  %1072 = vmatpush1.msra.mxu0 0.0
  %1073 = vmatprep.subr.mxu0 0.0
  %1074 = vmatpush1.msra.mxu0 0.0
  %1075 = vmatprep.subr.mxu0 0.0
  %1076 = vmatpush1.msra.mxu0 0.0
  %1077 = vmatprep.subr.mxu0 0.0
  %1078 = vmatpush1.msra.mxu0 0.0
  %1079 = vmatprep.subr.mxu0 0.0
  %1080 = vmatpush1.msra.mxu0 0.0
  %1081 = vmatprep.subr.mxu0 0.0
  %1082 = vmatpush1.msra.mxu0 0.0
  %1083 = vmatprep.subr.mxu0 0.0
  %1084 = vmatpush1.msra.mxu0 0.0
  %1085 = vmatprep.subr.mxu0 0.0
  %1086 = vmatpush1.msra.mxu0 0.0
  %1087 = vmatprep.subr.mxu0 0.0
  %1088 = vmatpush1.msra.mxu0 0.0
  %1089 = vmatprep.subr.mxu0 0.0
  %1090 = vmatpush1.msra.mxu0 0.0
  %1091 = vmatprep.subr.mxu0 0.0
  %1092 = vmatpush1.msra.mxu0 0.0
  %1093 = vmatprep.subr.mxu0 0.0
  %1094 = vmatpush1.msra.mxu0 0.0
  %1095 = vmatprep.subr.mxu0 0.0
  %1096 = vmatpush1.msra.mxu0 0.0
  %1097 = vmatprep.subr.mxu0 0.0
  %1098 = vmatpush1.msra.mxu0 0.0
  %1099 = vmatprep.subr.mxu0 0.0
  %1100 = vmatpush1.msra.mxu0 0.0
  %1101 = vmatprep.subr.mxu0 0.0
  %1102 = vmatpush1.msra.mxu0 0.0
  %1103 = vmatprep.subr.mxu0 0.0
  %1104 = vmatpush1.msra.mxu0 0.0
  %1105 = vmatprep.subr.mxu0 0.0
  %1106 = vmatpush1.msra.mxu0 0.0
  %1107 = vmatprep.subr.mxu0 0.0
  %1108 = vmatpush1.msra.mxu0 0.0
  %1109 = vmatprep.subr.mxu0 0.0
  %1110 = vmatpush1.msra.mxu0 0.0
  %1111 = vmatprep.subr.mxu0 0.0
  %1112 = vmatpush1.msra.mxu0 0.0
  %1113 = vmatprep.subr.mxu0 0.0
  %1114 = vmatpush1.msra.mxu0 0.0
  %1115 = vmatprep.subr.mxu0 0.0
  %1116 = vmatpush1.msra.mxu0 0.0
  %1117 = vmatprep.mubr.f32.mxu0 0.0
  %1118 = vmatmul.mubr.f32.gmra.mrb[0].mxu0 %v968
  %v1119 = vpop.f32.mrb[0].mxu0
  %v1120 = vadd.f32 0.0, %v1119
  %v1121 = vpop.f32.mrb[0].mxu0
  %v1122 = vadd.f32 0.0, %v1121
  %1123 = vdwg.mxu0
  %v1124 = vadd.f32 %v940, %v1049
  %v1125 = vadd.f32 %v941, %v1051
  %v1126 = vadd.f32 %v942, %v1120
  %v1127 = vadd.f32 %v943, %v1122
  %1128 = vrot.lane.b32.xlu0 %v17, 113
  %v1129 = vpop.permute.xlu0 %1128
  %1130 = vrot.lane.b32.xlu0 %v34, 113
  %v1131 = vpop.permute.xlu0 %1130
  %1132 = vrot.lane.b32.xlu0 %v18, 113
  %v1133 = vpop.permute.xlu0 %1132
  %1134 = vrot.lane.b32.xlu0 %v35, 113
  %v1135 = vpop.permute.xlu0 %1134
  %vm1136 = vcmask 924672
  %v1137 = vsel %vm1136, %v1129, %v1131
  %v1138 = vsel %vm1136, %v1131, %v1133
  %v1139 = vsel %vm1136, %v1133, %v1135
  %v1144 = vsel %vm1136, %v1135, 0.0
  %vm1145 = vcmp.lt.s32.totalorder %v24, 240
  %vm1146 = vcmp.lt.s32.totalorder %v25, 240
  %vm1147 = vcmp.lt.s32.totalorder %v26, 240
  %vm1148 = vcmp.lt.s32.totalorder %v27, 240
  %vm1149 = vmand %vm1145, %vm57
  %vm1150 = vmand %vm1146, %vm58
  %vm1151 = vmand %vm1147, %vm59
  %vm1152 = vmand %vm1148, %vm60
  %v1153 = vsel %vm1149, %v1137, 0.0
  %v1154 = vsel %vm1150, %v1138, 0.0
  %v1155 = vsel %vm1151, %v1139, 0.0
  %v1156 = vsel %vm1152, %v1144, 0.0
  %s1157 = scalar_lea.vmem %s1, 48
  %v1158 = vld [vmem:[%s1157] sm:$0xff]
  %v1160 = vsel %vm93, %v1158, 0
  %v1163 = vsel %vm97, %v1153, 0
  %v1166 = vsel %vm97, %v1154, 0
  %v1169 = vsel %vm97, %v1155, 0
  %v1172 = vsel %vm97, %v1156, 0
  %1174 = vmatprep.subr.mxu0 %v1166
  %1175 = vmatpush1.msra.mxu0 %v1163
  %1176 = vmatprep.subr.mxu0 0.0
  %1177 = vmatpush1.msra.mxu0 0.0
  %1178 = vmatprep.subr.mxu0 0.0
  %1179 = vmatpush1.msra.mxu0 0.0
  %1180 = vmatprep.subr.mxu0 0.0
  %1181 = vmatpush1.msra.mxu0 0.0
  %1182 = vmatprep.subr.mxu0 0.0
  %1183 = vmatpush1.msra.mxu0 0.0
  %1184 = vmatprep.subr.mxu0 0.0
  %1185 = vmatpush1.msra.mxu0 0.0
  %1186 = vmatprep.subr.mxu0 0.0
  %1187 = vmatpush1.msra.mxu0 0.0
  %1188 = vmatprep.subr.mxu0 0.0
  %1189 = vmatpush1.msra.mxu0 0.0
  %1190 = vmatprep.subr.mxu0 0.0
  %1191 = vmatpush1.msra.mxu0 0.0
  %1192 = vmatprep.subr.mxu0 0.0
  %1193 = vmatpush1.msra.mxu0 0.0
  %1194 = vmatprep.subr.mxu0 0.0
  %1195 = vmatpush1.msra.mxu0 0.0
  %1196 = vmatprep.subr.mxu0 0.0
  %1197 = vmatpush1.msra.mxu0 0.0
  %1198 = vmatprep.subr.mxu0 0.0
  %1199 = vmatpush1.msra.mxu0 0.0
  %1200 = vmatprep.subr.mxu0 0.0
  %1201 = vmatpush1.msra.mxu0 0.0
  %1202 = vmatprep.subr.mxu0 0.0
  %1203 = vmatpush1.msra.mxu0 0.0
  %1204 = vmatprep.subr.mxu0 0.0
  %1205 = vmatpush1.msra.mxu0 0.0
  %1206 = vmatprep.subr.mxu0 0.0
  %1207 = vmatpush1.msra.mxu0 0.0
  %1208 = vmatprep.subr.mxu0 0.0
  %1209 = vmatpush1.msra.mxu0 0.0
  %1210 = vmatprep.subr.mxu0 0.0
  %1211 = vmatpush1.msra.mxu0 0.0
  %1212 = vmatprep.subr.mxu0 0.0
  %1213 = vmatpush1.msra.mxu0 0.0
  %1214 = vmatprep.subr.mxu0 0.0
  %1215 = vmatpush1.msra.mxu0 0.0
  %1216 = vmatprep.subr.mxu0 0.0
  %1217 = vmatpush1.msra.mxu0 0.0
  %1218 = vmatprep.subr.mxu0 0.0
  %1219 = vmatpush1.msra.mxu0 0.0
  %1220 = vmatprep.subr.mxu0 0.0
  %1221 = vmatpush1.msra.mxu0 0.0
  %1222 = vmatprep.subr.mxu0 0.0
  %1223 = vmatpush1.msra.mxu0 0.0
  %1224 = vmatprep.subr.mxu0 0.0
  %1225 = vmatpush1.msra.mxu0 0.0
  %1226 = vmatprep.subr.mxu0 0.0
  %1227 = vmatpush1.msra.mxu0 0.0
  %1228 = vmatprep.subr.mxu0 0.0
  %1229 = vmatpush1.msra.mxu0 0.0
  %1230 = vmatprep.subr.mxu0 0.0
  %1231 = vmatpush1.msra.mxu0 0.0
  %1232 = vmatprep.subr.mxu0 0.0
  %1233 = vmatpush1.msra.mxu0 0.0
  %1234 = vmatprep.subr.mxu0 0.0
  %1235 = vmatpush1.msra.mxu0 0.0
  %1236 = vmatprep.subr.mxu0 0.0
  %1237 = vmatpush1.msra.mxu0 0.0
  %1238 = vmatprep.mubr.f32.mxu0 0.0
  %1239 = vmatmul.mubr.f32.gmra.mrb[0].mxu0 %v1160
  %v1240 = vpop.f32.mrb[0].mxu0
  %v1241 = vadd.f32 0.0, %v1240
  %v1242 = vpop.f32.mrb[0].mxu0
  %v1243 = vadd.f32 0.0, %v1242
  %1244 = vdwg.mxu0
  %1245 = vmatprep.subr.mxu0 %v1172
  %1246 = vmatpush1.msra.mxu0 %v1169
  %1247 = vmatprep.subr.mxu0 0.0
  %1248 = vmatpush1.msra.mxu0 0.0
  %1249 = vmatprep.subr.mxu0 0.0
  %1250 = vmatpush1.msra.mxu0 0.0
  %1251 = vmatprep.subr.mxu0 0.0
  %1252 = vmatpush1.msra.mxu0 0.0
  %1253 = vmatprep.subr.mxu0 0.0
  %1254 = vmatpush1.msra.mxu0 0.0
  %1255 = vmatprep.subr.mxu0 0.0
  %1256 = vmatpush1.msra.mxu0 0.0
  %1257 = vmatprep.subr.mxu0 0.0
  %1258 = vmatpush1.msra.mxu0 0.0
  %1259 = vmatprep.subr.mxu0 0.0
  %1260 = vmatpush1.msra.mxu0 0.0
  %1261 = vmatprep.subr.mxu0 0.0
  %1262 = vmatpush1.msra.mxu0 0.0
  %1263 = vmatprep.subr.mxu0 0.0
  %1264 = vmatpush1.msra.mxu0 0.0
  %1265 = vmatprep.subr.mxu0 0.0
  %1266 = vmatpush1.msra.mxu0 0.0
  %1267 = vmatprep.subr.mxu0 0.0
  %1268 = vmatpush1.msra.mxu0 0.0
  %1269 = vmatprep.subr.mxu0 0.0
  %1270 = vmatpush1.msra.mxu0 0.0
  %1271 = vmatprep.subr.mxu0 0.0
  %1272 = vmatpush1.msra.mxu0 0.0
  %1273 = vmatprep.subr.mxu0 0.0
  %1274 = vmatpush1.msra.mxu0 0.0
  %1275 = vmatprep.subr.mxu0 0.0
  %1276 = vmatpush1.msra.mxu0 0.0
  %1277 = vmatprep.subr.mxu0 0.0
  %1278 = vmatpush1.msra.mxu0 0.0
  %1279 = vmatprep.subr.mxu0 0.0
  %1280 = vmatpush1.msra.mxu0 0.0
  %1281 = vmatprep.subr.mxu0 0.0
  %1282 = vmatpush1.msra.mxu0 0.0
  %1283 = vmatprep.subr.mxu0 0.0
  %1284 = vmatpush1.msra.mxu0 0.0
  %1285 = vmatprep.subr.mxu0 0.0
  %1286 = vmatpush1.msra.mxu0 0.0
  %1287 = vmatprep.subr.mxu0 0.0
  %1288 = vmatpush1.msra.mxu0 0.0
  %1289 = vmatprep.subr.mxu0 0.0
  %1290 = vmatpush1.msra.mxu0 0.0
  %1291 = vmatprep.subr.mxu0 0.0
  %1292 = vmatpush1.msra.mxu0 0.0
  %1293 = vmatprep.subr.mxu0 0.0
  %1294 = vmatpush1.msra.mxu0 0.0
  %1295 = vmatprep.subr.mxu0 0.0
  %1296 = vmatpush1.msra.mxu0 0.0
  %1297 = vmatprep.subr.mxu0 0.0
  %1298 = vmatpush1.msra.mxu0 0.0
  %1299 = vmatprep.subr.mxu0 0.0
  %1300 = vmatpush1.msra.mxu0 0.0
  %1301 = vmatprep.subr.mxu0 0.0
  %1302 = vmatpush1.msra.mxu0 0.0
  %1303 = vmatprep.subr.mxu0 0.0
  %1304 = vmatpush1.msra.mxu0 0.0
  %1305 = vmatprep.subr.mxu0 0.0
  %1306 = vmatpush1.msra.mxu0 0.0
  %1307 = vmatprep.subr.mxu0 0.0
  %1308 = vmatpush1.msra.mxu0 0.0
  %1309 = vmatprep.mubr.f32.mxu0 0.0
  %1310 = vmatmul.mubr.f32.gmra.mrb[0].mxu0 %v1160
  %v1311 = vpop.f32.mrb[0].mxu0
  %v1312 = vadd.f32 0.0, %v1311
  %v1313 = vpop.f32.mrb[0].mxu0
  %v1314 = vadd.f32 0.0, %v1313
  %1315 = vdwg.mxu0
  %v1316 = vadd.f32 %v1124, %v1241
  %v1317 = vadd.f32 %v1125, %v1243
  %v1318 = vadd.f32 %v1126, %v1312
  %v1319 = vadd.f32 %v1127, %v1314
  %1320 = vrot.lane.b32.xlu0 %v17, 112
  %v1321 = vpop.permute.xlu0 %1320
  %1322 = vrot.lane.b32.xlu0 %v34, 112
  %v1323 = vpop.permute.xlu0 %1322
  %1324 = vrot.lane.b32.xlu0 %v18, 112
  %v1325 = vpop.permute.xlu0 %1324
  %1326 = vrot.lane.b32.xlu0 %v35, 112
  %v1327 = vpop.permute.xlu0 %1326
  %vm1328 = vcmask 916480
  %v1329 = vsel %vm1328, %v1321, %v1323
  %v1330 = vsel %vm1328, %v1323, %v1325
  %v1331 = vsel %vm1328, %v1325, %v1327
  %v1336 = vsel %vm1328, %v1327, 0.0
  %v1337 = vsel %vm1145, %v1329, 0.0
  %v1338 = vsel %vm1146, %v1330, 0.0
  %v1339 = vsel %vm1147, %v1331, 0.0
  %v1340 = vsel %vm1148, %v1336, 0.0
  %s1341 = scalar_lea.vmem %s1, 56
  %v1342 = vld [vmem:[%s1341] sm:$0xff]
  %v1344 = vsel %vm93, %v1342, 0
  %v1347 = vsel %vm97, %v1337, 0
  %v1350 = vsel %vm97, %v1338, 0
  %v1353 = vsel %vm97, %v1339, 0
  %v1356 = vsel %vm97, %v1340, 0
  %1358 = vmatprep.subr.mxu0 %v1350
  %1359 = vmatpush1.msra.mxu0 %v1347
  %1360 = vmatprep.subr.mxu0 0.0
  %1361 = vmatpush1.msra.mxu0 0.0
  %1362 = vmatprep.subr.mxu0 0.0
  %1363 = vmatpush1.msra.mxu0 0.0
  %1364 = vmatprep.subr.mxu0 0.0
  %1365 = vmatpush1.msra.mxu0 0.0
  %1366 = vmatprep.subr.mxu0 0.0
  %1367 = vmatpush1.msra.mxu0 0.0
  %1368 = vmatprep.subr.mxu0 0.0
  %1369 = vmatpush1.msra.mxu0 0.0
  %1370 = vmatprep.subr.mxu0 0.0
  %1371 = vmatpush1.msra.mxu0 0.0
  %1372 = vmatprep.subr.mxu0 0.0
  %1373 = vmatpush1.msra.mxu0 0.0
  %1374 = vmatprep.subr.mxu0 0.0
  %1375 = vmatpush1.msra.mxu0 0.0
  %1376 = vmatprep.subr.mxu0 0.0
  %1377 = vmatpush1.msra.mxu0 0.0
  %1378 = vmatprep.subr.mxu0 0.0
  %1379 = vmatpush1.msra.mxu0 0.0
  %1380 = vmatprep.subr.mxu0 0.0
  %1381 = vmatpush1.msra.mxu0 0.0
  %1382 = vmatprep.subr.mxu0 0.0
  %1383 = vmatpush1.msra.mxu0 0.0
  %1384 = vmatprep.subr.mxu0 0.0
  %1385 = vmatpush1.msra.mxu0 0.0
  %1386 = vmatprep.subr.mxu0 0.0
  %1387 = vmatpush1.msra.mxu0 0.0
  %1388 = vmatprep.subr.mxu0 0.0
  %1389 = vmatpush1.msra.mxu0 0.0
  %1390 = vmatprep.subr.mxu0 0.0
  %1391 = vmatpush1.msra.mxu0 0.0
  %1392 = vmatprep.subr.mxu0 0.0
  %1393 = vmatpush1.msra.mxu0 0.0
  %1394 = vmatprep.subr.mxu0 0.0
  %1395 = vmatpush1.msra.mxu0 0.0
  %1396 = vmatprep.subr.mxu0 0.0
  %1397 = vmatpush1.msra.mxu0 0.0
  %1398 = vmatprep.subr.mxu0 0.0
  %1399 = vmatpush1.msra.mxu0 0.0
  %1400 = vmatprep.subr.mxu0 0.0
  %1401 = vmatpush1.msra.mxu0 0.0
  %1402 = vmatprep.subr.mxu0 0.0
  %1403 = vmatpush1.msra.mxu0 0.0
  %1404 = vmatprep.subr.mxu0 0.0
  %1405 = vmatpush1.msra.mxu0 0.0
  %1406 = vmatprep.subr.mxu0 0.0
  %1407 = vmatpush1.msra.mxu0 0.0
  %1408 = vmatprep.subr.mxu0 0.0
  %1409 = vmatpush1.msra.mxu0 0.0
  %1410 = vmatprep.subr.mxu0 0.0
  %1411 = vmatpush1.msra.mxu0 0.0
  %1412 = vmatprep.subr.mxu0 0.0
  %1413 = vmatpush1.msra.mxu0 0.0
  %1414 = vmatprep.subr.mxu0 0.0
  %1415 = vmatpush1.msra.mxu0 0.0
  %1416 = vmatprep.subr.mxu0 0.0
  %1417 = vmatpush1.msra.mxu0 0.0
  %1418 = vmatprep.subr.mxu0 0.0
  %1419 = vmatpush1.msra.mxu0 0.0
  %1420 = vmatprep.subr.mxu0 0.0
  %1421 = vmatpush1.msra.mxu0 0.0
  %1422 = vmatprep.mubr.f32.mxu0 0.0
  %1423 = vmatmul.mubr.f32.gmra.mrb[0].mxu0 %v1344
  %v1424 = vpop.f32.mrb[0].mxu0
  %v1425 = vadd.f32 0.0, %v1424
  %v1426 = vpop.f32.mrb[0].mxu0
  %v1427 = vadd.f32 0.0, %v1426
  %1428 = vdwg.mxu0
  %1429 = vmatprep.subr.mxu0 %v1356
  %1430 = vmatpush1.msra.mxu0 %v1353
  %1431 = vmatprep.subr.mxu0 0.0
  %1432 = vmatpush1.msra.mxu0 0.0
  %1433 = vmatprep.subr.mxu0 0.0
  %1434 = vmatpush1.msra.mxu0 0.0
  %1435 = vmatprep.subr.mxu0 0.0
  %1436 = vmatpush1.msra.mxu0 0.0
  %1437 = vmatprep.subr.mxu0 0.0
  %1438 = vmatpush1.msra.mxu0 0.0
  %1439 = vmatprep.subr.mxu0 0.0
  %1440 = vmatpush1.msra.mxu0 0.0
  %1441 = vmatprep.subr.mxu0 0.0
  %1442 = vmatpush1.msra.mxu0 0.0
  %1443 = vmatprep.subr.mxu0 0.0
  %1444 = vmatpush1.msra.mxu0 0.0
  %1445 = vmatprep.subr.mxu0 0.0
  %1446 = vmatpush1.msra.mxu0 0.0
  %1447 = vmatprep.subr.mxu0 0.0
  %1448 = vmatpush1.msra.mxu0 0.0
  %1449 = vmatprep.subr.mxu0 0.0
  %1450 = vmatpush1.msra.mxu0 0.0
  %1451 = vmatprep.subr.mxu0 0.0
  %1452 = vmatpush1.msra.mxu0 0.0
  %1453 = vmatprep.subr.mxu0 0.0
  %1454 = vmatpush1.msra.mxu0 0.0
  %1455 = vmatprep.subr.mxu0 0.0
  %1456 = vmatpush1.msra.mxu0 0.0
  %1457 = vmatprep.subr.mxu0 0.0
  %1458 = vmatpush1.msra.mxu0 0.0
  %1459 = vmatprep.subr.mxu0 0.0
  %1460 = vmatpush1.msra.mxu0 0.0
  %1461 = vmatprep.subr.mxu0 0.0
  %1462 = vmatpush1.msra.mxu0 0.0
  %1463 = vmatprep.subr.mxu0 0.0
  %1464 = vmatpush1.msra.mxu0 0.0
  %1465 = vmatprep.subr.mxu0 0.0
  %1466 = vmatpush1.msra.mxu0 0.0
  %1467 = vmatprep.subr.mxu0 0.0
  %1468 = vmatpush1.msra.mxu0 0.0
  %1469 = vmatprep.subr.mxu0 0.0
  %1470 = vmatpush1.msra.mxu0 0.0
  %1471 = vmatprep.subr.mxu0 0.0
  %1472 = vmatpush1.msra.mxu0 0.0
  %1473 = vmatprep.subr.mxu0 0.0
  %1474 = vmatpush1.msra.mxu0 0.0
  %1475 = vmatprep.subr.mxu0 0.0
  %1476 = vmatpush1.msra.mxu0 0.0
  %1477 = vmatprep.subr.mxu0 0.0
  %1478 = vmatpush1.msra.mxu0 0.0
  %1479 = vmatprep.subr.mxu0 0.0
  %1480 = vmatpush1.msra.mxu0 0.0
  %1481 = vmatprep.subr.mxu0 0.0
  %1482 = vmatpush1.msra.mxu0 0.0
  %1483 = vmatprep.subr.mxu0 0.0
  %1484 = vmatpush1.msra.mxu0 0.0
  %1485 = vmatprep.subr.mxu0 0.0
  %1486 = vmatpush1.msra.mxu0 0.0
  %1487 = vmatprep.subr.mxu0 0.0
  %1488 = vmatpush1.msra.mxu0 0.0
  %1489 = vmatprep.subr.mxu0 0.0
  %1490 = vmatpush1.msra.mxu0 0.0
  %1491 = vmatprep.subr.mxu0 0.0
  %1492 = vmatpush1.msra.mxu0 0.0
  %1493 = vmatprep.mubr.f32.mxu0 0.0
  %1494 = vmatmul.mubr.f32.gmra.mrb[0].mxu0 %v1344
  %v1495 = vpop.f32.mrb[0].mxu0
  %v1496 = vadd.f32 0.0, %v1495
  %v1497 = vpop.f32.mrb[0].mxu0
  %v1498 = vadd.f32 0.0, %v1497
  %1499 = vdwg.mxu0
  %v1500 = vadd.f32 %v1316, %v1425
  %v1501 = vadd.f32 %v1317, %v1427
  %v1502 = vadd.f32 %v1318, %v1496
  %v1503 = vadd.f32 %v1319, %v1498
  %1504 = vrot.lane.b32.xlu0 %v17, 111
  %v1505 = vpop.permute.xlu0 %1504
  %1506 = vrot.lane.b32.xlu0 %v34, 111
  %v1507 = vpop.permute.xlu0 %1506
  %1508 = vrot.lane.b32.xlu0 %v18, 111
  %v1509 = vpop.permute.xlu0 %1508
  %1510 = vrot.lane.b32.xlu0 %v35, 111
  %v1511 = vpop.permute.xlu0 %1510
  %vm1512 = vcmask 908288
  %v1513 = vsel %vm1512, %v1505, %v1507
  %v1514 = vsel %vm1512, %v1507, %v1509
  %v1515 = vsel %vm1512, %v1509, %v1511
  %v1520 = vsel %vm1512, %v1511, 0.0
  %vm1521 = vmand %vm1145, %vm426
  %vm1522 = vmand %vm1146, %vm427
  %vm1523 = vmand %vm1147, %vm428
  %vm1524 = vmand %vm1148, %vm429
  %v1525 = vsel %vm1521, %v1513, 0.0
  %v1526 = vsel %vm1522, %v1514, 0.0
  %v1527 = vsel %vm1523, %v1515, 0.0
  %v1528 = vsel %vm1524, %v1520, 0.0
  %s1529 = scalar_lea.vmem %s1, 64
  %v1530 = vld [vmem:[%s1529] sm:$0xff]
  %v1532 = vsel %vm93, %v1530, 0
  %v1535 = vsel %vm97, %v1525, 0
  %v1538 = vsel %vm97, %v1526, 0
  %v1541 = vsel %vm97, %v1527, 0
  %v1544 = vsel %vm97, %v1528, 0
  %1546 = vmatprep.subr.mxu0 %v1538
  %1547 = vmatpush1.msra.mxu0 %v1535
  %1548 = vmatprep.subr.mxu0 0.0
  %1549 = vmatpush1.msra.mxu0 0.0
  %1550 = vmatprep.subr.mxu0 0.0
  %1551 = vmatpush1.msra.mxu0 0.0
  %1552 = vmatprep.subr.mxu0 0.0
  %1553 = vmatpush1.msra.mxu0 0.0
  %1554 = vmatprep.subr.mxu0 0.0
  %1555 = vmatpush1.msra.mxu0 0.0
  %1556 = vmatprep.subr.mxu0 0.0
  %1557 = vmatpush1.msra.mxu0 0.0
  %1558 = vmatprep.subr.mxu0 0.0
  %1559 = vmatpush1.msra.mxu0 0.0
  %1560 = vmatprep.subr.mxu0 0.0
  %1561 = vmatpush1.msra.mxu0 0.0
  %1562 = vmatprep.subr.mxu0 0.0
  %1563 = vmatpush1.msra.mxu0 0.0
  %1564 = vmatprep.subr.mxu0 0.0
  %1565 = vmatpush1.msra.mxu0 0.0
  %1566 = vmatprep.subr.mxu0 0.0
  %1567 = vmatpush1.msra.mxu0 0.0
  %1568 = vmatprep.subr.mxu0 0.0
  %1569 = vmatpush1.msra.mxu0 0.0
  %1570 = vmatprep.subr.mxu0 0.0
  %1571 = vmatpush1.msra.mxu0 0.0
  %1572 = vmatprep.subr.mxu0 0.0
  %1573 = vmatpush1.msra.mxu0 0.0
  %1574 = vmatprep.subr.mxu0 0.0
  %1575 = vmatpush1.msra.mxu0 0.0
  %1576 = vmatprep.subr.mxu0 0.0
  %1577 = vmatpush1.msra.mxu0 0.0
  %1578 = vmatprep.subr.mxu0 0.0
  %1579 = vmatpush1.msra.mxu0 0.0
  %1580 = vmatprep.subr.mxu0 0.0
  %1581 = vmatpush1.msra.mxu0 0.0
  %1582 = vmatprep.subr.mxu0 0.0
  %1583 = vmatpush1.msra.mxu0 0.0
  %1584 = vmatprep.subr.mxu0 0.0
  %1585 = vmatpush1.msra.mxu0 0.0
  %1586 = vmatprep.subr.mxu0 0.0
  %1587 = vmatpush1.msra.mxu0 0.0
  %1588 = vmatprep.subr.mxu0 0.0
  %1589 = vmatpush1.msra.mxu0 0.0
  %1590 = vmatprep.subr.mxu0 0.0
  %1591 = vmatpush1.msra.mxu0 0.0
  %1592 = vmatprep.subr.mxu0 0.0
  %1593 = vmatpush1.msra.mxu0 0.0
  %1594 = vmatprep.subr.mxu0 0.0
  %1595 = vmatpush1.msra.mxu0 0.0
  %1596 = vmatprep.subr.mxu0 0.0
  %1597 = vmatpush1.msra.mxu0 0.0
  %1598 = vmatprep.subr.mxu0 0.0
  %1599 = vmatpush1.msra.mxu0 0.0
  %1600 = vmatprep.subr.mxu0 0.0
  %1601 = vmatpush1.msra.mxu0 0.0
  %1602 = vmatprep.subr.mxu0 0.0
  %1603 = vmatpush1.msra.mxu0 0.0
  %1604 = vmatprep.subr.mxu0 0.0
  %1605 = vmatpush1.msra.mxu0 0.0
  %1606 = vmatprep.subr.mxu0 0.0
  %1607 = vmatpush1.msra.mxu0 0.0
  %1608 = vmatprep.subr.mxu0 0.0
  %1609 = vmatpush1.msra.mxu0 0.0
  %1610 = vmatprep.mubr.f32.mxu0 0.0
  %1611 = vmatmul.mubr.f32.gmra.mrb[0].mxu0 %v1532
  %v1612 = vpop.f32.mrb[0].mxu0
  %v1613 = vadd.f32 0.0, %v1612
  %v1614 = vpop.f32.mrb[0].mxu0
  %v1615 = vadd.f32 0.0, %v1614
  %1616 = vdwg.mxu0
  %1617 = vmatprep.subr.mxu0 %v1544
  %1618 = vmatpush1.msra.mxu0 %v1541
  %1619 = vmatprep.subr.mxu0 0.0
  %1620 = vmatpush1.msra.mxu0 0.0
  %1621 = vmatprep.subr.mxu0 0.0
  %1622 = vmatpush1.msra.mxu0 0.0
  %1623 = vmatprep.subr.mxu0 0.0
  %1624 = vmatpush1.msra.mxu0 0.0
  %1625 = vmatprep.subr.mxu0 0.0
  %1626 = vmatpush1.msra.mxu0 0.0
  %1627 = vmatprep.subr.mxu0 0.0
  %1628 = vmatpush1.msra.mxu0 0.0
  %1629 = vmatprep.subr.mxu0 0.0
  %1630 = vmatpush1.msra.mxu0 0.0
  %1631 = vmatprep.subr.mxu0 0.0
  %1632 = vmatpush1.msra.mxu0 0.0
  %1633 = vmatprep.subr.mxu0 0.0
  %1634 = vmatpush1.msra.mxu0 0.0
  %1635 = vmatprep.subr.mxu0 0.0
  %1636 = vmatpush1.msra.mxu0 0.0
  %1637 = vmatprep.subr.mxu0 0.0
  %1638 = vmatpush1.msra.mxu0 0.0
  %1639 = vmatprep.subr.mxu0 0.0
  %1640 = vmatpush1.msra.mxu0 0.0
  %1641 = vmatprep.subr.mxu0 0.0
  %1642 = vmatpush1.msra.mxu0 0.0
  %1643 = vmatprep.subr.mxu0 0.0
  %1644 = vmatpush1.msra.mxu0 0.0
  %1645 = vmatprep.subr.mxu0 0.0
  %1646 = vmatpush1.msra.mxu0 0.0
  %1647 = vmatprep.subr.mxu0 0.0
  %1648 = vmatpush1.msra.mxu0 0.0
  %1649 = vmatprep.subr.mxu0 0.0
  %1650 = vmatpush1.msra.mxu0 0.0
  %1651 = vmatprep.subr.mxu0 0.0
  %1652 = vmatpush1.msra.mxu0 0.0
  %1653 = vmatprep.subr.mxu0 0.0
  %1654 = vmatpush1.msra.mxu0 0.0
  %1655 = vmatprep.subr.mxu0 0.0
  %1656 = vmatpush1.msra.mxu0 0.0
  %1657 = vmatprep.subr.mxu0 0.0
  %1658 = vmatpush1.msra.mxu0 0.0
  %1659 = vmatprep.subr.mxu0 0.0
  %1660 = vmatpush1.msra.mxu0 0.0
  %1661 = vmatprep.subr.mxu0 0.0
  %1662 = vmatpush1.msra.mxu0 0.0
  %1663 = vmatprep.subr.mxu0 0.0
  %1664 = vmatpush1.msra.mxu0 0.0
  %1665 = vmatprep.subr.mxu0 0.0
  %1666 = vmatpush1.msra.mxu0 0.0
  %1667 = vmatprep.subr.mxu0 0.0
  %1668 = vmatpush1.msra.mxu0 0.0
  %1669 = vmatprep.subr.mxu0 0.0
  %1670 = vmatpush1.msra.mxu0 0.0
  %1671 = vmatprep.subr.mxu0 0.0
  %1672 = vmatpush1.msra.mxu0 0.0
  %1673 = vmatprep.subr.mxu0 0.0
  %1674 = vmatpush1.msra.mxu0 0.0
  %1675 = vmatprep.subr.mxu0 0.0
  %1676 = vmatpush1.msra.mxu0 0.0
  %1677 = vmatprep.subr.mxu0 0.0
  %1678 = vmatpush1.msra.mxu0 0.0
  %1679 = vmatprep.subr.mxu0 0.0
  %1680 = vmatpush1.msra.mxu0 0.0
  %1681 = vmatprep.mubr.f32.mxu0 0.0
  %1682 = vmatmul.mubr.f32.gmra.mrb[0].mxu0 %v1532
  %v1683 = vpop.f32.mrb[0].mxu0
  %v1684 = vadd.f32 0.0, %v1683
  %v1685 = vpop.f32.mrb[0].mxu0
  %v1686 = vadd.f32 0.0, %v1685
  %1687 = vdwg.mxu0
  %v1688 = vadd.f32 %v1500, %v1613
  %v1689 = vadd.f32 %v1501, %v1615
  %v1690 = vadd.f32 %v1502, %v1684
  %v1691 = vadd.f32 %v1503, %v1686
  %v1692 = vadd.f32 %v1688, %v1689
  %v1693 = vadd.f32 %v1692, %v1690
  %v1694 = vadd.f32 %v1693, %v1691
  %1695 = vadd.xlane.f32.xlu0 %v1694
  %v1696 = vpop.xlane.xlu0 %1695
  %v1697 = vmul.f32 %v1696, 0.001953125
  %v1698 = vmul.f32 %v1688, %v1688
  %v1699 = vmul.f32 %v1689, %v1689
  %v1700 = vmul.f32 %v1690, %v1690
  %v1701 = vmul.f32 %v1691, %v1691
  %v1702 = vadd.f32 %v1698, %v1699
  %v1703 = vadd.f32 %v1702, %v1700
  %v1704 = vadd.f32 %v1703, %v1701
  %1705 = vadd.xlane.f32.xlu0 %v1704
  %v1706 = vpop.xlane.xlu0 %1705
  %v1707 = vmul.f32 %v1706, 0.001953125
  %v1708 = vmul.f32 %v1697, %v1697
  %v1709 = vsub.f32 %v1707, %v1708
  %v1710 = vmax.f32 %v1709, 0.0
  %v1711 = vld [vmem:[%s2] sm:$0xff]
  %v1712 = vadd.f32 %v1710, 1e-05
  %v1713 = vrsqrt.pop %v1712
  %v1714 = vmul.f32 %v1711, %v1713
  %v1715 = vld [vmem:[%s3] sm:$0xff]
  %v1716 = vmul.f32 %v1697, %v1714
  %v1717 = vsub.f32 %v1715, %v1716
  %1719 = vset.pattern.permute.xlu0 0
  %1720 = vperm.xlu0 %1719, %v1714
  %v1721 = vpop.permute.xlu0 %1720
  %v1723 = vmul.f32 %v1688, %v1721
  %v1724 = vmul.f32 %v1689, %v1721
  %v1725 = vmul.f32 %v1690, %v1721
  %v1726 = vmul.f32 %v1691, %v1721
  %1728 = vset.pattern.permute.xlu0 0
  %1729 = vperm.xlu0 %1728, %v1717
  %v1730 = vpop.permute.xlu0 %1729
  %v1732 = vadd.f32 %v1723, %v1730
  %v1733 = vadd.f32 %v1724, %v1730
  %v1734 = vadd.f32 %v1725, %v1730
  %v1735 = vadd.f32 %v1726, %v1730
  %vm1736 = vcmp.ge.f32.partialorder %v1732, 0.0
  %vm1737 = vcmp.ge.f32.partialorder %v1733, 0.0
  %vm1738 = vcmp.ge.f32.partialorder %v1734, 0.0
  %vm1739 = vcmp.ge.f32.partialorder %v1735, 0.0
  %v1740 = vmul.f32 %v1732, 0.01
  %v1741 = vmul.f32 %v1733, 0.01
  %v1742 = vmul.f32 %v1734, 0.01
  %v1743 = vmul.f32 %v1735, 0.01
  %v1744 = vsel %vm1736, %v1732, %v1740
  %v1745 = vsel %vm1737, %v1733, %v1741
  %v1746 = vsel %vm1738, %v1734, %v1742
  %v1747 = vsel %vm1739, %v1735, %v1743
  %1748 = vst [vmem:[%s4] sm:$0xff] %v1744
  %1749 = vst [vmem:[%s4 + $0x8] sm:$0xff] %v1745
  %1750 = vst [vmem:[%s4 + $0x10] sm:$0xff] %v1746
  %1751 = vst [vmem:[%s4 + $0x18] sm:$0xff] %v1747
  // Predicated region
  $region18: #{vae_forward.9} parent=0 // pred_check
    _
  $region19: #{vae_forward.9} parent=0 // pred_check_branch
    %1753 = sbr.rel (0) target = $region21
  $region20: #{vae_forward.9} parent=0 // pred_region
    _
  $region21: #{vae_forward.9} parent=0 // pred_fallthru
    _
  // Predicated region
  $region22: #{vae_forward.9} parent=0 // pred_check
    _
  $region23: #{vae_forward.9} parent=0 // pred_check_branch
    %1755 = sbr.rel (0) target = $region25
  $region24: #{vae_forward.9} parent=0 // pred_region
    _
  $region25: #{vae_forward.9} parent=0 // pred_fallthru
    _

// kernel: vae_forward.13
$region0: #{vae_forward.13}
  #allocation0 [shape = 'u32[]', space=smem, size = 0x4, offset = 0x4, fixed_abs, tag = 'smem constant byte address 0x4 - core index']
  #allocation1 [shape = 'u32[144,128]{1,0:T(1,128)}', space=vmem, size = 0x12000, scoped, tag = 'internal scratch']
  %s0 = inlined_call_operand.vmem [shape: f32[4,128], index: 0, kind: input, shape index: {}]
  %s1 = inlined_call_operand.vmem [shape: f32[9,4,4], index: 1, kind: input, shape index: {}]
  %s2 = inlined_call_operand.vmem [shape: f32[4,1], index: 2, kind: input, shape index: {}]
  %s3 = inlined_call_operand.vmem [shape: f32[4,1], index: 3, kind: input, shape index: {}]
  %s4 = inlined_call_operand.vmem [shape: f32[4,128], index: 4, kind: output, shape index: {}]
  %s5 = sld [smem:[#allocation0]]
  $region26: #{vae_forward.13} parent=0
    _
  %s7 = ssub.s32 1, %s5
  %s8 = scalar_select 0, %s7, %s5
  // Predicated region
  $region2: #{vae_forward.13} parent=0 // pred_check
    _
  $region3: #{vae_forward.13} parent=0 // pred_check_branch
    %10 = sbr.rel (0) target = $region5
  $region4: #{vae_forward.13} parent=0 // pred_region
    _
  $region5: #{vae_forward.13} parent=0 // pred_fallthru
    _
  // Predicated region
  $region6: #{vae_forward.13} parent=0 // pred_check
    _
  $region7: #{vae_forward.13} parent=0 // pred_check_branch
    %12 = sbr.rel (0) target = $region9
  $region8: #{vae_forward.13} parent=0 // pred_region
    _
  $region9: #{vae_forward.13} parent=0 // pred_fallthru
    _
  // Predicated region
  $region10: #{vae_forward.13} parent=0 // pred_check
    _
  $region11: #{vae_forward.13} parent=0 // pred_check_branch
    %14 = sbr.rel (0) target = $region13
  $region12: #{vae_forward.13} parent=0 // pred_region
    _
  $region13: #{vae_forward.13} parent=0 // pred_fallthru
    _
  // Predicated region
  $region14: #{vae_forward.13} parent=0 // pred_check
    _
  $region15: #{vae_forward.13} parent=0 // pred_check_branch
    %16 = sbr.rel (0) target = $region17
  $region16: #{vae_forward.13} parent=0 // pred_region
    _
  $region17: #{vae_forward.13} parent=0 // pred_fallthru
    _
  %v17 = vld [vmem:[%s0] sm:$0xf]
  %v18 = vlaneseq
  %v19 = vand.u32 %v18, 127
  %v20 = vand.u32 %v19, 63
  %v21 = vand.u32 %v19, 7
  %23 = vrot.lane.b32.xlu0 %v17, 9
  %v24 = vpop.permute.xlu0 %23
  %vm26 = vcmask 72704
  %v27 = vsel %vm26, 0.0, %v24
  %vm28 = vcmp.ge.s32.totalorder %v20, 8
  %vm29 = vcmp.ge.s32.totalorder %v21, 1
  %vm30 = vmand %vm28, %vm29
  %v31 = vsel %vm30, %v27, 0.0
  %v32 = vld [vmem:[%s1] sm:$0xf]
  %33 = vrot.lane.b32.xlu0 %v17, 8
  %v34 = vpop.permute.xlu0 %33
  %vm36 = vcmask 64512
  %v37 = vsel %vm36, 0.0, %v34
  %v38 = vsel %vm28, %v37, 0.0
  %s39 = scalar_lea.vmem %s1, 4
  %v40 = vld [vmem:[%s39] sm:$0xf]
  %vm41 = vcmask 31744
  %v43 = vsel %vm41, %v40, 0
  %vm45 = vcmask 1043456
  %v47 = vsel %vm45, %v38, 0
  %49 = vmatprep.subr.mxu0 0.0
  %50 = vmatpush1.msra.mxu0 %v47
  %51 = vmatprep.subr.mxu0 0.0
  %52 = vmatpush1.msra.mxu0 0.0
  %53 = vmatprep.subr.mxu0 0.0
  %54 = vmatpush1.msra.mxu0 0.0
  %55 = vmatprep.subr.mxu0 0.0
  %56 = vmatpush1.msra.mxu0 0.0
  %57 = vmatprep.subr.mxu0 0.0
  %58 = vmatpush1.msra.mxu0 0.0
  %59 = vmatprep.subr.mxu0 0.0
  %60 = vmatpush1.msra.mxu0 0.0
  %61 = vmatprep.subr.mxu0 0.0
  %62 = vmatpush1.msra.mxu0 0.0
  %63 = vmatprep.subr.mxu0 0.0
  %64 = vmatpush1.msra.mxu0 0.0
  %65 = vmatprep.subr.mxu0 0.0
  %66 = vmatpush1.msra.mxu0 0.0
  %67 = vmatprep.subr.mxu0 0.0
  %68 = vmatpush1.msra.mxu0 0.0
  %69 = vmatprep.subr.mxu0 0.0
  %70 = vmatpush1.msra.mxu0 0.0
  %71 = vmatprep.subr.mxu0 0.0
  %72 = vmatpush1.msra.mxu0 0.0
  %73 = vmatprep.subr.mxu0 0.0
  %74 = vmatpush1.msra.mxu0 0.0
  %75 = vmatprep.subr.mxu0 0.0
  %76 = vmatpush1.msra.mxu0 0.0
  %77 = vmatprep.subr.mxu0 0.0
  %78 = vmatpush1.msra.mxu0 0.0
  %79 = vmatprep.subr.mxu0 0.0
  %80 = vmatpush1.msra.mxu0 0.0
  %81 = vmatprep.subr.mxu0 0.0
  %82 = vmatpush1.msra.mxu0 0.0
  %83 = vmatprep.subr.mxu0 0.0
  %84 = vmatpush1.msra.mxu0 0.0
  %85 = vmatprep.subr.mxu0 0.0
  %86 = vmatpush1.msra.mxu0 0.0
  %87 = vmatprep.subr.mxu0 0.0
  %88 = vmatpush1.msra.mxu0 0.0
  %89 = vmatprep.subr.mxu0 0.0
  %90 = vmatpush1.msra.mxu0 0.0
  %91 = vmatprep.subr.mxu0 0.0
  %92 = vmatpush1.msra.mxu0 0.0
  %93 = vmatprep.subr.mxu0 0.0
  %94 = vmatpush1.msra.mxu0 0.0
  %95 = vmatprep.subr.mxu0 0.0
  %96 = vmatpush1.msra.mxu0 0.0
  %97 = vmatprep.subr.mxu0 0.0
  %98 = vmatpush1.msra.mxu0 0.0
  %99 = vmatprep.subr.mxu0 0.0
  %100 = vmatpush1.msra.mxu0 0.0
  %101 = vmatprep.subr.mxu0 0.0
  %102 = vmatpush1.msra.mxu0 0.0
  %103 = vmatprep.subr.mxu0 0.0
  %104 = vmatpush1.msra.mxu0 0.0
  %105 = vmatprep.subr.mxu0 0.0
  %106 = vmatpush1.msra.mxu0 0.0
  %107 = vmatprep.subr.mxu0 0.0
  %108 = vmatpush1.msra.mxu0 0.0
  %109 = vmatprep.subr.mxu0 0.0
  %110 = vmatpush1.msra.mxu0 0.0
  %111 = vmatprep.subr.mxu0 0.0
  %112 = vmatpush1.msra.mxu0 0.0
  %113 = vmatprep.mubr.f32.mxu0 0.0
  %114 = vmatmul.mubr.f32.gmra.mrb[0].mxu0 %v43
  %v115 = vpop.f32.mrb[0].mxu0
  %v116 = vadd.f32 0.0, %v115
  %v117 = vpop.f32.mrb[0].mxu0
  %118 = vdwg.mxu0
  %v120 = vsel %vm41, %v32, 0
  %v123 = vsel %vm45, %v31, 0
  %125 = vmatprep.subr.mxu0 0.0
  %126 = vmatpush1.msra.mxu0 %v123
  %127 = vmatprep.subr.mxu0 0.0
  %128 = vmatpush1.msra.mxu0 0.0
  %129 = vmatprep.subr.mxu0 0.0
  %130 = vmatpush1.msra.mxu0 0.0
  %131 = vmatprep.subr.mxu0 0.0
  %132 = vmatpush1.msra.mxu0 0.0
  %133 = vmatprep.subr.mxu0 0.0
  %134 = vmatpush1.msra.mxu0 0.0
  %135 = vmatprep.subr.mxu0 0.0
  %136 = vmatpush1.msra.mxu0 0.0
  %137 = vmatprep.subr.mxu0 0.0
  %138 = vmatpush1.msra.mxu0 0.0
  %139 = vmatprep.subr.mxu0 0.0
  %140 = vmatpush1.msra.mxu0 0.0
  %141 = vmatprep.subr.mxu0 0.0
  %142 = vmatpush1.msra.mxu0 0.0
  %143 = vmatprep.subr.mxu0 0.0
  %144 = vmatpush1.msra.mxu0 0.0
  %145 = vmatprep.subr.mxu0 0.0
  %146 = vmatpush1.msra.mxu0 0.0
  %147 = vmatprep.subr.mxu0 0.0
  %148 = vmatpush1.msra.mxu0 0.0
  %149 = vmatprep.subr.mxu0 0.0
  %150 = vmatpush1.msra.mxu0 0.0
  %151 = vmatprep.subr.mxu0 0.0
  %152 = vmatpush1.msra.mxu0 0.0
  %153 = vmatprep.subr.mxu0 0.0
  %154 = vmatpush1.msra.mxu0 0.0
  %155 = vmatprep.subr.mxu0 0.0
  %156 = vmatpush1.msra.mxu0 0.0
  %157 = vmatprep.subr.mxu0 0.0
  %158 = vmatpush1.msra.mxu0 0.0
  %159 = vmatprep.subr.mxu0 0.0
  %160 = vmatpush1.msra.mxu0 0.0
  %161 = vmatprep.subr.mxu0 0.0
  %162 = vmatpush1.msra.mxu0 0.0
  %163 = vmatprep.subr.mxu0 0.0
  %164 = vmatpush1.msra.mxu0 0.0
  %165 = vmatprep.subr.mxu0 0.0
  %166 = vmatpush1.msra.mxu0 0.0
  %167 = vmatprep.subr.mxu0 0.0
  %168 = vmatpush1.msra.mxu0 0.0
  %169 = vmatprep.subr.mxu0 0.0
  %170 = vmatpush1.msra.mxu0 0.0
  %171 = vmatprep.subr.mxu0 0.0
  %172 = vmatpush1.msra.mxu0 0.0
  %173 = vmatprep.subr.mxu0 0.0
  %174 = vmatpush1.msra.mxu0 0.0
  %175 = vmatprep.subr.mxu0 0.0
  %176 = vmatpush1.msra.mxu0 0.0
  %177 = vmatprep.subr.mxu0 0.0
  %178 = vmatpush1.msra.mxu0 0.0
  %179 = vmatprep.subr.mxu0 0.0
  %180 = vmatpush1.msra.mxu0 0.0
  %181 = vmatprep.subr.mxu0 0.0
  %182 = vmatpush1.msra.mxu0 0.0
  %183 = vmatprep.subr.mxu0 0.0
  %184 = vmatpush1.msra.mxu0 0.0
  %185 = vmatprep.subr.mxu0 0.0
  %186 = vmatpush1.msra.mxu0 0.0
  %187 = vmatprep.subr.mxu0 0.0
  %188 = vmatpush1.msra.mxu0 0.0
  %189 = vmatprep.mubr.f32.mxu0 0.0
  %190 = vmatmul.mubr.f32.gmra.mrb[0].mxu0 %v120
  %v191 = vpop.f32.mrb[0].mxu0
  %v192 = vadd.f32 %v116, %v191
  %v193 = vpop.f32.mrb[0].mxu0
  %194 = vdwg.mxu0
  %195 = vrot.lane.b32.xlu0 %v17, 7
  %v196 = vpop.permute.xlu0 %195
  %vm198 = vcmask 56320
  %v199 = vsel %vm198, 0.0, %v196
  %vm200 = vcmp.lt.s32.totalorder %v21, 7
  %vm201 = vmand %vm28, %vm200
  %v202 = vsel %vm201, %v199, 0.0
  %s203 = scalar_lea.vmem %s1, 8
  %v204 = vld [vmem:[%s203] sm:$0xf]
  %v206 = vsel %vm41, %v204, 0
  %v209 = vsel %vm45, %v202, 0
  %211 = vmatprep.subr.mxu0 0.0
  %212 = vmatpush1.msra.mxu0 %v209
  %213 = vmatprep.subr.mxu0 0.0
  %214 = vmatpush1.msra.mxu0 0.0
  %215 = vmatprep.subr.mxu0 0.0
  %216 = vmatpush1.msra.mxu0 0.0
  %217 = vmatprep.subr.mxu0 0.0
  %218 = vmatpush1.msra.mxu0 0.0
  %219 = vmatprep.subr.mxu0 0.0
  %220 = vmatpush1.msra.mxu0 0.0
  %221 = vmatprep.subr.mxu0 0.0
  %222 = vmatpush1.msra.mxu0 0.0
  %223 = vmatprep.subr.mxu0 0.0
  %224 = vmatpush1.msra.mxu0 0.0
  %225 = vmatprep.subr.mxu0 0.0
  %226 = vmatpush1.msra.mxu0 0.0
  %227 = vmatprep.subr.mxu0 0.0
  %228 = vmatpush1.msra.mxu0 0.0
  %229 = vmatprep.subr.mxu0 0.0
  %230 = vmatpush1.msra.mxu0 0.0
  %231 = vmatprep.subr.mxu0 0.0
  %232 = vmatpush1.msra.mxu0 0.0
  %233 = vmatprep.subr.mxu0 0.0
  %234 = vmatpush1.msra.mxu0 0.0
  %235 = vmatprep.subr.mxu0 0.0
  %236 = vmatpush1.msra.mxu0 0.0
  %237 = vmatprep.subr.mxu0 0.0
  %238 = vmatpush1.msra.mxu0 0.0
  %239 = vmatprep.subr.mxu0 0.0
  %240 = vmatpush1.msra.mxu0 0.0
  %241 = vmatprep.subr.mxu0 0.0
  %242 = vmatpush1.msra.mxu0 0.0
  %243 = vmatprep.subr.mxu0 0.0
  %244 = vmatpush1.msra.mxu0 0.0
  %245 = vmatprep.subr.mxu0 0.0
  %246 = vmatpush1.msra.mxu0 0.0
  %247 = vmatprep.subr.mxu0 0.0
  %248 = vmatpush1.msra.mxu0 0.0
  %249 = vmatprep.subr.mxu0 0.0
  %250 = vmatpush1.msra.mxu0 0.0
  %251 = vmatprep.subr.mxu0 0.0
  %252 = vmatpush1.msra.mxu0 0.0
  %253 = vmatprep.subr.mxu0 0.0
  %254 = vmatpush1.msra.mxu0 0.0
  %255 = vmatprep.subr.mxu0 0.0
  %256 = vmatpush1.msra.mxu0 0.0
  %257 = vmatprep.subr.mxu0 0.0
  %258 = vmatpush1.msra.mxu0 0.0
  %259 = vmatprep.subr.mxu0 0.0
  %260 = vmatpush1.msra.mxu0 0.0
  %261 = vmatprep.subr.mxu0 0.0
  %262 = vmatpush1.msra.mxu0 0.0
  %263 = vmatprep.subr.mxu0 0.0
  %264 = vmatpush1.msra.mxu0 0.0
  %265 = vmatprep.subr.mxu0 0.0
  %266 = vmatpush1.msra.mxu0 0.0
  %267 = vmatprep.subr.mxu0 0.0
  %268 = vmatpush1.msra.mxu0 0.0
  %269 = vmatprep.subr.mxu0 0.0
  %270 = vmatpush1.msra.mxu0 0.0
  %271 = vmatprep.subr.mxu0 0.0
  %272 = vmatpush1.msra.mxu0 0.0
  %273 = vmatprep.subr.mxu0 0.0
  %274 = vmatpush1.msra.mxu0 0.0
  %275 = vmatprep.mubr.f32.mxu0 0.0
  %276 = vmatmul.mubr.f32.gmra.mrb[0].mxu0 %v206
  %v277 = vpop.f32.mrb[0].mxu0
  %v278 = vadd.f32 0.0, %v277
  %v279 = vpop.f32.mrb[0].mxu0
  %280 = vdwg.mxu0
  %v281 = vadd.f32 %v192, %v278
  %282 = vrot.lane.b32.xlu0 %v17, 1
  %v283 = vpop.permute.xlu0 %282
  %vm285 = vcmask 7168
  %v286 = vsel %vm285, 0.0, %v283
  %v287 = vsel %vm29, %v286, 0.0
  %s288 = scalar_lea.vmem %s1, 12
  %v289 = vld [vmem:[%s288] sm:$0xf]
  %v291 = vsel %vm41, %v289, 0
  %v294 = vsel %vm45, %v287, 0
  %296 = vmatprep.subr.mxu0 0.0
  %297 = vmatpush1.msra.mxu0 %v294
  %298 = vmatprep.subr.mxu0 0.0
  %299 = vmatpush1.msra.mxu0 0.0
  %300 = vmatprep.subr.mxu0 0.0
  %301 = vmatpush1.msra.mxu0 0.0
  %302 = vmatprep.subr.mxu0 0.0
  %303 = vmatpush1.msra.mxu0 0.0
  %304 = vmatprep.subr.mxu0 0.0
  %305 = vmatpush1.msra.mxu0 0.0
  %306 = vmatprep.subr.mxu0 0.0
  %307 = vmatpush1.msra.mxu0 0.0
  %308 = vmatprep.subr.mxu0 0.0
  %309 = vmatpush1.msra.mxu0 0.0
  %310 = vmatprep.subr.mxu0 0.0
  %311 = vmatpush1.msra.mxu0 0.0
  %312 = vmatprep.subr.mxu0 0.0
  %313 = vmatpush1.msra.mxu0 0.0
  %314 = vmatprep.subr.mxu0 0.0
  %315 = vmatpush1.msra.mxu0 0.0
  %316 = vmatprep.subr.mxu0 0.0
  %317 = vmatpush1.msra.mxu0 0.0
  %318 = vmatprep.subr.mxu0 0.0
  %319 = vmatpush1.msra.mxu0 0.0
  %320 = vmatprep.subr.mxu0 0.0
  %321 = vmatpush1.msra.mxu0 0.0
  %322 = vmatprep.subr.mxu0 0.0
  %323 = vmatpush1.msra.mxu0 0.0
  %324 = vmatprep.subr.mxu0 0.0
  %325 = vmatpush1.msra.mxu0 0.0
  %326 = vmatprep.subr.mxu0 0.0
  %327 = vmatpush1.msra.mxu0 0.0
  %328 = vmatprep.subr.mxu0 0.0
  %329 = vmatpush1.msra.mxu0 0.0
  %330 = vmatprep.subr.mxu0 0.0
  %331 = vmatpush1.msra.mxu0 0.0
  %332 = vmatprep.subr.mxu0 0.0
  %333 = vmatpush1.msra.mxu0 0.0
  %334 = vmatprep.subr.mxu0 0.0
  %335 = vmatpush1.msra.mxu0 0.0
  %336 = vmatprep.subr.mxu0 0.0
  %337 = vmatpush1.msra.mxu0 0.0
  %338 = vmatprep.subr.mxu0 0.0
  %339 = vmatpush1.msra.mxu0 0.0
  %340 = vmatprep.subr.mxu0 0.0
  %341 = vmatpush1.msra.mxu0 0.0
  %342 = vmatprep.subr.mxu0 0.0
  %343 = vmatpush1.msra.mxu0 0.0
  %344 = vmatprep.subr.mxu0 0.0
  %345 = vmatpush1.msra.mxu0 0.0
  %346 = vmatprep.subr.mxu0 0.0
  %347 = vmatpush1.msra.mxu0 0.0
  %348 = vmatprep.subr.mxu0 0.0
  %349 = vmatpush1.msra.mxu0 0.0
  %350 = vmatprep.subr.mxu0 0.0
  %351 = vmatpush1.msra.mxu0 0.0
  %352 = vmatprep.subr.mxu0 0.0
  %353 = vmatpush1.msra.mxu0 0.0
  %354 = vmatprep.subr.mxu0 0.0
  %355 = vmatpush1.msra.mxu0 0.0
  %356 = vmatprep.subr.mxu0 0.0
  %357 = vmatpush1.msra.mxu0 0.0
  %358 = vmatprep.subr.mxu0 0.0
  %359 = vmatpush1.msra.mxu0 0.0
  %360 = vmatprep.mubr.f32.mxu0 0.0
  %361 = vmatmul.mubr.f32.gmra.mrb[0].mxu0 %v291
  %v362 = vpop.f32.mrb[0].mxu0
  %v363 = vadd.f32 0.0, %v362
  %v364 = vpop.f32.mrb[0].mxu0
  %365 = vdwg.mxu0
  %v366 = vadd.f32 %v281, %v363
  %s367 = scalar_lea.vmem %s1, 16
  %v368 = vld [vmem:[%s367] sm:$0xf]
  %v370 = vsel %vm41, %v368, 0
  %v372 = vsel %vm45, %v17, 0
  %374 = vmatprep.subr.mxu0 0.0
  %375 = vmatpush1.msra.mxu0 %v372
  %376 = vmatprep.subr.mxu0 0.0
  %377 = vmatpush1.msra.mxu0 0.0
  %378 = vmatprep.subr.mxu0 0.0
  %379 = vmatpush1.msra.mxu0 0.0
  %380 = vmatprep.subr.mxu0 0.0
  %381 = vmatpush1.msra.mxu0 0.0
  %382 = vmatprep.subr.mxu0 0.0
  %383 = vmatpush1.msra.mxu0 0.0
  %384 = vmatprep.subr.mxu0 0.0
  %385 = vmatpush1.msra.mxu0 0.0
  %386 = vmatprep.subr.mxu0 0.0
  %387 = vmatpush1.msra.mxu0 0.0
  %388 = vmatprep.subr.mxu0 0.0
  %389 = vmatpush1.msra.mxu0 0.0
  %390 = vmatprep.subr.mxu0 0.0
  %391 = vmatpush1.msra.mxu0 0.0
  %392 = vmatprep.subr.mxu0 0.0
  %393 = vmatpush1.msra.mxu0 0.0
  %394 = vmatprep.subr.mxu0 0.0
  %395 = vmatpush1.msra.mxu0 0.0
  %396 = vmatprep.subr.mxu0 0.0
  %397 = vmatpush1.msra.mxu0 0.0
  %398 = vmatprep.subr.mxu0 0.0
  %399 = vmatpush1.msra.mxu0 0.0
  %400 = vmatprep.subr.mxu0 0.0
  %401 = vmatpush1.msra.mxu0 0.0
  %402 = vmatprep.subr.mxu0 0.0
  %403 = vmatpush1.msra.mxu0 0.0
  %404 = vmatprep.subr.mxu0 0.0
  %405 = vmatpush1.msra.mxu0 0.0
  %406 = vmatprep.subr.mxu0 0.0
  %407 = vmatpush1.msra.mxu0 0.0
  %408 = vmatprep.subr.mxu0 0.0
  %409 = vmatpush1.msra.mxu0 0.0
  %410 = vmatprep.subr.mxu0 0.0
  %411 = vmatpush1.msra.mxu0 0.0
  %412 = vmatprep.subr.mxu0 0.0
  %413 = vmatpush1.msra.mxu0 0.0
  %414 = vmatprep.subr.mxu0 0.0
  %415 = vmatpush1.msra.mxu0 0.0
  %416 = vmatprep.subr.mxu0 0.0
  %417 = vmatpush1.msra.mxu0 0.0
  %418 = vmatprep.subr.mxu0 0.0
  %419 = vmatpush1.msra.mxu0 0.0
  %420 = vmatprep.subr.mxu0 0.0
  %421 = vmatpush1.msra.mxu0 0.0
  %422 = vmatprep.subr.mxu0 0.0
  %423 = vmatpush1.msra.mxu0 0.0
  %424 = vmatprep.subr.mxu0 0.0
  %425 = vmatpush1.msra.mxu0 0.0
  %426 = vmatprep.subr.mxu0 0.0
  %427 = vmatpush1.msra.mxu0 0.0
  %428 = vmatprep.subr.mxu0 0.0
  %429 = vmatpush1.msra.mxu0 0.0
  %430 = vmatprep.subr.mxu0 0.0
  %431 = vmatpush1.msra.mxu0 0.0
  %432 = vmatprep.subr.mxu0 0.0
  %433 = vmatpush1.msra.mxu0 0.0
  %434 = vmatprep.subr.mxu0 0.0
  %435 = vmatpush1.msra.mxu0 0.0
  %436 = vmatprep.subr.mxu0 0.0
  %437 = vmatpush1.msra.mxu0 0.0
  %438 = vmatprep.mubr.f32.mxu0 0.0
  %439 = vmatmul.mubr.f32.gmra.mrb[0].mxu0 %v370
  %v440 = vpop.f32.mrb[0].mxu0
  %v441 = vadd.f32 0.0, %v440
  %v442 = vpop.f32.mrb[0].mxu0
  %443 = vdwg.mxu0
  %v444 = vadd.f32 %v366, %v441
  %445 = vrot.lane.b32.xlu0 %v17, 127
  %v446 = vpop.permute.xlu0 %445
  %vm448 = vcmask 1039360
  %v449 = vsel %vm448, %v446, 0.0
  %v450 = vsel %vm200, %v449, 0.0
  %s451 = scalar_lea.vmem %s1, 20
  %v452 = vld [vmem:[%s451] sm:$0xf]
  %v454 = vsel %vm41, %v452, 0
  %v457 = vsel %vm45, %v450, 0
  %459 = vmatprep.subr.mxu0 0.0
  %460 = vmatpush1.msra.mxu0 %v457
  %461 = vmatprep.subr.mxu0 0.0
  %462 = vmatpush1.msra.mxu0 0.0
  %463 = vmatprep.subr.mxu0 0.0
  %464 = vmatpush1.msra.mxu0 0.0
  %465 = vmatprep.subr.mxu0 0.0
  %466 = vmatpush1.msra.mxu0 0.0
  %467 = vmatprep.subr.mxu0 0.0
  %468 = vmatpush1.msra.mxu0 0.0
  %469 = vmatprep.subr.mxu0 0.0
  %470 = vmatpush1.msra.mxu0 0.0
  %471 = vmatprep.subr.mxu0 0.0
  %472 = vmatpush1.msra.mxu0 0.0
  %473 = vmatprep.subr.mxu0 0.0
  %474 = vmatpush1.msra.mxu0 0.0
  %475 = vmatprep.subr.mxu0 0.0
  %476 = vmatpush1.msra.mxu0 0.0
  %477 = vmatprep.subr.mxu0 0.0
  %478 = vmatpush1.msra.mxu0 0.0
  %479 = vmatprep.subr.mxu0 0.0
  %480 = vmatpush1.msra.mxu0 0.0
  %481 = vmatprep.subr.mxu0 0.0
  %482 = vmatpush1.msra.mxu0 0.0
  %483 = vmatprep.subr.mxu0 0.0
  %484 = vmatpush1.msra.mxu0 0.0
  %485 = vmatprep.subr.mxu0 0.0
  %486 = vmatpush1.msra.mxu0 0.0
  %487 = vmatprep.subr.mxu0 0.0
  %488 = vmatpush1.msra.mxu0 0.0
  %489 = vmatprep.subr.mxu0 0.0
  %490 = vmatpush1.msra.mxu0 0.0
  %491 = vmatprep.subr.mxu0 0.0
  %492 = vmatpush1.msra.mxu0 0.0
  %493 = vmatprep.subr.mxu0 0.0
  %494 = vmatpush1.msra.mxu0 0.0
  %495 = vmatprep.subr.mxu0 0.0
  %496 = vmatpush1.msra.mxu0 0.0
  %497 = vmatprep.subr.mxu0 0.0
  %498 = vmatpush1.msra.mxu0 0.0
  %499 = vmatprep.subr.mxu0 0.0
  %500 = vmatpush1.msra.mxu0 0.0
  %501 = vmatprep.subr.mxu0 0.0
  %502 = vmatpush1.msra.mxu0 0.0
  %503 = vmatprep.subr.mxu0 0.0
  %504 = vmatpush1.msra.mxu0 0.0
  %505 = vmatprep.subr.mxu0 0.0
  %506 = vmatpush1.msra.mxu0 0.0
  %507 = vmatprep.subr.mxu0 0.0
  %508 = vmatpush1.msra.mxu0 0.0
  %509 = vmatprep.subr.mxu0 0.0
  %510 = vmatpush1.msra.mxu0 0.0
  %511 = vmatprep.subr.mxu0 0.0
  %512 = vmatpush1.msra.mxu0 0.0
  %513 = vmatprep.subr.mxu0 0.0
  %514 = vmatpush1.msra.mxu0 0.0
  %515 = vmatprep.subr.mxu0 0.0
  %516 = vmatpush1.msra.mxu0 0.0
  %517 = vmatprep.subr.mxu0 0.0
  %518 = vmatpush1.msra.mxu0 0.0
  %519 = vmatprep.subr.mxu0 0.0
  %520 = vmatpush1.msra.mxu0 0.0
  %521 = vmatprep.subr.mxu0 0.0
  %522 = vmatpush1.msra.mxu0 0.0
  %523 = vmatprep.mubr.f32.mxu0 0.0
  %524 = vmatmul.mubr.f32.gmra.mrb[0].mxu0 %v454
  %v525 = vpop.f32.mrb[0].mxu0
  %v526 = vadd.f32 0.0, %v525
  %v527 = vpop.f32.mrb[0].mxu0
  %528 = vdwg.mxu0
  %v529 = vadd.f32 %v444, %v526
  %530 = vrot.lane.b32.xlu0 %v17, 121
  %v531 = vpop.permute.xlu0 %530
  %vm533 = vcmask 990208
  %v534 = vsel %vm533, %v531, 0.0
  %vm535 = vcmp.lt.s32.totalorder %v20, 56
  %vm536 = vmand %vm535, %vm29
  %v537 = vsel %vm536, %v534, 0.0
  %s538 = scalar_lea.vmem %s1, 24
  %v539 = vld [vmem:[%s538] sm:$0xf]
  %v541 = vsel %vm41, %v539, 0
  %v544 = vsel %vm45, %v537, 0
  %546 = vmatprep.subr.mxu0 0.0
  %547 = vmatpush1.msra.mxu0 %v544
  %548 = vmatprep.subr.mxu0 0.0
  %549 = vmatpush1.msra.mxu0 0.0
  %550 = vmatprep.subr.mxu0 0.0
  %551 = vmatpush1.msra.mxu0 0.0
  %552 = vmatprep.subr.mxu0 0.0
  %553 = vmatpush1.msra.mxu0 0.0
  %554 = vmatprep.subr.mxu0 0.0
  %555 = vmatpush1.msra.mxu0 0.0
  %556 = vmatprep.subr.mxu0 0.0
  %557 = vmatpush1.msra.mxu0 0.0
  %558 = vmatprep.subr.mxu0 0.0
  %559 = vmatpush1.msra.mxu0 0.0
  %560 = vmatprep.subr.mxu0 0.0
  %561 = vmatpush1.msra.mxu0 0.0
  %562 = vmatprep.subr.mxu0 0.0
  %563 = vmatpush1.msra.mxu0 0.0
  %564 = vmatprep.subr.mxu0 0.0
  %565 = vmatpush1.msra.mxu0 0.0
  %566 = vmatprep.subr.mxu0 0.0
  %567 = vmatpush1.msra.mxu0 0.0
  %568 = vmatprep.subr.mxu0 0.0
  %569 = vmatpush1.msra.mxu0 0.0
  %570 = vmatprep.subr.mxu0 0.0
  %571 = vmatpush1.msra.mxu0 0.0
  %572 = vmatprep.subr.mxu0 0.0
  %573 = vmatpush1.msra.mxu0 0.0
  %574 = vmatprep.subr.mxu0 0.0
  %575 = vmatpush1.msra.mxu0 0.0
  %576 = vmatprep.subr.mxu0 0.0
  %577 = vmatpush1.msra.mxu0 0.0
  %578 = vmatprep.subr.mxu0 0.0
  %579 = vmatpush1.msra.mxu0 0.0
  %580 = vmatprep.subr.mxu0 0.0
  %581 = vmatpush1.msra.mxu0 0.0
  %582 = vmatprep.subr.mxu0 0.0
  %583 = vmatpush1.msra.mxu0 0.0
  %584 = vmatprep.subr.mxu0 0.0
  %585 = vmatpush1.msra.mxu0 0.0
  %586 = vmatprep.subr.mxu0 0.0
  %587 = vmatpush1.msra.mxu0 0.0
  %588 = vmatprep.subr.mxu0 0.0
  %589 = vmatpush1.msra.mxu0 0.0
  %590 = vmatprep.subr.mxu0 0.0
  %591 = vmatpush1.msra.mxu0 0.0
  %592 = vmatprep.subr.mxu0 0.0
  %593 = vmatpush1.msra.mxu0 0.0
  %594 = vmatprep.subr.mxu0 0.0
  %595 = vmatpush1.msra.mxu0 0.0
  %596 = vmatprep.subr.mxu0 0.0
  %597 = vmatpush1.msra.mxu0 0.0
  %598 = vmatprep.subr.mxu0 0.0
  %599 = vmatpush1.msra.mxu0 0.0
  %600 = vmatprep.subr.mxu0 0.0
  %601 = vmatpush1.msra.mxu0 0.0
  %602 = vmatprep.subr.mxu0 0.0
  %603 = vmatpush1.msra.mxu0 0.0
  %604 = vmatprep.subr.mxu0 0.0
  %605 = vmatpush1.msra.mxu0 0.0
  %606 = vmatprep.subr.mxu0 0.0
  %607 = vmatpush1.msra.mxu0 0.0
  %608 = vmatprep.subr.mxu0 0.0
  %609 = vmatpush1.msra.mxu0 0.0
  %610 = vmatprep.mubr.f32.mxu0 0.0
  %611 = vmatmul.mubr.f32.gmra.mrb[0].mxu0 %v541
  %v612 = vpop.f32.mrb[0].mxu0
  %v613 = vadd.f32 0.0, %v612
  %v614 = vpop.f32.mrb[0].mxu0
  %615 = vdwg.mxu0
  %v616 = vadd.f32 %v529, %v613
  %617 = vrot.lane.b32.xlu0 %v17, 120
  %v618 = vpop.permute.xlu0 %617
  %vm620 = vcmask 982016
  %v621 = vsel %vm620, %v618, 0.0
  %v622 = vsel %vm535, %v621, 0.0
  %s623 = scalar_lea.vmem %s1, 28
  %v624 = vld [vmem:[%s623] sm:$0xf]
  %v626 = vsel %vm41, %v624, 0
  %v629 = vsel %vm45, %v622, 0
  %631 = vmatprep.subr.mxu0 0.0
  %632 = vmatpush1.msra.mxu0 %v629
  %633 = vmatprep.subr.mxu0 0.0
  %634 = vmatpush1.msra.mxu0 0.0
  %635 = vmatprep.subr.mxu0 0.0
  %636 = vmatpush1.msra.mxu0 0.0
  %637 = vmatprep.subr.mxu0 0.0
  %638 = vmatpush1.msra.mxu0 0.0
  %639 = vmatprep.subr.mxu0 0.0
  %640 = vmatpush1.msra.mxu0 0.0
  %641 = vmatprep.subr.mxu0 0.0
  %642 = vmatpush1.msra.mxu0 0.0
  %643 = vmatprep.subr.mxu0 0.0
  %644 = vmatpush1.msra.mxu0 0.0
  %645 = vmatprep.subr.mxu0 0.0
  %646 = vmatpush1.msra.mxu0 0.0
  %647 = vmatprep.subr.mxu0 0.0
  %648 = vmatpush1.msra.mxu0 0.0
  %649 = vmatprep.subr.mxu0 0.0
  %650 = vmatpush1.msra.mxu0 0.0
  %651 = vmatprep.subr.mxu0 0.0
  %652 = vmatpush1.msra.mxu0 0.0
  %653 = vmatprep.subr.mxu0 0.0
  %654 = vmatpush1.msra.mxu0 0.0
  %655 = vmatprep.subr.mxu0 0.0
  %656 = vmatpush1.msra.mxu0 0.0
  %657 = vmatprep.subr.mxu0 0.0
  %658 = vmatpush1.msra.mxu0 0.0
  %659 = vmatprep.subr.mxu0 0.0
  %660 = vmatpush1.msra.mxu0 0.0
  %661 = vmatprep.subr.mxu0 0.0
  %662 = vmatpush1.msra.mxu0 0.0
  %663 = vmatprep.subr.mxu0 0.0
  %664 = vmatpush1.msra.mxu0 0.0
  %665 = vmatprep.subr.mxu0 0.0
  %666 = vmatpush1.msra.mxu0 0.0
  %667 = vmatprep.subr.mxu0 0.0
  %668 = vmatpush1.msra.mxu0 0.0
  %669 = vmatprep.subr.mxu0 0.0
  %670 = vmatpush1.msra.mxu0 0.0
  %671 = vmatprep.subr.mxu0 0.0
  %672 = vmatpush1.msra.mxu0 0.0
  %673 = vmatprep.subr.mxu0 0.0
  %674 = vmatpush1.msra.mxu0 0.0
  %675 = vmatprep.subr.mxu0 0.0
  %676 = vmatpush1.msra.mxu0 0.0
  %677 = vmatprep.subr.mxu0 0.0
  %678 = vmatpush1.msra.mxu0 0.0
  %679 = vmatprep.subr.mxu0 0.0
  %680 = vmatpush1.msra.mxu0 0.0
  %681 = vmatprep.subr.mxu0 0.0
  %682 = vmatpush1.msra.mxu0 0.0
  %683 = vmatprep.subr.mxu0 0.0
  %684 = vmatpush1.msra.mxu0 0.0
  %685 = vmatprep.subr.mxu0 0.0
  %686 = vmatpush1.msra.mxu0 0.0
  %687 = vmatprep.subr.mxu0 0.0
  %688 = vmatpush1.msra.mxu0 0.0
  %689 = vmatprep.subr.mxu0 0.0
  %690 = vmatpush1.msra.mxu0 0.0
  %691 = vmatprep.subr.mxu0 0.0
  %692 = vmatpush1.msra.mxu0 0.0
  %693 = vmatprep.subr.mxu0 0.0
  %694 = vmatpush1.msra.mxu0 0.0
  %695 = vmatprep.mubr.f32.mxu0 0.0
  %696 = vmatmul.mubr.f32.gmra.mrb[0].mxu0 %v626
  %v697 = vpop.f32.mrb[0].mxu0
  %v698 = vadd.f32 0.0, %v697
  %v699 = vpop.f32.mrb[0].mxu0
  %700 = vdwg.mxu0
  %v701 = vadd.f32 %v616, %v698
  %702 = vrot.lane.b32.xlu0 %v17, 119
  %v703 = vpop.permute.xlu0 %702
  %vm705 = vcmask 973824
  %v706 = vsel %vm705, %v703, 0.0
  %vm707 = vmand %vm535, %vm200
  %v708 = vsel %vm707, %v706, 0.0
  %s709 = scalar_lea.vmem %s1, 32
  %v710 = vld [vmem:[%s709] sm:$0xf]
  %v712 = vsel %vm41, %v710, 0
  %v715 = vsel %vm45, %v708, 0
  %717 = vmatprep.subr.mxu0 0.0
  %718 = vmatpush1.msra.mxu0 %v715
  %719 = vmatprep.subr.mxu0 0.0
  %720 = vmatpush1.msra.mxu0 0.0
  %721 = vmatprep.subr.mxu0 0.0
  %722 = vmatpush1.msra.mxu0 0.0
  %723 = vmatprep.subr.mxu0 0.0
  %724 = vmatpush1.msra.mxu0 0.0
  %725 = vmatprep.subr.mxu0 0.0
  %726 = vmatpush1.msra.mxu0 0.0
  %727 = vmatprep.subr.mxu0 0.0
  %728 = vmatpush1.msra.mxu0 0.0
  %729 = vmatprep.subr.mxu0 0.0
  %730 = vmatpush1.msra.mxu0 0.0
  %731 = vmatprep.subr.mxu0 0.0
  %732 = vmatpush1.msra.mxu0 0.0
  %733 = vmatprep.subr.mxu0 0.0
  %734 = vmatpush1.msra.mxu0 0.0
  %735 = vmatprep.subr.mxu0 0.0
  %736 = vmatpush1.msra.mxu0 0.0
  %737 = vmatprep.subr.mxu0 0.0
  %738 = vmatpush1.msra.mxu0 0.0
  %739 = vmatprep.subr.mxu0 0.0
  %740 = vmatpush1.msra.mxu0 0.0
  %741 = vmatprep.subr.mxu0 0.0
  %742 = vmatpush1.msra.mxu0 0.0
  %743 = vmatprep.subr.mxu0 0.0
  %744 = vmatpush1.msra.mxu0 0.0
  %745 = vmatprep.subr.mxu0 0.0
  %746 = vmatpush1.msra.mxu0 0.0
  %747 = vmatprep.subr.mxu0 0.0
  %748 = vmatpush1.msra.mxu0 0.0
  %749 = vmatprep.subr.mxu0 0.0
  %750 = vmatpush1.msra.mxu0 0.0
  %751 = vmatprep.subr.mxu0 0.0
  %752 = vmatpush1.msra.mxu0 0.0
  %753 = vmatprep.subr.mxu0 0.0
  %754 = vmatpush1.msra.mxu0 0.0
  %755 = vmatprep.subr.mxu0 0.0
  %756 = vmatpush1.msra.mxu0 0.0
  %757 = vmatprep.subr.mxu0 0.0
  %758 = vmatpush1.msra.mxu0 0.0
  %759 = vmatprep.subr.mxu0 0.0
  %760 = vmatpush1.msra.mxu0 0.0
  %761 = vmatprep.subr.mxu0 0.0
  %762 = vmatpush1.msra.mxu0 0.0
  %763 = vmatprep.subr.mxu0 0.0
  %764 = vmatpush1.msra.mxu0 0.0
  %765 = vmatprep.subr.mxu0 0.0
  %766 = vmatpush1.msra.mxu0 0.0
  %767 = vmatprep.subr.mxu0 0.0
  %768 = vmatpush1.msra.mxu0 0.0
  %769 = vmatprep.subr.mxu0 0.0
  %770 = vmatpush1.msra.mxu0 0.0
  %771 = vmatprep.subr.mxu0 0.0
  %772 = vmatpush1.msra.mxu0 0.0
  %773 = vmatprep.subr.mxu0 0.0
  %774 = vmatpush1.msra.mxu0 0.0
  %775 = vmatprep.subr.mxu0 0.0
  %776 = vmatpush1.msra.mxu0 0.0
  %777 = vmatprep.subr.mxu0 0.0
  %778 = vmatpush1.msra.mxu0 0.0
  %779 = vmatprep.subr.mxu0 0.0
  %780 = vmatpush1.msra.mxu0 0.0
  %781 = vmatprep.mubr.f32.mxu0 0.0
  %782 = vmatmul.mubr.f32.gmra.mrb[0].mxu0 %v712
  %v783 = vpop.f32.mrb[0].mxu0
  %v784 = vadd.f32 0.0, %v783
  %v785 = vpop.f32.mrb[0].mxu0
  %786 = vdwg.mxu0
  %v787 = vadd.f32 %v701, %v784
  %v788 = vsel %vm45, %v787, 0.0
  %789 = vadd.xlane.f32.xlu0 %v788
  %v790 = vpop.xlane.xlu0 %789
  %v791 = vmul.f32 %v790, 0.0078125
  %v792 = vmul.f32 %v787, %v787
  %v793 = vsel %vm45, %v792, 0.0
  %794 = vadd.xlane.f32.xlu0 %v793
  %v795 = vpop.xlane.xlu0 %794
  %v796 = vmul.f32 %v795, 0.0078125
  %v797 = vmul.f32 %v791, %v791
  %v798 = vsub.f32 %v796, %v797
  %v799 = vmax.f32 %v798, 0.0
  %v800 = vld [vmem:[%s2] sm:$0xf]
  %v801 = vadd.f32 %v799, 1e-05
  %v802 = vrsqrt.pop %v801
  %v803 = vmul.f32 %v800, %v802
  %v804 = vld [vmem:[%s3] sm:$0xf]
  %v805 = vmul.f32 %v791, %v803
  %v806 = vsub.f32 %v804, %v805
  %808 = vset.pattern.permute.xlu0 0
  %809 = vperm.xlu0 %808, %v803
  %v810 = vpop.permute.xlu0 %809
  %v812 = vmul.f32 %v787, %v810
  %814 = vset.pattern.permute.xlu0 0
  %815 = vperm.xlu0 %814, %v806
  %v816 = vpop.permute.xlu0 %815
  %v818 = vadd.f32 %v812, %v816
  %vm819 = vcmp.ge.f32.partialorder %v818, 0.0
  %v820 = vmul.f32 %v818, 0.01
  %v821 = vsel %vm819, %v818, %v820
  %822 = vst [vmem:[%s4] sm:$0xf] %v821
  // Predicated region
  $region18: #{vae_forward.13} parent=0 // pred_check
    _
  $region19: #{vae_forward.13} parent=0 // pred_check_branch
    %824 = sbr.rel (0) target = $region21
  $region20: #{vae_forward.13} parent=0 // pred_region
    _
  $region21: #{vae_forward.13} parent=0 // pred_fallthru
    _
  // Predicated region
  $region22: #{vae_forward.13} parent=0 // pred_check
    _
  $region23: #{vae_forward.13} parent=0 // pred_check_branch
    %826 = sbr.rel (0) target = $region25
  $region24: #{vae_forward.13} parent=0 // pred_region
    _
  $region25: #{vae_forward.13} parent=0 // pred_fallthru
    _

// kernel: vae_forward.14
$region0: #{vae_forward.14}
  #allocation0 [shape = 'u32[]', space=smem, size = 0x4, offset = 0x4, fixed_abs, tag = 'smem constant byte address 0x4 - core index']
  #allocation1 [shape = 'u32[144,128]{1,0:T(1,128)}', space=vmem, size = 0x12000, scoped, tag = 'internal scratch']
  %s0 = inlined_call_operand.vmem [shape: f32[4,128], index: 0, kind: input, shape index: {}]
  %s1 = inlined_call_operand.vmem [shape: f32[9,8,4], index: 1, kind: input, shape index: {}]
  %s2 = inlined_call_operand.vmem [shape: f32[8,1], index: 2, kind: input, shape index: {}]
  %s3 = inlined_call_operand.vmem [shape: f32[8,1], index: 3, kind: input, shape index: {}]
  %s4 = inlined_call_operand.vmem [shape: f32[8,128], index: 4, kind: output, shape index: {}]
  %s5 = sld [smem:[#allocation0]]
  $region26: #{vae_forward.14} parent=0
    _
  %s7 = ssub.s32 1, %s5
  %s8 = scalar_select 0, %s7, %s5
  // Predicated region
  $region2: #{vae_forward.14} parent=0 // pred_check
    _
  $region3: #{vae_forward.14} parent=0 // pred_check_branch
    %10 = sbr.rel (0) target = $region5
  $region4: #{vae_forward.14} parent=0 // pred_region
    _
  $region5: #{vae_forward.14} parent=0 // pred_fallthru
    _
  // Predicated region
  $region6: #{vae_forward.14} parent=0 // pred_check
    _
  $region7: #{vae_forward.14} parent=0 // pred_check_branch
    %12 = sbr.rel (0) target = $region9
  $region8: #{vae_forward.14} parent=0 // pred_region
    _
  $region9: #{vae_forward.14} parent=0 // pred_fallthru
    _
  // Predicated region
  $region10: #{vae_forward.14} parent=0 // pred_check
    _
  $region11: #{vae_forward.14} parent=0 // pred_check_branch
    %14 = sbr.rel (0) target = $region13
  $region12: #{vae_forward.14} parent=0 // pred_region
    _
  $region13: #{vae_forward.14} parent=0 // pred_fallthru
    _
  // Predicated region
  $region14: #{vae_forward.14} parent=0 // pred_check
    _
  $region15: #{vae_forward.14} parent=0 // pred_check_branch
    %16 = sbr.rel (0) target = $region17
  $region16: #{vae_forward.14} parent=0 // pred_region
    _
  $region17: #{vae_forward.14} parent=0 // pred_fallthru
    _
  %v17 = vld [vmem:[%s0] sm:$0xf]
  %v18 = vlaneseq
  %v19 = vand.u32 %v18, 127
  %v20 = vand.u32 %v19, 63
  %v21 = vand.u32 %v19, 7
  %23 = vrot.lane.b32.xlu0 %v17, 9
  %v24 = vpop.permute.xlu0 %23
  %vm26 = vcmask 72704
  %v27 = vsel %vm26, 0.0, %v24
  %vm28 = vcmp.ge.s32.totalorder %v20, 8
  %vm29 = vcmp.ge.s32.totalorder %v21, 1
  %vm30 = vmand %vm28, %vm29
  %v31 = vsel %vm30, %v27, 0.0
  %v32 = vld [vmem:[%s1] sm:$0xff]
  %33 = vrot.lane.b32.xlu0 %v17, 8
  %v34 = vpop.permute.xlu0 %33
  %vm36 = vcmask 64512
  %v37 = vsel %vm36, 0.0, %v34
  %v38 = vsel %vm28, %v37, 0.0
  %s39 = scalar_lea.vmem %s1, 8
  %v40 = vld [vmem:[%s39] sm:$0xff]
  %vm41 = vcmask 31744
  %v43 = vsel %vm41, %v40, 0
  %vm45 = vcmask 1043456
  %v47 = vsel %vm45, %v38, 0
  %49 = vmatprep.subr.mxu0 0.0
  %50 = vmatpush1.msra.mxu0 %v47
  %51 = vmatprep.subr.mxu0 0.0
  %52 = vmatpush1.msra.mxu0 0.0
  %53 = vmatprep.subr.mxu0 0.0
  %54 = vmatpush1.msra.mxu0 0.0
  %55 = vmatprep.subr.mxu0 0.0
  %56 = vmatpush1.msra.mxu0 0.0
  %57 = vmatprep.subr.mxu0 0.0
  %58 = vmatpush1.msra.mxu0 0.0
  %59 = vmatprep.subr.mxu0 0.0
  %60 = vmatpush1.msra.mxu0 0.0
  %61 = vmatprep.subr.mxu0 0.0
  %62 = vmatpush1.msra.mxu0 0.0
  %63 = vmatprep.subr.mxu0 0.0
  %64 = vmatpush1.msra.mxu0 0.0
  %65 = vmatprep.subr.mxu0 0.0
  %66 = vmatpush1.msra.mxu0 0.0
  %67 = vmatprep.subr.mxu0 0.0
  %68 = vmatpush1.msra.mxu0 0.0
  %69 = vmatprep.subr.mxu0 0.0
  %70 = vmatpush1.msra.mxu0 0.0
  %71 = vmatprep.subr.mxu0 0.0
  %72 = vmatpush1.msra.mxu0 0.0
  %73 = vmatprep.subr.mxu0 0.0
  %74 = vmatpush1.msra.mxu0 0.0
  %75 = vmatprep.subr.mxu0 0.0
  %76 = vmatpush1.msra.mxu0 0.0
  %77 = vmatprep.subr.mxu0 0.0
  %78 = vmatpush1.msra.mxu0 0.0
  %79 = vmatprep.subr.mxu0 0.0
  %80 = vmatpush1.msra.mxu0 0.0
  %81 = vmatprep.subr.mxu0 0.0
  %82 = vmatpush1.msra.mxu0 0.0
  %83 = vmatprep.subr.mxu0 0.0
  %84 = vmatpush1.msra.mxu0 0.0
  %85 = vmatprep.subr.mxu0 0.0
  %86 = vmatpush1.msra.mxu0 0.0
  %87 = vmatprep.subr.mxu0 0.0
  %88 = vmatpush1.msra.mxu0 0.0
  %89 = vmatprep.subr.mxu0 0.0
  %90 = vmatpush1.msra.mxu0 0.0
  %91 = vmatprep.subr.mxu0 0.0
  %92 = vmatpush1.msra.mxu0 0.0
  %93 = vmatprep.subr.mxu0 0.0
  %94 = vmatpush1.msra.mxu0 0.0
  %95 = vmatprep.subr.mxu0 0.0
  %96 = vmatpush1.msra.mxu0 0.0
  %97 = vmatprep.subr.mxu0 0.0
  %98 = vmatpush1.msra.mxu0 0.0
  %99 = vmatprep.subr.mxu0 0.0
  %100 = vmatpush1.msra.mxu0 0.0
  %101 = vmatprep.subr.mxu0 0.0
  %102 = vmatpush1.msra.mxu0 0.0
  %103 = vmatprep.subr.mxu0 0.0
  %104 = vmatpush1.msra.mxu0 0.0
  %105 = vmatprep.subr.mxu0 0.0
  %106 = vmatpush1.msra.mxu0 0.0
  %107 = vmatprep.subr.mxu0 0.0
  %108 = vmatpush1.msra.mxu0 0.0
  %109 = vmatprep.subr.mxu0 0.0
  %110 = vmatpush1.msra.mxu0 0.0
  %111 = vmatprep.subr.mxu0 0.0
  %112 = vmatpush1.msra.mxu0 0.0
  %113 = vmatprep.mubr.f32.mxu0 0.0
  %114 = vmatmul.mubr.f32.gmra.mrb[0].mxu0 %v43
  %v115 = vpop.f32.mrb[0].mxu0
  %v116 = vadd.f32 0.0, %v115
  %v117 = vpop.f32.mrb[0].mxu0
  %118 = vdwg.mxu0
  %v120 = vsel %vm41, %v32, 0
  %v123 = vsel %vm45, %v31, 0
  %125 = vmatprep.subr.mxu0 0.0
  %126 = vmatpush1.msra.mxu0 %v123
  %127 = vmatprep.subr.mxu0 0.0
  %128 = vmatpush1.msra.mxu0 0.0
  %129 = vmatprep.subr.mxu0 0.0
  %130 = vmatpush1.msra.mxu0 0.0
  %131 = vmatprep.subr.mxu0 0.0
  %132 = vmatpush1.msra.mxu0 0.0
  %133 = vmatprep.subr.mxu0 0.0
  %134 = vmatpush1.msra.mxu0 0.0
  %135 = vmatprep.subr.mxu0 0.0
  %136 = vmatpush1.msra.mxu0 0.0
  %137 = vmatprep.subr.mxu0 0.0
  %138 = vmatpush1.msra.mxu0 0.0
  %139 = vmatprep.subr.mxu0 0.0
  %140 = vmatpush1.msra.mxu0 0.0
  %141 = vmatprep.subr.mxu0 0.0
  %142 = vmatpush1.msra.mxu0 0.0
  %143 = vmatprep.subr.mxu0 0.0
  %144 = vmatpush1.msra.mxu0 0.0
  %145 = vmatprep.subr.mxu0 0.0
  %146 = vmatpush1.msra.mxu0 0.0
  %147 = vmatprep.subr.mxu0 0.0
  %148 = vmatpush1.msra.mxu0 0.0
  %149 = vmatprep.subr.mxu0 0.0
  %150 = vmatpush1.msra.mxu0 0.0
  %151 = vmatprep.subr.mxu0 0.0
  %152 = vmatpush1.msra.mxu0 0.0
  %153 = vmatprep.subr.mxu0 0.0
  %154 = vmatpush1.msra.mxu0 0.0
  %155 = vmatprep.subr.mxu0 0.0
  %156 = vmatpush1.msra.mxu0 0.0
  %157 = vmatprep.subr.mxu0 0.0
  %158 = vmatpush1.msra.mxu0 0.0
  %159 = vmatprep.subr.mxu0 0.0
  %160 = vmatpush1.msra.mxu0 0.0
  %161 = vmatprep.subr.mxu0 0.0
  %162 = vmatpush1.msra.mxu0 0.0
  %163 = vmatprep.subr.mxu0 0.0
  %164 = vmatpush1.msra.mxu0 0.0
  %165 = vmatprep.subr.mxu0 0.0
  %166 = vmatpush1.msra.mxu0 0.0
  %167 = vmatprep.subr.mxu0 0.0
  %168 = vmatpush1.msra.mxu0 0.0
  %169 = vmatprep.subr.mxu0 0.0
  %170 = vmatpush1.msra.mxu0 0.0
  %171 = vmatprep.subr.mxu0 0.0
  %172 = vmatpush1.msra.mxu0 0.0
  %173 = vmatprep.subr.mxu0 0.0
  %174 = vmatpush1.msra.mxu0 0.0
  %175 = vmatprep.subr.mxu0 0.0
  %176 = vmatpush1.msra.mxu0 0.0
  %177 = vmatprep.subr.mxu0 0.0
  %178 = vmatpush1.msra.mxu0 0.0
  %179 = vmatprep.subr.mxu0 0.0
  %180 = vmatpush1.msra.mxu0 0.0
  %181 = vmatprep.subr.mxu0 0.0
  %182 = vmatpush1.msra.mxu0 0.0
  %183 = vmatprep.subr.mxu0 0.0
  %184 = vmatpush1.msra.mxu0 0.0
  %185 = vmatprep.subr.mxu0 0.0
  %186 = vmatpush1.msra.mxu0 0.0
  %187 = vmatprep.subr.mxu0 0.0
  %188 = vmatpush1.msra.mxu0 0.0
  %189 = vmatprep.mubr.f32.mxu0 0.0
  %190 = vmatmul.mubr.f32.gmra.mrb[0].mxu0 %v120
  %v191 = vpop.f32.mrb[0].mxu0
  %v192 = vadd.f32 %v116, %v191
  %v193 = vpop.f32.mrb[0].mxu0
  %194 = vdwg.mxu0
  %195 = vrot.lane.b32.xlu0 %v17, 7
  %v196 = vpop.permute.xlu0 %195
  %vm198 = vcmask 56320
  %v199 = vsel %vm198, 0.0, %v196
  %vm200 = vcmp.lt.s32.totalorder %v21, 7
  %vm201 = vmand %vm28, %vm200
  %v202 = vsel %vm201, %v199, 0.0
  %s203 = scalar_lea.vmem %s1, 16
  %v204 = vld [vmem:[%s203] sm:$0xff]
  %v206 = vsel %vm41, %v204, 0
  %v209 = vsel %vm45, %v202, 0
  %211 = vmatprep.subr.mxu0 0.0
  %212 = vmatpush1.msra.mxu0 %v209
  %213 = vmatprep.subr.mxu0 0.0
  %214 = vmatpush1.msra.mxu0 0.0
  %215 = vmatprep.subr.mxu0 0.0
  %216 = vmatpush1.msra.mxu0 0.0
  %217 = vmatprep.subr.mxu0 0.0
  %218 = vmatpush1.msra.mxu0 0.0
  %219 = vmatprep.subr.mxu0 0.0
  %220 = vmatpush1.msra.mxu0 0.0
  %221 = vmatprep.subr.mxu0 0.0
  %222 = vmatpush1.msra.mxu0 0.0
  %223 = vmatprep.subr.mxu0 0.0
  %224 = vmatpush1.msra.mxu0 0.0
  %225 = vmatprep.subr.mxu0 0.0
  %226 = vmatpush1.msra.mxu0 0.0
  %227 = vmatprep.subr.mxu0 0.0
  %228 = vmatpush1.msra.mxu0 0.0
  %229 = vmatprep.subr.mxu0 0.0
  %230 = vmatpush1.msra.mxu0 0.0
  %231 = vmatprep.subr.mxu0 0.0
  %232 = vmatpush1.msra.mxu0 0.0
  %233 = vmatprep.subr.mxu0 0.0
  %234 = vmatpush1.msra.mxu0 0.0
  %235 = vmatprep.subr.mxu0 0.0
  %236 = vmatpush1.msra.mxu0 0.0
  %237 = vmatprep.subr.mxu0 0.0
  %238 = vmatpush1.msra.mxu0 0.0
  %239 = vmatprep.subr.mxu0 0.0
  %240 = vmatpush1.msra.mxu0 0.0
  %241 = vmatprep.subr.mxu0 0.0
  %242 = vmatpush1.msra.mxu0 0.0
  %243 = vmatprep.subr.mxu0 0.0
  %244 = vmatpush1.msra.mxu0 0.0
  %245 = vmatprep.subr.mxu0 0.0
  %246 = vmatpush1.msra.mxu0 0.0
  %247 = vmatprep.subr.mxu0 0.0
  %248 = vmatpush1.msra.mxu0 0.0
  %249 = vmatprep.subr.mxu0 0.0
  %250 = vmatpush1.msra.mxu0 0.0
  %251 = vmatprep.subr.mxu0 0.0
  %252 = vmatpush1.msra.mxu0 0.0
  %253 = vmatprep.subr.mxu0 0.0
  %254 = vmatpush1.msra.mxu0 0.0
  %255 = vmatprep.subr.mxu0 0.0
  %256 = vmatpush1.msra.mxu0 0.0
  %257 = vmatprep.subr.mxu0 0.0
  %258 = vmatpush1.msra.mxu0 0.0
  %259 = vmatprep.subr.mxu0 0.0
  %260 = vmatpush1.msra.mxu0 0.0
  %261 = vmatprep.subr.mxu0 0.0
  %262 = vmatpush1.msra.mxu0 0.0
  %263 = vmatprep.subr.mxu0 0.0
  %264 = vmatpush1.msra.mxu0 0.0
  %265 = vmatprep.subr.mxu0 0.0
  %266 = vmatpush1.msra.mxu0 0.0
  %267 = vmatprep.subr.mxu0 0.0
  %268 = vmatpush1.msra.mxu0 0.0
  %269 = vmatprep.subr.mxu0 0.0
  %270 = vmatpush1.msra.mxu0 0.0
  %271 = vmatprep.subr.mxu0 0.0
  %272 = vmatpush1.msra.mxu0 0.0
  %273 = vmatprep.subr.mxu0 0.0
  %274 = vmatpush1.msra.mxu0 0.0
  %275 = vmatprep.mubr.f32.mxu0 0.0
  %276 = vmatmul.mubr.f32.gmra.mrb[0].mxu0 %v206
  %v277 = vpop.f32.mrb[0].mxu0
  %v278 = vadd.f32 0.0, %v277
  %v279 = vpop.f32.mrb[0].mxu0
  %280 = vdwg.mxu0
  %v281 = vadd.f32 %v192, %v278
  %282 = vrot.lane.b32.xlu0 %v17, 1
  %v283 = vpop.permute.xlu0 %282
  %vm285 = vcmask 7168
  %v286 = vsel %vm285, 0.0, %v283
  %v287 = vsel %vm29, %v286, 0.0
  %s288 = scalar_lea.vmem %s1, 24
  %v289 = vld [vmem:[%s288] sm:$0xff]
  %v291 = vsel %vm41, %v289, 0
  %v294 = vsel %vm45, %v287, 0
  %296 = vmatprep.subr.mxu0 0.0
  %297 = vmatpush1.msra.mxu0 %v294
  %298 = vmatprep.subr.mxu0 0.0
  %299 = vmatpush1.msra.mxu0 0.0
  %300 = vmatprep.subr.mxu0 0.0
  %301 = vmatpush1.msra.mxu0 0.0
  %302 = vmatprep.subr.mxu0 0.0
  %303 = vmatpush1.msra.mxu0 0.0
  %304 = vmatprep.subr.mxu0 0.0
  %305 = vmatpush1.msra.mxu0 0.0
  %306 = vmatprep.subr.mxu0 0.0
  %307 = vmatpush1.msra.mxu0 0.0
  %308 = vmatprep.subr.mxu0 0.0
  %309 = vmatpush1.msra.mxu0 0.0
  %310 = vmatprep.subr.mxu0 0.0
  %311 = vmatpush1.msra.mxu0 0.0
  %312 = vmatprep.subr.mxu0 0.0
  %313 = vmatpush1.msra.mxu0 0.0
  %314 = vmatprep.subr.mxu0 0.0
  %315 = vmatpush1.msra.mxu0 0.0
  %316 = vmatprep.subr.mxu0 0.0
  %317 = vmatpush1.msra.mxu0 0.0
  %318 = vmatprep.subr.mxu0 0.0
  %319 = vmatpush1.msra.mxu0 0.0
  %320 = vmatprep.subr.mxu0 0.0
  %321 = vmatpush1.msra.mxu0 0.0
  %322 = vmatprep.subr.mxu0 0.0
  %323 = vmatpush1.msra.mxu0 0.0
  %324 = vmatprep.subr.mxu0 0.0
  %325 = vmatpush1.msra.mxu0 0.0
  %326 = vmatprep.subr.mxu0 0.0
  %327 = vmatpush1.msra.mxu0 0.0
  %328 = vmatprep.subr.mxu0 0.0
  %329 = vmatpush1.msra.mxu0 0.0
  %330 = vmatprep.subr.mxu0 0.0
  %331 = vmatpush1.msra.mxu0 0.0
  %332 = vmatprep.subr.mxu0 0.0
  %333 = vmatpush1.msra.mxu0 0.0
  %334 = vmatprep.subr.mxu0 0.0
  %335 = vmatpush1.msra.mxu0 0.0
  %336 = vmatprep.subr.mxu0 0.0
  %337 = vmatpush1.msra.mxu0 0.0
  %338 = vmatprep.subr.mxu0 0.0
  %339 = vmatpush1.msra.mxu0 0.0
  %340 = vmatprep.subr.mxu0 0.0
  %341 = vmatpush1.msra.mxu0 0.0
  %342 = vmatprep.subr.mxu0 0.0
  %343 = vmatpush1.msra.mxu0 0.0
  %344 = vmatprep.subr.mxu0 0.0
  %345 = vmatpush1.msra.mxu0 0.0
  %346 = vmatprep.subr.mxu0 0.0
  %347 = vmatpush1.msra.mxu0 0.0
  %348 = vmatprep.subr.mxu0 0.0
  %349 = vmatpush1.msra.mxu0 0.0
  %350 = vmatprep.subr.mxu0 0.0
  %351 = vmatpush1.msra.mxu0 0.0
  %352 = vmatprep.subr.mxu0 0.0
  %353 = vmatpush1.msra.mxu0 0.0
  %354 = vmatprep.subr.mxu0 0.0
  %355 = vmatpush1.msra.mxu0 0.0
  %356 = vmatprep.subr.mxu0 0.0
  %357 = vmatpush1.msra.mxu0 0.0
  %358 = vmatprep.subr.mxu0 0.0
  %359 = vmatpush1.msra.mxu0 0.0
  %360 = vmatprep.mubr.f32.mxu0 0.0
  %361 = vmatmul.mubr.f32.gmra.mrb[0].mxu0 %v291
  %v362 = vpop.f32.mrb[0].mxu0
  %v363 = vadd.f32 0.0, %v362
  %v364 = vpop.f32.mrb[0].mxu0
  %365 = vdwg.mxu0
  %v366 = vadd.f32 %v281, %v363
  %s367 = scalar_lea.vmem %s1, 32
  %v368 = vld [vmem:[%s367] sm:$0xff]
  %v370 = vsel %vm41, %v368, 0
  %v372 = vsel %vm45, %v17, 0
  %374 = vmatprep.subr.mxu0 0.0
  %375 = vmatpush1.msra.mxu0 %v372
  %376 = vmatprep.subr.mxu0 0.0
  %377 = vmatpush1.msra.mxu0 0.0
  %378 = vmatprep.subr.mxu0 0.0
  %379 = vmatpush1.msra.mxu0 0.0
  %380 = vmatprep.subr.mxu0 0.0
  %381 = vmatpush1.msra.mxu0 0.0
  %382 = vmatprep.subr.mxu0 0.0
  %383 = vmatpush1.msra.mxu0 0.0
  %384 = vmatprep.subr.mxu0 0.0
  %385 = vmatpush1.msra.mxu0 0.0
  %386 = vmatprep.subr.mxu0 0.0
  %387 = vmatpush1.msra.mxu0 0.0
  %388 = vmatprep.subr.mxu0 0.0
  %389 = vmatpush1.msra.mxu0 0.0
  %390 = vmatprep.subr.mxu0 0.0
  %391 = vmatpush1.msra.mxu0 0.0
  %392 = vmatprep.subr.mxu0 0.0
  %393 = vmatpush1.msra.mxu0 0.0
  %394 = vmatprep.subr.mxu0 0.0
  %395 = vmatpush1.msra.mxu0 0.0
  %396 = vmatprep.subr.mxu0 0.0
  %397 = vmatpush1.msra.mxu0 0.0
  %398 = vmatprep.subr.mxu0 0.0
  %399 = vmatpush1.msra.mxu0 0.0
  %400 = vmatprep.subr.mxu0 0.0
  %401 = vmatpush1.msra.mxu0 0.0
  %402 = vmatprep.subr.mxu0 0.0
  %403 = vmatpush1.msra.mxu0 0.0
  %404 = vmatprep.subr.mxu0 0.0
  %405 = vmatpush1.msra.mxu0 0.0
  %406 = vmatprep.subr.mxu0 0.0
  %407 = vmatpush1.msra.mxu0 0.0
  %408 = vmatprep.subr.mxu0 0.0
  %409 = vmatpush1.msra.mxu0 0.0
  %410 = vmatprep.subr.mxu0 0.0
  %411 = vmatpush1.msra.mxu0 0.0
  %412 = vmatprep.subr.mxu0 0.0
  %413 = vmatpush1.msra.mxu0 0.0
  %414 = vmatprep.subr.mxu0 0.0
  %415 = vmatpush1.msra.mxu0 0.0
  %416 = vmatprep.subr.mxu0 0.0
  %417 = vmatpush1.msra.mxu0 0.0
  %418 = vmatprep.subr.mxu0 0.0
  %419 = vmatpush1.msra.mxu0 0.0
  %420 = vmatprep.subr.mxu0 0.0
  %421 = vmatpush1.msra.mxu0 0.0
  %422 = vmatprep.subr.mxu0 0.0
  %423 = vmatpush1.msra.mxu0 0.0
  %424 = vmatprep.subr.mxu0 0.0
  %425 = vmatpush1.msra.mxu0 0.0
  %426 = vmatprep.subr.mxu0 0.0
  %427 = vmatpush1.msra.mxu0 0.0
  %428 = vmatprep.subr.mxu0 0.0
  %429 = vmatpush1.msra.mxu0 0.0
  %430 = vmatprep.subr.mxu0 0.0
  %431 = vmatpush1.msra.mxu0 0.0
  %432 = vmatprep.subr.mxu0 0.0
  %433 = vmatpush1.msra.mxu0 0.0
  %434 = vmatprep.subr.mxu0 0.0
  %435 = vmatpush1.msra.mxu0 0.0
  %436 = vmatprep.subr.mxu0 0.0
  %437 = vmatpush1.msra.mxu0 0.0
  %438 = vmatprep.mubr.f32.mxu0 0.0
  %439 = vmatmul.mubr.f32.gmra.mrb[0].mxu0 %v370
  %v440 = vpop.f32.mrb[0].mxu0
  %v441 = vadd.f32 0.0, %v440
  %v442 = vpop.f32.mrb[0].mxu0
  %443 = vdwg.mxu0
  %v444 = vadd.f32 %v366, %v441
  %445 = vrot.lane.b32.xlu0 %v17, 127
  %v446 = vpop.permute.xlu0 %445
  %vm448 = vcmask 1039360
  %v449 = vsel %vm448, %v446, 0.0
  %v450 = vsel %vm200, %v449, 0.0
  %s451 = scalar_lea.vmem %s1, 40
  %v452 = vld [vmem:[%s451] sm:$0xff]
  %v454 = vsel %vm41, %v452, 0
  %v457 = vsel %vm45, %v450, 0
  %459 = vmatprep.subr.mxu0 0.0
  %460 = vmatpush1.msra.mxu0 %v457
  %461 = vmatprep.subr.mxu0 0.0
  %462 = vmatpush1.msra.mxu0 0.0
  %463 = vmatprep.subr.mxu0 0.0
  %464 = vmatpush1.msra.mxu0 0.0
  %465 = vmatprep.subr.mxu0 0.0
  %466 = vmatpush1.msra.mxu0 0.0
  %467 = vmatprep.subr.mxu0 0.0
  %468 = vmatpush1.msra.mxu0 0.0
  %469 = vmatprep.subr.mxu0 0.0
  %470 = vmatpush1.msra.mxu0 0.0
  %471 = vmatprep.subr.mxu0 0.0
  %472 = vmatpush1.msra.mxu0 0.0
  %473 = vmatprep.subr.mxu0 0.0
  %474 = vmatpush1.msra.mxu0 0.0
  %475 = vmatprep.subr.mxu0 0.0
  %476 = vmatpush1.msra.mxu0 0.0
  %477 = vmatprep.subr.mxu0 0.0
  %478 = vmatpush1.msra.mxu0 0.0
  %479 = vmatprep.subr.mxu0 0.0
  %480 = vmatpush1.msra.mxu0 0.0
  %481 = vmatprep.subr.mxu0 0.0
  %482 = vmatpush1.msra.mxu0 0.0
  %483 = vmatprep.subr.mxu0 0.0
  %484 = vmatpush1.msra.mxu0 0.0
  %485 = vmatprep.subr.mxu0 0.0
  %486 = vmatpush1.msra.mxu0 0.0
  %487 = vmatprep.subr.mxu0 0.0
  %488 = vmatpush1.msra.mxu0 0.0
  %489 = vmatprep.subr.mxu0 0.0
  %490 = vmatpush1.msra.mxu0 0.0
  %491 = vmatprep.subr.mxu0 0.0
  %492 = vmatpush1.msra.mxu0 0.0
  %493 = vmatprep.subr.mxu0 0.0
  %494 = vmatpush1.msra.mxu0 0.0
  %495 = vmatprep.subr.mxu0 0.0
  %496 = vmatpush1.msra.mxu0 0.0
  %497 = vmatprep.subr.mxu0 0.0
  %498 = vmatpush1.msra.mxu0 0.0
  %499 = vmatprep.subr.mxu0 0.0
  %500 = vmatpush1.msra.mxu0 0.0
  %501 = vmatprep.subr.mxu0 0.0
  %502 = vmatpush1.msra.mxu0 0.0
  %503 = vmatprep.subr.mxu0 0.0
  %504 = vmatpush1.msra.mxu0 0.0
  %505 = vmatprep.subr.mxu0 0.0
  %506 = vmatpush1.msra.mxu0 0.0
  %507 = vmatprep.subr.mxu0 0.0
  %508 = vmatpush1.msra.mxu0 0.0
  %509 = vmatprep.subr.mxu0 0.0
  %510 = vmatpush1.msra.mxu0 0.0
  %511 = vmatprep.subr.mxu0 0.0
  %512 = vmatpush1.msra.mxu0 0.0
  %513 = vmatprep.subr.mxu0 0.0
  %514 = vmatpush1.msra.mxu0 0.0
  %515 = vmatprep.subr.mxu0 0.0
  %516 = vmatpush1.msra.mxu0 0.0
  %517 = vmatprep.subr.mxu0 0.0
  %518 = vmatpush1.msra.mxu0 0.0
  %519 = vmatprep.subr.mxu0 0.0
  %520 = vmatpush1.msra.mxu0 0.0
  %521 = vmatprep.subr.mxu0 0.0
  %522 = vmatpush1.msra.mxu0 0.0
  %523 = vmatprep.mubr.f32.mxu0 0.0
  %524 = vmatmul.mubr.f32.gmra.mrb[0].mxu0 %v454
  %v525 = vpop.f32.mrb[0].mxu0
  %v526 = vadd.f32 0.0, %v525
  %v527 = vpop.f32.mrb[0].mxu0
  %528 = vdwg.mxu0
  %v529 = vadd.f32 %v444, %v526
  %530 = vrot.lane.b32.xlu0 %v17, 121
  %v531 = vpop.permute.xlu0 %530
  %vm533 = vcmask 990208
  %v534 = vsel %vm533, %v531, 0.0
  %vm535 = vcmp.lt.s32.totalorder %v20, 56
  %vm536 = vmand %vm535, %vm29
  %v537 = vsel %vm536, %v534, 0.0
  %s538 = scalar_lea.vmem %s1, 48
  %v539 = vld [vmem:[%s538] sm:$0xff]
  %v541 = vsel %vm41, %v539, 0
  %v544 = vsel %vm45, %v537, 0
  %546 = vmatprep.subr.mxu0 0.0
  %547 = vmatpush1.msra.mxu0 %v544
  %548 = vmatprep.subr.mxu0 0.0
  %549 = vmatpush1.msra.mxu0 0.0
  %550 = vmatprep.subr.mxu0 0.0
  %551 = vmatpush1.msra.mxu0 0.0
  %552 = vmatprep.subr.mxu0 0.0
  %553 = vmatpush1.msra.mxu0 0.0
  %554 = vmatprep.subr.mxu0 0.0
  %555 = vmatpush1.msra.mxu0 0.0
  %556 = vmatprep.subr.mxu0 0.0
  %557 = vmatpush1.msra.mxu0 0.0
  %558 = vmatprep.subr.mxu0 0.0
  %559 = vmatpush1.msra.mxu0 0.0
  %560 = vmatprep.subr.mxu0 0.0
  %561 = vmatpush1.msra.mxu0 0.0
  %562 = vmatprep.subr.mxu0 0.0
  %563 = vmatpush1.msra.mxu0 0.0
  %564 = vmatprep.subr.mxu0 0.0
  %565 = vmatpush1.msra.mxu0 0.0
  %566 = vmatprep.subr.mxu0 0.0
  %567 = vmatpush1.msra.mxu0 0.0
  %568 = vmatprep.subr.mxu0 0.0
  %569 = vmatpush1.msra.mxu0 0.0
  %570 = vmatprep.subr.mxu0 0.0
  %571 = vmatpush1.msra.mxu0 0.0
  %572 = vmatprep.subr.mxu0 0.0
  %573 = vmatpush1.msra.mxu0 0.0
  %574 = vmatprep.subr.mxu0 0.0
  %575 = vmatpush1.msra.mxu0 0.0
  %576 = vmatprep.subr.mxu0 0.0
  %577 = vmatpush1.msra.mxu0 0.0
  %578 = vmatprep.subr.mxu0 0.0
  %579 = vmatpush1.msra.mxu0 0.0
  %580 = vmatprep.subr.mxu0 0.0
  %581 = vmatpush1.msra.mxu0 0.0
  %582 = vmatprep.subr.mxu0 0.0
  %583 = vmatpush1.msra.mxu0 0.0
  %584 = vmatprep.subr.mxu0 0.0
  %585 = vmatpush1.msra.mxu0 0.0
  %586 = vmatprep.subr.mxu0 0.0
  %587 = vmatpush1.msra.mxu0 0.0
  %588 = vmatprep.subr.mxu0 0.0
  %589 = vmatpush1.msra.mxu0 0.0
  %590 = vmatprep.subr.mxu0 0.0
  %591 = vmatpush1.msra.mxu0 0.0
  %592 = vmatprep.subr.mxu0 0.0
  %593 = vmatpush1.msra.mxu0 0.0
  %594 = vmatprep.subr.mxu0 0.0
  %595 = vmatpush1.msra.mxu0 0.0
  %596 = vmatprep.subr.mxu0 0.0
  %597 = vmatpush1.msra.mxu0 0.0
  %598 = vmatprep.subr.mxu0 0.0
  %599 = vmatpush1.msra.mxu0 0.0
  %600 = vmatprep.subr.mxu0 0.0
  %601 = vmatpush1.msra.mxu0 0.0
  %602 = vmatprep.subr.mxu0 0.0
  %603 = vmatpush1.msra.mxu0 0.0
  %604 = vmatprep.subr.mxu0 0.0
  %605 = vmatpush1.msra.mxu0 0.0
  %606 = vmatprep.subr.mxu0 0.0
  %607 = vmatpush1.msra.mxu0 0.0
  %608 = vmatprep.subr.mxu0 0.0
  %609 = vmatpush1.msra.mxu0 0.0
  %610 = vmatprep.mubr.f32.mxu0 0.0
  %611 = vmatmul.mubr.f32.gmra.mrb[0].mxu0 %v541
  %v612 = vpop.f32.mrb[0].mxu0
  %v613 = vadd.f32 0.0, %v612
  %v614 = vpop.f32.mrb[0].mxu0
  %615 = vdwg.mxu0
  %v616 = vadd.f32 %v529, %v613
  %617 = vrot.lane.b32.xlu0 %v17, 120
  %v618 = vpop.permute.xlu0 %617
  %vm620 = vcmask 982016
  %v621 = vsel %vm620, %v618, 0.0
  %v622 = vsel %vm535, %v621, 0.0
  %s623 = scalar_lea.vmem %s1, 56
  %v624 = vld [vmem:[%s623] sm:$0xff]
  %v626 = vsel %vm41, %v624, 0
  %v629 = vsel %vm45, %v622, 0
  %631 = vmatprep.subr.mxu0 0.0
  %632 = vmatpush1.msra.mxu0 %v629
  %633 = vmatprep.subr.mxu0 0.0
  %634 = vmatpush1.msra.mxu0 0.0
  %635 = vmatprep.subr.mxu0 0.0
  %636 = vmatpush1.msra.mxu0 0.0
  %637 = vmatprep.subr.mxu0 0.0
  %638 = vmatpush1.msra.mxu0 0.0
  %639 = vmatprep.subr.mxu0 0.0
  %640 = vmatpush1.msra.mxu0 0.0
  %641 = vmatprep.subr.mxu0 0.0
  %642 = vmatpush1.msra.mxu0 0.0
  %643 = vmatprep.subr.mxu0 0.0
  %644 = vmatpush1.msra.mxu0 0.0
  %645 = vmatprep.subr.mxu0 0.0
  %646 = vmatpush1.msra.mxu0 0.0
  %647 = vmatprep.subr.mxu0 0.0
  %648 = vmatpush1.msra.mxu0 0.0
  %649 = vmatprep.subr.mxu0 0.0
  %650 = vmatpush1.msra.mxu0 0.0
  %651 = vmatprep.subr.mxu0 0.0
  %652 = vmatpush1.msra.mxu0 0.0
  %653 = vmatprep.subr.mxu0 0.0
  %654 = vmatpush1.msra.mxu0 0.0
  %655 = vmatprep.subr.mxu0 0.0
  %656 = vmatpush1.msra.mxu0 0.0
  %657 = vmatprep.subr.mxu0 0.0
  %658 = vmatpush1.msra.mxu0 0.0
  %659 = vmatprep.subr.mxu0 0.0
  %660 = vmatpush1.msra.mxu0 0.0
  %661 = vmatprep.subr.mxu0 0.0
  %662 = vmatpush1.msra.mxu0 0.0
  %663 = vmatprep.subr.mxu0 0.0
  %664 = vmatpush1.msra.mxu0 0.0
  %665 = vmatprep.subr.mxu0 0.0
  %666 = vmatpush1.msra.mxu0 0.0
  %667 = vmatprep.subr.mxu0 0.0
  %668 = vmatpush1.msra.mxu0 0.0
  %669 = vmatprep.subr.mxu0 0.0
  %670 = vmatpush1.msra.mxu0 0.0
  %671 = vmatprep.subr.mxu0 0.0
  %672 = vmatpush1.msra.mxu0 0.0
  %673 = vmatprep.subr.mxu0 0.0
  %674 = vmatpush1.msra.mxu0 0.0
  %675 = vmatprep.subr.mxu0 0.0
  %676 = vmatpush1.msra.mxu0 0.0
  %677 = vmatprep.subr.mxu0 0.0
  %678 = vmatpush1.msra.mxu0 0.0
  %679 = vmatprep.subr.mxu0 0.0
  %680 = vmatpush1.msra.mxu0 0.0
  %681 = vmatprep.subr.mxu0 0.0
  %682 = vmatpush1.msra.mxu0 0.0
  %683 = vmatprep.subr.mxu0 0.0
  %684 = vmatpush1.msra.mxu0 0.0
  %685 = vmatprep.subr.mxu0 0.0
  %686 = vmatpush1.msra.mxu0 0.0
  %687 = vmatprep.subr.mxu0 0.0
  %688 = vmatpush1.msra.mxu0 0.0
  %689 = vmatprep.subr.mxu0 0.0
  %690 = vmatpush1.msra.mxu0 0.0
  %691 = vmatprep.subr.mxu0 0.0
  %692 = vmatpush1.msra.mxu0 0.0
  %693 = vmatprep.subr.mxu0 0.0
  %694 = vmatpush1.msra.mxu0 0.0
  %695 = vmatprep.mubr.f32.mxu0 0.0
  %696 = vmatmul.mubr.f32.gmra.mrb[0].mxu0 %v626
  %v697 = vpop.f32.mrb[0].mxu0
  %v698 = vadd.f32 0.0, %v697
  %v699 = vpop.f32.mrb[0].mxu0
  %700 = vdwg.mxu0
  %v701 = vadd.f32 %v616, %v698
  %702 = vrot.lane.b32.xlu0 %v17, 119
  %v703 = vpop.permute.xlu0 %702
  %vm705 = vcmask 973824
  %v706 = vsel %vm705, %v703, 0.0
  %vm707 = vmand %vm535, %vm200
  %v708 = vsel %vm707, %v706, 0.0
  %s709 = scalar_lea.vmem %s1, 64
  %v710 = vld [vmem:[%s709] sm:$0xff]
  %v712 = vsel %vm41, %v710, 0
  %v715 = vsel %vm45, %v708, 0
  %717 = vmatprep.subr.mxu0 0.0
  %718 = vmatpush1.msra.mxu0 %v715
  %719 = vmatprep.subr.mxu0 0.0
  %720 = vmatpush1.msra.mxu0 0.0
  %721 = vmatprep.subr.mxu0 0.0
  %722 = vmatpush1.msra.mxu0 0.0
  %723 = vmatprep.subr.mxu0 0.0
  %724 = vmatpush1.msra.mxu0 0.0
  %725 = vmatprep.subr.mxu0 0.0
  %726 = vmatpush1.msra.mxu0 0.0
  %727 = vmatprep.subr.mxu0 0.0
  %728 = vmatpush1.msra.mxu0 0.0
  %729 = vmatprep.subr.mxu0 0.0
  %730 = vmatpush1.msra.mxu0 0.0
  %731 = vmatprep.subr.mxu0 0.0
  %732 = vmatpush1.msra.mxu0 0.0
  %733 = vmatprep.subr.mxu0 0.0
  %734 = vmatpush1.msra.mxu0 0.0
  %735 = vmatprep.subr.mxu0 0.0
  %736 = vmatpush1.msra.mxu0 0.0
  %737 = vmatprep.subr.mxu0 0.0
  %738 = vmatpush1.msra.mxu0 0.0
  %739 = vmatprep.subr.mxu0 0.0
  %740 = vmatpush1.msra.mxu0 0.0
  %741 = vmatprep.subr.mxu0 0.0
  %742 = vmatpush1.msra.mxu0 0.0
  %743 = vmatprep.subr.mxu0 0.0
  %744 = vmatpush1.msra.mxu0 0.0
  %745 = vmatprep.subr.mxu0 0.0
  %746 = vmatpush1.msra.mxu0 0.0
  %747 = vmatprep.subr.mxu0 0.0
  %748 = vmatpush1.msra.mxu0 0.0
  %749 = vmatprep.subr.mxu0 0.0
  %750 = vmatpush1.msra.mxu0 0.0
  %751 = vmatprep.subr.mxu0 0.0
  %752 = vmatpush1.msra.mxu0 0.0
  %753 = vmatprep.subr.mxu0 0.0
  %754 = vmatpush1.msra.mxu0 0.0
  %755 = vmatprep.subr.mxu0 0.0
  %756 = vmatpush1.msra.mxu0 0.0
  %757 = vmatprep.subr.mxu0 0.0
  %758 = vmatpush1.msra.mxu0 0.0
  %759 = vmatprep.subr.mxu0 0.0
  %760 = vmatpush1.msra.mxu0 0.0
  %761 = vmatprep.subr.mxu0 0.0
  %762 = vmatpush1.msra.mxu0 0.0
  %763 = vmatprep.subr.mxu0 0.0
  %764 = vmatpush1.msra.mxu0 0.0
  %765 = vmatprep.subr.mxu0 0.0
  %766 = vmatpush1.msra.mxu0 0.0
  %767 = vmatprep.subr.mxu0 0.0
  %768 = vmatpush1.msra.mxu0 0.0
  %769 = vmatprep.subr.mxu0 0.0
  %770 = vmatpush1.msra.mxu0 0.0
  %771 = vmatprep.subr.mxu0 0.0
  %772 = vmatpush1.msra.mxu0 0.0
  %773 = vmatprep.subr.mxu0 0.0
  %774 = vmatpush1.msra.mxu0 0.0
  %775 = vmatprep.subr.mxu0 0.0
  %776 = vmatpush1.msra.mxu0 0.0
  %777 = vmatprep.subr.mxu0 0.0
  %778 = vmatpush1.msra.mxu0 0.0
  %779 = vmatprep.subr.mxu0 0.0
  %780 = vmatpush1.msra.mxu0 0.0
  %781 = vmatprep.mubr.f32.mxu0 0.0
  %782 = vmatmul.mubr.f32.gmra.mrb[0].mxu0 %v712
  %v783 = vpop.f32.mrb[0].mxu0
  %v784 = vadd.f32 0.0, %v783
  %v785 = vpop.f32.mrb[0].mxu0
  %786 = vdwg.mxu0
  %v787 = vadd.f32 %v701, %v784
  %788 = vadd.xlane.f32.xlu0 %v787
  %v789 = vpop.xlane.xlu0 %788
  %v790 = vmul.f32 %v789, 0.0078125
  %v791 = vmul.f32 %v787, %v787
  %792 = vadd.xlane.f32.xlu0 %v791
  %v793 = vpop.xlane.xlu0 %792
  %v794 = vmul.f32 %v793, 0.0078125
  %v795 = vmul.f32 %v790, %v790
  %v796 = vsub.f32 %v794, %v795
  %v797 = vmax.f32 %v796, 0.0
  %v798 = vld [vmem:[%s2] sm:$0xff]
  %v799 = vadd.f32 %v797, 1e-05
  %v800 = vrsqrt.pop %v799
  %v801 = vmul.f32 %v798, %v800
  %v802 = vld [vmem:[%s3] sm:$0xff]
  %v803 = vmul.f32 %v790, %v801
  %v804 = vsub.f32 %v802, %v803
  %806 = vset.pattern.permute.xlu0 0
  %807 = vperm.xlu0 %806, %v801
  %v808 = vpop.permute.xlu0 %807
  %v810 = vmul.f32 %v787, %v808
  %812 = vset.pattern.permute.xlu0 0
  %813 = vperm.xlu0 %812, %v804
  %v814 = vpop.permute.xlu0 %813
  %v816 = vadd.f32 %v810, %v814
  %vm817 = vcmp.ge.f32.partialorder %v816, 0.0
  %v818 = vmul.f32 %v816, 0.01
  %v819 = vsel %vm817, %v816, %v818
  %820 = vst [vmem:[%s4] sm:$0xff] %v819
  // Predicated region
  $region18: #{vae_forward.14} parent=0 // pred_check
    _
  $region19: #{vae_forward.14} parent=0 // pred_check_branch
    %822 = sbr.rel (0) target = $region21
  $region20: #{vae_forward.14} parent=0 // pred_region
    _
  $region21: #{vae_forward.14} parent=0 // pred_fallthru
    _
  // Predicated region
  $region22: #{vae_forward.14} parent=0 // pred_check
    _
  $region23: #{vae_forward.14} parent=0 // pred_check_branch
    %824 = sbr.rel (0) target = $region25
  $region24: #{vae_forward.14} parent=0 // pred_region
    _
  $region25: #{vae_forward.14} parent=0 // pred_fallthru
    _

// kernel: vae_forward.17
$region0: #{vae_forward.17}
  #allocation0 [shape = 'u32[]', space=smem, size = 0x4, offset = 0x4, fixed_abs, tag = 'smem constant byte address 0x4 - core index']
  #allocation1 [shape = 'u32[144,128]{1,0:T(1,128)}', space=vmem, size = 0x12000, scoped, tag = 'internal scratch']
  %s0 = inlined_call_operand.vmem [shape: f32[8,512], index: 0, kind: input, shape index: {}]
  %s1 = inlined_call_operand.vmem [shape: f32[9,4,8], index: 1, kind: input, shape index: {}]
  %s2 = inlined_call_operand.vmem [shape: f32[4,1], index: 2, kind: input, shape index: {}]
  %s3 = inlined_call_operand.vmem [shape: f32[4,512], index: 3, kind: output, shape index: {}]
  %s4 = sld [smem:[#allocation0]]
  $region22: #{vae_forward.17} parent=0
    _
  %s6 = ssub.s32 1, %s4
  %s7 = scalar_select 0, %s6, %s4
  // Predicated region
  $region2: #{vae_forward.17} parent=0 // pred_check
    _
  $region3: #{vae_forward.17} parent=0 // pred_check_branch
    %9 = sbr.rel (0) target = $region5
  $region4: #{vae_forward.17} parent=0 // pred_region
    _
  $region5: #{vae_forward.17} parent=0 // pred_fallthru
    _
  // Predicated region
  $region6: #{vae_forward.17} parent=0 // pred_check
    _
  $region7: #{vae_forward.17} parent=0 // pred_check_branch
    %11 = sbr.rel (0) target = $region9
  $region8: #{vae_forward.17} parent=0 // pred_region
    _
  $region9: #{vae_forward.17} parent=0 // pred_fallthru
    _
  // Predicated region
  $region10: #{vae_forward.17} parent=0 // pred_check
    _
  $region11: #{vae_forward.17} parent=0 // pred_check_branch
    %13 = sbr.rel (0) target = $region13
  $region12: #{vae_forward.17} parent=0 // pred_region
    _
  $region13: #{vae_forward.17} parent=0 // pred_fallthru
    _
  %v14 = vld [vmem:[%s0] sm:$0xff]
  %v15 = vld [vmem:[%s0 + $0x8] sm:$0xff]
  %v16 = vld [vmem:[%s0 + $0x10] sm:$0xff]
  %v17 = vld [vmem:[%s0 + $0x18] sm:$0xff]
  %v18 = vlaneseq
  %v19 = vand.u32 %v18, 127
  %v20 = vadd.s32 %v19, 128
  %v21 = vadd.s32 %v19, 256
  %v22 = vadd.s32 %v19, 384
  %v23 = vand.u32 %v19, 255
  %v24 = vand.u32 %v20, 255
  %v25 = vand.u32 %v21, 255
  %v26 = vand.u32 %v22, 255
  %v27 = vand.u32 %v19, 15
  %v28 = vand.u32 %v20, 15
  %v29 = vand.u32 %v21, 15
  %v30 = vand.u32 %v22, 15
  %35 = vrot.lane.b32.xlu0 %v14, 17
  %v36 = vpop.permute.xlu0 %35
  %37 = vrot.lane.b32.xlu0 %v15, 17
  %v38 = vpop.permute.xlu0 %37
  %39 = vrot.lane.b32.xlu0 %v16, 17
  %v40 = vpop.permute.xlu0 %39
  %41 = vrot.lane.b32.xlu0 %v17, 17
  %v42 = vpop.permute.xlu0 %41
  %vm43 = vcmask 138240
  %v44 = vsel %vm43, %v36, %v38
  %v45 = vsel %vm43, %v38, %v40
  %v46 = vsel %vm43, %v40, %v42
  %v51 = vsel %vm43, 0.0, %v36
  %vm52 = vcmp.ge.s32.totalorder %v23, 16
  %vm53 = vcmp.ge.s32.totalorder %v24, 16
  %vm54 = vcmp.ge.s32.totalorder %v25, 16
  %vm55 = vcmp.ge.s32.totalorder %v26, 16
  %vm56 = vcmp.ge.s32.totalorder %v27, 1
  %vm57 = vcmp.ge.s32.totalorder %v28, 1
  %vm58 = vcmp.ge.s32.totalorder %v29, 1
  %vm59 = vcmp.ge.s32.totalorder %v30, 1
  %vm60 = vmand %vm52, %vm56
  %vm61 = vmand %vm53, %vm57
  %vm62 = vmand %vm54, %vm58
  %vm63 = vmand %vm55, %vm59
  %v64 = vsel %vm60, %v51, 0.0
  %v65 = vsel %vm61, %v44, 0.0
  %v66 = vsel %vm62, %v45, 0.0
  %v67 = vsel %vm63, %v46, 0.0
  %v68 = vld [vmem:[%s1] sm:$0xf]
  %69 = vrot.lane.b32.xlu0 %v14, 16
  %v70 = vpop.permute.xlu0 %69
  %71 = vrot.lane.b32.xlu0 %v15, 16
  %v72 = vpop.permute.xlu0 %71
  %73 = vrot.lane.b32.xlu0 %v16, 16
  %v74 = vpop.permute.xlu0 %73
  %75 = vrot.lane.b32.xlu0 %v17, 16
  %v76 = vpop.permute.xlu0 %75
  %vm77 = vcmask 130048
  %v78 = vsel %vm77, %v70, %v72
  %v79 = vsel %vm77, %v72, %v74
  %v80 = vsel %vm77, %v74, %v76
  %v85 = vsel %vm77, 0.0, %v70
  %v86 = vsel %vm52, %v85, 0.0
  %v87 = vsel %vm53, %v78, 0.0
  %v88 = vsel %vm54, %v79, 0.0
  %v89 = vsel %vm55, %v80, 0.0
  %s90 = scalar_lea.vmem %s1, 4
  %v91 = vld [vmem:[%s90] sm:$0xf]
  %vm92 = vcmask 64512
  %v94 = vsel %vm92, %v91, 0
  %96 = vmatprep.subr.mxu0 %v87
  %97 = vmatpush1.msra.mxu0 %v86
  %98 = vmatprep.subr.mxu0 0.0
  %99 = vmatpush1.msra.mxu0 0.0
  %100 = vmatprep.subr.mxu0 0.0
  %101 = vmatpush1.msra.mxu0 0.0
  %102 = vmatprep.subr.mxu0 0.0
  %103 = vmatpush1.msra.mxu0 0.0
  %104 = vmatprep.subr.mxu0 0.0
  %105 = vmatpush1.msra.mxu0 0.0
  %106 = vmatprep.subr.mxu0 0.0
  %107 = vmatpush1.msra.mxu0 0.0
  %108 = vmatprep.subr.mxu0 0.0
  %109 = vmatpush1.msra.mxu0 0.0
  %110 = vmatprep.subr.mxu0 0.0
  %111 = vmatpush1.msra.mxu0 0.0
  %112 = vmatprep.subr.mxu0 0.0
  %113 = vmatpush1.msra.mxu0 0.0
  %114 = vmatprep.subr.mxu0 0.0
  %115 = vmatpush1.msra.mxu0 0.0
  %116 = vmatprep.subr.mxu0 0.0
  %117 = vmatpush1.msra.mxu0 0.0
  %118 = vmatprep.subr.mxu0 0.0
  %119 = vmatpush1.msra.mxu0 0.0
  %120 = vmatprep.subr.mxu0 0.0
  %121 = vmatpush1.msra.mxu0 0.0
  %122 = vmatprep.subr.mxu0 0.0
  %123 = vmatpush1.msra.mxu0 0.0
  %124 = vmatprep.subr.mxu0 0.0
  %125 = vmatpush1.msra.mxu0 0.0
  %126 = vmatprep.subr.mxu0 0.0
  %127 = vmatpush1.msra.mxu0 0.0
  %128 = vmatprep.subr.mxu0 0.0
  %129 = vmatpush1.msra.mxu0 0.0
  %130 = vmatprep.subr.mxu0 0.0
  %131 = vmatpush1.msra.mxu0 0.0
  %132 = vmatprep.subr.mxu0 0.0
  %133 = vmatpush1.msra.mxu0 0.0
  %134 = vmatprep.subr.mxu0 0.0
  %135 = vmatpush1.msra.mxu0 0.0
  %136 = vmatprep.subr.mxu0 0.0
  %137 = vmatpush1.msra.mxu0 0.0
  %138 = vmatprep.subr.mxu0 0.0
  %139 = vmatpush1.msra.mxu0 0.0
  %140 = vmatprep.subr.mxu0 0.0
  %141 = vmatpush1.msra.mxu0 0.0
  %142 = vmatprep.subr.mxu0 0.0
  %143 = vmatpush1.msra.mxu0 0.0
  %144 = vmatprep.subr.mxu0 0.0
  %145 = vmatpush1.msra.mxu0 0.0
  %146 = vmatprep.subr.mxu0 0.0
  %147 = vmatpush1.msra.mxu0 0.0
  %148 = vmatprep.subr.mxu0 0.0
  %149 = vmatpush1.msra.mxu0 0.0
  %150 = vmatprep.subr.mxu0 0.0
  %151 = vmatpush1.msra.mxu0 0.0
  %152 = vmatprep.subr.mxu0 0.0
  %153 = vmatpush1.msra.mxu0 0.0
  %154 = vmatprep.subr.mxu0 0.0
  %155 = vmatpush1.msra.mxu0 0.0
  %156 = vmatprep.subr.mxu0 0.0
  %157 = vmatpush1.msra.mxu0 0.0
  %158 = vmatprep.subr.mxu0 0.0
  %159 = vmatpush1.msra.mxu0 0.0
  %160 = vmatprep.mubr.f32.mxu0 0.0
  %161 = vmatmul.mubr.f32.gmra.mrb[0].mxu0 %v94
  %v162 = vpop.f32.mrb[0].mxu0
  %v163 = vadd.f32 0.0, %v162
  %v164 = vpop.f32.mrb[0].mxu0
  %v165 = vadd.f32 0.0, %v164
  %166 = vdwg.mxu0
  %167 = vmatprep.subr.mxu0 %v89
  %168 = vmatpush1.msra.mxu0 %v88
  %169 = vmatprep.subr.mxu0 0.0
  %170 = vmatpush1.msra.mxu0 0.0
  %171 = vmatprep.subr.mxu0 0.0
  %172 = vmatpush1.msra.mxu0 0.0
  %173 = vmatprep.subr.mxu0 0.0
  %174 = vmatpush1.msra.mxu0 0.0
  %175 = vmatprep.subr.mxu0 0.0
  %176 = vmatpush1.msra.mxu0 0.0
  %177 = vmatprep.subr.mxu0 0.0
  %178 = vmatpush1.msra.mxu0 0.0
  %179 = vmatprep.subr.mxu0 0.0
  %180 = vmatpush1.msra.mxu0 0.0
  %181 = vmatprep.subr.mxu0 0.0
  %182 = vmatpush1.msra.mxu0 0.0
  %183 = vmatprep.subr.mxu0 0.0
  %184 = vmatpush1.msra.mxu0 0.0
  %185 = vmatprep.subr.mxu0 0.0
  %186 = vmatpush1.msra.mxu0 0.0
  %187 = vmatprep.subr.mxu0 0.0
  %188 = vmatpush1.msra.mxu0 0.0
  %189 = vmatprep.subr.mxu0 0.0
  %190 = vmatpush1.msra.mxu0 0.0
  %191 = vmatprep.subr.mxu0 0.0
  %192 = vmatpush1.msra.mxu0 0.0
  %193 = vmatprep.subr.mxu0 0.0
  %194 = vmatpush1.msra.mxu0 0.0
  %195 = vmatprep.subr.mxu0 0.0
  %196 = vmatpush1.msra.mxu0 0.0
  %197 = vmatprep.subr.mxu0 0.0
  %198 = vmatpush1.msra.mxu0 0.0
  %199 = vmatprep.subr.mxu0 0.0
  %200 = vmatpush1.msra.mxu0 0.0
  %201 = vmatprep.subr.mxu0 0.0
  %202 = vmatpush1.msra.mxu0 0.0
  %203 = vmatprep.subr.mxu0 0.0
  %204 = vmatpush1.msra.mxu0 0.0
  %205 = vmatprep.subr.mxu0 0.0
  %206 = vmatpush1.msra.mxu0 0.0
  %207 = vmatprep.subr.mxu0 0.0
  %208 = vmatpush1.msra.mxu0 0.0
  %209 = vmatprep.subr.mxu0 0.0
  %210 = vmatpush1.msra.mxu0 0.0
  %211 = vmatprep.subr.mxu0 0.0
  %212 = vmatpush1.msra.mxu0 0.0
  %213 = vmatprep.subr.mxu0 0.0
  %214 = vmatpush1.msra.mxu0 0.0
  %215 = vmatprep.subr.mxu0 0.0
  %216 = vmatpush1.msra.mxu0 0.0
  %217 = vmatprep.subr.mxu0 0.0
  %218 = vmatpush1.msra.mxu0 0.0
  %219 = vmatprep.subr.mxu0 0.0
  %220 = vmatpush1.msra.mxu0 0.0
  %221 = vmatprep.subr.mxu0 0.0
  %222 = vmatpush1.msra.mxu0 0.0
  %223 = vmatprep.subr.mxu0 0.0
  %224 = vmatpush1.msra.mxu0 0.0
  %225 = vmatprep.subr.mxu0 0.0
  %226 = vmatpush1.msra.mxu0 0.0
  %227 = vmatprep.subr.mxu0 0.0
  %228 = vmatpush1.msra.mxu0 0.0
  %229 = vmatprep.subr.mxu0 0.0
  %230 = vmatpush1.msra.mxu0 0.0
  %231 = vmatprep.mubr.f32.mxu0 0.0
  %232 = vmatmul.mubr.f32.gmra.mrb[0].mxu0 %v94
  %v233 = vpop.f32.mrb[0].mxu0
  %v234 = vadd.f32 0.0, %v233
  %v235 = vpop.f32.mrb[0].mxu0
  %v236 = vadd.f32 0.0, %v235
  %237 = vdwg.mxu0
  %v239 = vsel %vm92, %v68, 0
  %241 = vmatprep.subr.mxu0 %v65
  %242 = vmatpush1.msra.mxu0 %v64
  %243 = vmatprep.subr.mxu0 0.0
  %244 = vmatpush1.msra.mxu0 0.0
  %245 = vmatprep.subr.mxu0 0.0
  %246 = vmatpush1.msra.mxu0 0.0
  %247 = vmatprep.subr.mxu0 0.0
  %248 = vmatpush1.msra.mxu0 0.0
  %249 = vmatprep.subr.mxu0 0.0
  %250 = vmatpush1.msra.mxu0 0.0
  %251 = vmatprep.subr.mxu0 0.0
  %252 = vmatpush1.msra.mxu0 0.0
  %253 = vmatprep.subr.mxu0 0.0
  %254 = vmatpush1.msra.mxu0 0.0
  %255 = vmatprep.subr.mxu0 0.0
  %256 = vmatpush1.msra.mxu0 0.0
  %257 = vmatprep.subr.mxu0 0.0
  %258 = vmatpush1.msra.mxu0 0.0
  %259 = vmatprep.subr.mxu0 0.0
  %260 = vmatpush1.msra.mxu0 0.0
  %261 = vmatprep.subr.mxu0 0.0
  %262 = vmatpush1.msra.mxu0 0.0
  %263 = vmatprep.subr.mxu0 0.0
  %264 = vmatpush1.msra.mxu0 0.0
  %265 = vmatprep.subr.mxu0 0.0
  %266 = vmatpush1.msra.mxu0 0.0
  %267 = vmatprep.subr.mxu0 0.0
  %268 = vmatpush1.msra.mxu0 0.0
  %269 = vmatprep.subr.mxu0 0.0
  %270 = vmatpush1.msra.mxu0 0.0
  %271 = vmatprep.subr.mxu0 0.0
  %272 = vmatpush1.msra.mxu0 0.0
  %273 = vmatprep.subr.mxu0 0.0
  %274 = vmatpush1.msra.mxu0 0.0
  %275 = vmatprep.subr.mxu0 0.0
  %276 = vmatpush1.msra.mxu0 0.0
  %277 = vmatprep.subr.mxu0 0.0
  %278 = vmatpush1.msra.mxu0 0.0
  %279 = vmatprep.subr.mxu0 0.0
  %280 = vmatpush1.msra.mxu0 0.0
  %281 = vmatprep.subr.mxu0 0.0
  %282 = vmatpush1.msra.mxu0 0.0
  %283 = vmatprep.subr.mxu0 0.0
  %284 = vmatpush1.msra.mxu0 0.0
  %285 = vmatprep.subr.mxu0 0.0
  %286 = vmatpush1.msra.mxu0 0.0
  %287 = vmatprep.subr.mxu0 0.0
  %288 = vmatpush1.msra.mxu0 0.0
  %289 = vmatprep.subr.mxu0 0.0
  %290 = vmatpush1.msra.mxu0 0.0
  %291 = vmatprep.subr.mxu0 0.0
  %292 = vmatpush1.msra.mxu0 0.0
  %293 = vmatprep.subr.mxu0 0.0
  %294 = vmatpush1.msra.mxu0 0.0
  %295 = vmatprep.subr.mxu0 0.0
  %296 = vmatpush1.msra.mxu0 0.0
  %297 = vmatprep.subr.mxu0 0.0
  %298 = vmatpush1.msra.mxu0 0.0
  %299 = vmatprep.subr.mxu0 0.0
  %300 = vmatpush1.msra.mxu0 0.0
  %301 = vmatprep.subr.mxu0 0.0
  %302 = vmatpush1.msra.mxu0 0.0
  %303 = vmatprep.subr.mxu0 0.0
  %304 = vmatpush1.msra.mxu0 0.0
  %305 = vmatprep.mubr.f32.mxu0 0.0
  %306 = vmatmul.mubr.f32.gmra.mrb[0].mxu0 %v239
  %v307 = vpop.f32.mrb[0].mxu0
  %v308 = vadd.f32 %v163, %v307
  %v309 = vpop.f32.mrb[0].mxu0
  %v310 = vadd.f32 %v165, %v309
  %311 = vdwg.mxu0
  %312 = vmatprep.subr.mxu0 %v67
  %313 = vmatpush1.msra.mxu0 %v66
  %314 = vmatprep.subr.mxu0 0.0
  %315 = vmatpush1.msra.mxu0 0.0
  %316 = vmatprep.subr.mxu0 0.0
  %317 = vmatpush1.msra.mxu0 0.0
  %318 = vmatprep.subr.mxu0 0.0
  %319 = vmatpush1.msra.mxu0 0.0
  %320 = vmatprep.subr.mxu0 0.0
  %321 = vmatpush1.msra.mxu0 0.0
  %322 = vmatprep.subr.mxu0 0.0
  %323 = vmatpush1.msra.mxu0 0.0
  %324 = vmatprep.subr.mxu0 0.0
  %325 = vmatpush1.msra.mxu0 0.0
  %326 = vmatprep.subr.mxu0 0.0
  %327 = vmatpush1.msra.mxu0 0.0
  %328 = vmatprep.subr.mxu0 0.0
  %329 = vmatpush1.msra.mxu0 0.0
  %330 = vmatprep.subr.mxu0 0.0
  %331 = vmatpush1.msra.mxu0 0.0
  %332 = vmatprep.subr.mxu0 0.0
  %333 = vmatpush1.msra.mxu0 0.0
  %334 = vmatprep.subr.mxu0 0.0
  %335 = vmatpush1.msra.mxu0 0.0
  %336 = vmatprep.subr.mxu0 0.0
  %337 = vmatpush1.msra.mxu0 0.0
  %338 = vmatprep.subr.mxu0 0.0
  %339 = vmatpush1.msra.mxu0 0.0
  %340 = vmatprep.subr.mxu0 0.0
  %341 = vmatpush1.msra.mxu0 0.0
  %342 = vmatprep.subr.mxu0 0.0
  %343 = vmatpush1.msra.mxu0 0.0
  %344 = vmatprep.subr.mxu0 0.0
  %345 = vmatpush1.msra.mxu0 0.0
  %346 = vmatprep.subr.mxu0 0.0
  %347 = vmatpush1.msra.mxu0 0.0
  %348 = vmatprep.subr.mxu0 0.0
  %349 = vmatpush1.msra.mxu0 0.0
  %350 = vmatprep.subr.mxu0 0.0
  %351 = vmatpush1.msra.mxu0 0.0
  %352 = vmatprep.subr.mxu0 0.0
  %353 = vmatpush1.msra.mxu0 0.0
  %354 = vmatprep.subr.mxu0 0.0
  %355 = vmatpush1.msra.mxu0 0.0
  %356 = vmatprep.subr.mxu0 0.0
  %357 = vmatpush1.msra.mxu0 0.0
  %358 = vmatprep.subr.mxu0 0.0
  %359 = vmatpush1.msra.mxu0 0.0
  %360 = vmatprep.subr.mxu0 0.0
  %361 = vmatpush1.msra.mxu0 0.0
  %362 = vmatprep.subr.mxu0 0.0
  %363 = vmatpush1.msra.mxu0 0.0
  %364 = vmatprep.subr.mxu0 0.0
  %365 = vmatpush1.msra.mxu0 0.0
  %366 = vmatprep.subr.mxu0 0.0
  %367 = vmatpush1.msra.mxu0 0.0
  %368 = vmatprep.subr.mxu0 0.0
  %369 = vmatpush1.msra.mxu0 0.0
  %370 = vmatprep.subr.mxu0 0.0
  %371 = vmatpush1.msra.mxu0 0.0
  %372 = vmatprep.subr.mxu0 0.0
  %373 = vmatpush1.msra.mxu0 0.0
  %374 = vmatprep.subr.mxu0 0.0
  %375 = vmatpush1.msra.mxu0 0.0
  %376 = vmatprep.mubr.f32.mxu0 0.0
  %377 = vmatmul.mubr.f32.gmra.mrb[0].mxu0 %v239
  %v378 = vpop.f32.mrb[0].mxu0
  %v379 = vadd.f32 %v234, %v378
  %v380 = vpop.f32.mrb[0].mxu0
  %v381 = vadd.f32 %v236, %v380
  %382 = vdwg.mxu0
  %383 = vrot.lane.b32.xlu0 %v14, 15
  %v384 = vpop.permute.xlu0 %383
  %385 = vrot.lane.b32.xlu0 %v15, 15
  %v386 = vpop.permute.xlu0 %385
  %387 = vrot.lane.b32.xlu0 %v16, 15
  %v388 = vpop.permute.xlu0 %387
  %389 = vrot.lane.b32.xlu0 %v17, 15
  %v390 = vpop.permute.xlu0 %389
  %vm391 = vcmask 121856
  %v392 = vsel %vm391, %v384, %v386
  %v393 = vsel %vm391, %v386, %v388
  %v394 = vsel %vm391, %v388, %v390
  %v399 = vsel %vm391, 0.0, %v384
  %vm400 = vcmp.lt.s32.totalorder %v27, 15
  %vm401 = vcmp.lt.s32.totalorder %v28, 15
  %vm402 = vcmp.lt.s32.totalorder %v29, 15
  %vm403 = vcmp.lt.s32.totalorder %v30, 15
  %vm404 = vmand %vm52, %vm400
  %vm405 = vmand %vm53, %vm401
  %vm406 = vmand %vm54, %vm402
  %vm407 = vmand %vm55, %vm403
  %v408 = vsel %vm404, %v399, 0.0
  %v409 = vsel %vm405, %v392, 0.0
  %v410 = vsel %vm406, %v393, 0.0
  %v411 = vsel %vm407, %v394, 0.0
  %s412 = scalar_lea.vmem %s1, 8
  %v413 = vld [vmem:[%s412] sm:$0xf]
  %v415 = vsel %vm92, %v413, 0
  %417 = vmatprep.subr.mxu0 %v409
  %418 = vmatpush1.msra.mxu0 %v408
  %419 = vmatprep.subr.mxu0 0.0
  %420 = vmatpush1.msra.mxu0 0.0
  %421 = vmatprep.subr.mxu0 0.0
  %422 = vmatpush1.msra.mxu0 0.0
  %423 = vmatprep.subr.mxu0 0.0
  %424 = vmatpush1.msra.mxu0 0.0
  %425 = vmatprep.subr.mxu0 0.0
  %426 = vmatpush1.msra.mxu0 0.0
  %427 = vmatprep.subr.mxu0 0.0
  %428 = vmatpush1.msra.mxu0 0.0
  %429 = vmatprep.subr.mxu0 0.0
  %430 = vmatpush1.msra.mxu0 0.0
  %431 = vmatprep.subr.mxu0 0.0
  %432 = vmatpush1.msra.mxu0 0.0
  %433 = vmatprep.subr.mxu0 0.0
  %434 = vmatpush1.msra.mxu0 0.0
  %435 = vmatprep.subr.mxu0 0.0
  %436 = vmatpush1.msra.mxu0 0.0
  %437 = vmatprep.subr.mxu0 0.0
  %438 = vmatpush1.msra.mxu0 0.0
  %439 = vmatprep.subr.mxu0 0.0
  %440 = vmatpush1.msra.mxu0 0.0
  %441 = vmatprep.subr.mxu0 0.0
  %442 = vmatpush1.msra.mxu0 0.0
  %443 = vmatprep.subr.mxu0 0.0
  %444 = vmatpush1.msra.mxu0 0.0
  %445 = vmatprep.subr.mxu0 0.0
  %446 = vmatpush1.msra.mxu0 0.0
  %447 = vmatprep.subr.mxu0 0.0
  %448 = vmatpush1.msra.mxu0 0.0
  %449 = vmatprep.subr.mxu0 0.0
  %450 = vmatpush1.msra.mxu0 0.0
  %451 = vmatprep.subr.mxu0 0.0
  %452 = vmatpush1.msra.mxu0 0.0
  %453 = vmatprep.subr.mxu0 0.0
  %454 = vmatpush1.msra.mxu0 0.0
  %455 = vmatprep.subr.mxu0 0.0
  %456 = vmatpush1.msra.mxu0 0.0
  %457 = vmatprep.subr.mxu0 0.0
  %458 = vmatpush1.msra.mxu0 0.0
  %459 = vmatprep.subr.mxu0 0.0
  %460 = vmatpush1.msra.mxu0 0.0
  %461 = vmatprep.subr.mxu0 0.0
  %462 = vmatpush1.msra.mxu0 0.0
  %463 = vmatprep.subr.mxu0 0.0
  %464 = vmatpush1.msra.mxu0 0.0
  %465 = vmatprep.subr.mxu0 0.0
  %466 = vmatpush1.msra.mxu0 0.0
  %467 = vmatprep.subr.mxu0 0.0
  %468 = vmatpush1.msra.mxu0 0.0
  %469 = vmatprep.subr.mxu0 0.0
  %470 = vmatpush1.msra.mxu0 0.0
  %471 = vmatprep.subr.mxu0 0.0
  %472 = vmatpush1.msra.mxu0 0.0
  %473 = vmatprep.subr.mxu0 0.0
  %474 = vmatpush1.msra.mxu0 0.0
  %475 = vmatprep.subr.mxu0 0.0
  %476 = vmatpush1.msra.mxu0 0.0
  %477 = vmatprep.subr.mxu0 0.0
  %478 = vmatpush1.msra.mxu0 0.0
  %479 = vmatprep.subr.mxu0 0.0
  %480 = vmatpush1.msra.mxu0 0.0
  %481 = vmatprep.mubr.f32.mxu0 0.0
  %482 = vmatmul.mubr.f32.gmra.mrb[0].mxu0 %v415
  %v483 = vpop.f32.mrb[0].mxu0
  %v484 = vadd.f32 0.0, %v483
  %v485 = vpop.f32.mrb[0].mxu0
  %v486 = vadd.f32 0.0, %v485
  %487 = vdwg.mxu0
  %488 = vmatprep.subr.mxu0 %v411
  %489 = vmatpush1.msra.mxu0 %v410
  %490 = vmatprep.subr.mxu0 0.0
  %491 = vmatpush1.msra.mxu0 0.0
  %492 = vmatprep.subr.mxu0 0.0
  %493 = vmatpush1.msra.mxu0 0.0
  %494 = vmatprep.subr.mxu0 0.0
  %495 = vmatpush1.msra.mxu0 0.0
  %496 = vmatprep.subr.mxu0 0.0
  %497 = vmatpush1.msra.mxu0 0.0
  %498 = vmatprep.subr.mxu0 0.0
  %499 = vmatpush1.msra.mxu0 0.0
  %500 = vmatprep.subr.mxu0 0.0
  %501 = vmatpush1.msra.mxu0 0.0
  %502 = vmatprep.subr.mxu0 0.0
  %503 = vmatpush1.msra.mxu0 0.0
  %504 = vmatprep.subr.mxu0 0.0
  %505 = vmatpush1.msra.mxu0 0.0
  %506 = vmatprep.subr.mxu0 0.0
  %507 = vmatpush1.msra.mxu0 0.0
  %508 = vmatprep.subr.mxu0 0.0
  %509 = vmatpush1.msra.mxu0 0.0
  %510 = vmatprep.subr.mxu0 0.0
  %511 = vmatpush1.msra.mxu0 0.0
  %512 = vmatprep.subr.mxu0 0.0
  %513 = vmatpush1.msra.mxu0 0.0
  %514 = vmatprep.subr.mxu0 0.0
  %515 = vmatpush1.msra.mxu0 0.0
  %516 = vmatprep.subr.mxu0 0.0
  %517 = vmatpush1.msra.mxu0 0.0
  %518 = vmatprep.subr.mxu0 0.0
  %519 = vmatpush1.msra.mxu0 0.0
  %520 = vmatprep.subr.mxu0 0.0
  %521 = vmatpush1.msra.mxu0 0.0
  %522 = vmatprep.subr.mxu0 0.0
  %523 = vmatpush1.msra.mxu0 0.0
  %524 = vmatprep.subr.mxu0 0.0
  %525 = vmatpush1.msra.mxu0 0.0
  %526 = vmatprep.subr.mxu0 0.0
  %527 = vmatpush1.msra.mxu0 0.0
  %528 = vmatprep.subr.mxu0 0.0
  %529 = vmatpush1.msra.mxu0 0.0
  %530 = vmatprep.subr.mxu0 0.0
  %531 = vmatpush1.msra.mxu0 0.0
  %532 = vmatprep.subr.mxu0 0.0
  %533 = vmatpush1.msra.mxu0 0.0
  %534 = vmatprep.subr.mxu0 0.0
  %535 = vmatpush1.msra.mxu0 0.0
  %536 = vmatprep.subr.mxu0 0.0
  %537 = vmatpush1.msra.mxu0 0.0
  %538 = vmatprep.subr.mxu0 0.0
  %539 = vmatpush1.msra.mxu0 0.0
  %540 = vmatprep.subr.mxu0 0.0
  %541 = vmatpush1.msra.mxu0 0.0
  %542 = vmatprep.subr.mxu0 0.0
  %543 = vmatpush1.msra.mxu0 0.0
  %544 = vmatprep.subr.mxu0 0.0
  %545 = vmatpush1.msra.mxu0 0.0
  %546 = vmatprep.subr.mxu0 0.0
  %547 = vmatpush1.msra.mxu0 0.0
  %548 = vmatprep.subr.mxu0 0.0
  %549 = vmatpush1.msra.mxu0 0.0
  %550 = vmatprep.subr.mxu0 0.0
  %551 = vmatpush1.msra.mxu0 0.0
  %552 = vmatprep.mubr.f32.mxu0 0.0
  %553 = vmatmul.mubr.f32.gmra.mrb[0].mxu0 %v415
  %v554 = vpop.f32.mrb[0].mxu0
  %v555 = vadd.f32 0.0, %v554
  %v556 = vpop.f32.mrb[0].mxu0
  %v557 = vadd.f32 0.0, %v556
  %558 = vdwg.mxu0
  %v559 = vadd.f32 %v308, %v484
  %v560 = vadd.f32 %v310, %v486
  %v561 = vadd.f32 %v379, %v555
  %v562 = vadd.f32 %v381, %v557
  %563 = vrot.lane.b32.xlu0 %v14, 1
  %v564 = vpop.permute.xlu0 %563
  %565 = vrot.lane.b32.xlu0 %v15, 1
  %v566 = vpop.permute.xlu0 %565
  %567 = vrot.lane.b32.xlu0 %v16, 1
  %v568 = vpop.permute.xlu0 %567
  %569 = vrot.lane.b32.xlu0 %v17, 1
  %v570 = vpop.permute.xlu0 %569
  %vm571 = vcmask 7168
  %v572 = vsel %vm571, %v564, %v566
  %v573 = vsel %vm571, %v566, %v568
  %v574 = vsel %vm571, %v568, %v570
  %v579 = vsel %vm571, 0.0, %v564
  %v580 = vsel %vm56, %v579, 0.0
  %v581 = vsel %vm57, %v572, 0.0
  %v582 = vsel %vm58, %v573, 0.0
  %v583 = vsel %vm59, %v574, 0.0
  %s584 = scalar_lea.vmem %s1, 12
  %v585 = vld [vmem:[%s584] sm:$0xf]
  %v587 = vsel %vm92, %v585, 0
  %589 = vmatprep.subr.mxu0 %v581
  %590 = vmatpush1.msra.mxu0 %v580
  %591 = vmatprep.subr.mxu0 0.0
  %592 = vmatpush1.msra.mxu0 0.0
  %593 = vmatprep.subr.mxu0 0.0
  %594 = vmatpush1.msra.mxu0 0.0
  %595 = vmatprep.subr.mxu0 0.0
  %596 = vmatpush1.msra.mxu0 0.0
  %597 = vmatprep.subr.mxu0 0.0
  %598 = vmatpush1.msra.mxu0 0.0
  %599 = vmatprep.subr.mxu0 0.0
  %600 = vmatpush1.msra.mxu0 0.0
  %601 = vmatprep.subr.mxu0 0.0
  %602 = vmatpush1.msra.mxu0 0.0
  %603 = vmatprep.subr.mxu0 0.0
  %604 = vmatpush1.msra.mxu0 0.0
  %605 = vmatprep.subr.mxu0 0.0
  %606 = vmatpush1.msra.mxu0 0.0
  %607 = vmatprep.subr.mxu0 0.0
  %608 = vmatpush1.msra.mxu0 0.0
  %609 = vmatprep.subr.mxu0 0.0
  %610 = vmatpush1.msra.mxu0 0.0
  %611 = vmatprep.subr.mxu0 0.0
  %612 = vmatpush1.msra.mxu0 0.0
  %613 = vmatprep.subr.mxu0 0.0
  %614 = vmatpush1.msra.mxu0 0.0
  %615 = vmatprep.subr.mxu0 0.0
  %616 = vmatpush1.msra.mxu0 0.0
  %617 = vmatprep.subr.mxu0 0.0
  %618 = vmatpush1.msra.mxu0 0.0
  %619 = vmatprep.subr.mxu0 0.0
  %620 = vmatpush1.msra.mxu0 0.0
  %621 = vmatprep.subr.mxu0 0.0
  %622 = vmatpush1.msra.mxu0 0.0
  %623 = vmatprep.subr.mxu0 0.0
  %624 = vmatpush1.msra.mxu0 0.0
  %625 = vmatprep.subr.mxu0 0.0
  %626 = vmatpush1.msra.mxu0 0.0
  %627 = vmatprep.subr.mxu0 0.0
  %628 = vmatpush1.msra.mxu0 0.0
  %629 = vmatprep.subr.mxu0 0.0
  %630 = vmatpush1.msra.mxu0 0.0
  %631 = vmatprep.subr.mxu0 0.0
  %632 = vmatpush1.msra.mxu0 0.0
  %633 = vmatprep.subr.mxu0 0.0
  %634 = vmatpush1.msra.mxu0 0.0
  %635 = vmatprep.subr.mxu0 0.0
  %636 = vmatpush1.msra.mxu0 0.0
  %637 = vmatprep.subr.mxu0 0.0
  %638 = vmatpush1.msra.mxu0 0.0
  %639 = vmatprep.subr.mxu0 0.0
  %640 = vmatpush1.msra.mxu0 0.0
  %641 = vmatprep.subr.mxu0 0.0
  %642 = vmatpush1.msra.mxu0 0.0
  %643 = vmatprep.subr.mxu0 0.0
  %644 = vmatpush1.msra.mxu0 0.0
  %645 = vmatprep.subr.mxu0 0.0
  %646 = vmatpush1.msra.mxu0 0.0
  %647 = vmatprep.subr.mxu0 0.0
  %648 = vmatpush1.msra.mxu0 0.0
  %649 = vmatprep.subr.mxu0 0.0
  %650 = vmatpush1.msra.mxu0 0.0
  %651 = vmatprep.subr.mxu0 0.0
  %652 = vmatpush1.msra.mxu0 0.0
  %653 = vmatprep.mubr.f32.mxu0 0.0
  %654 = vmatmul.mubr.f32.gmra.mrb[0].mxu0 %v587
  %v655 = vpop.f32.mrb[0].mxu0
  %v656 = vadd.f32 0.0, %v655
  %v657 = vpop.f32.mrb[0].mxu0
  %v658 = vadd.f32 0.0, %v657
  %659 = vdwg.mxu0
  %660 = vmatprep.subr.mxu0 %v583
  %661 = vmatpush1.msra.mxu0 %v582
  %662 = vmatprep.subr.mxu0 0.0
  %663 = vmatpush1.msra.mxu0 0.0
  %664 = vmatprep.subr.mxu0 0.0
  %665 = vmatpush1.msra.mxu0 0.0
  %666 = vmatprep.subr.mxu0 0.0
  %667 = vmatpush1.msra.mxu0 0.0
  %668 = vmatprep.subr.mxu0 0.0
  %669 = vmatpush1.msra.mxu0 0.0
  %670 = vmatprep.subr.mxu0 0.0
  %671 = vmatpush1.msra.mxu0 0.0
  %672 = vmatprep.subr.mxu0 0.0
  %673 = vmatpush1.msra.mxu0 0.0
  %674 = vmatprep.subr.mxu0 0.0
  %675 = vmatpush1.msra.mxu0 0.0
  %676 = vmatprep.subr.mxu0 0.0
  %677 = vmatpush1.msra.mxu0 0.0
  %678 = vmatprep.subr.mxu0 0.0
  %679 = vmatpush1.msra.mxu0 0.0
  %680 = vmatprep.subr.mxu0 0.0
  %681 = vmatpush1.msra.mxu0 0.0
  %682 = vmatprep.subr.mxu0 0.0
  %683 = vmatpush1.msra.mxu0 0.0
  %684 = vmatprep.subr.mxu0 0.0
  %685 = vmatpush1.msra.mxu0 0.0
  %686 = vmatprep.subr.mxu0 0.0
  %687 = vmatpush1.msra.mxu0 0.0
  %688 = vmatprep.subr.mxu0 0.0
  %689 = vmatpush1.msra.mxu0 0.0
  %690 = vmatprep.subr.mxu0 0.0
  %691 = vmatpush1.msra.mxu0 0.0
  %692 = vmatprep.subr.mxu0 0.0
  %693 = vmatpush1.msra.mxu0 0.0
  %694 = vmatprep.subr.mxu0 0.0
  %695 = vmatpush1.msra.mxu0 0.0
  %696 = vmatprep.subr.mxu0 0.0
  %697 = vmatpush1.msra.mxu0 0.0
  %698 = vmatprep.subr.mxu0 0.0
  %699 = vmatpush1.msra.mxu0 0.0
  %700 = vmatprep.subr.mxu0 0.0
  %701 = vmatpush1.msra.mxu0 0.0
  %702 = vmatprep.subr.mxu0 0.0
  %703 = vmatpush1.msra.mxu0 0.0
  %704 = vmatprep.subr.mxu0 0.0
  %705 = vmatpush1.msra.mxu0 0.0
  %706 = vmatprep.subr.mxu0 0.0
  %707 = vmatpush1.msra.mxu0 0.0
  %708 = vmatprep.subr.mxu0 0.0
  %709 = vmatpush1.msra.mxu0 0.0
  %710 = vmatprep.subr.mxu0 0.0
  %711 = vmatpush1.msra.mxu0 0.0
  %712 = vmatprep.subr.mxu0 0.0
  %713 = vmatpush1.msra.mxu0 0.0
  %714 = vmatprep.subr.mxu0 0.0
  %715 = vmatpush1.msra.mxu0 0.0
  %716 = vmatprep.subr.mxu0 0.0
  %717 = vmatpush1.msra.mxu0 0.0
  %718 = vmatprep.subr.mxu0 0.0
  %719 = vmatpush1.msra.mxu0 0.0
  %720 = vmatprep.subr.mxu0 0.0
  %721 = vmatpush1.msra.mxu0 0.0
  %722 = vmatprep.subr.mxu0 0.0
  %723 = vmatpush1.msra.mxu0 0.0
  %724 = vmatprep.mubr.f32.mxu0 0.0
  %725 = vmatmul.mubr.f32.gmra.mrb[0].mxu0 %v587
  %v726 = vpop.f32.mrb[0].mxu0
  %v727 = vadd.f32 0.0, %v726
  %v728 = vpop.f32.mrb[0].mxu0
  %v729 = vadd.f32 0.0, %v728
  %730 = vdwg.mxu0
  %v731 = vadd.f32 %v559, %v656
  %v732 = vadd.f32 %v560, %v658
  %v733 = vadd.f32 %v561, %v727
  %v734 = vadd.f32 %v562, %v729
  %s735 = scalar_lea.vmem %s1, 16
  %v736 = vld [vmem:[%s735] sm:$0xf]
  %v738 = vsel %vm92, %v736, 0
  %740 = vmatprep.subr.mxu0 %v15
  %741 = vmatpush1.msra.mxu0 %v14
  %742 = vmatprep.subr.mxu0 0.0
  %743 = vmatpush1.msra.mxu0 0.0
  %744 = vmatprep.subr.mxu0 0.0
  %745 = vmatpush1.msra.mxu0 0.0
  %746 = vmatprep.subr.mxu0 0.0
  %747 = vmatpush1.msra.mxu0 0.0
  %748 = vmatprep.subr.mxu0 0.0
  %749 = vmatpush1.msra.mxu0 0.0
  %750 = vmatprep.subr.mxu0 0.0
  %751 = vmatpush1.msra.mxu0 0.0
  %752 = vmatprep.subr.mxu0 0.0
  %753 = vmatpush1.msra.mxu0 0.0
  %754 = vmatprep.subr.mxu0 0.0
  %755 = vmatpush1.msra.mxu0 0.0
  %756 = vmatprep.subr.mxu0 0.0
  %757 = vmatpush1.msra.mxu0 0.0
  %758 = vmatprep.subr.mxu0 0.0
  %759 = vmatpush1.msra.mxu0 0.0
  %760 = vmatprep.subr.mxu0 0.0
  %761 = vmatpush1.msra.mxu0 0.0
  %762 = vmatprep.subr.mxu0 0.0
  %763 = vmatpush1.msra.mxu0 0.0
  %764 = vmatprep.subr.mxu0 0.0
  %765 = vmatpush1.msra.mxu0 0.0
  %766 = vmatprep.subr.mxu0 0.0
  %767 = vmatpush1.msra.mxu0 0.0
  %768 = vmatprep.subr.mxu0 0.0
  %769 = vmatpush1.msra.mxu0 0.0
  %770 = vmatprep.subr.mxu0 0.0
  %771 = vmatpush1.msra.mxu0 0.0
  %772 = vmatprep.subr.mxu0 0.0
  %773 = vmatpush1.msra.mxu0 0.0
  %774 = vmatprep.subr.mxu0 0.0
  %775 = vmatpush1.msra.mxu0 0.0
  %776 = vmatprep.subr.mxu0 0.0
  %777 = vmatpush1.msra.mxu0 0.0
  %778 = vmatprep.subr.mxu0 0.0
  %779 = vmatpush1.msra.mxu0 0.0
  %780 = vmatprep.subr.mxu0 0.0
  %781 = vmatpush1.msra.mxu0 0.0
  %782 = vmatprep.subr.mxu0 0.0
  %783 = vmatpush1.msra.mxu0 0.0
  %784 = vmatprep.subr.mxu0 0.0
  %785 = vmatpush1.msra.mxu0 0.0
  %786 = vmatprep.subr.mxu0 0.0
  %787 = vmatpush1.msra.mxu0 0.0
  %788 = vmatprep.subr.mxu0 0.0
  %789 = vmatpush1.msra.mxu0 0.0
  %790 = vmatprep.subr.mxu0 0.0
  %791 = vmatpush1.msra.mxu0 0.0
  %792 = vmatprep.subr.mxu0 0.0
  %793 = vmatpush1.msra.mxu0 0.0
  %794 = vmatprep.subr.mxu0 0.0
  %795 = vmatpush1.msra.mxu0 0.0
  %796 = vmatprep.subr.mxu0 0.0
  %797 = vmatpush1.msra.mxu0 0.0
  %798 = vmatprep.subr.mxu0 0.0
  %799 = vmatpush1.msra.mxu0 0.0
  %800 = vmatprep.subr.mxu0 0.0
  %801 = vmatpush1.msra.mxu0 0.0
  %802 = vmatprep.subr.mxu0 0.0
  %803 = vmatpush1.msra.mxu0 0.0
  %804 = vmatprep.mubr.f32.mxu0 0.0
  %805 = vmatmul.mubr.f32.gmra.mrb[0].mxu0 %v738
  %v806 = vpop.f32.mrb[0].mxu0
  %v807 = vadd.f32 0.0, %v806
  %v808 = vpop.f32.mrb[0].mxu0
  %v809 = vadd.f32 0.0, %v808
  %810 = vdwg.mxu0
  %811 = vmatprep.subr.mxu0 %v17
  %812 = vmatpush1.msra.mxu0 %v16
  %813 = vmatprep.subr.mxu0 0.0
  %814 = vmatpush1.msra.mxu0 0.0
  %815 = vmatprep.subr.mxu0 0.0
  %816 = vmatpush1.msra.mxu0 0.0
  %817 = vmatprep.subr.mxu0 0.0
  %818 = vmatpush1.msra.mxu0 0.0
  %819 = vmatprep.subr.mxu0 0.0
  %820 = vmatpush1.msra.mxu0 0.0
  %821 = vmatprep.subr.mxu0 0.0
  %822 = vmatpush1.msra.mxu0 0.0
  %823 = vmatprep.subr.mxu0 0.0
  %824 = vmatpush1.msra.mxu0 0.0
  %825 = vmatprep.subr.mxu0 0.0
  %826 = vmatpush1.msra.mxu0 0.0
  %827 = vmatprep.subr.mxu0 0.0
  %828 = vmatpush1.msra.mxu0 0.0
  %829 = vmatprep.subr.mxu0 0.0
  %830 = vmatpush1.msra.mxu0 0.0
  %831 = vmatprep.subr.mxu0 0.0
  %832 = vmatpush1.msra.mxu0 0.0
  %833 = vmatprep.subr.mxu0 0.0
  %834 = vmatpush1.msra.mxu0 0.0
  %835 = vmatprep.subr.mxu0 0.0
  %836 = vmatpush1.msra.mxu0 0.0
  %837 = vmatprep.subr.mxu0 0.0
  %838 = vmatpush1.msra.mxu0 0.0
  %839 = vmatprep.subr.mxu0 0.0
  %840 = vmatpush1.msra.mxu0 0.0
  %841 = vmatprep.subr.mxu0 0.0
  %842 = vmatpush1.msra.mxu0 0.0
  %843 = vmatprep.subr.mxu0 0.0
  %844 = vmatpush1.msra.mxu0 0.0
  %845 = vmatprep.subr.mxu0 0.0
  %846 = vmatpush1.msra.mxu0 0.0
  %847 = vmatprep.subr.mxu0 0.0
  %848 = vmatpush1.msra.mxu0 0.0
  %849 = vmatprep.subr.mxu0 0.0
  %850 = vmatpush1.msra.mxu0 0.0
  %851 = vmatprep.subr.mxu0 0.0
  %852 = vmatpush1.msra.mxu0 0.0
  %853 = vmatprep.subr.mxu0 0.0
  %854 = vmatpush1.msra.mxu0 0.0
  %855 = vmatprep.subr.mxu0 0.0
  %856 = vmatpush1.msra.mxu0 0.0
  %857 = vmatprep.subr.mxu0 0.0
  %858 = vmatpush1.msra.mxu0 0.0
  %859 = vmatprep.subr.mxu0 0.0
  %860 = vmatpush1.msra.mxu0 0.0
  %861 = vmatprep.subr.mxu0 0.0
  %862 = vmatpush1.msra.mxu0 0.0
  %863 = vmatprep.subr.mxu0 0.0
  %864 = vmatpush1.msra.mxu0 0.0
  %865 = vmatprep.subr.mxu0 0.0
  %866 = vmatpush1.msra.mxu0 0.0
  %867 = vmatprep.subr.mxu0 0.0
  %868 = vmatpush1.msra.mxu0 0.0
  %869 = vmatprep.subr.mxu0 0.0
  %870 = vmatpush1.msra.mxu0 0.0
  %871 = vmatprep.subr.mxu0 0.0
  %872 = vmatpush1.msra.mxu0 0.0
  %873 = vmatprep.subr.mxu0 0.0
  %874 = vmatpush1.msra.mxu0 0.0
  %875 = vmatprep.mubr.f32.mxu0 0.0
  %876 = vmatmul.mubr.f32.gmra.mrb[0].mxu0 %v738
  %v877 = vpop.f32.mrb[0].mxu0
  %v878 = vadd.f32 0.0, %v877
  %v879 = vpop.f32.mrb[0].mxu0
  %v880 = vadd.f32 0.0, %v879
  %881 = vdwg.mxu0
  %v882 = vadd.f32 %v731, %v807
  %v883 = vadd.f32 %v732, %v809
  %v884 = vadd.f32 %v733, %v878
  %v885 = vadd.f32 %v734, %v880
  %886 = vrot.lane.b32.xlu0 %v14, 127
  %v887 = vpop.permute.xlu0 %886
  %888 = vrot.lane.b32.xlu0 %v15, 127
  %v889 = vpop.permute.xlu0 %888
  %890 = vrot.lane.b32.xlu0 %v16, 127
  %v891 = vpop.permute.xlu0 %890
  %892 = vrot.lane.b32.xlu0 %v17, 127
  %v893 = vpop.permute.xlu0 %892
  %vm894 = vcmask 1039360
  %v895 = vsel %vm894, %v887, %v889
  %v896 = vsel %vm894, %v889, %v891
  %v897 = vsel %vm894, %v891, %v893
  %v902 = vsel %vm894, %v893, 0.0
  %v903 = vsel %vm400, %v895, 0.0
  %v904 = vsel %vm401, %v896, 0.0
  %v905 = vsel %vm402, %v897, 0.0
  %v906 = vsel %vm403, %v902, 0.0
  %s907 = scalar_lea.vmem %s1, 20
  %v908 = vld [vmem:[%s907] sm:$0xf]
  %v910 = vsel %vm92, %v908, 0
  %912 = vmatprep.subr.mxu0 %v904
  %913 = vmatpush1.msra.mxu0 %v903
  %914 = vmatprep.subr.mxu0 0.0
  %915 = vmatpush1.msra.mxu0 0.0
  %916 = vmatprep.subr.mxu0 0.0
  %917 = vmatpush1.msra.mxu0 0.0
  %918 = vmatprep.subr.mxu0 0.0
  %919 = vmatpush1.msra.mxu0 0.0
  %920 = vmatprep.subr.mxu0 0.0
  %921 = vmatpush1.msra.mxu0 0.0
  %922 = vmatprep.subr.mxu0 0.0
  %923 = vmatpush1.msra.mxu0 0.0
  %924 = vmatprep.subr.mxu0 0.0
  %925 = vmatpush1.msra.mxu0 0.0
  %926 = vmatprep.subr.mxu0 0.0
  %927 = vmatpush1.msra.mxu0 0.0
  %928 = vmatprep.subr.mxu0 0.0
  %929 = vmatpush1.msra.mxu0 0.0
  %930 = vmatprep.subr.mxu0 0.0
  %931 = vmatpush1.msra.mxu0 0.0
  %932 = vmatprep.subr.mxu0 0.0
  %933 = vmatpush1.msra.mxu0 0.0
  %934 = vmatprep.subr.mxu0 0.0
  %935 = vmatpush1.msra.mxu0 0.0
  %936 = vmatprep.subr.mxu0 0.0
  %937 = vmatpush1.msra.mxu0 0.0
  %938 = vmatprep.subr.mxu0 0.0
  %939 = vmatpush1.msra.mxu0 0.0
  %940 = vmatprep.subr.mxu0 0.0
  %941 = vmatpush1.msra.mxu0 0.0
  %942 = vmatprep.subr.mxu0 0.0
  %943 = vmatpush1.msra.mxu0 0.0
  %944 = vmatprep.subr.mxu0 0.0
  %945 = vmatpush1.msra.mxu0 0.0
  %946 = vmatprep.subr.mxu0 0.0
  %947 = vmatpush1.msra.mxu0 0.0
  %948 = vmatprep.subr.mxu0 0.0
  %949 = vmatpush1.msra.mxu0 0.0
  %950 = vmatprep.subr.mxu0 0.0
  %951 = vmatpush1.msra.mxu0 0.0
  %952 = vmatprep.subr.mxu0 0.0
  %953 = vmatpush1.msra.mxu0 0.0
  %954 = vmatprep.subr.mxu0 0.0
  %955 = vmatpush1.msra.mxu0 0.0
  %956 = vmatprep.subr.mxu0 0.0
  %957 = vmatpush1.msra.mxu0 0.0
  %958 = vmatprep.subr.mxu0 0.0
  %959 = vmatpush1.msra.mxu0 0.0
  %960 = vmatprep.subr.mxu0 0.0
  %961 = vmatpush1.msra.mxu0 0.0
  %962 = vmatprep.subr.mxu0 0.0
  %963 = vmatpush1.msra.mxu0 0.0
  %964 = vmatprep.subr.mxu0 0.0
  %965 = vmatpush1.msra.mxu0 0.0
  %966 = vmatprep.subr.mxu0 0.0
  %967 = vmatpush1.msra.mxu0 0.0
  %968 = vmatprep.subr.mxu0 0.0
  %969 = vmatpush1.msra.mxu0 0.0
  %970 = vmatprep.subr.mxu0 0.0
  %971 = vmatpush1.msra.mxu0 0.0
  %972 = vmatprep.subr.mxu0 0.0
  %973 = vmatpush1.msra.mxu0 0.0
  %974 = vmatprep.subr.mxu0 0.0
  %975 = vmatpush1.msra.mxu0 0.0
  %976 = vmatprep.mubr.f32.mxu0 0.0
  %977 = vmatmul.mubr.f32.gmra.mrb[0].mxu0 %v910
  %v978 = vpop.f32.mrb[0].mxu0
  %v979 = vadd.f32 0.0, %v978
  %v980 = vpop.f32.mrb[0].mxu0
  %v981 = vadd.f32 0.0, %v980
  %982 = vdwg.mxu0
  %983 = vmatprep.subr.mxu0 %v906
  %984 = vmatpush1.msra.mxu0 %v905
  %985 = vmatprep.subr.mxu0 0.0
  %986 = vmatpush1.msra.mxu0 0.0
  %987 = vmatprep.subr.mxu0 0.0
  %988 = vmatpush1.msra.mxu0 0.0
  %989 = vmatprep.subr.mxu0 0.0
  %990 = vmatpush1.msra.mxu0 0.0
  %991 = vmatprep.subr.mxu0 0.0
  %992 = vmatpush1.msra.mxu0 0.0
  %993 = vmatprep.subr.mxu0 0.0
  %994 = vmatpush1.msra.mxu0 0.0
  %995 = vmatprep.subr.mxu0 0.0
  %996 = vmatpush1.msra.mxu0 0.0
  %997 = vmatprep.subr.mxu0 0.0
  %998 = vmatpush1.msra.mxu0 0.0
  %999 = vmatprep.subr.mxu0 0.0
  %1000 = vmatpush1.msra.mxu0 0.0
  %1001 = vmatprep.subr.mxu0 0.0
  %1002 = vmatpush1.msra.mxu0 0.0
  %1003 = vmatprep.subr.mxu0 0.0
  %1004 = vmatpush1.msra.mxu0 0.0
  %1005 = vmatprep.subr.mxu0 0.0
  %1006 = vmatpush1.msra.mxu0 0.0
  %1007 = vmatprep.subr.mxu0 0.0
  %1008 = vmatpush1.msra.mxu0 0.0
  %1009 = vmatprep.subr.mxu0 0.0
  %1010 = vmatpush1.msra.mxu0 0.0
  %1011 = vmatprep.subr.mxu0 0.0
  %1012 = vmatpush1.msra.mxu0 0.0
  %1013 = vmatprep.subr.mxu0 0.0
  %1014 = vmatpush1.msra.mxu0 0.0
  %1015 = vmatprep.subr.mxu0 0.0
  %1016 = vmatpush1.msra.mxu0 0.0
  %1017 = vmatprep.subr.mxu0 0.0
  %1018 = vmatpush1.msra.mxu0 0.0
  %1019 = vmatprep.subr.mxu0 0.0
  %1020 = vmatpush1.msra.mxu0 0.0
  %1021 = vmatprep.subr.mxu0 0.0
  %1022 = vmatpush1.msra.mxu0 0.0
  %1023 = vmatprep.subr.mxu0 0.0
  %1024 = vmatpush1.msra.mxu0 0.0
  %1025 = vmatprep.subr.mxu0 0.0
  %1026 = vmatpush1.msra.mxu0 0.0
  %1027 = vmatprep.subr.mxu0 0.0
  %1028 = vmatpush1.msra.mxu0 0.0
  %1029 = vmatprep.subr.mxu0 0.0
  %1030 = vmatpush1.msra.mxu0 0.0
  %1031 = vmatprep.subr.mxu0 0.0
  %1032 = vmatpush1.msra.mxu0 0.0
  %1033 = vmatprep.subr.mxu0 0.0
  %1034 = vmatpush1.msra.mxu0 0.0
  %1035 = vmatprep.subr.mxu0 0.0
  %1036 = vmatpush1.msra.mxu0 0.0
  %1037 = vmatprep.subr.mxu0 0.0
  %1038 = vmatpush1.msra.mxu0 0.0
  %1039 = vmatprep.subr.mxu0 0.0
  %1040 = vmatpush1.msra.mxu0 0.0
  %1041 = vmatprep.subr.mxu0 0.0
  %1042 = vmatpush1.msra.mxu0 0.0
  %1043 = vmatprep.subr.mxu0 0.0
  %1044 = vmatpush1.msra.mxu0 0.0
  %1045 = vmatprep.subr.mxu0 0.0
  %1046 = vmatpush1.msra.mxu0 0.0
  %1047 = vmatprep.mubr.f32.mxu0 0.0
  %1048 = vmatmul.mubr.f32.gmra.mrb[0].mxu0 %v910
  %v1049 = vpop.f32.mrb[0].mxu0
  %v1050 = vadd.f32 0.0, %v1049
  %v1051 = vpop.f32.mrb[0].mxu0
  %v1052 = vadd.f32 0.0, %v1051
  %1053 = vdwg.mxu0
  %v1054 = vadd.f32 %v882, %v979
  %v1055 = vadd.f32 %v883, %v981
  %v1056 = vadd.f32 %v884, %v1050
  %v1057 = vadd.f32 %v885, %v1052
  %1058 = vrot.lane.b32.xlu0 %v14, 113
  %v1059 = vpop.permute.xlu0 %1058
  %1060 = vrot.lane.b32.xlu0 %v15, 113
  %v1061 = vpop.permute.xlu0 %1060
  %1062 = vrot.lane.b32.xlu0 %v16, 113
  %v1063 = vpop.permute.xlu0 %1062
  %1064 = vrot.lane.b32.xlu0 %v17, 113
  %v1065 = vpop.permute.xlu0 %1064
  %vm1066 = vcmask 924672
  %v1067 = vsel %vm1066, %v1059, %v1061
  %v1068 = vsel %vm1066, %v1061, %v1063
  %v1069 = vsel %vm1066, %v1063, %v1065
  %v1074 = vsel %vm1066, %v1065, 0.0
  %vm1075 = vcmp.lt.s32.totalorder %v23, 240
  %vm1076 = vcmp.lt.s32.totalorder %v24, 240
  %vm1077 = vcmp.lt.s32.totalorder %v25, 240
  %vm1078 = vcmp.lt.s32.totalorder %v26, 240
  %vm1079 = vmand %vm1075, %vm56
  %vm1080 = vmand %vm1076, %vm57
  %vm1081 = vmand %vm1077, %vm58
  %vm1082 = vmand %vm1078, %vm59
  %v1083 = vsel %vm1079, %v1067, 0.0
  %v1084 = vsel %vm1080, %v1068, 0.0
  %v1085 = vsel %vm1081, %v1069, 0.0
  %v1086 = vsel %vm1082, %v1074, 0.0
  %s1087 = scalar_lea.vmem %s1, 24
  %v1088 = vld [vmem:[%s1087] sm:$0xf]
  %v1090 = vsel %vm92, %v1088, 0
  %1092 = vmatprep.subr.mxu0 %v1084
  %1093 = vmatpush1.msra.mxu0 %v1083
  %1094 = vmatprep.subr.mxu0 0.0
  %1095 = vmatpush1.msra.mxu0 0.0
  %1096 = vmatprep.subr.mxu0 0.0
  %1097 = vmatpush1.msra.mxu0 0.0
  %1098 = vmatprep.subr.mxu0 0.0
  %1099 = vmatpush1.msra.mxu0 0.0
  %1100 = vmatprep.subr.mxu0 0.0
  %1101 = vmatpush1.msra.mxu0 0.0
  %1102 = vmatprep.subr.mxu0 0.0
  %1103 = vmatpush1.msra.mxu0 0.0
  %1104 = vmatprep.subr.mxu0 0.0
  %1105 = vmatpush1.msra.mxu0 0.0
  %1106 = vmatprep.subr.mxu0 0.0
  %1107 = vmatpush1.msra.mxu0 0.0
  %1108 = vmatprep.subr.mxu0 0.0
  %1109 = vmatpush1.msra.mxu0 0.0
  %1110 = vmatprep.subr.mxu0 0.0
  %1111 = vmatpush1.msra.mxu0 0.0
  %1112 = vmatprep.subr.mxu0 0.0
  %1113 = vmatpush1.msra.mxu0 0.0
  %1114 = vmatprep.subr.mxu0 0.0
  %1115 = vmatpush1.msra.mxu0 0.0
  %1116 = vmatprep.subr.mxu0 0.0
  %1117 = vmatpush1.msra.mxu0 0.0
  %1118 = vmatprep.subr.mxu0 0.0
  %1119 = vmatpush1.msra.mxu0 0.0
  %1120 = vmatprep.subr.mxu0 0.0
  %1121 = vmatpush1.msra.mxu0 0.0
  %1122 = vmatprep.subr.mxu0 0.0
  %1123 = vmatpush1.msra.mxu0 0.0
  %1124 = vmatprep.subr.mxu0 0.0
  %1125 = vmatpush1.msra.mxu0 0.0
  %1126 = vmatprep.subr.mxu0 0.0
  %1127 = vmatpush1.msra.mxu0 0.0
  %1128 = vmatprep.subr.mxu0 0.0
  %1129 = vmatpush1.msra.mxu0 0.0
  %1130 = vmatprep.subr.mxu0 0.0
  %1131 = vmatpush1.msra.mxu0 0.0
  %1132 = vmatprep.subr.mxu0 0.0
  %1133 = vmatpush1.msra.mxu0 0.0
  %1134 = vmatprep.subr.mxu0 0.0
  %1135 = vmatpush1.msra.mxu0 0.0
  %1136 = vmatprep.subr.mxu0 0.0
  %1137 = vmatpush1.msra.mxu0 0.0
  %1138 = vmatprep.subr.mxu0 0.0
  %1139 = vmatpush1.msra.mxu0 0.0
  %1140 = vmatprep.subr.mxu0 0.0
  %1141 = vmatpush1.msra.mxu0 0.0
  %1142 = vmatprep.subr.mxu0 0.0
  %1143 = vmatpush1.msra.mxu0 0.0
  %1144 = vmatprep.subr.mxu0 0.0
  %1145 = vmatpush1.msra.mxu0 0.0
  %1146 = vmatprep.subr.mxu0 0.0
  %1147 = vmatpush1.msra.mxu0 0.0
  %1148 = vmatprep.subr.mxu0 0.0
  %1149 = vmatpush1.msra.mxu0 0.0
  %1150 = vmatprep.subr.mxu0 0.0
  %1151 = vmatpush1.msra.mxu0 0.0
  %1152 = vmatprep.subr.mxu0 0.0
  %1153 = vmatpush1.msra.mxu0 0.0
  %1154 = vmatprep.subr.mxu0 0.0
  %1155 = vmatpush1.msra.mxu0 0.0
  %1156 = vmatprep.mubr.f32.mxu0 0.0
  %1157 = vmatmul.mubr.f32.gmra.mrb[0].mxu0 %v1090
  %v1158 = vpop.f32.mrb[0].mxu0
  %v1159 = vadd.f32 0.0, %v1158
  %v1160 = vpop.f32.mrb[0].mxu0
  %v1161 = vadd.f32 0.0, %v1160
  %1162 = vdwg.mxu0
  %1163 = vmatprep.subr.mxu0 %v1086
  %1164 = vmatpush1.msra.mxu0 %v1085
  %1165 = vmatprep.subr.mxu0 0.0
  %1166 = vmatpush1.msra.mxu0 0.0
  %1167 = vmatprep.subr.mxu0 0.0
  %1168 = vmatpush1.msra.mxu0 0.0
  %1169 = vmatprep.subr.mxu0 0.0
  %1170 = vmatpush1.msra.mxu0 0.0
  %1171 = vmatprep.subr.mxu0 0.0
  %1172 = vmatpush1.msra.mxu0 0.0
  %1173 = vmatprep.subr.mxu0 0.0
  %1174 = vmatpush1.msra.mxu0 0.0
  %1175 = vmatprep.subr.mxu0 0.0
  %1176 = vmatpush1.msra.mxu0 0.0
  %1177 = vmatprep.subr.mxu0 0.0
  %1178 = vmatpush1.msra.mxu0 0.0
  %1179 = vmatprep.subr.mxu0 0.0
  %1180 = vmatpush1.msra.mxu0 0.0
  %1181 = vmatprep.subr.mxu0 0.0
  %1182 = vmatpush1.msra.mxu0 0.0
  %1183 = vmatprep.subr.mxu0 0.0
  %1184 = vmatpush1.msra.mxu0 0.0
  %1185 = vmatprep.subr.mxu0 0.0
  %1186 = vmatpush1.msra.mxu0 0.0
  %1187 = vmatprep.subr.mxu0 0.0
  %1188 = vmatpush1.msra.mxu0 0.0
  %1189 = vmatprep.subr.mxu0 0.0
  %1190 = vmatpush1.msra.mxu0 0.0
  %1191 = vmatprep.subr.mxu0 0.0
  %1192 = vmatpush1.msra.mxu0 0.0
  %1193 = vmatprep.subr.mxu0 0.0
  %1194 = vmatpush1.msra.mxu0 0.0
  %1195 = vmatprep.subr.mxu0 0.0
  %1196 = vmatpush1.msra.mxu0 0.0
  %1197 = vmatprep.subr.mxu0 0.0
  %1198 = vmatpush1.msra.mxu0 0.0
  %1199 = vmatprep.subr.mxu0 0.0
  %1200 = vmatpush1.msra.mxu0 0.0
  %1201 = vmatprep.subr.mxu0 0.0
  %1202 = vmatpush1.msra.mxu0 0.0
  %1203 = vmatprep.subr.mxu0 0.0
  %1204 = vmatpush1.msra.mxu0 0.0
  %1205 = vmatprep.subr.mxu0 0.0
  %1206 = vmatpush1.msra.mxu0 0.0
  %1207 = vmatprep.subr.mxu0 0.0
  %1208 = vmatpush1.msra.mxu0 0.0
  %1209 = vmatprep.subr.mxu0 0.0
  %1210 = vmatpush1.msra.mxu0 0.0
  %1211 = vmatprep.subr.mxu0 0.0
  %1212 = vmatpush1.msra.mxu0 0.0
  %1213 = vmatprep.subr.mxu0 0.0
  %1214 = vmatpush1.msra.mxu0 0.0
  %1215 = vmatprep.subr.mxu0 0.0
  %1216 = vmatpush1.msra.mxu0 0.0
  %1217 = vmatprep.subr.mxu0 0.0
  %1218 = vmatpush1.msra.mxu0 0.0
  %1219 = vmatprep.subr.mxu0 0.0
  %1220 = vmatpush1.msra.mxu0 0.0
  %1221 = vmatprep.subr.mxu0 0.0
  %1222 = vmatpush1.msra.mxu0 0.0
  %1223 = vmatprep.subr.mxu0 0.0
  %1224 = vmatpush1.msra.mxu0 0.0
  %1225 = vmatprep.subr.mxu0 0.0
  %1226 = vmatpush1.msra.mxu0 0.0
  %1227 = vmatprep.mubr.f32.mxu0 0.0
  %1228 = vmatmul.mubr.f32.gmra.mrb[0].mxu0 %v1090
  %v1229 = vpop.f32.mrb[0].mxu0
  %v1230 = vadd.f32 0.0, %v1229
  %v1231 = vpop.f32.mrb[0].mxu0
  %v1232 = vadd.f32 0.0, %v1231
  %1233 = vdwg.mxu0
  %v1234 = vadd.f32 %v1054, %v1159
  %v1235 = vadd.f32 %v1055, %v1161
  %v1236 = vadd.f32 %v1056, %v1230
  %v1237 = vadd.f32 %v1057, %v1232
  %1238 = vrot.lane.b32.xlu0 %v14, 112
  %v1239 = vpop.permute.xlu0 %1238
  %1240 = vrot.lane.b32.xlu0 %v15, 112
  %v1241 = vpop.permute.xlu0 %1240
  %1242 = vrot.lane.b32.xlu0 %v16, 112
  %v1243 = vpop.permute.xlu0 %1242
  %1244 = vrot.lane.b32.xlu0 %v17, 112
  %v1245 = vpop.permute.xlu0 %1244
  %vm1246 = vcmask 916480
  %v1247 = vsel %vm1246, %v1239, %v1241
  %v1248 = vsel %vm1246, %v1241, %v1243
  %v1249 = vsel %vm1246, %v1243, %v1245
  %v1254 = vsel %vm1246, %v1245, 0.0
  %v1255 = vsel %vm1075, %v1247, 0.0
  %v1256 = vsel %vm1076, %v1248, 0.0
  %v1257 = vsel %vm1077, %v1249, 0.0
  %v1258 = vsel %vm1078, %v1254, 0.0
  %s1259 = scalar_lea.vmem %s1, 28
  %v1260 = vld [vmem:[%s1259] sm:$0xf]
  %v1262 = vsel %vm92, %v1260, 0
  %1264 = vmatprep.subr.mxu0 %v1256
  %1265 = vmatpush1.msra.mxu0 %v1255
  %1266 = vmatprep.subr.mxu0 0.0
  %1267 = vmatpush1.msra.mxu0 0.0
  %1268 = vmatprep.subr.mxu0 0.0
  %1269 = vmatpush1.msra.mxu0 0.0
  %1270 = vmatprep.subr.mxu0 0.0
  %1271 = vmatpush1.msra.mxu0 0.0
  %1272 = vmatprep.subr.mxu0 0.0
  %1273 = vmatpush1.msra.mxu0 0.0
  %1274 = vmatprep.subr.mxu0 0.0
  %1275 = vmatpush1.msra.mxu0 0.0
  %1276 = vmatprep.subr.mxu0 0.0
  %1277 = vmatpush1.msra.mxu0 0.0
  %1278 = vmatprep.subr.mxu0 0.0
  %1279 = vmatpush1.msra.mxu0 0.0
  %1280 = vmatprep.subr.mxu0 0.0
  %1281 = vmatpush1.msra.mxu0 0.0
  %1282 = vmatprep.subr.mxu0 0.0
  %1283 = vmatpush1.msra.mxu0 0.0
  %1284 = vmatprep.subr.mxu0 0.0
  %1285 = vmatpush1.msra.mxu0 0.0
  %1286 = vmatprep.subr.mxu0 0.0
  %1287 = vmatpush1.msra.mxu0 0.0
  %1288 = vmatprep.subr.mxu0 0.0
  %1289 = vmatpush1.msra.mxu0 0.0
  %1290 = vmatprep.subr.mxu0 0.0
  %1291 = vmatpush1.msra.mxu0 0.0
  %1292 = vmatprep.subr.mxu0 0.0
  %1293 = vmatpush1.msra.mxu0 0.0
  %1294 = vmatprep.subr.mxu0 0.0
  %1295 = vmatpush1.msra.mxu0 0.0
  %1296 = vmatprep.subr.mxu0 0.0
  %1297 = vmatpush1.msra.mxu0 0.0
  %1298 = vmatprep.subr.mxu0 0.0
  %1299 = vmatpush1.msra.mxu0 0.0
  %1300 = vmatprep.subr.mxu0 0.0
  %1301 = vmatpush1.msra.mxu0 0.0
  %1302 = vmatprep.subr.mxu0 0.0
  %1303 = vmatpush1.msra.mxu0 0.0
  %1304 = vmatprep.subr.mxu0 0.0
  %1305 = vmatpush1.msra.mxu0 0.0
  %1306 = vmatprep.subr.mxu0 0.0
  %1307 = vmatpush1.msra.mxu0 0.0
  %1308 = vmatprep.subr.mxu0 0.0
  %1309 = vmatpush1.msra.mxu0 0.0
  %1310 = vmatprep.subr.mxu0 0.0
  %1311 = vmatpush1.msra.mxu0 0.0
  %1312 = vmatprep.subr.mxu0 0.0
  %1313 = vmatpush1.msra.mxu0 0.0
  %1314 = vmatprep.subr.mxu0 0.0
  %1315 = vmatpush1.msra.mxu0 0.0
  %1316 = vmatprep.subr.mxu0 0.0
  %1317 = vmatpush1.msra.mxu0 0.0
  %1318 = vmatprep.subr.mxu0 0.0
  %1319 = vmatpush1.msra.mxu0 0.0
  %1320 = vmatprep.subr.mxu0 0.0
  %1321 = vmatpush1.msra.mxu0 0.0
  %1322 = vmatprep.subr.mxu0 0.0
  %1323 = vmatpush1.msra.mxu0 0.0
  %1324 = vmatprep.subr.mxu0 0.0
  %1325 = vmatpush1.msra.mxu0 0.0
  %1326 = vmatprep.subr.mxu0 0.0
  %1327 = vmatpush1.msra.mxu0 0.0
  %1328 = vmatprep.mubr.f32.mxu0 0.0
  %1329 = vmatmul.mubr.f32.gmra.mrb[0].mxu0 %v1262
  %v1330 = vpop.f32.mrb[0].mxu0
  %v1331 = vadd.f32 0.0, %v1330
  %v1332 = vpop.f32.mrb[0].mxu0
  %v1333 = vadd.f32 0.0, %v1332
  %1334 = vdwg.mxu0
  %1335 = vmatprep.subr.mxu0 %v1258
  %1336 = vmatpush1.msra.mxu0 %v1257
  %1337 = vmatprep.subr.mxu0 0.0
  %1338 = vmatpush1.msra.mxu0 0.0
  %1339 = vmatprep.subr.mxu0 0.0
  %1340 = vmatpush1.msra.mxu0 0.0
  %1341 = vmatprep.subr.mxu0 0.0
  %1342 = vmatpush1.msra.mxu0 0.0
  %1343 = vmatprep.subr.mxu0 0.0
  %1344 = vmatpush1.msra.mxu0 0.0
  %1345 = vmatprep.subr.mxu0 0.0
  %1346 = vmatpush1.msra.mxu0 0.0
  %1347 = vmatprep.subr.mxu0 0.0
  %1348 = vmatpush1.msra.mxu0 0.0
  %1349 = vmatprep.subr.mxu0 0.0
  %1350 = vmatpush1.msra.mxu0 0.0
  %1351 = vmatprep.subr.mxu0 0.0
  %1352 = vmatpush1.msra.mxu0 0.0
  %1353 = vmatprep.subr.mxu0 0.0
  %1354 = vmatpush1.msra.mxu0 0.0
  %1355 = vmatprep.subr.mxu0 0.0
  %1356 = vmatpush1.msra.mxu0 0.0
  %1357 = vmatprep.subr.mxu0 0.0
  %1358 = vmatpush1.msra.mxu0 0.0
  %1359 = vmatprep.subr.mxu0 0.0
  %1360 = vmatpush1.msra.mxu0 0.0
  %1361 = vmatprep.subr.mxu0 0.0
  %1362 = vmatpush1.msra.mxu0 0.0
  %1363 = vmatprep.subr.mxu0 0.0
  %1364 = vmatpush1.msra.mxu0 0.0
  %1365 = vmatprep.subr.mxu0 0.0
  %1366 = vmatpush1.msra.mxu0 0.0
  %1367 = vmatprep.subr.mxu0 0.0
  %1368 = vmatpush1.msra.mxu0 0.0
  %1369 = vmatprep.subr.mxu0 0.0
  %1370 = vmatpush1.msra.mxu0 0.0
  %1371 = vmatprep.subr.mxu0 0.0
  %1372 = vmatpush1.msra.mxu0 0.0
  %1373 = vmatprep.subr.mxu0 0.0
  %1374 = vmatpush1.msra.mxu0 0.0
  %1375 = vmatprep.subr.mxu0 0.0
  %1376 = vmatpush1.msra.mxu0 0.0
  %1377 = vmatprep.subr.mxu0 0.0
  %1378 = vmatpush1.msra.mxu0 0.0
  %1379 = vmatprep.subr.mxu0 0.0
  %1380 = vmatpush1.msra.mxu0 0.0
  %1381 = vmatprep.subr.mxu0 0.0
  %1382 = vmatpush1.msra.mxu0 0.0
  %1383 = vmatprep.subr.mxu0 0.0
  %1384 = vmatpush1.msra.mxu0 0.0
  %1385 = vmatprep.subr.mxu0 0.0
  %1386 = vmatpush1.msra.mxu0 0.0
  %1387 = vmatprep.subr.mxu0 0.0
  %1388 = vmatpush1.msra.mxu0 0.0
  %1389 = vmatprep.subr.mxu0 0.0
  %1390 = vmatpush1.msra.mxu0 0.0
  %1391 = vmatprep.subr.mxu0 0.0
  %1392 = vmatpush1.msra.mxu0 0.0
  %1393 = vmatprep.subr.mxu0 0.0
  %1394 = vmatpush1.msra.mxu0 0.0
  %1395 = vmatprep.subr.mxu0 0.0
  %1396 = vmatpush1.msra.mxu0 0.0
  %1397 = vmatprep.subr.mxu0 0.0
  %1398 = vmatpush1.msra.mxu0 0.0
  %1399 = vmatprep.mubr.f32.mxu0 0.0
  %1400 = vmatmul.mubr.f32.gmra.mrb[0].mxu0 %v1262
  %v1401 = vpop.f32.mrb[0].mxu0
  %v1402 = vadd.f32 0.0, %v1401
  %v1403 = vpop.f32.mrb[0].mxu0
  %v1404 = vadd.f32 0.0, %v1403
  %1405 = vdwg.mxu0
  %v1406 = vadd.f32 %v1234, %v1331
  %v1407 = vadd.f32 %v1235, %v1333
  %v1408 = vadd.f32 %v1236, %v1402
  %v1409 = vadd.f32 %v1237, %v1404
  %1410 = vrot.lane.b32.xlu0 %v14, 111
  %v1411 = vpop.permute.xlu0 %1410
  %1412 = vrot.lane.b32.xlu0 %v15, 111
  %v1413 = vpop.permute.xlu0 %1412
  %1414 = vrot.lane.b32.xlu0 %v16, 111
  %v1415 = vpop.permute.xlu0 %1414
  %1416 = vrot.lane.b32.xlu0 %v17, 111
  %v1417 = vpop.permute.xlu0 %1416
  %vm1418 = vcmask 908288
  %v1419 = vsel %vm1418, %v1411, %v1413
  %v1420 = vsel %vm1418, %v1413, %v1415
  %v1421 = vsel %vm1418, %v1415, %v1417
  %v1426 = vsel %vm1418, %v1417, 0.0
  %vm1427 = vmand %vm1075, %vm400
  %vm1428 = vmand %vm1076, %vm401
  %vm1429 = vmand %vm1077, %vm402
  %vm1430 = vmand %vm1078, %vm403
  %v1431 = vsel %vm1427, %v1419, 0.0
  %v1432 = vsel %vm1428, %v1420, 0.0
  %v1433 = vsel %vm1429, %v1421, 0.0
  %v1434 = vsel %vm1430, %v1426, 0.0
  %s1435 = scalar_lea.vmem %s1, 32
  %v1436 = vld [vmem:[%s1435] sm:$0xf]
  %v1438 = vsel %vm92, %v1436, 0
  %1440 = vmatprep.subr.mxu0 %v1432
  %1441 = vmatpush1.msra.mxu0 %v1431
  %1442 = vmatprep.subr.mxu0 0.0
  %1443 = vmatpush1.msra.mxu0 0.0
  %1444 = vmatprep.subr.mxu0 0.0
  %1445 = vmatpush1.msra.mxu0 0.0
  %1446 = vmatprep.subr.mxu0 0.0
  %1447 = vmatpush1.msra.mxu0 0.0
  %1448 = vmatprep.subr.mxu0 0.0
  %1449 = vmatpush1.msra.mxu0 0.0
  %1450 = vmatprep.subr.mxu0 0.0
  %1451 = vmatpush1.msra.mxu0 0.0
  %1452 = vmatprep.subr.mxu0 0.0
  %1453 = vmatpush1.msra.mxu0 0.0
  %1454 = vmatprep.subr.mxu0 0.0
  %1455 = vmatpush1.msra.mxu0 0.0
  %1456 = vmatprep.subr.mxu0 0.0
  %1457 = vmatpush1.msra.mxu0 0.0
  %1458 = vmatprep.subr.mxu0 0.0
  %1459 = vmatpush1.msra.mxu0 0.0
  %1460 = vmatprep.subr.mxu0 0.0
  %1461 = vmatpush1.msra.mxu0 0.0
  %1462 = vmatprep.subr.mxu0 0.0
  %1463 = vmatpush1.msra.mxu0 0.0
  %1464 = vmatprep.subr.mxu0 0.0
  %1465 = vmatpush1.msra.mxu0 0.0
  %1466 = vmatprep.subr.mxu0 0.0
  %1467 = vmatpush1.msra.mxu0 0.0
  %1468 = vmatprep.subr.mxu0 0.0
  %1469 = vmatpush1.msra.mxu0 0.0
  %1470 = vmatprep.subr.mxu0 0.0
  %1471 = vmatpush1.msra.mxu0 0.0
  %1472 = vmatprep.subr.mxu0 0.0
  %1473 = vmatpush1.msra.mxu0 0.0
  %1474 = vmatprep.subr.mxu0 0.0
  %1475 = vmatpush1.msra.mxu0 0.0
  %1476 = vmatprep.subr.mxu0 0.0
  %1477 = vmatpush1.msra.mxu0 0.0
  %1478 = vmatprep.subr.mxu0 0.0
  %1479 = vmatpush1.msra.mxu0 0.0
  %1480 = vmatprep.subr.mxu0 0.0
  %1481 = vmatpush1.msra.mxu0 0.0
  %1482 = vmatprep.subr.mxu0 0.0
  %1483 = vmatpush1.msra.mxu0 0.0
  %1484 = vmatprep.subr.mxu0 0.0
  %1485 = vmatpush1.msra.mxu0 0.0
  %1486 = vmatprep.subr.mxu0 0.0
  %1487 = vmatpush1.msra.mxu0 0.0
  %1488 = vmatprep.subr.mxu0 0.0
  %1489 = vmatpush1.msra.mxu0 0.0
  %1490 = vmatprep.subr.mxu0 0.0
  %1491 = vmatpush1.msra.mxu0 0.0
  %1492 = vmatprep.subr.mxu0 0.0
  %1493 = vmatpush1.msra.mxu0 0.0
  %1494 = vmatprep.subr.mxu0 0.0
  %1495 = vmatpush1.msra.mxu0 0.0
  %1496 = vmatprep.subr.mxu0 0.0
  %1497 = vmatpush1.msra.mxu0 0.0
  %1498 = vmatprep.subr.mxu0 0.0
  %1499 = vmatpush1.msra.mxu0 0.0
  %1500 = vmatprep.subr.mxu0 0.0
  %1501 = vmatpush1.msra.mxu0 0.0
  %1502 = vmatprep.subr.mxu0 0.0
  %1503 = vmatpush1.msra.mxu0 0.0
  %1504 = vmatprep.mubr.f32.mxu0 0.0
  %1505 = vmatmul.mubr.f32.gmra.mrb[0].mxu0 %v1438
  %v1506 = vpop.f32.mrb[0].mxu0
  %v1507 = vadd.f32 0.0, %v1506
  %v1508 = vpop.f32.mrb[0].mxu0
  %v1509 = vadd.f32 0.0, %v1508
  %1510 = vdwg.mxu0
  %1511 = vmatprep.subr.mxu0 %v1434
  %1512 = vmatpush1.msra.mxu0 %v1433
  %1513 = vmatprep.subr.mxu0 0.0
  %1514 = vmatpush1.msra.mxu0 0.0
  %1515 = vmatprep.subr.mxu0 0.0
  %1516 = vmatpush1.msra.mxu0 0.0
  %1517 = vmatprep.subr.mxu0 0.0
  %1518 = vmatpush1.msra.mxu0 0.0
  %1519 = vmatprep.subr.mxu0 0.0
  %1520 = vmatpush1.msra.mxu0 0.0
  %1521 = vmatprep.subr.mxu0 0.0
  %1522 = vmatpush1.msra.mxu0 0.0
  %1523 = vmatprep.subr.mxu0 0.0
  %1524 = vmatpush1.msra.mxu0 0.0
  %1525 = vmatprep.subr.mxu0 0.0
  %1526 = vmatpush1.msra.mxu0 0.0
  %1527 = vmatprep.subr.mxu0 0.0
  %1528 = vmatpush1.msra.mxu0 0.0
  %1529 = vmatprep.subr.mxu0 0.0
  %1530 = vmatpush1.msra.mxu0 0.0
  %1531 = vmatprep.subr.mxu0 0.0
  %1532 = vmatpush1.msra.mxu0 0.0
  %1533 = vmatprep.subr.mxu0 0.0
  %1534 = vmatpush1.msra.mxu0 0.0
  %1535 = vmatprep.subr.mxu0 0.0
  %1536 = vmatpush1.msra.mxu0 0.0
  %1537 = vmatprep.subr.mxu0 0.0
  %1538 = vmatpush1.msra.mxu0 0.0
  %1539 = vmatprep.subr.mxu0 0.0
  %1540 = vmatpush1.msra.mxu0 0.0
  %1541 = vmatprep.subr.mxu0 0.0
  %1542 = vmatpush1.msra.mxu0 0.0
  %1543 = vmatprep.subr.mxu0 0.0
  %1544 = vmatpush1.msra.mxu0 0.0
  %1545 = vmatprep.subr.mxu0 0.0
  %1546 = vmatpush1.msra.mxu0 0.0
  %1547 = vmatprep.subr.mxu0 0.0
  %1548 = vmatpush1.msra.mxu0 0.0
  %1549 = vmatprep.subr.mxu0 0.0
  %1550 = vmatpush1.msra.mxu0 0.0
  %1551 = vmatprep.subr.mxu0 0.0
  %1552 = vmatpush1.msra.mxu0 0.0
  %1553 = vmatprep.subr.mxu0 0.0
  %1554 = vmatpush1.msra.mxu0 0.0
  %1555 = vmatprep.subr.mxu0 0.0
  %1556 = vmatpush1.msra.mxu0 0.0
  %1557 = vmatprep.subr.mxu0 0.0
  %1558 = vmatpush1.msra.mxu0 0.0
  %1559 = vmatprep.subr.mxu0 0.0
  %1560 = vmatpush1.msra.mxu0 0.0
  %1561 = vmatprep.subr.mxu0 0.0
  %1562 = vmatpush1.msra.mxu0 0.0
  %1563 = vmatprep.subr.mxu0 0.0
  %1564 = vmatpush1.msra.mxu0 0.0
  %1565 = vmatprep.subr.mxu0 0.0
  %1566 = vmatpush1.msra.mxu0 0.0
  %1567 = vmatprep.subr.mxu0 0.0
  %1568 = vmatpush1.msra.mxu0 0.0
  %1569 = vmatprep.subr.mxu0 0.0
  %1570 = vmatpush1.msra.mxu0 0.0
  %1571 = vmatprep.subr.mxu0 0.0
  %1572 = vmatpush1.msra.mxu0 0.0
  %1573 = vmatprep.subr.mxu0 0.0
  %1574 = vmatpush1.msra.mxu0 0.0
  %1575 = vmatprep.mubr.f32.mxu0 0.0
  %1576 = vmatmul.mubr.f32.gmra.mrb[0].mxu0 %v1438
  %v1577 = vpop.f32.mrb[0].mxu0
  %v1578 = vadd.f32 0.0, %v1577
  %v1579 = vpop.f32.mrb[0].mxu0
  %v1580 = vadd.f32 0.0, %v1579
  %1581 = vdwg.mxu0
  %v1582 = vadd.f32 %v1406, %v1507
  %v1583 = vadd.f32 %v1407, %v1509
  %v1584 = vadd.f32 %v1408, %v1578
  %v1585 = vadd.f32 %v1409, %v1580
  %v1586 = vld [vmem:[%s2] sm:$0xf]
  %1588 = vset.pattern.permute.xlu0 0
  %1589 = vperm.xlu0 %1588, %v1586
  %v1590 = vpop.permute.xlu0 %1589
  %v1592 = vadd.f32 %v1582, %v1590
  %v1593 = vadd.f32 %v1583, %v1590
  %v1594 = vadd.f32 %v1584, %v1590
  %v1595 = vadd.f32 %v1585, %v1590
  %v1600 = vcombine.low %v1592, %v1593
  %v1601 = vcombine.low %v1594, %v1595
  %1604 = vst [vmem:[%s3] sm:$0xff] %v1600
  %1605 = vst [vmem:[%s3 + $0x8] sm:$0xff] %v1601
  // Predicated region
  $region14: #{vae_forward.17} parent=0 // pred_check
    _
  $region15: #{vae_forward.17} parent=0 // pred_check_branch
    %1607 = sbr.rel (0) target = $region17
  $region16: #{vae_forward.17} parent=0 // pred_region
    _
  $region17: #{vae_forward.17} parent=0 // pred_fallthru
    _
  // Predicated region
  $region18: #{vae_forward.17} parent=0 // pred_check
    _
  $region19: #{vae_forward.17} parent=0 // pred_check_branch
    %1609 = sbr.rel (0) target = $region21
  $region20: #{vae_forward.17} parent=0 // pred_region
    _
  $region21: #{vae_forward.17} parent=0 // pred_fallthru
    _

</llo_original>
